<compile_context>
chip_gen: v7x
topology: tpu7x:2x2x1
jax: 0.10.0
libtpu: 0.0.40
codegen_flags: <defaults>
</compile_context>

<pallas_src>
import functools

import jax
import jax.numpy as jnp
from jax import lax
from jax.experimental import pallas as pl
from jax.experimental.pallas import tpu as pltpu


# --------------------------------------------------------------------------
# Fused ResGroup kernel: one image per grid step.
# --------------------------------------------------------------------------
def _res_group_kernel(H, W, C, Cr, n_rcab,
                      x_ref,
                      w1_ref, b1_ref, w2_ref, b2_ref,
                      caw1_ref, cab1_ref, caw2_ref, cab2_ref,
                      wf_ref, bf_ref,
                      o_ref,
                      pad_ref):
    def set_interior(val_hwc):
        # write the (H, W, C) activation into the zero-padded scratch interior
        pad_ref[1:H + 1, 1:W + 1, :] = val_hwc

    def conv3x3(w_bf16, b_f32):
        # im2col: 9 shifted taps concatenated along channels -> one MXU dot
        # with contraction depth 9*C (instead of 9 dots with K=C).
        taps = []
        for ky in range(3):
            for kx in range(3):
                taps.append(pad_ref[ky:ky + H, kx:kx + W, :]
                            .reshape(H * W, C))
        cols = jnp.concatenate(taps, axis=-1)                 # (H*W, 9C) f32
        acc = jnp.dot(cols.astype(jnp.bfloat16), w_bf16,      # bf16 MXU path
                      preferred_element_type=jnp.float32)     # f32 accumulate
        return acc + b_f32                                    # (H*W, C) f32

    # Zero the padded scratch once per grid step (only the interior is ever
    # overwritten afterwards, so the halo stays zero for every conv).
    pad_ref[...] = jnp.zeros_like(pad_ref)

    x0 = x_ref[0].astype(jnp.float32)                         # (H, W, C)
    res = x0

    for blk in range(n_rcab):                                 # static unroll
        w1 = w1_ref[blk]                                      # (9C, C) bf16
        b1 = b1_ref[blk].astype(jnp.float32)                  # (1, C)  f32
        w2 = w2_ref[blk]
        b2 = b2_ref[blk].astype(jnp.float32)

        # conv3x3 -> ReLU
        set_interior(res)
        h = jnp.maximum(conv3x3(w1, b1), 0.0)                 # (H*W, C)

        # conv3x3
        set_interior(h.reshape(H, W, C))
        r2 = conv3x3(w2, b2)                                  # (H*W, C)

        # channel attention (tiny, all f32: pool -> 1x1 -> ReLU -> 1x1 -> sigmoid)
        pooled = jnp.mean(r2, axis=0, keepdims=True)          # (1, C)
        hca = jnp.dot(pooled, caw1_ref[blk].astype(jnp.float32),
                      preferred_element_type=jnp.float32)
        hca = jnp.maximum(hca + cab1_ref[blk].astype(jnp.float32), 0.0)
        att = jnp.dot(hca, caw2_ref[blk].astype(jnp.float32),
                      preferred_element_type=jnp.float32)
        att = jax.nn.sigmoid(att + cab2_ref[blk].astype(jnp.float32))  # (1, C)

        # scale + block residual
        res = r2.reshape(H, W, C) * att.reshape(1, 1, C) + res

    # final conv of the group, fused with the group-level residual add
    set_interior(res)
    y = conv3x3(wf_ref[...], bf_ref[...].astype(jnp.float32))
    out = y.reshape(H, W, C) + x0
    o_ref[0] = out.astype(o_ref.dtype)


# --------------------------------------------------------------------------
# Wrapper: stack/flatten parameters once, launch the fused kernel.
# --------------------------------------------------------------------------
def _flatten_conv_weight(w):
    """(3,3,Cin,Cout) HWIO -> (9*Cin, Cout), matching the im2col tap order."""
    k0, k1, cin, cout = w.shape
    assert (k0, k1) == (3, 3)
    return w.reshape(9 * cin, cout).astype(jnp.bfloat16)


def res_group_forward(x, params):
    N, H, W, C = x.shape
    blocks = params["blocks"]
    n_rcab = len(blocks)
    Cr = blocks[0]["ca_w1"].shape[-1]
    assert params["wf"].shape == (3, 3, C, C)      # n_feats -> n_feats

    w1s = jnp.stack([_flatten_conv_weight(b["w1"]) for b in blocks])   # (R,9C,C) bf16
    w2s = jnp.stack([_flatten_conv_weight(b["w2"]) for b in blocks])
    b1s = jnp.stack([b["b1"].reshape(1, C) for b in blocks])           # (R,1,C) f32
    b2s = jnp.stack([b["b2"].reshape(1, C) for b in blocks])
    caw1s = jnp.stack([b["ca_w1"] for b in blocks])                    # (R,C,Cr)
    cab1s = jnp.stack([b["ca_b1"].reshape(1, Cr) for b in blocks])     # (R,1,Cr)
    caw2s = jnp.stack([b["ca_w2"] for b in blocks])                    # (R,Cr,C)
    cab2s = jnp.stack([b["ca_b2"].reshape(1, C) for b in blocks])      # (R,1,C)
    wf = _flatten_conv_weight(params["wf"])                            # (9C,C) bf16
    bf = params["bf"].reshape(1, C)

    kernel = functools.partial(_res_group_kernel, H, W, C, Cr, n_rcab)

    full3 = lambda n: (0, 0, 0)   # weights: resident in VMEM (fetched once)
    full2 = lambda n: (0, 0)

    return pl.pallas_call(
        kernel,
        out_shape=jax.ShapeDtypeStruct((N, H, W, C), x.dtype),
        grid=(N,),
        in_specs=[
            pl.BlockSpec((1, H, W, C), lambda n: (n, 0, 0, 0)),   # x
            pl.BlockSpec((n_rcab, 9 * C, C), full3),              # w1 (bf16)
            pl.BlockSpec((n_rcab, 1, C), full3),                  # b1
            pl.BlockSpec((n_rcab, 9 * C, C), full3),              # w2 (bf16)
            pl.BlockSpec((n_rcab, 1, C), full3),                  # b2
            pl.BlockSpec((n_rcab, C, Cr), full3),                 # ca_w1
            pl.BlockSpec((n_rcab, 1, Cr), full3),                 # ca_b1
            pl.BlockSpec((n_rcab, Cr, C), full3),                 # ca_w2
            pl.BlockSpec((n_rcab, 1, C), full3),                  # ca_b2
            pl.BlockSpec((9 * C, C), full2),                      # wf (bf16)
            pl.BlockSpec((1, C), full2),                          # bf
        ],
        out_specs=pl.BlockSpec((1, H, W, C), lambda n: (n, 0, 0, 0)),
        scratch_shapes=[pltpu.VMEM((H + 2, W + 2, C), jnp.float32)],
        compiler_params=pltpu.CompilerParams(
            dimension_semantics=("parallel",),
            vmem_limit_bytes=32 * 1024 * 1024),
    )(x, w1s, b1s, w2s, b2s, caw1s, cab1s, caw2s, cab2s, wf, bf)


# --------------------------------------------------------------------------
# Deterministic synthetic parameters (same shapes nn.Conv2d would create)
# --------------------------------------------------------------------------
def init_params(key, n_rcab, n_feats, reduction):
    cr = n_feats // reduction
    blocks = []
    for _ in range(n_rcab):
        key, *ks = jax.random.split(key, 9)
        blocks.append(dict(
            w1=0.05 * jax.random.normal(ks[0], (3, 3, n_feats, n_feats), jnp.float32),
            b1=0.01 * jax.random.normal(ks[1], (n_feats,), jnp.float32),
            w2=0.05 * jax.random.normal(ks[2], (3, 3, n_feats, n_feats), jnp.float32),
            b2=0.01 * jax.random.normal(ks[3], (n_feats,), jnp.float32),
            ca_w1=0.1 * jax.random.normal(ks[4], (n_feats, cr), jnp.float32),
            ca_b1=0.01 * jax.random.normal(ks[5], (cr,), jnp.float32),
            ca_w2=0.1 * jax.random.normal(ks[6], (cr, n_feats), jnp.float32),
            ca_b2=0.01 * jax.random.normal(ks[7], (n_feats,), jnp.float32),
        ))
    key, k1, k2 = jax.random.split(key, 3)
    return dict(
        blocks=blocks,
        wf=0.05 * jax.random.normal(k1, (3, 3, n_feats, n_feats), jnp.float32),
        bf=0.01 * jax.random.normal(k2, (n_feats,), jnp.float32),
    )


# --------------------------------------------------------------------------
# Pure-JAX reference.  Conv inputs/weights are cast to bf16 with f32
# accumulation, mirroring the kernel's MXU precision exactly; everything
# else (bias, ReLU, channel attention, residuals) stays in f32.
# --------------------------------------------------------------------------
def _conv3x3_ref(x, w, b):
    y = lax.conv_general_dilated(
        x.astype(jnp.bfloat16), w.astype(jnp.bfloat16),
        window_strides=(1, 1), padding="SAME",
        dimension_numbers=("NHWC", "HWIO", "NHWC"),
        preferred_element_type=jnp.float32)
    return y + b.reshape(1, 1, 1, -1)


def _res_group_ref(x, params):
    res = x
    for bp in params["blocks"]:
        h = jax.nn.relu(_conv3x3_ref(res, bp["w1"], bp["b1"]))
        h = _conv3x3_ref(h, bp["w2"], bp["b2"])
        s = jnp.mean(h, axis=(1, 2))                              # (N, C)
        s = jax.nn.relu(s @ bp["ca_w1"] + bp["ca_b1"])
        s = jax.nn.sigmoid(s @ bp["ca_w2"] + bp["ca_b2"])         # (N, C)
        res = h * s[:, None, None, :] + res
    return _conv3x3_ref(res, params["wf"], params["bf"]) + x


if __name__ == "__main__":
    # small, module-consistent shapes: N=2, n_feats=32, H=W=16,
    # reduction=8 (squeezed channels = 4), n_rcab=2
    N, H, W, C = 2, 16, 16, 32
    n_rcab, reduction = 2, 8

    key = jax.random.PRNGKey(0)
    key, kx = jax.random.split(key)
    x = jax.random.normal(kx, (N, H, W, C), jnp.float32)   # NHWC (== NCHW [2,32,16,16])

    params = init_params(key, n_rcab, C, reduction)

    fwd = jax.jit(res_group_forward)
    y = jax.block_until_ready(fwd(x, params))

    y_ref = _res_group_ref(x, params)
    assert y.shape == (N, H, W, C)
    assert jnp.allclose(y, y_ref, atol=2e-3, rtol=2e-3), \
        float(jnp.max(jnp.abs(y - y_ref)))

    print("KERNEL_OK")
</pallas_src>

<mosaic_0001>
module attributes {stable_mosaic.version = 11 : i64} {
  func.func @_res_group_kernel(%arg0: i32, %arg1: memref<1x16x16x32xf32, #tpu.memory_space<vmem>>, %arg2: memref<2x288x32xbf16, #tpu.memory_space<vmem>>, %arg3: memref<2x1x32xf32, #tpu.memory_space<vmem>>, %arg4: memref<2x288x32xbf16, #tpu.memory_space<vmem>>, %arg5: memref<2x1x32xf32, #tpu.memory_space<vmem>>, %arg6: memref<2x32x4xf32, #tpu.memory_space<vmem>>, %arg7: memref<2x1x4xf32, #tpu.memory_space<vmem>>, %arg8: memref<2x4x32xf32, #tpu.memory_space<vmem>>, %arg9: memref<2x1x32xf32, #tpu.memory_space<vmem>>, %arg10: memref<288x32xbf16, #tpu.memory_space<vmem>>, %arg11: memref<1x32xf32, #tpu.memory_space<vmem>>, %arg12: memref<1x16x16x32xf32, #tpu.memory_space<vmem>>, %arg13: memref<18x18x32xf32, #tpu.memory_space<vmem>>) attributes {dimension_semantics = [#tpu.dimension_semantics<parallel>], iteration_bounds = array<i64: 2>, scalar_prefetch = 0 : i64, scratch_operands = 1 : i64, tpu.core_type = #tpu.core_type<tc>, window_params = [{transform_indices = @transform_0, window_bounds = array<i64: 1, 16, 16, 32>}, {pipeline_mode = #tpu.pipeline_mode<synchronous>, transform_indices = @transform_1, window_bounds = array<i64: 2, 288, 32>}, {pipeline_mode = #tpu.pipeline_mode<synchronous>, transform_indices = @transform_2, window_bounds = array<i64: 2, 1, 32>}, {pipeline_mode = #tpu.pipeline_mode<synchronous>, transform_indices = @transform_3, window_bounds = array<i64: 2, 288, 32>}, {pipeline_mode = #tpu.pipeline_mode<synchronous>, transform_indices = @transform_4, window_bounds = array<i64: 2, 1, 32>}, {pipeline_mode = #tpu.pipeline_mode<synchronous>, transform_indices = @transform_5, window_bounds = array<i64: 2, 32, 4>}, {pipeline_mode = #tpu.pipeline_mode<synchronous>, transform_indices = @transform_6, window_bounds = array<i64: 2, 1, 4>}, {pipeline_mode = #tpu.pipeline_mode<synchronous>, transform_indices = @transform_7, window_bounds = array<i64: 2, 4, 32>}, {pipeline_mode = #tpu.pipeline_mode<synchronous>, transform_indices = @transform_8, window_bounds = array<i64: 2, 1, 32>}, {pipeline_mode = #tpu.pipeline_mode<synchronous>, transform_indices = @transform_9, window_bounds = array<i64: 288, 32>}, {pipeline_mode = #tpu.pipeline_mode<synchronous>, transform_indices = @transform_10, window_bounds = array<i64: 1, 32>}, {transform_indices = @transform_11, window_bounds = array<i64: 1, 16, 16, 32>}]} {
    %cst = arith.constant 0.000000e+00 : f32
    %0 = vector.broadcast %cst : f32 to vector<18x18x32xf32>
    %c0 = arith.constant 0 : index
    %c0_0 = arith.constant 0 : index
    %c0_1 = arith.constant 0 : index
    %1 = vector.load %arg13[%c0, %c0_0, %c0_1] : memref<18x18x32xf32, #tpu.memory_space<vmem>>, vector<18x18x32xf32>
    tpu.vector_store %arg13[%c0, %c0_0, %c0_1], %0 {strides = array<i32>} : memref<18x18x32xf32, #tpu.memory_space<vmem>>, vector<18x18x32xf32>,
    %c0_2 = arith.constant 0 : index
    %c0_3 = arith.constant 0 : index
    %c0_4 = arith.constant 0 : index
    %c0_5 = arith.constant 0 : index
    %2 = vector.load %arg1[%c0_2, %c0_3, %c0_4, %c0_5] : memref<1x16x16x32xf32, #tpu.memory_space<vmem>>, vector<1x16x16x32xf32>
    %3 = vector.shape_cast %2 : vector<1x16x16x32xf32> to vector<16x16x32xf32>
    %c0_6 = arith.constant 0 : index
    %c0_7 = arith.constant 0 : index
    %c0_8 = arith.constant 0 : index
    %4 = vector.load %arg2[%c0_6, %c0_7, %c0_8] : memref<2x288x32xbf16, #tpu.memory_space<vmem>>, vector<1x288x32xbf16>
    %5 = vector.shape_cast %4 : vector<1x288x32xbf16> to vector<288x32xbf16>
    %c0_9 = arith.constant 0 : index
    %c0_10 = arith.constant 0 : index
    %c0_11 = arith.constant 0 : index
    %6 = vector.load %arg3[%c0_9, %c0_10, %c0_11] : memref<2x1x32xf32, #tpu.memory_space<vmem>>, vector<1x1x32xf32>
    %7 = vector.shape_cast %6 : vector<1x1x32xf32> to vector<1x32xf32>
    %c0_12 = arith.constant 0 : index
    %c0_13 = arith.constant 0 : index
    %c0_14 = arith.constant 0 : index
    %8 = vector.load %arg4[%c0_12, %c0_13, %c0_14] : memref<2x288x32xbf16, #tpu.memory_space<vmem>>, vector<1x288x32xbf16>
    %9 = vector.shape_cast %8 : vector<1x288x32xbf16> to vector<288x32xbf16>
    %c0_15 = arith.constant 0 : index
    %c0_16 = arith.constant 0 : index
    %c0_17 = arith.constant 0 : index
    %10 = vector.load %arg5[%c0_15, %c0_16, %c0_17] : memref<2x1x32xf32, #tpu.memory_space<vmem>>, vector<1x1x32xf32>
    %11 = vector.shape_cast %10 : vector<1x1x32xf32> to vector<1x32xf32>
    %c1 = arith.constant 1 : index
    %c1_18 = arith.constant 1 : index
    %c0_19 = arith.constant 0 : index
    %12 = vector.load %arg13[%c1, %c1_18, %c0_19] : memref<18x18x32xf32, #tpu.memory_space<vmem>>, vector<16x16x32xf32>
    tpu.vector_store %arg13[%c1, %c1_18, %c0_19], %3 {strides = array<i32>} : memref<18x18x32xf32, #tpu.memory_space<vmem>>, vector<16x16x32xf32>,
    %c0_20 = arith.constant 0 : index
    %c0_21 = arith.constant 0 : index
    %c0_22 = arith.constant 0 : index
    %13 = vector.load %arg13[%c0_20, %c0_21, %c0_22] : memref<18x18x32xf32, #tpu.memory_space<vmem>>, vector<16x16x32xf32>
    %14 = vector.shape_cast %13 : vector<16x16x32xf32> to vector<256x32xf32>
    %c0_23 = arith.constant 0 : index
    %c1_24 = arith.constant 1 : index
    %c0_25 = arith.constant 0 : index
    %15 = vector.load %arg13[%c0_23, %c1_24, %c0_25] : memref<18x18x32xf32, #tpu.memory_space<vmem>>, vector<16x16x32xf32>
    %16 = vector.shape_cast %15 : vector<16x16x32xf32> to vector<256x32xf32>
    %c0_26 = arith.constant 0 : index
    %c2 = arith.constant 2 : index
    %c0_27 = arith.constant 0 : index
    %17 = vector.load %arg13[%c0_26, %c2, %c0_27] : memref<18x18x32xf32, #tpu.memory_space<vmem>>, vector<16x16x32xf32>
    %18 = vector.shape_cast %17 : vector<16x16x32xf32> to vector<256x32xf32>
    %c1_28 = arith.constant 1 : index
    %c0_29 = arith.constant 0 : index
    %c0_30 = arith.constant 0 : index
    %19 = vector.load %arg13[%c1_28, %c0_29, %c0_30] : memref<18x18x32xf32, #tpu.memory_space<vmem>>, vector<16x16x32xf32>
    %20 = vector.shape_cast %19 : vector<16x16x32xf32> to vector<256x32xf32>
    %c1_31 = arith.constant 1 : index
    %c1_32 = arith.constant 1 : index
    %c0_33 = arith.constant 0 : index
    %21 = vector.load %arg13[%c1_31, %c1_32, %c0_33] : memref<18x18x32xf32, #tpu.memory_space<vmem>>, vector<16x16x32xf32>
    %22 = vector.shape_cast %21 : vector<16x16x32xf32> to vector<256x32xf32>
    %c1_34 = arith.constant 1 : index
    %c2_35 = arith.constant 2 : index
    %c0_36 = arith.constant 0 : index
    %23 = vector.load %arg13[%c1_34, %c2_35, %c0_36] : memref<18x18x32xf32, #tpu.memory_space<vmem>>, vector<16x16x32xf32>
    %24 = vector.shape_cast %23 : vector<16x16x32xf32> to vector<256x32xf32>
    %c2_37 = arith.constant 2 : index
    %c0_38 = arith.constant 0 : index
    %c0_39 = arith.constant 0 : index
    %25 = vector.load %arg13[%c2_37, %c0_38, %c0_39] : memref<18x18x32xf32, #tpu.memory_space<vmem>>, vector<16x16x32xf32>
    %26 = vector.shape_cast %25 : vector<16x16x32xf32> to vector<256x32xf32>
    %c2_40 = arith.constant 2 : index
    %c1_41 = arith.constant 1 : index
    %c0_42 = arith.constant 0 : index
    %27 = vector.load %arg13[%c2_40, %c1_41, %c0_42] : memref<18x18x32xf32, #tpu.memory_space<vmem>>, vector<16x16x32xf32>
    %28 = vector.shape_cast %27 : vector<16x16x32xf32> to vector<256x32xf32>
    %c2_43 = arith.constant 2 : index
    %c2_44 = arith.constant 2 : index
    %c0_45 = arith.constant 0 : index
    %29 = vector.load %arg13[%c2_43, %c2_44, %c0_45] : memref<18x18x32xf32, #tpu.memory_space<vmem>>, vector<16x16x32xf32>
    %30 = vector.shape_cast %29 : vector<16x16x32xf32> to vector<256x32xf32>
    %31 = tpu.concatenate %14, %16, %18, %20, %22, %24, %26, %28, %30 in 1 : vector<256x32xf32>, vector<256x32xf32>, vector<256x32xf32>, vector<256x32xf32>, vector<256x32xf32>, vector<256x32xf32>, vector<256x32xf32>, vector<256x32xf32>, vector<256x32xf32> -> vector<256x288xf32>
    %32 = arith.truncf %31 : vector<256x288xf32> to vector<256x288xbf16>
    %cst_46 = arith.constant dense<0.000000e+00> : vector<256x32xf32>
    %33 = tpu.matmul %32, %5, %cst_46 {dimension_numbers = #tpu.dot_dimension_numbers<[1], [0], [0], [1], [0, 0, 1, 1], [], []>} : vector<256x288xbf16>, vector<288x32xbf16>, vector<256x32xf32> -> vector<256x32xf32>
    %34 = vector.broadcast %7 : vector<1x32xf32> to vector<256x32xf32>
    %35 = arith.addf %33, %34 : vector<256x32xf32>
    %cst_47 = arith.constant 0.000000e+00 : f32
    %36 = vector.broadcast %cst_47 : f32 to vector<256x32xf32>
    %37 = arith.maximumf %35, %36 : vector<256x32xf32>
    %38 = vector.shape_cast %37 : vector<256x32xf32> to vector<16x16x32xf32>
    %c1_48 = arith.constant 1 : index
    %c1_49 = arith.constant 1 : index
    %c0_50 = arith.constant 0 : index
    %39 = vector.load %arg13[%c1_48, %c1_49, %c0_50] : memref<18x18x32xf32, #tpu.memory_space<vmem>>, vector<16x16x32xf32>
    tpu.vector_store %arg13[%c1_48, %c1_49, %c0_50], %38 {strides = array<i32>} : memref<18x18x32xf32, #tpu.memory_space<vmem>>, vector<16x16x32xf32>,
    %c0_51 = arith.constant 0 : index
    %c0_52 = arith.constant 0 : index
    %c0_53 = arith.constant 0 : index
    %40 = vector.load %arg13[%c0_51, %c0_52, %c0_53] : memref<18x18x32xf32, #tpu.memory_space<vmem>>, vector<16x16x32xf32>
    %41 = vector.shape_cast %40 : vector<16x16x32xf32> to vector<256x32xf32>
    %c0_54 = arith.constant 0 : index
    %c1_55 = arith.constant 1 : index
    %c0_56 = arith.constant 0 : index
    %42 = vector.load %arg13[%c0_54, %c1_55, %c0_56] : memref<18x18x32xf32, #tpu.memory_space<vmem>>, vector<16x16x32xf32>
    %43 = vector.shape_cast %42 : vector<16x16x32xf32> to vector<256x32xf32>
    %c0_57 = arith.constant 0 : index
    %c2_58 = arith.constant 2 : index
    %c0_59 = arith.constant 0 : index
    %44 = vector.load %arg13[%c0_57, %c2_58, %c0_59] : memref<18x18x32xf32, #tpu.memory_space<vmem>>, vector<16x16x32xf32>
    %45 = vector.shape_cast %44 : vector<16x16x32xf32> to vector<256x32xf32>
    %c1_60 = arith.constant 1 : index
    %c0_61 = arith.constant 0 : index
    %c0_62 = arith.constant 0 : index
    %46 = vector.load %arg13[%c1_60, %c0_61, %c0_62] : memref<18x18x32xf32, #tpu.memory_space<vmem>>, vector<16x16x32xf32>
    %47 = vector.shape_cast %46 : vector<16x16x32xf32> to vector<256x32xf32>
    %c1_63 = arith.constant 1 : index
    %c1_64 = arith.constant 1 : index
    %c0_65 = arith.constant 0 : index
    %48 = vector.load %arg13[%c1_63, %c1_64, %c0_65] : memref<18x18x32xf32, #tpu.memory_space<vmem>>, vector<16x16x32xf32>
    %49 = vector.shape_cast %48 : vector<16x16x32xf32> to vector<256x32xf32>
    %c1_66 = arith.constant 1 : index
    %c2_67 = arith.constant 2 : index
    %c0_68 = arith.constant 0 : index
    %50 = vector.load %arg13[%c1_66, %c2_67, %c0_68] : memref<18x18x32xf32, #tpu.memory_space<vmem>>, vector<16x16x32xf32>
    %51 = vector.shape_cast %50 : vector<16x16x32xf32> to vector<256x32xf32>
    %c2_69 = arith.constant 2 : index
    %c0_70 = arith.constant 0 : index
    %c0_71 = arith.constant 0 : index
    %52 = vector.load %arg13[%c2_69, %c0_70, %c0_71] : memref<18x18x32xf32, #tpu.memory_space<vmem>>, vector<16x16x32xf32>
    %53 = vector.shape_cast %52 : vector<16x16x32xf32> to vector<256x32xf32>
    %c2_72 = arith.constant 2 : index
    %c1_73 = arith.constant 1 : index
    %c0_74 = arith.constant 0 : index
    %54 = vector.load %arg13[%c2_72, %c1_73, %c0_74] : memref<18x18x32xf32, #tpu.memory_space<vmem>>, vector<16x16x32xf32>
    %55 = vector.shape_cast %54 : vector<16x16x32xf32> to vector<256x32xf32>
    %c2_75 = arith.constant 2 : index
    %c2_76 = arith.constant 2 : index
    %c0_77 = arith.constant 0 : index
    %56 = vector.load %arg13[%c2_75, %c2_76, %c0_77] : memref<18x18x32xf32, #tpu.memory_space<vmem>>, vector<16x16x32xf32>
    %57 = vector.shape_cast %56 : vector<16x16x32xf32> to vector<256x32xf32>
    %58 = tpu.concatenate %41, %43, %45, %47, %49, %51, %53, %55, %57 in 1 : vector<256x32xf32>, vector<256x32xf32>, vector<256x32xf32>, vector<256x32xf32>, vector<256x32xf32>, vector<256x32xf32>, vector<256x32xf32>, vector<256x32xf32>, vector<256x32xf32> -> vector<256x288xf32>
    %59 = arith.truncf %58 : vector<256x288xf32> to vector<256x288xbf16>
    %cst_78 = arith.constant dense<0.000000e+00> : vector<256x32xf32>
    %60 = tpu.matmul %59, %9, %cst_78 {dimension_numbers = #tpu.dot_dimension_numbers<[1], [0], [0], [1], [0, 0, 1, 1], [], []>} : vector<256x288xbf16>, vector<288x32xbf16>, vector<256x32xf32> -> vector<256x32xf32>
    %61 = vector.broadcast %11 : vector<1x32xf32> to vector<256x32xf32>
    %62 = arith.addf %60, %61 : vector<256x32xf32>
    %cst_79 = arith.constant dense<0.000000e+00> : vector<32xf32>
    %63 = vector.multi_reduction <add>, %62, %cst_79 [0] : vector<256x32xf32> to vector<32xf32>
    %64 = vector.shape_cast %63 : vector<32xf32> to vector<1x32xf32>
    %cst_80 = arith.constant 2.560000e+02 : f32
    %65 = vector.broadcast %cst_80 : f32 to vector<1x32xf32>
    %66 = arith.divf %64, %65 : vector<1x32xf32>
    %c0_81 = arith.constant 0 : index
    %c0_82 = arith.constant 0 : index
    %c0_83 = arith.constant 0 : index
    %67 = vector.load %arg6[%c0_81, %c0_82, %c0_83] : memref<2x32x4xf32, #tpu.memory_space<vmem>>, vector<1x32x4xf32>
    %68 = vector.shape_cast %67 : vector<1x32x4xf32> to vector<32x4xf32>
    %cst_84 = arith.constant dense<0.000000e+00> : vector<1x4xf32>
    %69 = tpu.matmul %66, %68, %cst_84 {dimension_numbers = #tpu.dot_dimension_numbers<[1], [0], [0], [1], [0, 0, 1, 1], [], []>} : vector<1x32xf32>, vector<32x4xf32>, vector<1x4xf32> -> vector<1x4xf32>
    %c0_85 = arith.constant 0 : index
    %c0_86 = arith.constant 0 : index
    %c0_87 = arith.constant 0 : index
    %70 = vector.load %arg7[%c0_85, %c0_86, %c0_87] : memref<2x1x4xf32, #tpu.memory_space<vmem>>, vector<1x1x4xf32>
    %71 = vector.shape_cast %70 : vector<1x1x4xf32> to vector<1x4xf32>
    %72 = arith.addf %69, %71 : vector<1x4xf32>
    %cst_88 = arith.constant 0.000000e+00 : f32
    %73 = vector.broadcast %cst_88 : f32 to vector<1x4xf32>
    %74 = arith.maximumf %72, %73 : vector<1x4xf32>
    %c0_89 = arith.constant 0 : index
    %c0_90 = arith.constant 0 : index
    %c0_91 = arith.constant 0 : index
    %75 = vector.load %arg8[%c0_89, %c0_90, %c0_91] : memref<2x4x32xf32, #tpu.memory_space<vmem>>, vector<1x4x32xf32>
    %76 = vector.shape_cast %75 : vector<1x4x32xf32> to vector<4x32xf32>
    %cst_92 = arith.constant dense<0.000000e+00> : vector<1x32xf32>
    %77 = tpu.matmul %74, %76, %cst_92 {dimension_numbers = #tpu.dot_dimension_numbers<[1], [0], [0], [1], [0, 0, 1, 1], [], []>} : vector<1x4xf32>, vector<4x32xf32>, vector<1x32xf32> -> vector<1x32xf32>
    %c0_93 = arith.constant 0 : index
    %c0_94 = arith.constant 0 : index
    %c0_95 = arith.constant 0 : index
    %78 = vector.load %arg9[%c0_93, %c0_94, %c0_95] : memref<2x1x32xf32, #tpu.memory_space<vmem>>, vector<1x1x32xf32>
    %79 = vector.shape_cast %78 : vector<1x1x32xf32> to vector<1x32xf32>
    %80 = arith.addf %77, %79 : vector<1x32xf32>
    %81 = arith.negf %80 : vector<1x32xf32>
    %82 = math.exp %81 : vector<1x32xf32>
    %cst_96 = arith.constant 1.000000e+00 : f32
    %83 = vector.broadcast %cst_96 : f32 to vector<1x32xf32>
    %84 = arith.addf %83, %82 : vector<1x32xf32>
    %85 = arith.divf %83, %84 : vector<1x32xf32>
    %86 = vector.shape_cast %62 : vector<256x32xf32> to vector<16x16x32xf32>
    %87 = vector.shape_cast %85 : vector<1x32xf32> to vector<1x1x32xf32>
    %88 = vector.broadcast %87 : vector<1x1x32xf32> to vector<16x16x32xf32>
    %89 = arith.mulf %86, %88 : vector<16x16x32xf32>
    %90 = arith.addf %89, %3 : vector<16x16x32xf32>
    %c1_97 = arith.constant 1 : index
    %c0_98 = arith.constant 0 : index
    %c0_99 = arith.constant 0 : index
    %91 = vector.load %arg2[%c1_97, %c0_98, %c0_99] : memref<2x288x32xbf16, #tpu.memory_space<vmem>>, vector<1x288x32xbf16>
    %92 = vector.shape_cast %91 : vector<1x288x32xbf16> to vector<288x32xbf16>
    %c1_100 = arith.constant 1 : index
    %c0_101 = arith.constant 0 : index
    %c0_102 = arith.constant 0 : index
    %93 = vector.load %arg3[%c1_100, %c0_101, %c0_102] : memref<2x1x32xf32, #tpu.memory_space<vmem>>, vector<1x1x32xf32>
    %94 = vector.shape_cast %93 : vector<1x1x32xf32> to vector<1x32xf32>
    %c1_103 = arith.constant 1 : index
    %c0_104 = arith.constant 0 : index
    %c0_105 = arith.constant 0 : index
    %95 = vector.load %arg4[%c1_103, %c0_104, %c0_105] : memref<2x288x32xbf16, #tpu.memory_space<vmem>>, vector<1x288x32xbf16>
    %96 = vector.shape_cast %95 : vector<1x288x32xbf16> to vector<288x32xbf16>
    %c1_106 = arith.constant 1 : index
    %c0_107 = arith.constant 0 : index
    %c0_108 = arith.constant 0 : index
    %97 = vector.load %arg5[%c1_106, %c0_107, %c0_108] : memref<2x1x32xf32, #tpu.memory_space<vmem>>, vector<1x1x32xf32>
    %98 = vector.shape_cast %97 : vector<1x1x32xf32> to vector<1x32xf32>
    %c1_109 = arith.constant 1 : index
    %c1_110 = arith.constant 1 : index
    %c0_111 = arith.constant 0 : index
    %99 = vector.load %arg13[%c1_109, %c1_110, %c0_111] : memref<18x18x32xf32, #tpu.memory_space<vmem>>, vector<16x16x32xf32>
    tpu.vector_store %arg13[%c1_109, %c1_110, %c0_111], %90 {strides = array<i32>} : memref<18x18x32xf32, #tpu.memory_space<vmem>>, vector<16x16x32xf32>,
    %c0_112 = arith.constant 0 : index
    %c0_113 = arith.constant 0 : index
    %c0_114 = arith.constant 0 : index
    %100 = vector.load %arg13[%c0_112, %c0_113, %c0_114] : memref<18x18x32xf32, #tpu.memory_space<vmem>>, vector<16x16x32xf32>
    %101 = vector.shape_cast %100 : vector<16x16x32xf32> to vector<256x32xf32>
    %c0_115 = arith.constant 0 : index
    %c1_116 = arith.constant 1 : index
    %c0_117 = arith.constant 0 : index
    %102 = vector.load %arg13[%c0_115, %c1_116, %c0_117] : memref<18x18x32xf32, #tpu.memory_space<vmem>>, vector<16x16x32xf32>
    %103 = vector.shape_cast %102 : vector<16x16x32xf32> to vector<256x32xf32>
    %c0_118 = arith.constant 0 : index
    %c2_119 = arith.constant 2 : index
    %c0_120 = arith.constant 0 : index
    %104 = vector.load %arg13[%c0_118, %c2_119, %c0_120] : memref<18x18x32xf32, #tpu.memory_space<vmem>>, vector<16x16x32xf32>
    %105 = vector.shape_cast %104 : vector<16x16x32xf32> to vector<256x32xf32>
    %c1_121 = arith.constant 1 : index
    %c0_122 = arith.constant 0 : index
    %c0_123 = arith.constant 0 : index
    %106 = vector.load %arg13[%c1_121, %c0_122, %c0_123] : memref<18x18x32xf32, #tpu.memory_space<vmem>>, vector<16x16x32xf32>
    %107 = vector.shape_cast %106 : vector<16x16x32xf32> to vector<256x32xf32>
    %c1_124 = arith.constant 1 : index
    %c1_125 = arith.constant 1 : index
    %c0_126 = arith.constant 0 : index
    %108 = vector.load %arg13[%c1_124, %c1_125, %c0_126] : memref<18x18x32xf32, #tpu.memory_space<vmem>>, vector<16x16x32xf32>
    %109 = vector.shape_cast %108 : vector<16x16x32xf32> to vector<256x32xf32>
    %c1_127 = arith.constant 1 : index
    %c2_128 = arith.constant 2 : index
    %c0_129 = arith.constant 0 : index
    %110 = vector.load %arg13[%c1_127, %c2_128, %c0_129] : memref<18x18x32xf32, #tpu.memory_space<vmem>>, vector<16x16x32xf32>
    %111 = vector.shape_cast %110 : vector<16x16x32xf32> to vector<256x32xf32>
    %c2_130 = arith.constant 2 : index
    %c0_131 = arith.constant 0 : index
    %c0_132 = arith.constant 0 : index
    %112 = vector.load %arg13[%c2_130, %c0_131, %c0_132] : memref<18x18x32xf32, #tpu.memory_space<vmem>>, vector<16x16x32xf32>
    %113 = vector.shape_cast %112 : vector<16x16x32xf32> to vector<256x32xf32>
    %c2_133 = arith.constant 2 : index
    %c1_134 = arith.constant 1 : index
    %c0_135 = arith.constant 0 : index
    %114 = vector.load %arg13[%c2_133, %c1_134, %c0_135] : memref<18x18x32xf32, #tpu.memory_space<vmem>>, vector<16x16x32xf32>
    %115 = vector.shape_cast %114 : vector<16x16x32xf32> to vector<256x32xf32>
    %c2_136 = arith.constant 2 : index
    %c2_137 = arith.constant 2 : index
    %c0_138 = arith.constant 0 : index
    %116 = vector.load %arg13[%c2_136, %c2_137, %c0_138] : memref<18x18x32xf32, #tpu.memory_space<vmem>>, vector<16x16x32xf32>
    %117 = vector.shape_cast %116 : vector<16x16x32xf32> to vector<256x32xf32>
    %118 = tpu.concatenate %101, %103, %105, %107, %109, %111, %113, %115, %117 in 1 : vector<256x32xf32>, vector<256x32xf32>, vector<256x32xf32>, vector<256x32xf32>, vector<256x32xf32>, vector<256x32xf32>, vector<256x32xf32>, vector<256x32xf32>, vector<256x32xf32> -> vector<256x288xf32>
    %119 = arith.truncf %118 : vector<256x288xf32> to vector<256x288xbf16>
    %cst_139 = arith.constant dense<0.000000e+00> : vector<256x32xf32>
    %120 = tpu.matmul %119, %92, %cst_139 {dimension_numbers = #tpu.dot_dimension_numbers<[1], [0], [0], [1], [0, 0, 1, 1], [], []>} : vector<256x288xbf16>, vector<288x32xbf16>, vector<256x32xf32> -> vector<256x32xf32>
    %121 = vector.broadcast %94 : vector<1x32xf32> to vector<256x32xf32>
    %122 = arith.addf %120, %121 : vector<256x32xf32>
    %cst_140 = arith.constant 0.000000e+00 : f32
    %123 = vector.broadcast %cst_140 : f32 to vector<256x32xf32>
    %124 = arith.maximumf %122, %123 : vector<256x32xf32>
    %125 = vector.shape_cast %124 : vector<256x32xf32> to vector<16x16x32xf32>
    %c1_141 = arith.constant 1 : index
    %c1_142 = arith.constant 1 : index
    %c0_143 = arith.constant 0 : index
    %126 = vector.load %arg13[%c1_141, %c1_142, %c0_143] : memref<18x18x32xf32, #tpu.memory_space<vmem>>, vector<16x16x32xf32>
    tpu.vector_store %arg13[%c1_141, %c1_142, %c0_143], %125 {strides = array<i32>} : memref<18x18x32xf32, #tpu.memory_space<vmem>>, vector<16x16x32xf32>,
    %c0_144 = arith.constant 0 : index
    %c0_145 = arith.constant 0 : index
    %c0_146 = arith.constant 0 : index
    %127 = vector.load %arg13[%c0_144, %c0_145, %c0_146] : memref<18x18x32xf32, #tpu.memory_space<vmem>>, vector<16x16x32xf32>
    %128 = vector.shape_cast %127 : vector<16x16x32xf32> to vector<256x32xf32>
    %c0_147 = arith.constant 0 : index
    %c1_148 = arith.constant 1 : index
    %c0_149 = arith.constant 0 : index
    %129 = vector.load %arg13[%c0_147, %c1_148, %c0_149] : memref<18x18x32xf32, #tpu.memory_space<vmem>>, vector<16x16x32xf32>
    %130 = vector.shape_cast %129 : vector<16x16x32xf32> to vector<256x32xf32>
    %c0_150 = arith.constant 0 : index
    %c2_151 = arith.constant 2 : index
    %c0_152 = arith.constant 0 : index
    %131 = vector.load %arg13[%c0_150, %c2_151, %c0_152] : memref<18x18x32xf32, #tpu.memory_space<vmem>>, vector<16x16x32xf32>
    %132 = vector.shape_cast %131 : vector<16x16x32xf32> to vector<256x32xf32>
    %c1_153 = arith.constant 1 : index
    %c0_154 = arith.constant 0 : index
    %c0_155 = arith.constant 0 : index
    %133 = vector.load %arg13[%c1_153, %c0_154, %c0_155] : memref<18x18x32xf32, #tpu.memory_space<vmem>>, vector<16x16x32xf32>
    %134 = vector.shape_cast %133 : vector<16x16x32xf32> to vector<256x32xf32>
    %c1_156 = arith.constant 1 : index
    %c1_157 = arith.constant 1 : index
    %c0_158 = arith.constant 0 : index
    %135 = vector.load %arg13[%c1_156, %c1_157, %c0_158] : memref<18x18x32xf32, #tpu.memory_space<vmem>>, vector<16x16x32xf32>
    %136 = vector.shape_cast %135 : vector<16x16x32xf32> to vector<256x32xf32>
    %c1_159 = arith.constant 1 : index
    %c2_160 = arith.constant 2 : index
    %c0_161 = arith.constant 0 : index
    %137 = vector.load %arg13[%c1_159, %c2_160, %c0_161] : memref<18x18x32xf32, #tpu.memory_space<vmem>>, vector<16x16x32xf32>
    %138 = vector.shape_cast %137 : vector<16x16x32xf32> to vector<256x32xf32>
    %c2_162 = arith.constant 2 : index
    %c0_163 = arith.constant 0 : index
    %c0_164 = arith.constant 0 : index
    %139 = vector.load %arg13[%c2_162, %c0_163, %c0_164] : memref<18x18x32xf32, #tpu.memory_space<vmem>>, vector<16x16x32xf32>
    %140 = vector.shape_cast %139 : vector<16x16x32xf32> to vector<256x32xf32>
    %c2_165 = arith.constant 2 : index
    %c1_166 = arith.constant 1 : index
    %c0_167 = arith.constant 0 : index
    %141 = vector.load %arg13[%c2_165, %c1_166, %c0_167] : memref<18x18x32xf32, #tpu.memory_space<vmem>>, vector<16x16x32xf32>
    %142 = vector.shape_cast %141 : vector<16x16x32xf32> to vector<256x32xf32>
    %c2_168 = arith.constant 2 : index
    %c2_169 = arith.constant 2 : index
    %c0_170 = arith.constant 0 : index
    %143 = vector.load %arg13[%c2_168, %c2_169, %c0_170] : memref<18x18x32xf32, #tpu.memory_space<vmem>>, vector<16x16x32xf32>
    %144 = vector.shape_cast %143 : vector<16x16x32xf32> to vector<256x32xf32>
    %145 = tpu.concatenate %128, %130, %132, %134, %136, %138, %140, %142, %144 in 1 : vector<256x32xf32>, vector<256x32xf32>, vector<256x32xf32>, vector<256x32xf32>, vector<256x32xf32>, vector<256x32xf32>, vector<256x32xf32>, vector<256x32xf32>, vector<256x32xf32> -> vector<256x288xf32>
    %146 = arith.truncf %145 : vector<256x288xf32> to vector<256x288xbf16>
    %cst_171 = arith.constant dense<0.000000e+00> : vector<256x32xf32>
    %147 = tpu.matmul %146, %96, %cst_171 {dimension_numbers = #tpu.dot_dimension_numbers<[1], [0], [0], [1], [0, 0, 1, 1], [], []>} : vector<256x288xbf16>, vector<288x32xbf16>, vector<256x32xf32> -> vector<256x32xf32>
    %148 = vector.broadcast %98 : vector<1x32xf32> to vector<256x32xf32>
    %149 = arith.addf %147, %148 : vector<256x32xf32>
    %cst_172 = arith.constant dense<0.000000e+00> : vector<32xf32>
    %150 = vector.multi_reduction <add>, %149, %cst_172 [0] : vector<256x32xf32> to vector<32xf32>
    %151 = vector.shape_cast %150 : vector<32xf32> to vector<1x32xf32>
    %cst_173 = arith.constant 2.560000e+02 : f32
    %152 = vector.broadcast %cst_173 : f32 to vector<1x32xf32>
    %153 = arith.divf %151, %152 : vector<1x32xf32>
    %c1_174 = arith.constant 1 : index
    %c0_175 = arith.constant 0 : index
    %c0_176 = arith.constant 0 : index
    %154 = vector.load %arg6[%c1_174, %c0_175, %c0_176] : memref<2x32x4xf32, #tpu.memory_space<vmem>>, vector<1x32x4xf32>
    %155 = vector.shape_cast %154 : vector<1x32x4xf32> to vector<32x4xf32>
    %cst_177 = arith.constant dense<0.000000e+00> : vector<1x4xf32>
    %156 = tpu.matmul %153, %155, %cst_177 {dimension_numbers = #tpu.dot_dimension_numbers<[1], [0], [0], [1], [0, 0, 1, 1], [], []>} : vector<1x32xf32>, vector<32x4xf32>, vector<1x4xf32> -> vector<1x4xf32>
    %c1_178 = arith.constant 1 : index
    %c0_179 = arith.constant 0 : index
    %c0_180 = arith.constant 0 : index
    %157 = vector.load %arg7[%c1_178, %c0_179, %c0_180] : memref<2x1x4xf32, #tpu.memory_space<vmem>>, vector<1x1x4xf32>
    %158 = vector.shape_cast %157 : vector<1x1x4xf32> to vector<1x4xf32>
    %159 = arith.addf %156, %158 : vector<1x4xf32>
    %cst_181 = arith.constant 0.000000e+00 : f32
    %160 = vector.broadcast %cst_181 : f32 to vector<1x4xf32>
    %161 = arith.maximumf %159, %160 : vector<1x4xf32>
    %c1_182 = arith.constant 1 : index
    %c0_183 = arith.constant 0 : index
    %c0_184 = arith.constant 0 : index
    %162 = vector.load %arg8[%c1_182, %c0_183, %c0_184] : memref<2x4x32xf32, #tpu.memory_space<vmem>>, vector<1x4x32xf32>
    %163 = vector.shape_cast %162 : vector<1x4x32xf32> to vector<4x32xf32>
    %cst_185 = arith.constant dense<0.000000e+00> : vector<1x32xf32>
    %164 = tpu.matmul %161, %163, %cst_185 {dimension_numbers = #tpu.dot_dimension_numbers<[1], [0], [0], [1], [0, 0, 1, 1], [], []>} : vector<1x4xf32>, vector<4x32xf32>, vector<1x32xf32> -> vector<1x32xf32>
    %c1_186 = arith.constant 1 : index
    %c0_187 = arith.constant 0 : index
    %c0_188 = arith.constant 0 : index
    %165 = vector.load %arg9[%c1_186, %c0_187, %c0_188] : memref<2x1x32xf32, #tpu.memory_space<vmem>>, vector<1x1x32xf32>
    %166 = vector.shape_cast %165 : vector<1x1x32xf32> to vector<1x32xf32>
    %167 = arith.addf %164, %166 : vector<1x32xf32>
    %168 = arith.negf %167 : vector<1x32xf32>
    %169 = math.exp %168 : vector<1x32xf32>
    %cst_189 = arith.constant 1.000000e+00 : f32
    %170 = vector.broadcast %cst_189 : f32 to vector<1x32xf32>
    %171 = arith.addf %170, %169 : vector<1x32xf32>
    %172 = arith.divf %170, %171 : vector<1x32xf32>
    %173 = vector.shape_cast %149 : vector<256x32xf32> to vector<16x16x32xf32>
    %174 = vector.shape_cast %172 : vector<1x32xf32> to vector<1x1x32xf32>
    %175 = vector.broadcast %174 : vector<1x1x32xf32> to vector<16x16x32xf32>
    %176 = arith.mulf %173, %175 : vector<16x16x32xf32>
    %177 = arith.addf %176, %90 : vector<16x16x32xf32>
    %c1_190 = arith.constant 1 : index
    %c1_191 = arith.constant 1 : index
    %c0_192 = arith.constant 0 : index
    %178 = vector.load %arg13[%c1_190, %c1_191, %c0_192] : memref<18x18x32xf32, #tpu.memory_space<vmem>>, vector<16x16x32xf32>
    tpu.vector_store %arg13[%c1_190, %c1_191, %c0_192], %177 {strides = array<i32>} : memref<18x18x32xf32, #tpu.memory_space<vmem>>, vector<16x16x32xf32>,
    %c0_193 = arith.constant 0 : index
    %c0_194 = arith.constant 0 : index
    %179 = vector.load %arg10[%c0_193, %c0_194] : memref<288x32xbf16, #tpu.memory_space<vmem>>, vector<288x32xbf16>
    %c0_195 = arith.constant 0 : index
    %c0_196 = arith.constant 0 : index
    %180 = vector.load %arg11[%c0_195, %c0_196] : memref<1x32xf32, #tpu.memory_space<vmem>>, vector<1x32xf32>
    %c0_197 = arith.constant 0 : index
    %c0_198 = arith.constant 0 : index
    %c0_199 = arith.constant 0 : index
    %181 = vector.load %arg13[%c0_197, %c0_198, %c0_199] : memref<18x18x32xf32, #tpu.memory_space<vmem>>, vector<16x16x32xf32>
    %182 = vector.shape_cast %181 : vector<16x16x32xf32> to vector<256x32xf32>
    %c0_200 = arith.constant 0 : index
    %c1_201 = arith.constant 1 : index
    %c0_202 = arith.constant 0 : index
    %183 = vector.load %arg13[%c0_200, %c1_201, %c0_202] : memref<18x18x32xf32, #tpu.memory_space<vmem>>, vector<16x16x32xf32>
    %184 = vector.shape_cast %183 : vector<16x16x32xf32> to vector<256x32xf32>
    %c0_203 = arith.constant 0 : index
    %c2_204 = arith.constant 2 : index
    %c0_205 = arith.constant 0 : index
    %185 = vector.load %arg13[%c0_203, %c2_204, %c0_205] : memref<18x18x32xf32, #tpu.memory_space<vmem>>, vector<16x16x32xf32>
    %186 = vector.shape_cast %185 : vector<16x16x32xf32> to vector<256x32xf32>
    %c1_206 = arith.constant 1 : index
    %c0_207 = arith.constant 0 : index
    %c0_208 = arith.constant 0 : index
    %187 = vector.load %arg13[%c1_206, %c0_207, %c0_208] : memref<18x18x32xf32, #tpu.memory_space<vmem>>, vector<16x16x32xf32>
    %188 = vector.shape_cast %187 : vector<16x16x32xf32> to vector<256x32xf32>
    %c1_209 = arith.constant 1 : index
    %c1_210 = arith.constant 1 : index
    %c0_211 = arith.constant 0 : index
    %189 = vector.load %arg13[%c1_209, %c1_210, %c0_211] : memref<18x18x32xf32, #tpu.memory_space<vmem>>, vector<16x16x32xf32>
    %190 = vector.shape_cast %189 : vector<16x16x32xf32> to vector<256x32xf32>
    %c1_212 = arith.constant 1 : index
    %c2_213 = arith.constant 2 : index
    %c0_214 = arith.constant 0 : index
    %191 = vector.load %arg13[%c1_212, %c2_213, %c0_214] : memref<18x18x32xf32, #tpu.memory_space<vmem>>, vector<16x16x32xf32>
    %192 = vector.shape_cast %191 : vector<16x16x32xf32> to vector<256x32xf32>
    %c2_215 = arith.constant 2 : index
    %c0_216 = arith.constant 0 : index
    %c0_217 = arith.constant 0 : index
    %193 = vector.load %arg13[%c2_215, %c0_216, %c0_217] : memref<18x18x32xf32, #tpu.memory_space<vmem>>, vector<16x16x32xf32>
    %194 = vector.shape_cast %193 : vector<16x16x32xf32> to vector<256x32xf32>
    %c2_218 = arith.constant 2 : index
    %c1_219 = arith.constant 1 : index
    %c0_220 = arith.constant 0 : index
    %195 = vector.load %arg13[%c2_218, %c1_219, %c0_220] : memref<18x18x32xf32, #tpu.memory_space<vmem>>, vector<16x16x32xf32>
    %196 = vector.shape_cast %195 : vector<16x16x32xf32> to vector<256x32xf32>
    %c2_221 = arith.constant 2 : index
    %c2_222 = arith.constant 2 : index
    %c0_223 = arith.constant 0 : index
    %197 = vector.load %arg13[%c2_221, %c2_222, %c0_223] : memref<18x18x32xf32, #tpu.memory_space<vmem>>, vector<16x16x32xf32>
    %198 = vector.shape_cast %197 : vector<16x16x32xf32> to vector<256x32xf32>
    %199 = tpu.concatenate %182, %184, %186, %188, %190, %192, %194, %196, %198 in 1 : vector<256x32xf32>, vector<256x32xf32>, vector<256x32xf32>, vector<256x32xf32>, vector<256x32xf32>, vector<256x32xf32>, vector<256x32xf32>, vector<256x32xf32>, vector<256x32xf32> -> vector<256x288xf32>
    %200 = arith.truncf %199 : vector<256x288xf32> to vector<256x288xbf16>
    %cst_224 = arith.constant dense<0.000000e+00> : vector<256x32xf32>
    %201 = tpu.matmul %200, %179, %cst_224 {dimension_numbers = #tpu.dot_dimension_numbers<[1], [0], [0], [1], [0, 0, 1, 1], [], []>} : vector<256x288xbf16>, vector<288x32xbf16>, vector<256x32xf32> -> vector<256x32xf32>
    %202 = vector.broadcast %180 : vector<1x32xf32> to vector<256x32xf32>
    %203 = arith.addf %201, %202 : vector<256x32xf32>
    %204 = vector.shape_cast %203 : vector<256x32xf32> to vector<16x16x32xf32>
    %205 = arith.addf %204, %3 : vector<16x16x32xf32>
    %c0_225 = arith.constant 0 : index
    %c0_226 = arith.constant 0 : index
    %c0_227 = arith.constant 0 : index
    %c0_228 = arith.constant 0 : index
    %206 = vector.load %arg12[%c0_225, %c0_226, %c0_227, %c0_228] : memref<1x16x16x32xf32, #tpu.memory_space<vmem>>, vector<1x16x16x32xf32>
    %207 = vector.shape_cast %206 : vector<1x16x16x32xf32> to vector<16x16x32xf32>
    %208 = vector.shape_cast %205 : vector<16x16x32xf32> to vector<1x16x16x32xf32>
    tpu.vector_store %arg12[%c0_225, %c0_226, %c0_227, %c0_228], %208 {strides = array<i32>} : memref<1x16x16x32xf32, #tpu.memory_space<vmem>>, vector<1x16x16x32xf32>,
    return
  }
  func.func @transform_0(%arg0: i32) -> (i32, i32, i32, i32) {
    %c0_i32 = arith.constant 0 : i32
    %c0_i32_0 = arith.constant 0 : i32
    %c0_i32_1 = arith.constant 0 : i32
    %c0_i32_2 = arith.constant 0 : i32
    return %arg0, %c0_i32, %c0_i32_0, %c0_i32_1 : i32, i32, i32, i32
  }
  func.func @transform_1(%arg0: i32) -> (i32, i32, i32) {
    %c0_i32 = arith.constant 0 : i32
    %c0_i32_0 = arith.constant 0 : i32
    %c0_i32_1 = arith.constant 0 : i32
    %c0_i32_2 = arith.constant 0 : i32
    return %c0_i32, %c0_i32_0, %c0_i32_1 : i32, i32, i32
  }
  func.func @transform_2(%arg0: i32) -> (i32, i32, i32) {
    %c0_i32 = arith.constant 0 : i32
    %c0_i32_0 = arith.constant 0 : i32
    %c0_i32_1 = arith.constant 0 : i32
    %c0_i32_2 = arith.constant 0 : i32
    return %c0_i32, %c0_i32_0, %c0_i32_1 : i32, i32, i32
  }
  func.func @transform_3(%arg0: i32) -> (i32, i32, i32) {
    %c0_i32 = arith.constant 0 : i32
    %c0_i32_0 = arith.constant 0 : i32
    %c0_i32_1 = arith.constant 0 : i32
    %c0_i32_2 = arith.constant 0 : i32
    return %c0_i32, %c0_i32_0, %c0_i32_1 : i32, i32, i32
  }
  func.func @transform_4(%arg0: i32) -> (i32, i32, i32) {
    %c0_i32 = arith.constant 0 : i32
    %c0_i32_0 = arith.constant 0 : i32
    %c0_i32_1 = arith.constant 0 : i32
    %c0_i32_2 = arith.constant 0 : i32
    return %c0_i32, %c0_i32_0, %c0_i32_1 : i32, i32, i32
  }
  func.func @transform_5(%arg0: i32) -> (i32, i32, i32) {
    %c0_i32 = arith.constant 0 : i32
    %c0_i32_0 = arith.constant 0 : i32
    %c0_i32_1 = arith.constant 0 : i32
    %c0_i32_2 = arith.constant 0 : i32
    return %c0_i32, %c0_i32_0, %c0_i32_1 : i32, i32, i32
  }
  func.func @transform_6(%arg0: i32) -> (i32, i32, i32) {
    %c0_i32 = arith.constant 0 : i32
    %c0_i32_0 = arith.constant 0 : i32
    %c0_i32_1 = arith.constant 0 : i32
    %c0_i32_2 = arith.constant 0 : i32
    return %c0_i32, %c0_i32_0, %c0_i32_1 : i32, i32, i32
  }
  func.func @transform_7(%arg0: i32) -> (i32, i32, i32) {
    %c0_i32 = arith.constant 0 : i32
    %c0_i32_0 = arith.constant 0 : i32
    %c0_i32_1 = arith.constant 0 : i32
    %c0_i32_2 = arith.constant 0 : i32
    return %c0_i32, %c0_i32_0, %c0_i32_1 : i32, i32, i32
  }
  func.func @transform_8(%arg0: i32) -> (i32, i32, i32) {
    %c0_i32 = arith.constant 0 : i32
    %c0_i32_0 = arith.constant 0 : i32
    %c0_i32_1 = arith.constant 0 : i32
    %c0_i32_2 = arith.constant 0 : i32
    return %c0_i32, %c0_i32_0, %c0_i32_1 : i32, i32, i32
  }
  func.func @transform_9(%arg0: i32) -> (i32, i32) {
    %c0_i32 = arith.constant 0 : i32
    %c0_i32_0 = arith.constant 0 : i32
    %c0_i32_1 = arith.constant 0 : i32
    return %c0_i32, %c0_i32_0 : i32, i32
  }
  func.func @transform_10(%arg0: i32) -> (i32, i32) {
    %c0_i32 = arith.constant 0 : i32
    %c0_i32_0 = arith.constant 0 : i32
    %c0_i32_1 = arith.constant 0 : i32
    return %c0_i32, %c0_i32_0 : i32, i32
  }
  func.func @transform_11(%arg0: i32) -> (i32, i32, i32, i32) {
    %c0_i32 = arith.constant 0 : i32
    %c0_i32_0 = arith.constant 0 : i32
    %c0_i32_1 = arith.constant 0 : i32
    %c0_i32_2 = arith.constant 0 : i32
    return %arg0, %c0_i32, %c0_i32_0, %c0_i32_1 : i32, i32, i32, i32
  }
}

</mosaic_0001>

<llo_original>
// kernel: res_group_forward.1
$region0: #{res_group_forward.1}
  #allocation0 [shape = 'u32[]', space=smem, size = 0x4, offset = 0x4, fixed_abs, tag = 'smem constant byte address 0x4 - core index']
  #allocation1 [shape = 'u32[144,128]{1,0:T(1,128)}', space=vmem, size = 0x12000, scoped, tag = 'internal scratch']
  #allocation2 [shape = 'f32[18,18,32]{2,1,0:T(8,128)}', space=vmem, size = 0x36000, scoped, tag = 'scratch operand']
  %s0 = inlined_call_operand.vmem [shape: f32[2,16,16,32], index: 0, kind: input, shape index: {}]
  %s1 = inlined_call_operand.vmem [shape: bf16[2,288,32], index: 1, kind: input, shape index: {}]
  %s2 = inlined_call_operand.vmem [shape: f32[2,1,32], index: 2, kind: input, shape index: {}]
  %s3 = inlined_call_operand.vmem [shape: bf16[2,288,32], index: 3, kind: input, shape index: {}]
  %s4 = inlined_call_operand.vmem [shape: f32[2,1,32], index: 4, kind: input, shape index: {}]
  %s5 = inlined_call_operand.vmem [shape: f32[2,32,4], index: 5, kind: input, shape index: {}]
  %s6 = inlined_call_operand.vmem [shape: f32[2,1,4], index: 6, kind: input, shape index: {}]
  %s7 = inlined_call_operand.vmem [shape: f32[2,4,32], index: 7, kind: input, shape index: {}]
  %s8 = inlined_call_operand.vmem [shape: f32[2,1,32], index: 8, kind: input, shape index: {}]
  %s9 = inlined_call_operand.vmem [shape: bf16[288,32], index: 9, kind: input, shape index: {}]
  %s10 = inlined_call_operand.vmem [shape: f32[1,32], index: 10, kind: input, shape index: {}]
  %s11 = inlined_call_operand.hbm [shape: f32[2,16,16,32], index: 11, kind: output, shape index: {}]
  %s12 = sld [smem:[#allocation0]]
  $region77: #{res_group_forward.1} parent=0
    _
  %s14 = ssub.s32 1, %s12
  %s15 = scalar_select 0, %s14, %s12
  $region1: #{res_group_forward.1} parent=0
    #allocation3 [shape = 'u8[262144]{0}', space=vmem, size = 0x40000, scoped, tag = 'output window, operand 0']
    #allocation4 [shape = 's32[2]{0}', space=sflag, size = 0x8, scoped, tag = 'scoped memory for res_group_forward.1']
    %16 = vsyncpa [#allocation4], 0
    %s17 = scalar_lea.sflag [#allocation4], 1
    %18 = vsyncpa %s17, 0
    loop: start=0, step=1, limit=4
    $region2: #{res_group_forward.1} parent=1 // loop_pre_header
      _
    $region3: #{res_group_forward.1} parent=1 // loop_header
      %s20 = sphi 0, %s24
      %p21 = scmp.ge.s32.totalorder %s20, 4
      %s30 = sphi 0, %s32
      %s33 = sphi 0, %s30
      %s34 = sphi 0, %s33
      %s50 = sphi 0, %s34
      %s54 = sphi 0, %s54
      %s56 = sphi 0, %s54
      %s57 = sphi 0, %s56
      %s71 = sphi 0, %s57
      %s75 = sphi 0, %s75
      %s77 = sphi 0, %s75
      %s78 = sphi 0, %s77
      %s92 = sphi 0, %s78
      %s96 = sphi 0, %s96
      %s98 = sphi 0, %s96
      %s99 = sphi 0, %s98
      %s113 = sphi 0, %s99
      %s117 = sphi 0, %s117
      %s119 = sphi 0, %s117
      %s120 = sphi 0, %s119
      %s134 = sphi 0, %s120
      %s138 = sphi 0, %s138
      %s140 = sphi 0, %s138
      %s141 = sphi 0, %s140
      %s155 = sphi 0, %s141
      %s159 = sphi 0, %s159
      %s161 = sphi 0, %s159
      %s162 = sphi 0, %s161
      %s176 = sphi 0, %s162
      %s180 = sphi 0, %s180
      %s182 = sphi 0, %s180
      %s183 = sphi 0, %s182
      %s197 = sphi 0, %s183
      %s201 = sphi 0, %s201
      %s203 = sphi 0, %s201
      %s204 = sphi 0, %s203
      %s218 = sphi 0, %s204
      %s222 = sphi 0, %s222
      %s224 = sphi 0, %s222
      %s225 = sphi 0, %s224
      %s239 = sphi 0, %s225
      %s243 = sphi 0, %s243
      %s245 = sphi 0, %s243
      %s246 = sphi 0, %s245
      %s260 = sphi 0, %s246
      %s266 = sphi 0, %s268
      %s269 = sphi 0, %s266
      %s270 = sphi 0, %s269
      %s286 = sphi 0, %s270
    $region4: #{res_group_forward.1} parent=1 // loop_header_branch
      %23 = sbr.rel (%p21) target = $region8
    $region5: #{res_group_forward.1} parent=1 // loop_body
      %s25 = ssub.s32 %s20, 1
      %s26 = ssub.s32 %s20, 2
      %s27 = sadd.s32 %s20, 1
      %s28 = ssub.s32 %s20, %s27
      %p29 = scmp.eq.s32.totalorder %s28, 0
      %s31 = sadd.s32 %s30, 1
      %s32 = scalar_select %p29, %s30, %s31
      %p35 = pneg %p29
      %p36 = scmp.eq.s32.totalorder %s20, 1
      %p37 = por %p35, %p36
      %p38 = scmp.ne.s32.totalorder %s30, %s33
      %p39 = scmp.eq.s32.totalorder %s20, 0
      %p40 = por %p38, %p39
      %p41 = scmp.ne.s32.totalorder %s30, %s33
      %p42 = scmp.eq.s32.totalorder %s25, 1
      %p43 = por %p41, %p42
      %p44 = scmp.ne.s32.totalorder %s33, %s34
      %p45 = scmp.eq.s32.totalorder %s25, 0
      %p46 = por %p44, %p45
      %p47 = scmp.ne.s32.totalorder %s33, %s34
      %p48 = scmp.eq.s32.totalorder %s26, 1
      %p49 = por %p47, %p48
      %p51 = scmp.ne.s32.totalorder %s34, %s50
      %p52 = scmp.eq.s32.totalorder %s26, 0
      %p53 = por %p51, %p52
      %s55 = sadd.s32 %s54, 1
      %p58 = scmp.eq.s32.totalorder %s20, 1
      %p59 = scmp.ne.s32.totalorder %s54, %s56
      %p60 = scmp.eq.s32.totalorder %s20, 0
      %p61 = por %p59, %p60
      %p62 = scmp.ne.s32.totalorder %s54, %s56
      %p63 = scmp.eq.s32.totalorder %s25, 1
      %p64 = por %p62, %p63
      %p65 = scmp.ne.s32.totalorder %s56, %s57
      %p66 = scmp.eq.s32.totalorder %s25, 0
      %p67 = por %p65, %p66
      %p68 = scmp.ne.s32.totalorder %s56, %s57
      %p69 = scmp.eq.s32.totalorder %s26, 1
      %p70 = por %p68, %p69
      %p72 = scmp.ne.s32.totalorder %s57, %s71
      %p73 = scmp.eq.s32.totalorder %s26, 0
      %p74 = por %p72, %p73
      %s76 = sadd.s32 %s75, 1
      %p79 = scmp.eq.s32.totalorder %s20, 1
      %p80 = scmp.ne.s32.totalorder %s75, %s77
      %p81 = scmp.eq.s32.totalorder %s20, 0
      %p82 = por %p80, %p81
      %p83 = scmp.ne.s32.totalorder %s75, %s77
      %p84 = scmp.eq.s32.totalorder %s25, 1
      %p85 = por %p83, %p84
      %p86 = scmp.ne.s32.totalorder %s77, %s78
      %p87 = scmp.eq.s32.totalorder %s25, 0
      %p88 = por %p86, %p87
      %p89 = scmp.ne.s32.totalorder %s77, %s78
      %p90 = scmp.eq.s32.totalorder %s26, 1
      %p91 = por %p89, %p90
      %p93 = scmp.ne.s32.totalorder %s78, %s92
      %p94 = scmp.eq.s32.totalorder %s26, 0
      %p95 = por %p93, %p94
      %s97 = sadd.s32 %s96, 1
      %p100 = scmp.eq.s32.totalorder %s20, 1
      %p101 = scmp.ne.s32.totalorder %s96, %s98
      %p102 = scmp.eq.s32.totalorder %s20, 0
      %p103 = por %p101, %p102
      %p104 = scmp.ne.s32.totalorder %s96, %s98
      %p105 = scmp.eq.s32.totalorder %s25, 1
      %p106 = por %p104, %p105
      %p107 = scmp.ne.s32.totalorder %s98, %s99
      %p108 = scmp.eq.s32.totalorder %s25, 0
      %p109 = por %p107, %p108
      %p110 = scmp.ne.s32.totalorder %s98, %s99
      %p111 = scmp.eq.s32.totalorder %s26, 1
      %p112 = por %p110, %p111
      %p114 = scmp.ne.s32.totalorder %s99, %s113
      %p115 = scmp.eq.s32.totalorder %s26, 0
      %p116 = por %p114, %p115
      %s118 = sadd.s32 %s117, 1
      %p121 = scmp.eq.s32.totalorder %s20, 1
      %p122 = scmp.ne.s32.totalorder %s117, %s119
      %p123 = scmp.eq.s32.totalorder %s20, 0
      %p124 = por %p122, %p123
      %p125 = scmp.ne.s32.totalorder %s117, %s119
      %p126 = scmp.eq.s32.totalorder %s25, 1
      %p127 = por %p125, %p126
      %p128 = scmp.ne.s32.totalorder %s119, %s120
      %p129 = scmp.eq.s32.totalorder %s25, 0
      %p130 = por %p128, %p129
      %p131 = scmp.ne.s32.totalorder %s119, %s120
      %p132 = scmp.eq.s32.totalorder %s26, 1
      %p133 = por %p131, %p132
      %p135 = scmp.ne.s32.totalorder %s120, %s134
      %p136 = scmp.eq.s32.totalorder %s26, 0
      %p137 = por %p135, %p136
      %s139 = sadd.s32 %s138, 1
      %p142 = scmp.eq.s32.totalorder %s20, 1
      %p143 = scmp.ne.s32.totalorder %s138, %s140
      %p144 = scmp.eq.s32.totalorder %s20, 0
      %p145 = por %p143, %p144
      %p146 = scmp.ne.s32.totalorder %s138, %s140
      %p147 = scmp.eq.s32.totalorder %s25, 1
      %p148 = por %p146, %p147
      %p149 = scmp.ne.s32.totalorder %s140, %s141
      %p150 = scmp.eq.s32.totalorder %s25, 0
      %p151 = por %p149, %p150
      %p152 = scmp.ne.s32.totalorder %s140, %s141
      %p153 = scmp.eq.s32.totalorder %s26, 1
      %p154 = por %p152, %p153
      %p156 = scmp.ne.s32.totalorder %s141, %s155
      %p157 = scmp.eq.s32.totalorder %s26, 0
      %p158 = por %p156, %p157
      %s160 = sadd.s32 %s159, 1
      %p163 = scmp.eq.s32.totalorder %s20, 1
      %p164 = scmp.ne.s32.totalorder %s159, %s161
      %p165 = scmp.eq.s32.totalorder %s20, 0
      %p166 = por %p164, %p165
      %p167 = scmp.ne.s32.totalorder %s159, %s161
      %p168 = scmp.eq.s32.totalorder %s25, 1
      %p169 = por %p167, %p168
      %p170 = scmp.ne.s32.totalorder %s161, %s162
      %p171 = scmp.eq.s32.totalorder %s25, 0
      %p172 = por %p170, %p171
      %p173 = scmp.ne.s32.totalorder %s161, %s162
      %p174 = scmp.eq.s32.totalorder %s26, 1
      %p175 = por %p173, %p174
      %p177 = scmp.ne.s32.totalorder %s162, %s176
      %p178 = scmp.eq.s32.totalorder %s26, 0
      %p179 = por %p177, %p178
      %s181 = sadd.s32 %s180, 1
      %p184 = scmp.eq.s32.totalorder %s20, 1
      %p185 = scmp.ne.s32.totalorder %s180, %s182
      %p186 = scmp.eq.s32.totalorder %s20, 0
      %p187 = por %p185, %p186
      %p188 = scmp.ne.s32.totalorder %s180, %s182
      %p189 = scmp.eq.s32.totalorder %s25, 1
      %p190 = por %p188, %p189
      %p191 = scmp.ne.s32.totalorder %s182, %s183
      %p192 = scmp.eq.s32.totalorder %s25, 0
      %p193 = por %p191, %p192
      %p194 = scmp.ne.s32.totalorder %s182, %s183
      %p195 = scmp.eq.s32.totalorder %s26, 1
      %p196 = por %p194, %p195
      %p198 = scmp.ne.s32.totalorder %s183, %s197
      %p199 = scmp.eq.s32.totalorder %s26, 0
      %p200 = por %p198, %p199
      %s202 = sadd.s32 %s201, 1
      %p205 = scmp.eq.s32.totalorder %s20, 1
      %p206 = scmp.ne.s32.totalorder %s201, %s203
      %p207 = scmp.eq.s32.totalorder %s20, 0
      %p208 = por %p206, %p207
      %p209 = scmp.ne.s32.totalorder %s201, %s203
      %p210 = scmp.eq.s32.totalorder %s25, 1
      %p211 = por %p209, %p210
      %p212 = scmp.ne.s32.totalorder %s203, %s204
      %p213 = scmp.eq.s32.totalorder %s25, 0
      %p214 = por %p212, %p213
      %p215 = scmp.ne.s32.totalorder %s203, %s204
      %p216 = scmp.eq.s32.totalorder %s26, 1
      %p217 = por %p215, %p216
      %p219 = scmp.ne.s32.totalorder %s204, %s218
      %p220 = scmp.eq.s32.totalorder %s26, 0
      %p221 = por %p219, %p220
      %s223 = sadd.s32 %s222, 1
      %p226 = scmp.eq.s32.totalorder %s20, 1
      %p227 = scmp.ne.s32.totalorder %s222, %s224
      %p228 = scmp.eq.s32.totalorder %s20, 0
      %p229 = por %p227, %p228
      %p230 = scmp.ne.s32.totalorder %s222, %s224
      %p231 = scmp.eq.s32.totalorder %s25, 1
      %p232 = por %p230, %p231
      %p233 = scmp.ne.s32.totalorder %s224, %s225
      %p234 = scmp.eq.s32.totalorder %s25, 0
      %p235 = por %p233, %p234
      %p236 = scmp.ne.s32.totalorder %s224, %s225
      %p237 = scmp.eq.s32.totalorder %s26, 1
      %p238 = por %p236, %p237
      %p240 = scmp.ne.s32.totalorder %s225, %s239
      %p241 = scmp.eq.s32.totalorder %s26, 0
      %p242 = por %p240, %p241
      %s244 = sadd.s32 %s243, 1
      %p247 = scmp.eq.s32.totalorder %s20, 1
      %p248 = scmp.ne.s32.totalorder %s243, %s245
      %p249 = scmp.eq.s32.totalorder %s20, 0
      %p250 = por %p248, %p249
      %p251 = scmp.ne.s32.totalorder %s243, %s245
      %p252 = scmp.eq.s32.totalorder %s25, 1
      %p253 = por %p251, %p252
      %p254 = scmp.ne.s32.totalorder %s245, %s246
      %p255 = scmp.eq.s32.totalorder %s25, 0
      %p256 = por %p254, %p255
      %p257 = scmp.ne.s32.totalorder %s245, %s246
      %p258 = scmp.eq.s32.totalorder %s26, 1
      %p259 = por %p257, %p258
      %p261 = scmp.ne.s32.totalorder %s246, %s260
      %p262 = scmp.eq.s32.totalorder %s26, 0
      %p263 = por %p261, %p262
      %s264 = ssub.s32 %s20, %s27
      %p265 = scmp.eq.s32.totalorder %s264, 0
      %s267 = sadd.s32 %s266, 1
      %s268 = scalar_select %p265, %s266, %s267
      %p271 = pneg %p265
      %p272 = scmp.eq.s32.totalorder %s20, 1
      %p273 = por %p271, %p272
      %p274 = scmp.ne.s32.totalorder %s266, %s269
      %p275 = scmp.eq.s32.totalorder %s20, 0
      %p276 = por %p274, %p275
      %p277 = scmp.ne.s32.totalorder %s266, %s269
      %p278 = scmp.eq.s32.totalorder %s25, 1
      %p279 = por %p277, %p278
      %p280 = scmp.ne.s32.totalorder %s269, %s270
      %p281 = scmp.eq.s32.totalorder %s25, 0
      %p282 = por %p280, %p281
      %p283 = scmp.ne.s32.totalorder %s269, %s270
      %p284 = scmp.eq.s32.totalorder %s26, 1
      %p285 = por %p283, %p284
      %p287 = scmp.ne.s32.totalorder %s270, %s286
      %p288 = scmp.eq.s32.totalorder %s26, 0
      %p289 = por %p287, %p288
      %p290 = scmp.le.s32.totalorder 1, %s20
      %p291 = scmp.lt.s32.totalorder %s20, 3
      %p292 = pnand %p290, %p291
      %p293 = pneg %p292
      // Predicated region
      $region9: #{res_group_forward.1} parent=5 // pred_check
        _
      $region10: #{res_group_forward.1} parent=5 // pred_check_branch
        %295 = sbr.rel (%p292) target = $region12
      $region11: #{res_group_forward.1} parent=5 // pred_region
        %s296 = ssub.s32 %s20, 1
        // Predicated region
        $region13: #{res_group_forward.1} parent=11 // pred_check
          %p297 = pneg %p67
        $region14: #{res_group_forward.1} parent=11 // pred_check_branch
          %299 = sbr.rel (%p297) target = $region16
        $region15: #{res_group_forward.1} parent=11 // pred_region
          _
        $region16: #{res_group_forward.1} parent=11 // pred_fallthru
          _
        // Predicated region
        $region17: #{res_group_forward.1} parent=11 // pred_check
          %p300 = pneg %p88
        $region18: #{res_group_forward.1} parent=11 // pred_check_branch
          %302 = sbr.rel (%p300) target = $region20
        $region19: #{res_group_forward.1} parent=11 // pred_region
          _
        $region20: #{res_group_forward.1} parent=11 // pred_fallthru
          _
        // Predicated region
        $region21: #{res_group_forward.1} parent=11 // pred_check
          %p303 = pneg %p109
        $region22: #{res_group_forward.1} parent=11 // pred_check_branch
          %305 = sbr.rel (%p303) target = $region24
        $region23: #{res_group_forward.1} parent=11 // pred_region
          _
        $region24: #{res_group_forward.1} parent=11 // pred_fallthru
          _
        // Predicated region
        $region25: #{res_group_forward.1} parent=11 // pred_check
          %p306 = pneg %p130
        $region26: #{res_group_forward.1} parent=11 // pred_check_branch
          %308 = sbr.rel (%p306) target = $region28
        $region27: #{res_group_forward.1} parent=11 // pred_region
          _
        $region28: #{res_group_forward.1} parent=11 // pred_fallthru
          _
        // Predicated region
        $region29: #{res_group_forward.1} parent=11 // pred_check
          %p309 = pneg %p151
        $region30: #{res_group_forward.1} parent=11 // pred_check_branch
          %311 = sbr.rel (%p309) target = $region32
        $region31: #{res_group_forward.1} parent=11 // pred_region
          _
        $region32: #{res_group_forward.1} parent=11 // pred_fallthru
          _
        // Predicated region
        $region33: #{res_group_forward.1} parent=11 // pred_check
          %p312 = pneg %p172
        $region34: #{res_group_forward.1} parent=11 // pred_check_branch
          %314 = sbr.rel (%p312) target = $region36
        $region35: #{res_group_forward.1} parent=11 // pred_region
          _
        $region36: #{res_group_forward.1} parent=11 // pred_fallthru
          _
        // Predicated region
        $region37: #{res_group_forward.1} parent=11 // pred_check
          %p315 = pneg %p193
        $region38: #{res_group_forward.1} parent=11 // pred_check_branch
          %317 = sbr.rel (%p315) target = $region40
        $region39: #{res_group_forward.1} parent=11 // pred_region
          _
        $region40: #{res_group_forward.1} parent=11 // pred_fallthru
          _
        // Predicated region
        $region41: #{res_group_forward.1} parent=11 // pred_check
          %p318 = pneg %p214
        $region42: #{res_group_forward.1} parent=11 // pred_check_branch
          %320 = sbr.rel (%p318) target = $region44
        $region43: #{res_group_forward.1} parent=11 // pred_region
          _
        $region44: #{res_group_forward.1} parent=11 // pred_fallthru
          _
        // Predicated region
        $region45: #{res_group_forward.1} parent=11 // pred_check
          %p321 = pneg %p235
        $region46: #{res_group_forward.1} parent=11 // pred_check_branch
          %323 = sbr.rel (%p321) target = $region48
        $region47: #{res_group_forward.1} parent=11 // pred_region
          _
        $region48: #{res_group_forward.1} parent=11 // pred_fallthru
          _
        // Predicated region
        $region49: #{res_group_forward.1} parent=11 // pred_check
          %p324 = pneg %p256
        $region50: #{res_group_forward.1} parent=11 // pred_check_branch
          %326 = sbr.rel (%p324) target = $region52
        $region51: #{res_group_forward.1} parent=11 // pred_region
          _
        $region52: #{res_group_forward.1} parent=11 // pred_fallthru
          _
      $region12: #{res_group_forward.1} parent=5 // pred_fallthru
        _
      %p327 = scmp.lt.s32.totalorder %s20, 2
      // Predicated region
      $region53: #{res_group_forward.1} parent=5 // pred_check
        %p328 = pneg %p327
      $region54: #{res_group_forward.1} parent=5 // pred_check_branch
        %330 = sbr.rel (%p328) target = $region56
      $region55: #{res_group_forward.1} parent=5 // pred_region
        // Predicated region
        $region57: #{res_group_forward.1} parent=55 // pred_check
          %p331 = pneg %p40
        $region58: #{res_group_forward.1} parent=55 // pred_check_branch
          %333 = sbr.rel (%p331) target = $region60
        $region59: #{res_group_forward.1} parent=55 // pred_region
          %p334 = scmp.lt.s32.totalorder %s20, 1
          %s335 = scalar_select %p334, %s20, 1
          %s336 = smul.addr %s335, 32
          %s337 = smul.addr %s336, 8
          %s338 = scalar_lea.vmem %s0, %s337
        $region60: #{res_group_forward.1} parent=55 // pred_fallthru
          _
      $region56: #{res_group_forward.1} parent=5 // pred_fallthru
        _
      %p339 = scmp.le.s32.totalorder 1, %s20
      %p340 = scmp.lt.s32.totalorder %s20, 3
      %p341 = pnand %p339, %p340
      %p342 = pneg %p341
      // Predicated region
      $region61: #{res_group_forward.1} parent=5 // pred_check
        _
      $region62: #{res_group_forward.1} parent=5 // pred_check_branch
        %344 = sbr.rel (%p341) target = $region64
      $region63: #{res_group_forward.1} parent=5 // pred_region
        %s345 = ssub.s32 %s20, 1
        %p346 = scmp.lt.s32.totalorder %s25, 1
        %s347 = scalar_select %p346, %s25, 1
        %s348 = smul.addr %s347, 32
        %s349 = smul.addr %s348, 8
        %s350 = scalar_lea.vmem %s0, %s349
        %p351 = pneg %p46
        %p352 = pneg %p43
        %p353 = pneg %p67
        %p354 = pneg %p64
        %p355 = pneg %p88
        %p356 = pneg %p85
        %p357 = pneg %p109
        %p358 = pneg %p106
        %p359 = pneg %p130
        %p360 = pneg %p127
        %p361 = pneg %p151
        %p362 = pneg %p148
        %p363 = pneg %p172
        %p364 = pneg %p169
        %p365 = pneg %p193
        %p366 = pneg %p190
        %p367 = pneg %p214
        %p368 = pneg %p211
        %p369 = pneg %p235
        %p370 = pneg %p232
        %p371 = pneg %p256
        %p372 = pneg %p253
        %p373 = pneg %p282
        %p374 = pneg %p279
        %s375 = sand.u32 %s269, 1
        %s376 = scalar_lea.sflag [#allocation4], %s375
        %s377 = sand.u32 %s269, 1
        %s378 = smul.addr %s377, 256
        %s379 = scalar_lea.vmem [#allocation3], %s378
        %p380 = scmp.lt.s32.totalorder %s25, 1
        %s381 = scalar_select %p380, %s25, 1
        %s382 = smul.addr %s381, 32
        %s383 = smul.addr %s382, 8
        %s384 = scalar_lea.vmem %s0, %s383
        %vm386 = vcmask 261120
        %387 = vst.msk [vmem:[#allocation2] sm:$0xff] %vm386, 0.0
        %388 = vst.msk [vmem:[#allocation2 + $0x8] sm:$0xff] %vm386, 0.0
        %vm389 = vcmask 254976
        %390 = vst.msk [vmem:[#allocation2 + $0x10] sm:$0x3] %vm389, 0.0
        %391 = vst.msk [vmem:[#allocation2 + $0x18] sm:$0xff] %vm386, 0.0
        %392 = vst.msk [vmem:[#allocation2 + $0x20] sm:$0xff] %vm386, 0.0
        %393 = vst.msk [vmem:[#allocation2 + $0x28] sm:$0x3] %vm389, 0.0
        %394 = vst.msk [vmem:[#allocation2 + $0x30] sm:$0xff] %vm386, 0.0
        %395 = vst.msk [vmem:[#allocation2 + $0x38] sm:$0xff] %vm386, 0.0
        %396 = vst.msk [vmem:[#allocation2 + $0x40] sm:$0x3] %vm389, 0.0
        %397 = vst.msk [vmem:[#allocation2 + $0x48] sm:$0xff] %vm386, 0.0
        %398 = vst.msk [vmem:[#allocation2 + $0x50] sm:$0xff] %vm386, 0.0
        %399 = vst.msk [vmem:[#allocation2 + $0x58] sm:$0x3] %vm389, 0.0
        %400 = vst.msk [vmem:[#allocation2 + $0x60] sm:$0xff] %vm386, 0.0
        %401 = vst.msk [vmem:[#allocation2 + $0x68] sm:$0xff] %vm386, 0.0
        %402 = vst.msk [vmem:[#allocation2 + $0x70] sm:$0x3] %vm389, 0.0
        %403 = vst.msk [vmem:[#allocation2 + $0x78] sm:$0xff] %vm386, 0.0
        %404 = vst.msk [vmem:[#allocation2 + $0x80] sm:$0xff] %vm386, 0.0
        %405 = vst.msk [vmem:[#allocation2 + $0x88] sm:$0x3] %vm389, 0.0
        %406 = vst.msk [vmem:[#allocation2 + $0x90] sm:$0xff] %vm386, 0.0
        %407 = vst.msk [vmem:[#allocation2 + $0x98] sm:$0xff] %vm386, 0.0
        %408 = vst.msk [vmem:[#allocation2 + $0xa0] sm:$0x3] %vm389, 0.0
        %409 = vst.msk [vmem:[#allocation2 + $0xa8] sm:$0xff] %vm386, 0.0
        %410 = vst.msk [vmem:[#allocation2 + $0xb0] sm:$0xff] %vm386, 0.0
        %411 = vst.msk [vmem:[#allocation2 + $0xb8] sm:$0x3] %vm389, 0.0
        %412 = vst.msk [vmem:[#allocation2 + $0xc0] sm:$0xff] %vm386, 0.0
        %413 = vst.msk [vmem:[#allocation2 + $0xc8] sm:$0xff] %vm386, 0.0
        %414 = vst.msk [vmem:[#allocation2 + $0xd0] sm:$0x3] %vm389, 0.0
        %415 = vst.msk [vmem:[#allocation2 + $0xd8] sm:$0xff] %vm386, 0.0
        %416 = vst.msk [vmem:[#allocation2 + $0xe0] sm:$0xff] %vm386, 0.0
        %417 = vst.msk [vmem:[#allocation2 + $0xe8] sm:$0x3] %vm389, 0.0
        %418 = vst.msk [vmem:[#allocation2 + $0xf0] sm:$0xff] %vm386, 0.0
        %419 = vst.msk [vmem:[#allocation2 + $0xf8] sm:$0xff] %vm386, 0.0
        %420 = vst.msk [vmem:[#allocation2 + $0x100] sm:$0x3] %vm389, 0.0
        %421 = vst.msk [vmem:[#allocation2 + $0x108] sm:$0xff] %vm386, 0.0
        %422 = vst.msk [vmem:[#allocation2 + $0x110] sm:$0xff] %vm386, 0.0
        %423 = vst.msk [vmem:[#allocation2 + $0x118] sm:$0x3] %vm389, 0.0
        %424 = vst.msk [vmem:[#allocation2 + $0x120] sm:$0xff] %vm386, 0.0
        %425 = vst.msk [vmem:[#allocation2 + $0x128] sm:$0xff] %vm386, 0.0
        %426 = vst.msk [vmem:[#allocation2 + $0x130] sm:$0x3] %vm389, 0.0
        %427 = vst.msk [vmem:[#allocation2 + $0x138] sm:$0xff] %vm386, 0.0
        %428 = vst.msk [vmem:[#allocation2 + $0x140] sm:$0xff] %vm386, 0.0
        %429 = vst.msk [vmem:[#allocation2 + $0x148] sm:$0x3] %vm389, 0.0
        %430 = vst.msk [vmem:[#allocation2 + $0x150] sm:$0xff] %vm386, 0.0
        %431 = vst.msk [vmem:[#allocation2 + $0x158] sm:$0xff] %vm386, 0.0
        %432 = vst.msk [vmem:[#allocation2 + $0x160] sm:$0x3] %vm389, 0.0
        %433 = vst.msk [vmem:[#allocation2 + $0x168] sm:$0xff] %vm386, 0.0
        %434 = vst.msk [vmem:[#allocation2 + $0x170] sm:$0xff] %vm386, 0.0
        %435 = vst.msk [vmem:[#allocation2 + $0x178] sm:$0x3] %vm389, 0.0
        %436 = vst.msk [vmem:[#allocation2 + $0x180] sm:$0xff] %vm386, 0.0
        %437 = vst.msk [vmem:[#allocation2 + $0x188] sm:$0xff] %vm386, 0.0
        %438 = vst.msk [vmem:[#allocation2 + $0x190] sm:$0x3] %vm389, 0.0
        %439 = vst.msk [vmem:[#allocation2 + $0x198] sm:$0xff] %vm386, 0.0
        %440 = vst.msk [vmem:[#allocation2 + $0x1a0] sm:$0xff] %vm386, 0.0
        %441 = vst.msk [vmem:[#allocation2 + $0x1a8] sm:$0x3] %vm389, 0.0
        %v442 = vld [vmem:[%s384] sm:$0xff]
        %v443 = vld [vmem:[%s384 + $0x8] sm:$0xff]
        %v444 = vld [vmem:[%s384 + $0x10] sm:$0xff]
        %v445 = vld [vmem:[%s384 + $0x18] sm:$0xff]
        %v446 = vld [vmem:[%s384 + $0x20] sm:$0xff]
        %v447 = vld [vmem:[%s384 + $0x28] sm:$0xff]
        %v448 = vld [vmem:[%s384 + $0x30] sm:$0xff]
        %v449 = vld [vmem:[%s384 + $0x38] sm:$0xff]
        %v450 = vld [vmem:[%s384 + $0x40] sm:$0xff]
        %v451 = vld [vmem:[%s384 + $0x48] sm:$0xff]
        %v452 = vld [vmem:[%s384 + $0x50] sm:$0xff]
        %v453 = vld [vmem:[%s384 + $0x58] sm:$0xff]
        %v454 = vld [vmem:[%s384 + $0x60] sm:$0xff]
        %v455 = vld [vmem:[%s384 + $0x68] sm:$0xff]
        %v456 = vld [vmem:[%s384 + $0x70] sm:$0xff]
        %v457 = vld [vmem:[%s384 + $0x78] sm:$0xff]
        %v458 = vld [vmem:[%s384 + $0x80] sm:$0xff]
        %v459 = vld [vmem:[%s384 + $0x88] sm:$0xff]
        %v460 = vld [vmem:[%s384 + $0x90] sm:$0xff]
        %v461 = vld [vmem:[%s384 + $0x98] sm:$0xff]
        %v462 = vld [vmem:[%s384 + $0xa0] sm:$0xff]
        %v463 = vld [vmem:[%s384 + $0xa8] sm:$0xff]
        %v464 = vld [vmem:[%s384 + $0xb0] sm:$0xff]
        %v465 = vld [vmem:[%s384 + $0xb8] sm:$0xff]
        %v466 = vld [vmem:[%s384 + $0xc0] sm:$0xff]
        %v467 = vld [vmem:[%s384 + $0xc8] sm:$0xff]
        %v468 = vld [vmem:[%s384 + $0xd0] sm:$0xff]
        %v469 = vld [vmem:[%s384 + $0xd8] sm:$0xff]
        %v470 = vld [vmem:[%s384 + $0xe0] sm:$0xff]
        %v471 = vld [vmem:[%s384 + $0xe8] sm:$0xff]
        %v472 = vld [vmem:[%s384 + $0xf0] sm:$0xff]
        %v473 = vld [vmem:[%s384 + $0xf8] sm:$0xff]
        %v474 = vld [vmem:[%s1] sm:$0xf]
        %v475 = vld [vmem:[%s1 + $0x4] sm:$0xf]
        %v476 = vld [vmem:[%s1 + $0x8] sm:$0xf]
        %v477 = vld [vmem:[%s1 + $0xc] sm:$0xf]
        %v478 = vld [vmem:[%s1 + $0x10] sm:$0xf]
        %v479 = vld [vmem:[%s1 + $0x14] sm:$0xf]
        %v480 = vld [vmem:[%s1 + $0x18] sm:$0xf]
        %v481 = vld [vmem:[%s1 + $0x1c] sm:$0xf]
        %v482 = vld [vmem:[%s1 + $0x20] sm:$0xf]
        %v483 = vld [vmem:[%s1 + $0x24] sm:$0xf]
        %v484 = vld [vmem:[%s1 + $0x28] sm:$0xf]
        %v485 = vld [vmem:[%s1 + $0x2c] sm:$0xf]
        %v486 = vld [vmem:[%s1 + $0x30] sm:$0xf]
        %v487 = vld [vmem:[%s1 + $0x34] sm:$0xf]
        %v488 = vld [vmem:[%s1 + $0x38] sm:$0xf]
        %v489 = vld [vmem:[%s1 + $0x3c] sm:$0xf]
        %v490 = vld [vmem:[%s1 + $0x40] sm:$0xf]
        %v491 = vld [vmem:[%s1 + $0x44] sm:$0xf]
        %v492 = vld [vmem:[%s1 + $0x48] sm:$0xf]
        %v493 = vld [vmem:[%s1 + $0x4c] sm:$0xf]
        %v494 = vld [vmem:[%s1 + $0x50] sm:$0xf]
        %v495 = vld [vmem:[%s1 + $0x54] sm:$0xf]
        %v496 = vld [vmem:[%s1 + $0x58] sm:$0xf]
        %v497 = vld [vmem:[%s1 + $0x5c] sm:$0xf]
        %v498 = vld [vmem:[%s1 + $0x60] sm:$0xf]
        %v499 = vld [vmem:[%s1 + $0x64] sm:$0xf]
        %v500 = vld [vmem:[%s1 + $0x68] sm:$0xf]
        %v501 = vld [vmem:[%s1 + $0x6c] sm:$0xf]
        %v502 = vld [vmem:[%s1 + $0x70] sm:$0xf]
        %v503 = vld [vmem:[%s1 + $0x74] sm:$0xf]
        %v504 = vld [vmem:[%s1 + $0x78] sm:$0xf]
        %v505 = vld [vmem:[%s1 + $0x7c] sm:$0xf]
        %v506 = vld [vmem:[%s1 + $0x80] sm:$0xf]
        %v507 = vld [vmem:[%s1 + $0x84] sm:$0xf]
        %v508 = vld [vmem:[%s1 + $0x88] sm:$0xf]
        %v509 = vld [vmem:[%s1 + $0x8c] sm:$0xf]
        %v510 = vld [vmem:[%s2] sm:$0x1]
        %v511 = vld [vmem:[%s3] sm:$0xf]
        %v512 = vld [vmem:[%s3 + $0x4] sm:$0xf]
        %v513 = vld [vmem:[%s3 + $0x8] sm:$0xf]
        %v514 = vld [vmem:[%s3 + $0xc] sm:$0xf]
        %v515 = vld [vmem:[%s3 + $0x10] sm:$0xf]
        %v516 = vld [vmem:[%s3 + $0x14] sm:$0xf]
        %v517 = vld [vmem:[%s3 + $0x18] sm:$0xf]
        %v518 = vld [vmem:[%s3 + $0x1c] sm:$0xf]
        %v519 = vld [vmem:[%s3 + $0x20] sm:$0xf]
        %v520 = vld [vmem:[%s3 + $0x24] sm:$0xf]
        %v521 = vld [vmem:[%s3 + $0x28] sm:$0xf]
        %v522 = vld [vmem:[%s3 + $0x2c] sm:$0xf]
        %v523 = vld [vmem:[%s3 + $0x30] sm:$0xf]
        %v524 = vld [vmem:[%s3 + $0x34] sm:$0xf]
        %v525 = vld [vmem:[%s3 + $0x38] sm:$0xf]
        %v526 = vld [vmem:[%s3 + $0x3c] sm:$0xf]
        %v527 = vld [vmem:[%s3 + $0x40] sm:$0xf]
        %v528 = vld [vmem:[%s3 + $0x44] sm:$0xf]
        %v529 = vld [vmem:[%s3 + $0x48] sm:$0xf]
        %v530 = vld [vmem:[%s3 + $0x4c] sm:$0xf]
        %v531 = vld [vmem:[%s3 + $0x50] sm:$0xf]
        %v532 = vld [vmem:[%s3 + $0x54] sm:$0xf]
        %v533 = vld [vmem:[%s3 + $0x58] sm:$0xf]
        %v534 = vld [vmem:[%s3 + $0x5c] sm:$0xf]
        %v535 = vld [vmem:[%s3 + $0x60] sm:$0xf]
        %v536 = vld [vmem:[%s3 + $0x64] sm:$0xf]
        %v537 = vld [vmem:[%s3 + $0x68] sm:$0xf]
        %v538 = vld [vmem:[%s3 + $0x6c] sm:$0xf]
        %v539 = vld [vmem:[%s3 + $0x70] sm:$0xf]
        %v540 = vld [vmem:[%s3 + $0x74] sm:$0xf]
        %v541 = vld [vmem:[%s3 + $0x78] sm:$0xf]
        %v542 = vld [vmem:[%s3 + $0x7c] sm:$0xf]
        %v543 = vld [vmem:[%s3 + $0x80] sm:$0xf]
        %v544 = vld [vmem:[%s3 + $0x84] sm:$0xf]
        %v545 = vld [vmem:[%s3 + $0x88] sm:$0xf]
        %v546 = vld [vmem:[%s3 + $0x8c] sm:$0xf]
        %v547 = vld [vmem:[%s4] sm:$0x1]
        %s548 = scalar_lea.vmem [#allocation2], 24
        %549 = vst.msk [vmem:[%s548 + $0x1] sm:$0xff] %vm386, %v442
        %550 = vst.msk [vmem:[%s548 + $0x9] sm:$0xff] %vm386, %v443
        %551 = vst.msk [vmem:[%s548 + $0x19] sm:$0xff] %vm386, %v444
        %552 = vst.msk [vmem:[%s548 + $0x21] sm:$0xff] %vm386, %v445
        %553 = vst.msk [vmem:[%s548 + $0x31] sm:$0xff] %vm386, %v446
        %554 = vst.msk [vmem:[%s548 + $0x39] sm:$0xff] %vm386, %v447
        %555 = vst.msk [vmem:[%s548 + $0x49] sm:$0xff] %vm386, %v448
        %556 = vst.msk [vmem:[%s548 + $0x51] sm:$0xff] %vm386, %v449
        %557 = vst.msk [vmem:[%s548 + $0x61] sm:$0xff] %vm386, %v450
        %558 = vst.msk [vmem:[%s548 + $0x69] sm:$0xff] %vm386, %v451
        %559 = vst.msk [vmem:[%s548 + $0x79] sm:$0xff] %vm386, %v452
        %560 = vst.msk [vmem:[%s548 + $0x81] sm:$0xff] %vm386, %v453
        %561 = vst.msk [vmem:[%s548 + $0x91] sm:$0xff] %vm386, %v454
        %562 = vst.msk [vmem:[%s548 + $0x99] sm:$0xff] %vm386, %v455
        %563 = vst.msk [vmem:[%s548 + $0xa9] sm:$0xff] %vm386, %v456
        %564 = vst.msk [vmem:[%s548 + $0xb1] sm:$0xff] %vm386, %v457
        %565 = vst.msk [vmem:[%s548 + $0xc1] sm:$0xff] %vm386, %v458
        %566 = vst.msk [vmem:[%s548 + $0xc9] sm:$0xff] %vm386, %v459
        %567 = vst.msk [vmem:[%s548 + $0xd9] sm:$0xff] %vm386, %v460
        %568 = vst.msk [vmem:[%s548 + $0xe1] sm:$0xff] %vm386, %v461
        %569 = vst.msk [vmem:[%s548 + $0xf1] sm:$0xff] %vm386, %v462
        %570 = vst.msk [vmem:[%s548 + $0xf9] sm:$0xff] %vm386, %v463
        %571 = vst.msk [vmem:[%s548 + $0x109] sm:$0xff] %vm386, %v464
        %572 = vst.msk [vmem:[%s548 + $0x111] sm:$0xff] %vm386, %v465
        %573 = vst.msk [vmem:[%s548 + $0x121] sm:$0xff] %vm386, %v466
        %574 = vst.msk [vmem:[%s548 + $0x129] sm:$0xff] %vm386, %v467
        %575 = vst.msk [vmem:[%s548 + $0x139] sm:$0xff] %vm386, %v468
        %576 = vst.msk [vmem:[%s548 + $0x141] sm:$0xff] %vm386, %v469
        %577 = vst.msk [vmem:[%s548 + $0x151] sm:$0xff] %vm386, %v470
        %578 = vst.msk [vmem:[%s548 + $0x159] sm:$0xff] %vm386, %v471
        %579 = vst.msk [vmem:[%s548 + $0x169] sm:$0xff] %vm386, %v472
        %580 = vst.msk [vmem:[%s548 + $0x171] sm:$0xff] %vm386, %v473
        %v581 = vld [vmem:[#allocation2] sm:$0xff]
        %v582 = vld [vmem:[#allocation2 + $0x8] sm:$0xff]
        %v583 = vld [vmem:[#allocation2 + $0x18] sm:$0xff]
        %v584 = vld [vmem:[#allocation2 + $0x20] sm:$0xff]
        %v585 = vld [vmem:[#allocation2 + $0x30] sm:$0xff]
        %v586 = vld [vmem:[#allocation2 + $0x38] sm:$0xff]
        %v587 = vld [vmem:[#allocation2 + $0x48] sm:$0xff]
        %v588 = vld [vmem:[#allocation2 + $0x50] sm:$0xff]
        %v589 = vld [vmem:[#allocation2 + $0x60] sm:$0xff]
        %v590 = vld [vmem:[#allocation2 + $0x68] sm:$0xff]
        %v591 = vld [vmem:[#allocation2 + $0x78] sm:$0xff]
        %v592 = vld [vmem:[#allocation2 + $0x80] sm:$0xff]
        %v593 = vld [vmem:[#allocation2 + $0x90] sm:$0xff]
        %v594 = vld [vmem:[#allocation2 + $0x98] sm:$0xff]
        %v595 = vld [vmem:[#allocation2 + $0xa8] sm:$0xff]
        %v596 = vld [vmem:[#allocation2 + $0xb0] sm:$0xff]
        %v597 = vld [vmem:[#allocation2 + $0xc0] sm:$0xff]
        %v598 = vld [vmem:[#allocation2 + $0xc8] sm:$0xff]
        %v599 = vld [vmem:[#allocation2 + $0xd8] sm:$0xff]
        %v600 = vld [vmem:[#allocation2 + $0xe0] sm:$0xff]
        %v601 = vld [vmem:[#allocation2 + $0xf0] sm:$0xff]
        %v602 = vld [vmem:[#allocation2 + $0xf8] sm:$0xff]
        %v603 = vld [vmem:[#allocation2 + $0x108] sm:$0xff]
        %v604 = vld [vmem:[#allocation2 + $0x110] sm:$0xff]
        %v605 = vld [vmem:[#allocation2 + $0x120] sm:$0xff]
        %v606 = vld [vmem:[#allocation2 + $0x128] sm:$0xff]
        %v607 = vld [vmem:[#allocation2 + $0x138] sm:$0xff]
        %v608 = vld [vmem:[#allocation2 + $0x140] sm:$0xff]
        %v609 = vld [vmem:[#allocation2 + $0x150] sm:$0xff]
        %v610 = vld [vmem:[#allocation2 + $0x158] sm:$0xff]
        %v611 = vld [vmem:[#allocation2 + $0x168] sm:$0xff]
        %v612 = vld [vmem:[#allocation2 + $0x170] sm:$0xff]
        %v613 = vld [vmem:[#allocation2 + $0x1] sm:$0xff]
        %v614 = vld [vmem:[#allocation2 + $0x9] sm:$0xff]
        %v615 = vld [vmem:[#allocation2 + $0x19] sm:$0xff]
        %v616 = vld [vmem:[#allocation2 + $0x21] sm:$0xff]
        %v617 = vld [vmem:[#allocation2 + $0x31] sm:$0xff]
        %v618 = vld [vmem:[#allocation2 + $0x39] sm:$0xff]
        %v619 = vld [vmem:[#allocation2 + $0x49] sm:$0xff]
        %v620 = vld [vmem:[#allocation2 + $0x51] sm:$0xff]
        %v621 = vld [vmem:[#allocation2 + $0x61] sm:$0xff]
        %v622 = vld [vmem:[#allocation2 + $0x69] sm:$0xff]
        %v623 = vld [vmem:[#allocation2 + $0x79] sm:$0xff]
        %v624 = vld [vmem:[#allocation2 + $0x81] sm:$0xff]
        %v625 = vld [vmem:[#allocation2 + $0x91] sm:$0xff]
        %v626 = vld [vmem:[#allocation2 + $0x99] sm:$0xff]
        %v627 = vld [vmem:[#allocation2 + $0xa9] sm:$0xff]
        %v628 = vld [vmem:[#allocation2 + $0xb1] sm:$0xff]
        %v629 = vld [vmem:[#allocation2 + $0xc1] sm:$0xff]
        %v630 = vld [vmem:[#allocation2 + $0xc9] sm:$0xff]
        %v631 = vld [vmem:[#allocation2 + $0xd9] sm:$0xff]
        %v632 = vld [vmem:[#allocation2 + $0xe1] sm:$0xff]
        %v633 = vld [vmem:[#allocation2 + $0xf1] sm:$0xff]
        %v634 = vld [vmem:[#allocation2 + $0xf9] sm:$0xff]
        %v635 = vld [vmem:[#allocation2 + $0x109] sm:$0xff]
        %v636 = vld [vmem:[#allocation2 + $0x111] sm:$0xff]
        %v637 = vld [vmem:[#allocation2 + $0x121] sm:$0xff]
        %v638 = vld [vmem:[#allocation2 + $0x129] sm:$0xff]
        %v639 = vld [vmem:[#allocation2 + $0x139] sm:$0xff]
        %v640 = vld [vmem:[#allocation2 + $0x141] sm:$0xff]
        %v641 = vld [vmem:[#allocation2 + $0x151] sm:$0xff]
        %v642 = vld [vmem:[#allocation2 + $0x159] sm:$0xff]
        %v643 = vld [vmem:[#allocation2 + $0x169] sm:$0xff]
        %v644 = vld [vmem:[#allocation2 + $0x171] sm:$0xff]
        %v645 = vld [vmem:[#allocation2 + $0x2] sm:$0xff]
        %v646 = vld [vmem:[#allocation2 + $0xa] sm:$0xff]
        %v647 = vld [vmem:[#allocation2 + $0x1a] sm:$0xff]
        %v648 = vld [vmem:[#allocation2 + $0x22] sm:$0xff]
        %v649 = vld [vmem:[#allocation2 + $0x32] sm:$0xff]
        %v650 = vld [vmem:[#allocation2 + $0x3a] sm:$0xff]
        %v651 = vld [vmem:[#allocation2 + $0x4a] sm:$0xff]
        %v652 = vld [vmem:[#allocation2 + $0x52] sm:$0xff]
        %v653 = vld [vmem:[#allocation2 + $0x62] sm:$0xff]
        %v654 = vld [vmem:[#allocation2 + $0x6a] sm:$0xff]
        %v655 = vld [vmem:[#allocation2 + $0x7a] sm:$0xff]
        %v656 = vld [vmem:[#allocation2 + $0x82] sm:$0xff]
        %v657 = vld [vmem:[#allocation2 + $0x92] sm:$0xff]
        %v658 = vld [vmem:[#allocation2 + $0x9a] sm:$0xff]
        %v659 = vld [vmem:[#allocation2 + $0xaa] sm:$0xff]
        %v660 = vld [vmem:[#allocation2 + $0xb2] sm:$0xff]
        %v661 = vld [vmem:[#allocation2 + $0xc2] sm:$0xff]
        %v662 = vld [vmem:[#allocation2 + $0xca] sm:$0xff]
        %v663 = vld [vmem:[#allocation2 + $0xda] sm:$0xff]
        %v664 = vld [vmem:[#allocation2 + $0xe2] sm:$0xff]
        %v665 = vld [vmem:[#allocation2 + $0xf2] sm:$0xff]
        %v666 = vld [vmem:[#allocation2 + $0xfa] sm:$0xff]
        %v667 = vld [vmem:[#allocation2 + $0x10a] sm:$0xff]
        %v668 = vld [vmem:[#allocation2 + $0x112] sm:$0xff]
        %v669 = vld [vmem:[#allocation2 + $0x122] sm:$0xff]
        %v670 = vld [vmem:[#allocation2 + $0x12a] sm:$0xff]
        %v671 = vld [vmem:[#allocation2 + $0x13a] sm:$0xff]
        %v672 = vld [vmem:[#allocation2 + $0x142] sm:$0xff]
        %v673 = vld [vmem:[#allocation2 + $0x152] sm:$0xff]
        %v674 = vld [vmem:[#allocation2 + $0x15a] sm:$0xff]
        %v675 = vld [vmem:[#allocation2 + $0x16a] sm:$0xff]
        %v676 = vld [vmem:[#allocation2 + $0x172] sm:$0xff]
        %v677 = vld [vmem:[%s548] sm:$0xff]
        %v678 = vld [vmem:[%s548 + $0x8] sm:$0xff]
        %v679 = vld [vmem:[%s548 + $0x18] sm:$0xff]
        %v680 = vld [vmem:[%s548 + $0x20] sm:$0xff]
        %v681 = vld [vmem:[%s548 + $0x30] sm:$0xff]
        %v682 = vld [vmem:[%s548 + $0x38] sm:$0xff]
        %v683 = vld [vmem:[%s548 + $0x48] sm:$0xff]
        %v684 = vld [vmem:[%s548 + $0x50] sm:$0xff]
        %v685 = vld [vmem:[%s548 + $0x60] sm:$0xff]
        %v686 = vld [vmem:[%s548 + $0x68] sm:$0xff]
        %v687 = vld [vmem:[%s548 + $0x78] sm:$0xff]
        %v688 = vld [vmem:[%s548 + $0x80] sm:$0xff]
        %v689 = vld [vmem:[%s548 + $0x90] sm:$0xff]
        %v690 = vld [vmem:[%s548 + $0x98] sm:$0xff]
        %v691 = vld [vmem:[%s548 + $0xa8] sm:$0xff]
        %v692 = vld [vmem:[%s548 + $0xb0] sm:$0xff]
        %v693 = vld [vmem:[%s548 + $0xc0] sm:$0xff]
        %v694 = vld [vmem:[%s548 + $0xc8] sm:$0xff]
        %v695 = vld [vmem:[%s548 + $0xd8] sm:$0xff]
        %v696 = vld [vmem:[%s548 + $0xe0] sm:$0xff]
        %v697 = vld [vmem:[%s548 + $0xf0] sm:$0xff]
        %v698 = vld [vmem:[%s548 + $0xf8] sm:$0xff]
        %v699 = vld [vmem:[%s548 + $0x108] sm:$0xff]
        %v700 = vld [vmem:[%s548 + $0x110] sm:$0xff]
        %v701 = vld [vmem:[%s548 + $0x120] sm:$0xff]
        %v702 = vld [vmem:[%s548 + $0x128] sm:$0xff]
        %v703 = vld [vmem:[%s548 + $0x138] sm:$0xff]
        %v704 = vld [vmem:[%s548 + $0x140] sm:$0xff]
        %v705 = vld [vmem:[%s548 + $0x150] sm:$0xff]
        %v706 = vld [vmem:[%s548 + $0x158] sm:$0xff]
        %v707 = vld [vmem:[%s548 + $0x168] sm:$0xff]
        %v708 = vld [vmem:[%s548 + $0x170] sm:$0xff]
        %v709 = vld [vmem:[%s548 + $0x1] sm:$0xff]
        %v710 = vld [vmem:[%s548 + $0x9] sm:$0xff]
        %v711 = vld [vmem:[%s548 + $0x19] sm:$0xff]
        %v712 = vld [vmem:[%s548 + $0x21] sm:$0xff]
        %v713 = vld [vmem:[%s548 + $0x31] sm:$0xff]
        %v714 = vld [vmem:[%s548 + $0x39] sm:$0xff]
        %v715 = vld [vmem:[%s548 + $0x49] sm:$0xff]
        %v716 = vld [vmem:[%s548 + $0x51] sm:$0xff]
        %v717 = vld [vmem:[%s548 + $0x61] sm:$0xff]
        %v718 = vld [vmem:[%s548 + $0x69] sm:$0xff]
        %v719 = vld [vmem:[%s548 + $0x79] sm:$0xff]
        %v720 = vld [vmem:[%s548 + $0x81] sm:$0xff]
        %v721 = vld [vmem:[%s548 + $0x91] sm:$0xff]
        %v722 = vld [vmem:[%s548 + $0x99] sm:$0xff]
        %v723 = vld [vmem:[%s548 + $0xa9] sm:$0xff]
        %v724 = vld [vmem:[%s548 + $0xb1] sm:$0xff]
        %v725 = vld [vmem:[%s548 + $0xc1] sm:$0xff]
        %v726 = vld [vmem:[%s548 + $0xc9] sm:$0xff]
        %v727 = vld [vmem:[%s548 + $0xd9] sm:$0xff]
        %v728 = vld [vmem:[%s548 + $0xe1] sm:$0xff]
        %v729 = vld [vmem:[%s548 + $0xf1] sm:$0xff]
        %v730 = vld [vmem:[%s548 + $0xf9] sm:$0xff]
        %v731 = vld [vmem:[%s548 + $0x109] sm:$0xff]
        %v732 = vld [vmem:[%s548 + $0x111] sm:$0xff]
        %v733 = vld [vmem:[%s548 + $0x121] sm:$0xff]
        %v734 = vld [vmem:[%s548 + $0x129] sm:$0xff]
        %v735 = vld [vmem:[%s548 + $0x139] sm:$0xff]
        %v736 = vld [vmem:[%s548 + $0x141] sm:$0xff]
        %v737 = vld [vmem:[%s548 + $0x151] sm:$0xff]
        %v738 = vld [vmem:[%s548 + $0x159] sm:$0xff]
        %v739 = vld [vmem:[%s548 + $0x169] sm:$0xff]
        %v740 = vld [vmem:[%s548 + $0x171] sm:$0xff]
        %v741 = vld [vmem:[%s548 + $0x2] sm:$0xff]
        %v742 = vld [vmem:[%s548 + $0xa] sm:$0xff]
        %v743 = vld [vmem:[%s548 + $0x1a] sm:$0xff]
        %v744 = vld [vmem:[%s548 + $0x22] sm:$0xff]
        %v745 = vld [vmem:[%s548 + $0x32] sm:$0xff]
        %v746 = vld [vmem:[%s548 + $0x3a] sm:$0xff]
        %v747 = vld [vmem:[%s548 + $0x4a] sm:$0xff]
        %v748 = vld [vmem:[%s548 + $0x52] sm:$0xff]
        %v749 = vld [vmem:[%s548 + $0x62] sm:$0xff]
        %v750 = vld [vmem:[%s548 + $0x6a] sm:$0xff]
        %v751 = vld [vmem:[%s548 + $0x7a] sm:$0xff]
        %v752 = vld [vmem:[%s548 + $0x82] sm:$0xff]
        %v753 = vld [vmem:[%s548 + $0x92] sm:$0xff]
        %v754 = vld [vmem:[%s548 + $0x9a] sm:$0xff]
        %v755 = vld [vmem:[%s548 + $0xaa] sm:$0xff]
        %v756 = vld [vmem:[%s548 + $0xb2] sm:$0xff]
        %v757 = vld [vmem:[%s548 + $0xc2] sm:$0xff]
        %v758 = vld [vmem:[%s548 + $0xca] sm:$0xff]
        %v759 = vld [vmem:[%s548 + $0xda] sm:$0xff]
        %v760 = vld [vmem:[%s548 + $0xe2] sm:$0xff]
        %v761 = vld [vmem:[%s548 + $0xf2] sm:$0xff]
        %v762 = vld [vmem:[%s548 + $0xfa] sm:$0xff]
        %v763 = vld [vmem:[%s548 + $0x10a] sm:$0xff]
        %v764 = vld [vmem:[%s548 + $0x112] sm:$0xff]
        %v765 = vld [vmem:[%s548 + $0x122] sm:$0xff]
        %v766 = vld [vmem:[%s548 + $0x12a] sm:$0xff]
        %v767 = vld [vmem:[%s548 + $0x13a] sm:$0xff]
        %v768 = vld [vmem:[%s548 + $0x142] sm:$0xff]
        %v769 = vld [vmem:[%s548 + $0x152] sm:$0xff]
        %v770 = vld [vmem:[%s548 + $0x15a] sm:$0xff]
        %v771 = vld [vmem:[%s548 + $0x16a] sm:$0xff]
        %v772 = vld [vmem:[%s548 + $0x172] sm:$0xff]
        %s773 = scalar_lea.vmem [#allocation2], 48
        %v774 = vld [vmem:[%s773] sm:$0xff]
        %v775 = vld [vmem:[%s773 + $0x8] sm:$0xff]
        %v776 = vld [vmem:[%s773 + $0x18] sm:$0xff]
        %v777 = vld [vmem:[%s773 + $0x20] sm:$0xff]
        %v778 = vld [vmem:[%s773 + $0x30] sm:$0xff]
        %v779 = vld [vmem:[%s773 + $0x38] sm:$0xff]
        %v780 = vld [vmem:[%s773 + $0x48] sm:$0xff]
        %v781 = vld [vmem:[%s773 + $0x50] sm:$0xff]
        %v782 = vld [vmem:[%s773 + $0x60] sm:$0xff]
        %v783 = vld [vmem:[%s773 + $0x68] sm:$0xff]
        %v784 = vld [vmem:[%s773 + $0x78] sm:$0xff]
        %v785 = vld [vmem:[%s773 + $0x80] sm:$0xff]
        %v786 = vld [vmem:[%s773 + $0x90] sm:$0xff]
        %v787 = vld [vmem:[%s773 + $0x98] sm:$0xff]
        %v788 = vld [vmem:[%s773 + $0xa8] sm:$0xff]
        %v789 = vld [vmem:[%s773 + $0xb0] sm:$0xff]
        %v790 = vld [vmem:[%s773 + $0xc0] sm:$0xff]
        %v791 = vld [vmem:[%s773 + $0xc8] sm:$0xff]
        %v792 = vld [vmem:[%s773 + $0xd8] sm:$0xff]
        %v793 = vld [vmem:[%s773 + $0xe0] sm:$0xff]
        %v794 = vld [vmem:[%s773 + $0xf0] sm:$0xff]
        %v795 = vld [vmem:[%s773 + $0xf8] sm:$0xff]
        %v796 = vld [vmem:[%s773 + $0x108] sm:$0xff]
        %v797 = vld [vmem:[%s773 + $0x110] sm:$0xff]
        %v798 = vld [vmem:[%s773 + $0x120] sm:$0xff]
        %v799 = vld [vmem:[%s773 + $0x128] sm:$0xff]
        %v800 = vld [vmem:[%s773 + $0x138] sm:$0xff]
        %v801 = vld [vmem:[%s773 + $0x140] sm:$0xff]
        %v802 = vld [vmem:[%s773 + $0x150] sm:$0xff]
        %v803 = vld [vmem:[%s773 + $0x158] sm:$0xff]
        %v804 = vld [vmem:[%s773 + $0x168] sm:$0xff]
        %v805 = vld [vmem:[%s773 + $0x170] sm:$0xff]
        %v806 = vld [vmem:[%s773 + $0x1] sm:$0xff]
        %v807 = vld [vmem:[%s773 + $0x9] sm:$0xff]
        %v808 = vld [vmem:[%s773 + $0x19] sm:$0xff]
        %v809 = vld [vmem:[%s773 + $0x21] sm:$0xff]
        %v810 = vld [vmem:[%s773 + $0x31] sm:$0xff]
        %v811 = vld [vmem:[%s773 + $0x39] sm:$0xff]
        %v812 = vld [vmem:[%s773 + $0x49] sm:$0xff]
        %v813 = vld [vmem:[%s773 + $0x51] sm:$0xff]
        %v814 = vld [vmem:[%s773 + $0x61] sm:$0xff]
        %v815 = vld [vmem:[%s773 + $0x69] sm:$0xff]
        %v816 = vld [vmem:[%s773 + $0x79] sm:$0xff]
        %v817 = vld [vmem:[%s773 + $0x81] sm:$0xff]
        %v818 = vld [vmem:[%s773 + $0x91] sm:$0xff]
        %v819 = vld [vmem:[%s773 + $0x99] sm:$0xff]
        %v820 = vld [vmem:[%s773 + $0xa9] sm:$0xff]
        %v821 = vld [vmem:[%s773 + $0xb1] sm:$0xff]
        %v822 = vld [vmem:[%s773 + $0xc1] sm:$0xff]
        %v823 = vld [vmem:[%s773 + $0xc9] sm:$0xff]
        %v824 = vld [vmem:[%s773 + $0xd9] sm:$0xff]
        %v825 = vld [vmem:[%s773 + $0xe1] sm:$0xff]
        %v826 = vld [vmem:[%s773 + $0xf1] sm:$0xff]
        %v827 = vld [vmem:[%s773 + $0xf9] sm:$0xff]
        %v828 = vld [vmem:[%s773 + $0x109] sm:$0xff]
        %v829 = vld [vmem:[%s773 + $0x111] sm:$0xff]
        %v830 = vld [vmem:[%s773 + $0x121] sm:$0xff]
        %v831 = vld [vmem:[%s773 + $0x129] sm:$0xff]
        %v832 = vld [vmem:[%s773 + $0x139] sm:$0xff]
        %v833 = vld [vmem:[%s773 + $0x141] sm:$0xff]
        %v834 = vld [vmem:[%s773 + $0x151] sm:$0xff]
        %v835 = vld [vmem:[%s773 + $0x159] sm:$0xff]
        %v836 = vld [vmem:[%s773 + $0x169] sm:$0xff]
        %v837 = vld [vmem:[%s773 + $0x171] sm:$0xff]
        %v838 = vld [vmem:[%s773 + $0x2] sm:$0xff]
        %v839 = vld [vmem:[%s773 + $0xa] sm:$0xff]
        %v840 = vld [vmem:[%s773 + $0x1a] sm:$0xff]
        %v841 = vld [vmem:[%s773 + $0x22] sm:$0xff]
        %v842 = vld [vmem:[%s773 + $0x32] sm:$0xff]
        %v843 = vld [vmem:[%s773 + $0x3a] sm:$0xff]
        %v844 = vld [vmem:[%s773 + $0x4a] sm:$0xff]
        %v845 = vld [vmem:[%s773 + $0x52] sm:$0xff]
        %v846 = vld [vmem:[%s773 + $0x62] sm:$0xff]
        %v847 = vld [vmem:[%s773 + $0x6a] sm:$0xff]
        %v848 = vld [vmem:[%s773 + $0x7a] sm:$0xff]
        %v849 = vld [vmem:[%s773 + $0x82] sm:$0xff]
        %v850 = vld [vmem:[%s773 + $0x92] sm:$0xff]
        %v851 = vld [vmem:[%s773 + $0x9a] sm:$0xff]
        %v852 = vld [vmem:[%s773 + $0xaa] sm:$0xff]
        %v853 = vld [vmem:[%s773 + $0xb2] sm:$0xff]
        %v854 = vld [vmem:[%s773 + $0xc2] sm:$0xff]
        %v855 = vld [vmem:[%s773 + $0xca] sm:$0xff]
        %v856 = vld [vmem:[%s773 + $0xda] sm:$0xff]
        %v857 = vld [vmem:[%s773 + $0xe2] sm:$0xff]
        %v858 = vld [vmem:[%s773 + $0xf2] sm:$0xff]
        %v859 = vld [vmem:[%s773 + $0xfa] sm:$0xff]
        %v860 = vld [vmem:[%s773 + $0x10a] sm:$0xff]
        %v861 = vld [vmem:[%s773 + $0x112] sm:$0xff]
        %v862 = vld [vmem:[%s773 + $0x122] sm:$0xff]
        %v863 = vld [vmem:[%s773 + $0x12a] sm:$0xff]
        %v864 = vld [vmem:[%s773 + $0x13a] sm:$0xff]
        %v865 = vld [vmem:[%s773 + $0x142] sm:$0xff]
        %v866 = vld [vmem:[%s773 + $0x152] sm:$0xff]
        %v867 = vld [vmem:[%s773 + $0x15a] sm:$0xff]
        %v868 = vld [vmem:[%s773 + $0x16a] sm:$0xff]
        %v869 = vld [vmem:[%s773 + $0x172] sm:$0xff]
        %902 = vrot.lane.b32.xlu0 %v613, 32
        %v903 = vpop.permute.xlu0 %902
        %904 = vrot.lane.b32.xlu0 %v614, 32
        %v905 = vpop.permute.xlu0 %904
        %906 = vrot.lane.b32.xlu0 %v615, 32
        %v907 = vpop.permute.xlu0 %906
        %908 = vrot.lane.b32.xlu0 %v616, 32
        %v909 = vpop.permute.xlu0 %908
        %910 = vrot.lane.b32.xlu0 %v617, 32
        %v911 = vpop.permute.xlu0 %910
        %912 = vrot.lane.b32.xlu0 %v618, 32
        %v913 = vpop.permute.xlu0 %912
        %914 = vrot.lane.b32.xlu0 %v619, 32
        %v915 = vpop.permute.xlu0 %914
        %916 = vrot.lane.b32.xlu0 %v620, 32
        %v917 = vpop.permute.xlu0 %916
        %918 = vrot.lane.b32.xlu0 %v621, 32
        %v919 = vpop.permute.xlu0 %918
        %920 = vrot.lane.b32.xlu0 %v622, 32
        %v921 = vpop.permute.xlu0 %920
        %922 = vrot.lane.b32.xlu0 %v623, 32
        %v923 = vpop.permute.xlu0 %922
        %924 = vrot.lane.b32.xlu0 %v624, 32
        %v925 = vpop.permute.xlu0 %924
        %926 = vrot.lane.b32.xlu0 %v625, 32
        %v927 = vpop.permute.xlu0 %926
        %928 = vrot.lane.b32.xlu0 %v626, 32
        %v929 = vpop.permute.xlu0 %928
        %930 = vrot.lane.b32.xlu0 %v627, 32
        %v931 = vpop.permute.xlu0 %930
        %932 = vrot.lane.b32.xlu0 %v628, 32
        %v933 = vpop.permute.xlu0 %932
        %934 = vrot.lane.b32.xlu0 %v629, 32
        %v935 = vpop.permute.xlu0 %934
        %936 = vrot.lane.b32.xlu0 %v630, 32
        %v937 = vpop.permute.xlu0 %936
        %938 = vrot.lane.b32.xlu0 %v631, 32
        %v939 = vpop.permute.xlu0 %938
        %940 = vrot.lane.b32.xlu0 %v632, 32
        %v941 = vpop.permute.xlu0 %940
        %942 = vrot.lane.b32.xlu0 %v633, 32
        %v943 = vpop.permute.xlu0 %942
        %944 = vrot.lane.b32.xlu0 %v634, 32
        %v945 = vpop.permute.xlu0 %944
        %946 = vrot.lane.b32.xlu0 %v635, 32
        %v947 = vpop.permute.xlu0 %946
        %948 = vrot.lane.b32.xlu0 %v636, 32
        %v949 = vpop.permute.xlu0 %948
        %950 = vrot.lane.b32.xlu0 %v637, 32
        %v951 = vpop.permute.xlu0 %950
        %952 = vrot.lane.b32.xlu0 %v638, 32
        %v953 = vpop.permute.xlu0 %952
        %954 = vrot.lane.b32.xlu0 %v639, 32
        %v955 = vpop.permute.xlu0 %954
        %956 = vrot.lane.b32.xlu0 %v640, 32
        %v957 = vpop.permute.xlu0 %956
        %958 = vrot.lane.b32.xlu0 %v641, 32
        %v959 = vpop.permute.xlu0 %958
        %960 = vrot.lane.b32.xlu0 %v642, 32
        %v961 = vpop.permute.xlu0 %960
        %962 = vrot.lane.b32.xlu0 %v643, 32
        %v963 = vpop.permute.xlu0 %962
        %964 = vrot.lane.b32.xlu0 %v644, 32
        %v965 = vpop.permute.xlu0 %964
        %1030 = vrot.lane.b32.xlu0 %v645, 64
        %v1031 = vpop.permute.xlu0 %1030
        %1032 = vrot.lane.b32.xlu0 %v646, 64
        %v1033 = vpop.permute.xlu0 %1032
        %1034 = vrot.lane.b32.xlu0 %v647, 64
        %v1035 = vpop.permute.xlu0 %1034
        %1036 = vrot.lane.b32.xlu0 %v648, 64
        %v1037 = vpop.permute.xlu0 %1036
        %1038 = vrot.lane.b32.xlu0 %v649, 64
        %v1039 = vpop.permute.xlu0 %1038
        %1040 = vrot.lane.b32.xlu0 %v650, 64
        %v1041 = vpop.permute.xlu0 %1040
        %1042 = vrot.lane.b32.xlu0 %v651, 64
        %v1043 = vpop.permute.xlu0 %1042
        %1044 = vrot.lane.b32.xlu0 %v652, 64
        %v1045 = vpop.permute.xlu0 %1044
        %1046 = vrot.lane.b32.xlu0 %v653, 64
        %v1047 = vpop.permute.xlu0 %1046
        %1048 = vrot.lane.b32.xlu0 %v654, 64
        %v1049 = vpop.permute.xlu0 %1048
        %1050 = vrot.lane.b32.xlu0 %v655, 64
        %v1051 = vpop.permute.xlu0 %1050
        %1052 = vrot.lane.b32.xlu0 %v656, 64
        %v1053 = vpop.permute.xlu0 %1052
        %1054 = vrot.lane.b32.xlu0 %v657, 64
        %v1055 = vpop.permute.xlu0 %1054
        %1056 = vrot.lane.b32.xlu0 %v658, 64
        %v1057 = vpop.permute.xlu0 %1056
        %1058 = vrot.lane.b32.xlu0 %v659, 64
        %v1059 = vpop.permute.xlu0 %1058
        %1060 = vrot.lane.b32.xlu0 %v660, 64
        %v1061 = vpop.permute.xlu0 %1060
        %1062 = vrot.lane.b32.xlu0 %v661, 64
        %v1063 = vpop.permute.xlu0 %1062
        %1064 = vrot.lane.b32.xlu0 %v662, 64
        %v1065 = vpop.permute.xlu0 %1064
        %1066 = vrot.lane.b32.xlu0 %v663, 64
        %v1067 = vpop.permute.xlu0 %1066
        %1068 = vrot.lane.b32.xlu0 %v664, 64
        %v1069 = vpop.permute.xlu0 %1068
        %1070 = vrot.lane.b32.xlu0 %v665, 64
        %v1071 = vpop.permute.xlu0 %1070
        %1072 = vrot.lane.b32.xlu0 %v666, 64
        %v1073 = vpop.permute.xlu0 %1072
        %1074 = vrot.lane.b32.xlu0 %v667, 64
        %v1075 = vpop.permute.xlu0 %1074
        %1076 = vrot.lane.b32.xlu0 %v668, 64
        %v1077 = vpop.permute.xlu0 %1076
        %1078 = vrot.lane.b32.xlu0 %v669, 64
        %v1079 = vpop.permute.xlu0 %1078
        %1080 = vrot.lane.b32.xlu0 %v670, 64
        %v1081 = vpop.permute.xlu0 %1080
        %1082 = vrot.lane.b32.xlu0 %v671, 64
        %v1083 = vpop.permute.xlu0 %1082
        %1084 = vrot.lane.b32.xlu0 %v672, 64
        %v1085 = vpop.permute.xlu0 %1084
        %1086 = vrot.lane.b32.xlu0 %v673, 64
        %v1087 = vpop.permute.xlu0 %1086
        %1088 = vrot.lane.b32.xlu0 %v674, 64
        %v1089 = vpop.permute.xlu0 %1088
        %1090 = vrot.lane.b32.xlu0 %v675, 64
        %v1091 = vpop.permute.xlu0 %1090
        %1092 = vrot.lane.b32.xlu0 %v676, 64
        %v1093 = vpop.permute.xlu0 %1092
        %1158 = vrot.lane.b32.xlu0 %v677, 96
        %v1159 = vpop.permute.xlu0 %1158
        %1160 = vrot.lane.b32.xlu0 %v678, 96
        %v1161 = vpop.permute.xlu0 %1160
        %1162 = vrot.lane.b32.xlu0 %v679, 96
        %v1163 = vpop.permute.xlu0 %1162
        %1164 = vrot.lane.b32.xlu0 %v680, 96
        %v1165 = vpop.permute.xlu0 %1164
        %1166 = vrot.lane.b32.xlu0 %v681, 96
        %v1167 = vpop.permute.xlu0 %1166
        %1168 = vrot.lane.b32.xlu0 %v682, 96
        %v1169 = vpop.permute.xlu0 %1168
        %1170 = vrot.lane.b32.xlu0 %v683, 96
        %v1171 = vpop.permute.xlu0 %1170
        %1172 = vrot.lane.b32.xlu0 %v684, 96
        %v1173 = vpop.permute.xlu0 %1172
        %1174 = vrot.lane.b32.xlu0 %v685, 96
        %v1175 = vpop.permute.xlu0 %1174
        %1176 = vrot.lane.b32.xlu0 %v686, 96
        %v1177 = vpop.permute.xlu0 %1176
        %1178 = vrot.lane.b32.xlu0 %v687, 96
        %v1179 = vpop.permute.xlu0 %1178
        %1180 = vrot.lane.b32.xlu0 %v688, 96
        %v1181 = vpop.permute.xlu0 %1180
        %1182 = vrot.lane.b32.xlu0 %v689, 96
        %v1183 = vpop.permute.xlu0 %1182
        %1184 = vrot.lane.b32.xlu0 %v690, 96
        %v1185 = vpop.permute.xlu0 %1184
        %1186 = vrot.lane.b32.xlu0 %v691, 96
        %v1187 = vpop.permute.xlu0 %1186
        %1188 = vrot.lane.b32.xlu0 %v692, 96
        %v1189 = vpop.permute.xlu0 %1188
        %1190 = vrot.lane.b32.xlu0 %v693, 96
        %v1191 = vpop.permute.xlu0 %1190
        %1192 = vrot.lane.b32.xlu0 %v694, 96
        %v1193 = vpop.permute.xlu0 %1192
        %1194 = vrot.lane.b32.xlu0 %v695, 96
        %v1195 = vpop.permute.xlu0 %1194
        %1196 = vrot.lane.b32.xlu0 %v696, 96
        %v1197 = vpop.permute.xlu0 %1196
        %1198 = vrot.lane.b32.xlu0 %v697, 96
        %v1199 = vpop.permute.xlu0 %1198
        %1200 = vrot.lane.b32.xlu0 %v698, 96
        %v1201 = vpop.permute.xlu0 %1200
        %1202 = vrot.lane.b32.xlu0 %v699, 96
        %v1203 = vpop.permute.xlu0 %1202
        %1204 = vrot.lane.b32.xlu0 %v700, 96
        %v1205 = vpop.permute.xlu0 %1204
        %1206 = vrot.lane.b32.xlu0 %v701, 96
        %v1207 = vpop.permute.xlu0 %1206
        %1208 = vrot.lane.b32.xlu0 %v702, 96
        %v1209 = vpop.permute.xlu0 %1208
        %1210 = vrot.lane.b32.xlu0 %v703, 96
        %v1211 = vpop.permute.xlu0 %1210
        %1212 = vrot.lane.b32.xlu0 %v704, 96
        %v1213 = vpop.permute.xlu0 %1212
        %1214 = vrot.lane.b32.xlu0 %v705, 96
        %v1215 = vpop.permute.xlu0 %1214
        %1216 = vrot.lane.b32.xlu0 %v706, 96
        %v1217 = vpop.permute.xlu0 %1216
        %1218 = vrot.lane.b32.xlu0 %v707, 96
        %v1219 = vpop.permute.xlu0 %1218
        %1220 = vrot.lane.b32.xlu0 %v708, 96
        %v1221 = vpop.permute.xlu0 %1220
        %1286 = vrot.lane.b32.xlu0 %v741, 32
        %v1287 = vpop.permute.xlu0 %1286
        %1288 = vrot.lane.b32.xlu0 %v742, 32
        %v1289 = vpop.permute.xlu0 %1288
        %1290 = vrot.lane.b32.xlu0 %v743, 32
        %v1291 = vpop.permute.xlu0 %1290
        %1292 = vrot.lane.b32.xlu0 %v744, 32
        %v1293 = vpop.permute.xlu0 %1292
        %1294 = vrot.lane.b32.xlu0 %v745, 32
        %v1295 = vpop.permute.xlu0 %1294
        %1296 = vrot.lane.b32.xlu0 %v746, 32
        %v1297 = vpop.permute.xlu0 %1296
        %1298 = vrot.lane.b32.xlu0 %v747, 32
        %v1299 = vpop.permute.xlu0 %1298
        %1300 = vrot.lane.b32.xlu0 %v748, 32
        %v1301 = vpop.permute.xlu0 %1300
        %1302 = vrot.lane.b32.xlu0 %v749, 32
        %v1303 = vpop.permute.xlu0 %1302
        %1304 = vrot.lane.b32.xlu0 %v750, 32
        %v1305 = vpop.permute.xlu0 %1304
        %1306 = vrot.lane.b32.xlu0 %v751, 32
        %v1307 = vpop.permute.xlu0 %1306
        %1308 = vrot.lane.b32.xlu0 %v752, 32
        %v1309 = vpop.permute.xlu0 %1308
        %1310 = vrot.lane.b32.xlu0 %v753, 32
        %v1311 = vpop.permute.xlu0 %1310
        %1312 = vrot.lane.b32.xlu0 %v754, 32
        %v1313 = vpop.permute.xlu0 %1312
        %1314 = vrot.lane.b32.xlu0 %v755, 32
        %v1315 = vpop.permute.xlu0 %1314
        %1316 = vrot.lane.b32.xlu0 %v756, 32
        %v1317 = vpop.permute.xlu0 %1316
        %1318 = vrot.lane.b32.xlu0 %v757, 32
        %v1319 = vpop.permute.xlu0 %1318
        %1320 = vrot.lane.b32.xlu0 %v758, 32
        %v1321 = vpop.permute.xlu0 %1320
        %1322 = vrot.lane.b32.xlu0 %v759, 32
        %v1323 = vpop.permute.xlu0 %1322
        %1324 = vrot.lane.b32.xlu0 %v760, 32
        %v1325 = vpop.permute.xlu0 %1324
        %1326 = vrot.lane.b32.xlu0 %v761, 32
        %v1327 = vpop.permute.xlu0 %1326
        %1328 = vrot.lane.b32.xlu0 %v762, 32
        %v1329 = vpop.permute.xlu0 %1328
        %1330 = vrot.lane.b32.xlu0 %v763, 32
        %v1331 = vpop.permute.xlu0 %1330
        %1332 = vrot.lane.b32.xlu0 %v764, 32
        %v1333 = vpop.permute.xlu0 %1332
        %1334 = vrot.lane.b32.xlu0 %v765, 32
        %v1335 = vpop.permute.xlu0 %1334
        %1336 = vrot.lane.b32.xlu0 %v766, 32
        %v1337 = vpop.permute.xlu0 %1336
        %1338 = vrot.lane.b32.xlu0 %v767, 32
        %v1339 = vpop.permute.xlu0 %1338
        %1340 = vrot.lane.b32.xlu0 %v768, 32
        %v1341 = vpop.permute.xlu0 %1340
        %1342 = vrot.lane.b32.xlu0 %v769, 32
        %v1343 = vpop.permute.xlu0 %1342
        %1344 = vrot.lane.b32.xlu0 %v770, 32
        %v1345 = vpop.permute.xlu0 %1344
        %1346 = vrot.lane.b32.xlu0 %v771, 32
        %v1347 = vpop.permute.xlu0 %1346
        %1348 = vrot.lane.b32.xlu0 %v772, 32
        %v1349 = vpop.permute.xlu0 %1348
        %1414 = vrot.lane.b32.xlu0 %v774, 64
        %v1415 = vpop.permute.xlu0 %1414
        %1416 = vrot.lane.b32.xlu0 %v775, 64
        %v1417 = vpop.permute.xlu0 %1416
        %1418 = vrot.lane.b32.xlu0 %v776, 64
        %v1419 = vpop.permute.xlu0 %1418
        %1420 = vrot.lane.b32.xlu0 %v777, 64
        %v1421 = vpop.permute.xlu0 %1420
        %1422 = vrot.lane.b32.xlu0 %v778, 64
        %v1423 = vpop.permute.xlu0 %1422
        %1424 = vrot.lane.b32.xlu0 %v779, 64
        %v1425 = vpop.permute.xlu0 %1424
        %1426 = vrot.lane.b32.xlu0 %v780, 64
        %v1427 = vpop.permute.xlu0 %1426
        %1428 = vrot.lane.b32.xlu0 %v781, 64
        %v1429 = vpop.permute.xlu0 %1428
        %1430 = vrot.lane.b32.xlu0 %v782, 64
        %v1431 = vpop.permute.xlu0 %1430
        %1432 = vrot.lane.b32.xlu0 %v783, 64
        %v1433 = vpop.permute.xlu0 %1432
        %1434 = vrot.lane.b32.xlu0 %v784, 64
        %v1435 = vpop.permute.xlu0 %1434
        %1436 = vrot.lane.b32.xlu0 %v785, 64
        %v1437 = vpop.permute.xlu0 %1436
        %1438 = vrot.lane.b32.xlu0 %v786, 64
        %v1439 = vpop.permute.xlu0 %1438
        %1440 = vrot.lane.b32.xlu0 %v787, 64
        %v1441 = vpop.permute.xlu0 %1440
        %1442 = vrot.lane.b32.xlu0 %v788, 64
        %v1443 = vpop.permute.xlu0 %1442
        %1444 = vrot.lane.b32.xlu0 %v789, 64
        %v1445 = vpop.permute.xlu0 %1444
        %1446 = vrot.lane.b32.xlu0 %v790, 64
        %v1447 = vpop.permute.xlu0 %1446
        %1448 = vrot.lane.b32.xlu0 %v791, 64
        %v1449 = vpop.permute.xlu0 %1448
        %1450 = vrot.lane.b32.xlu0 %v792, 64
        %v1451 = vpop.permute.xlu0 %1450
        %1452 = vrot.lane.b32.xlu0 %v793, 64
        %v1453 = vpop.permute.xlu0 %1452
        %1454 = vrot.lane.b32.xlu0 %v794, 64
        %v1455 = vpop.permute.xlu0 %1454
        %1456 = vrot.lane.b32.xlu0 %v795, 64
        %v1457 = vpop.permute.xlu0 %1456
        %1458 = vrot.lane.b32.xlu0 %v796, 64
        %v1459 = vpop.permute.xlu0 %1458
        %1460 = vrot.lane.b32.xlu0 %v797, 64
        %v1461 = vpop.permute.xlu0 %1460
        %1462 = vrot.lane.b32.xlu0 %v798, 64
        %v1463 = vpop.permute.xlu0 %1462
        %1464 = vrot.lane.b32.xlu0 %v799, 64
        %v1465 = vpop.permute.xlu0 %1464
        %1466 = vrot.lane.b32.xlu0 %v800, 64
        %v1467 = vpop.permute.xlu0 %1466
        %1468 = vrot.lane.b32.xlu0 %v801, 64
        %v1469 = vpop.permute.xlu0 %1468
        %1470 = vrot.lane.b32.xlu0 %v802, 64
        %v1471 = vpop.permute.xlu0 %1470
        %1472 = vrot.lane.b32.xlu0 %v803, 64
        %v1473 = vpop.permute.xlu0 %1472
        %1474 = vrot.lane.b32.xlu0 %v804, 64
        %v1475 = vpop.permute.xlu0 %1474
        %1476 = vrot.lane.b32.xlu0 %v805, 64
        %v1477 = vpop.permute.xlu0 %1476
        %1542 = vrot.lane.b32.xlu0 %v806, 96
        %v1543 = vpop.permute.xlu0 %1542
        %1544 = vrot.lane.b32.xlu0 %v807, 96
        %v1545 = vpop.permute.xlu0 %1544
        %1546 = vrot.lane.b32.xlu0 %v808, 96
        %v1547 = vpop.permute.xlu0 %1546
        %1548 = vrot.lane.b32.xlu0 %v809, 96
        %v1549 = vpop.permute.xlu0 %1548
        %1550 = vrot.lane.b32.xlu0 %v810, 96
        %v1551 = vpop.permute.xlu0 %1550
        %1552 = vrot.lane.b32.xlu0 %v811, 96
        %v1553 = vpop.permute.xlu0 %1552
        %1554 = vrot.lane.b32.xlu0 %v812, 96
        %v1555 = vpop.permute.xlu0 %1554
        %1556 = vrot.lane.b32.xlu0 %v813, 96
        %v1557 = vpop.permute.xlu0 %1556
        %1558 = vrot.lane.b32.xlu0 %v814, 96
        %v1559 = vpop.permute.xlu0 %1558
        %1560 = vrot.lane.b32.xlu0 %v815, 96
        %v1561 = vpop.permute.xlu0 %1560
        %1562 = vrot.lane.b32.xlu0 %v816, 96
        %v1563 = vpop.permute.xlu0 %1562
        %1564 = vrot.lane.b32.xlu0 %v817, 96
        %v1565 = vpop.permute.xlu0 %1564
        %1566 = vrot.lane.b32.xlu0 %v818, 96
        %v1567 = vpop.permute.xlu0 %1566
        %1568 = vrot.lane.b32.xlu0 %v819, 96
        %v1569 = vpop.permute.xlu0 %1568
        %1570 = vrot.lane.b32.xlu0 %v820, 96
        %v1571 = vpop.permute.xlu0 %1570
        %1572 = vrot.lane.b32.xlu0 %v821, 96
        %v1573 = vpop.permute.xlu0 %1572
        %1574 = vrot.lane.b32.xlu0 %v822, 96
        %v1575 = vpop.permute.xlu0 %1574
        %1576 = vrot.lane.b32.xlu0 %v823, 96
        %v1577 = vpop.permute.xlu0 %1576
        %1578 = vrot.lane.b32.xlu0 %v824, 96
        %v1579 = vpop.permute.xlu0 %1578
        %1580 = vrot.lane.b32.xlu0 %v825, 96
        %v1581 = vpop.permute.xlu0 %1580
        %1582 = vrot.lane.b32.xlu0 %v826, 96
        %v1583 = vpop.permute.xlu0 %1582
        %1584 = vrot.lane.b32.xlu0 %v827, 96
        %v1585 = vpop.permute.xlu0 %1584
        %1586 = vrot.lane.b32.xlu0 %v828, 96
        %v1587 = vpop.permute.xlu0 %1586
        %1588 = vrot.lane.b32.xlu0 %v829, 96
        %v1589 = vpop.permute.xlu0 %1588
        %1590 = vrot.lane.b32.xlu0 %v830, 96
        %v1591 = vpop.permute.xlu0 %1590
        %1592 = vrot.lane.b32.xlu0 %v831, 96
        %v1593 = vpop.permute.xlu0 %1592
        %1594 = vrot.lane.b32.xlu0 %v832, 96
        %v1595 = vpop.permute.xlu0 %1594
        %1596 = vrot.lane.b32.xlu0 %v833, 96
        %v1597 = vpop.permute.xlu0 %1596
        %1598 = vrot.lane.b32.xlu0 %v834, 96
        %v1599 = vpop.permute.xlu0 %1598
        %1600 = vrot.lane.b32.xlu0 %v835, 96
        %v1601 = vpop.permute.xlu0 %1600
        %1602 = vrot.lane.b32.xlu0 %v836, 96
        %v1603 = vpop.permute.xlu0 %1602
        %1604 = vrot.lane.b32.xlu0 %v837, 96
        %v1605 = vpop.permute.xlu0 %1604
        %v1638 = vsel %vm386, %v581, %v903
        %v1639 = vsel %vm386, %v582, %v905
        %v1640 = vsel %vm386, %v583, %v907
        %v1641 = vsel %vm386, %v584, %v909
        %v1642 = vsel %vm386, %v585, %v911
        %v1643 = vsel %vm386, %v586, %v913
        %v1644 = vsel %vm386, %v587, %v915
        %v1645 = vsel %vm386, %v588, %v917
        %v1646 = vsel %vm386, %v589, %v919
        %v1647 = vsel %vm386, %v590, %v921
        %v1648 = vsel %vm386, %v591, %v923
        %v1649 = vsel %vm386, %v592, %v925
        %v1650 = vsel %vm386, %v593, %v927
        %v1651 = vsel %vm386, %v594, %v929
        %v1652 = vsel %vm386, %v595, %v931
        %v1653 = vsel %vm386, %v596, %v933
        %v1654 = vsel %vm386, %v597, %v935
        %v1655 = vsel %vm386, %v598, %v937
        %v1656 = vsel %vm386, %v599, %v939
        %v1657 = vsel %vm386, %v600, %v941
        %v1658 = vsel %vm386, %v601, %v943
        %v1659 = vsel %vm386, %v602, %v945
        %v1660 = vsel %vm386, %v603, %v947
        %v1661 = vsel %vm386, %v604, %v949
        %v1662 = vsel %vm386, %v605, %v951
        %v1663 = vsel %vm386, %v606, %v953
        %v1664 = vsel %vm386, %v607, %v955
        %v1665 = vsel %vm386, %v608, %v957
        %v1666 = vsel %vm386, %v609, %v959
        %v1667 = vsel %vm386, %v610, %v961
        %v1668 = vsel %vm386, %v611, %v963
        %v1669 = vsel %vm386, %v612, %v965
        %vm1670 = vcmask 523264
        %v1671 = vsel %vm1670, %v1638, %v1031
        %v1672 = vsel %vm1670, %v1639, %v1033
        %v1673 = vsel %vm1670, %v1640, %v1035
        %v1674 = vsel %vm1670, %v1641, %v1037
        %v1675 = vsel %vm1670, %v1642, %v1039
        %v1676 = vsel %vm1670, %v1643, %v1041
        %v1677 = vsel %vm1670, %v1644, %v1043
        %v1678 = vsel %vm1670, %v1645, %v1045
        %v1679 = vsel %vm1670, %v1646, %v1047
        %v1680 = vsel %vm1670, %v1647, %v1049
        %v1681 = vsel %vm1670, %v1648, %v1051
        %v1682 = vsel %vm1670, %v1649, %v1053
        %v1683 = vsel %vm1670, %v1650, %v1055
        %v1684 = vsel %vm1670, %v1651, %v1057
        %v1685 = vsel %vm1670, %v1652, %v1059
        %v1686 = vsel %vm1670, %v1653, %v1061
        %v1687 = vsel %vm1670, %v1654, %v1063
        %v1688 = vsel %vm1670, %v1655, %v1065
        %v1689 = vsel %vm1670, %v1656, %v1067
        %v1690 = vsel %vm1670, %v1657, %v1069
        %v1691 = vsel %vm1670, %v1658, %v1071
        %v1692 = vsel %vm1670, %v1659, %v1073
        %v1693 = vsel %vm1670, %v1660, %v1075
        %v1694 = vsel %vm1670, %v1661, %v1077
        %v1695 = vsel %vm1670, %v1662, %v1079
        %v1696 = vsel %vm1670, %v1663, %v1081
        %v1697 = vsel %vm1670, %v1664, %v1083
        %v1698 = vsel %vm1670, %v1665, %v1085
        %v1699 = vsel %vm1670, %v1666, %v1087
        %v1700 = vsel %vm1670, %v1667, %v1089
        %v1701 = vsel %vm1670, %v1668, %v1091
        %v1702 = vsel %vm1670, %v1669, %v1093
        %vm1703 = vcmask 785408
        %v1704 = vsel %vm1703, %v1671, %v1159
        %v1705 = vsel %vm1703, %v1672, %v1161
        %v1706 = vsel %vm1703, %v1673, %v1163
        %v1707 = vsel %vm1703, %v1674, %v1165
        %v1708 = vsel %vm1703, %v1675, %v1167
        %v1709 = vsel %vm1703, %v1676, %v1169
        %v1710 = vsel %vm1703, %v1677, %v1171
        %v1711 = vsel %vm1703, %v1678, %v1173
        %v1712 = vsel %vm1703, %v1679, %v1175
        %v1713 = vsel %vm1703, %v1680, %v1177
        %v1714 = vsel %vm1703, %v1681, %v1179
        %v1715 = vsel %vm1703, %v1682, %v1181
        %v1716 = vsel %vm1703, %v1683, %v1183
        %v1717 = vsel %vm1703, %v1684, %v1185
        %v1718 = vsel %vm1703, %v1685, %v1187
        %v1719 = vsel %vm1703, %v1686, %v1189
        %v1720 = vsel %vm1703, %v1687, %v1191
        %v1721 = vsel %vm1703, %v1688, %v1193
        %v1722 = vsel %vm1703, %v1689, %v1195
        %v1723 = vsel %vm1703, %v1690, %v1197
        %v1724 = vsel %vm1703, %v1691, %v1199
        %v1725 = vsel %vm1703, %v1692, %v1201
        %v1726 = vsel %vm1703, %v1693, %v1203
        %v1727 = vsel %vm1703, %v1694, %v1205
        %v1728 = vsel %vm1703, %v1695, %v1207
        %v1729 = vsel %vm1703, %v1696, %v1209
        %v1730 = vsel %vm1703, %v1697, %v1211
        %v1731 = vsel %vm1703, %v1698, %v1213
        %v1732 = vsel %vm1703, %v1699, %v1215
        %v1733 = vsel %vm1703, %v1700, %v1217
        %v1734 = vsel %vm1703, %v1701, %v1219
        %v1735 = vsel %vm1703, %v1702, %v1221
        %v1736 = vsel %vm386, %v709, %v1287
        %v1737 = vsel %vm386, %v710, %v1289
        %v1738 = vsel %vm386, %v711, %v1291
        %v1739 = vsel %vm386, %v712, %v1293
        %v1740 = vsel %vm386, %v713, %v1295
        %v1741 = vsel %vm386, %v714, %v1297
        %v1742 = vsel %vm386, %v715, %v1299
        %v1743 = vsel %vm386, %v716, %v1301
        %v1744 = vsel %vm386, %v717, %v1303
        %v1745 = vsel %vm386, %v718, %v1305
        %v1746 = vsel %vm386, %v719, %v1307
        %v1747 = vsel %vm386, %v720, %v1309
        %v1748 = vsel %vm386, %v721, %v1311
        %v1749 = vsel %vm386, %v722, %v1313
        %v1750 = vsel %vm386, %v723, %v1315
        %v1751 = vsel %vm386, %v724, %v1317
        %v1752 = vsel %vm386, %v725, %v1319
        %v1753 = vsel %vm386, %v726, %v1321
        %v1754 = vsel %vm386, %v727, %v1323
        %v1755 = vsel %vm386, %v728, %v1325
        %v1756 = vsel %vm386, %v729, %v1327
        %v1757 = vsel %vm386, %v730, %v1329
        %v1758 = vsel %vm386, %v731, %v1331
        %v1759 = vsel %vm386, %v732, %v1333
        %v1760 = vsel %vm386, %v733, %v1335
        %v1761 = vsel %vm386, %v734, %v1337
        %v1762 = vsel %vm386, %v735, %v1339
        %v1763 = vsel %vm386, %v736, %v1341
        %v1764 = vsel %vm386, %v737, %v1343
        %v1765 = vsel %vm386, %v738, %v1345
        %v1766 = vsel %vm386, %v739, %v1347
        %v1767 = vsel %vm386, %v740, %v1349
        %v1768 = vsel %vm1670, %v1736, %v1415
        %v1769 = vsel %vm1670, %v1737, %v1417
        %v1770 = vsel %vm1670, %v1738, %v1419
        %v1771 = vsel %vm1670, %v1739, %v1421
        %v1772 = vsel %vm1670, %v1740, %v1423
        %v1773 = vsel %vm1670, %v1741, %v1425
        %v1774 = vsel %vm1670, %v1742, %v1427
        %v1775 = vsel %vm1670, %v1743, %v1429
        %v1776 = vsel %vm1670, %v1744, %v1431
        %v1777 = vsel %vm1670, %v1745, %v1433
        %v1778 = vsel %vm1670, %v1746, %v1435
        %v1779 = vsel %vm1670, %v1747, %v1437
        %v1780 = vsel %vm1670, %v1748, %v1439
        %v1781 = vsel %vm1670, %v1749, %v1441
        %v1782 = vsel %vm1670, %v1750, %v1443
        %v1783 = vsel %vm1670, %v1751, %v1445
        %v1784 = vsel %vm1670, %v1752, %v1447
        %v1785 = vsel %vm1670, %v1753, %v1449
        %v1786 = vsel %vm1670, %v1754, %v1451
        %v1787 = vsel %vm1670, %v1755, %v1453
        %v1788 = vsel %vm1670, %v1756, %v1455
        %v1789 = vsel %vm1670, %v1757, %v1457
        %v1790 = vsel %vm1670, %v1758, %v1459
        %v1791 = vsel %vm1670, %v1759, %v1461
        %v1792 = vsel %vm1670, %v1760, %v1463
        %v1793 = vsel %vm1670, %v1761, %v1465
        %v1794 = vsel %vm1670, %v1762, %v1467
        %v1795 = vsel %vm1670, %v1763, %v1469
        %v1796 = vsel %vm1670, %v1764, %v1471
        %v1797 = vsel %vm1670, %v1765, %v1473
        %v1798 = vsel %vm1670, %v1766, %v1475
        %v1799 = vsel %vm1670, %v1767, %v1477
        %v1800 = vsel %vm1703, %v1768, %v1543
        %v1801 = vsel %vm1703, %v1769, %v1545
        %v1802 = vsel %vm1703, %v1770, %v1547
        %v1803 = vsel %vm1703, %v1771, %v1549
        %v1804 = vsel %vm1703, %v1772, %v1551
        %v1805 = vsel %vm1703, %v1773, %v1553
        %v1806 = vsel %vm1703, %v1774, %v1555
        %v1807 = vsel %vm1703, %v1775, %v1557
        %v1808 = vsel %vm1703, %v1776, %v1559
        %v1809 = vsel %vm1703, %v1777, %v1561
        %v1810 = vsel %vm1703, %v1778, %v1563
        %v1811 = vsel %vm1703, %v1779, %v1565
        %v1812 = vsel %vm1703, %v1780, %v1567
        %v1813 = vsel %vm1703, %v1781, %v1569
        %v1814 = vsel %vm1703, %v1782, %v1571
        %v1815 = vsel %vm1703, %v1783, %v1573
        %v1816 = vsel %vm1703, %v1784, %v1575
        %v1817 = vsel %vm1703, %v1785, %v1577
        %v1818 = vsel %vm1703, %v1786, %v1579
        %v1819 = vsel %vm1703, %v1787, %v1581
        %v1820 = vsel %vm1703, %v1788, %v1583
        %v1821 = vsel %vm1703, %v1789, %v1585
        %v1822 = vsel %vm1703, %v1790, %v1587
        %v1823 = vsel %vm1703, %v1791, %v1589
        %v1824 = vsel %vm1703, %v1792, %v1591
        %v1825 = vsel %vm1703, %v1793, %v1593
        %v1826 = vsel %vm1703, %v1794, %v1595
        %v1827 = vsel %vm1703, %v1795, %v1597
        %v1828 = vsel %vm1703, %v1796, %v1599
        %v1829 = vsel %vm1703, %v1797, %v1601
        %v1830 = vsel %vm1703, %v1798, %v1603
        %v1831 = vsel %vm1703, %v1799, %v1605
        %v1832 = vpack.c.bf16 %v1705, %v1704
        %v1833 = vpack.c.bf16 %v1801, %v1800
        %v1834 = vpack.c.bf16 %v839, %v838
        %v1835 = vpack.c.bf16 %v1707, %v1706
        %v1836 = vpack.c.bf16 %v1803, %v1802
        %v1837 = vpack.c.bf16 %v841, %v840
        %v1838 = vpack.c.bf16 %v1709, %v1708
        %v1839 = vpack.c.bf16 %v1805, %v1804
        %v1840 = vpack.c.bf16 %v843, %v842
        %v1841 = vpack.c.bf16 %v1711, %v1710
        %v1842 = vpack.c.bf16 %v1807, %v1806
        %v1843 = vpack.c.bf16 %v845, %v844
        %v1844 = vpack.c.bf16 %v1713, %v1712
        %v1845 = vpack.c.bf16 %v1809, %v1808
        %v1846 = vpack.c.bf16 %v847, %v846
        %v1847 = vpack.c.bf16 %v1715, %v1714
        %v1848 = vpack.c.bf16 %v1811, %v1810
        %v1849 = vpack.c.bf16 %v849, %v848
        %v1850 = vpack.c.bf16 %v1717, %v1716
        %v1851 = vpack.c.bf16 %v1813, %v1812
        %v1852 = vpack.c.bf16 %v851, %v850
        %v1853 = vpack.c.bf16 %v1719, %v1718
        %v1854 = vpack.c.bf16 %v1815, %v1814
        %v1855 = vpack.c.bf16 %v853, %v852
        %v1856 = vpack.c.bf16 %v1721, %v1720
        %v1857 = vpack.c.bf16 %v1817, %v1816
        %v1858 = vpack.c.bf16 %v855, %v854
        %v1859 = vpack.c.bf16 %v1723, %v1722
        %v1860 = vpack.c.bf16 %v1819, %v1818
        %v1861 = vpack.c.bf16 %v857, %v856
        %v1862 = vpack.c.bf16 %v1725, %v1724
        %v1863 = vpack.c.bf16 %v1821, %v1820
        %v1864 = vpack.c.bf16 %v859, %v858
        %v1865 = vpack.c.bf16 %v1727, %v1726
        %v1866 = vpack.c.bf16 %v1823, %v1822
        %v1867 = vpack.c.bf16 %v861, %v860
        %v1868 = vpack.c.bf16 %v1729, %v1728
        %v1869 = vpack.c.bf16 %v1825, %v1824
        %v1870 = vpack.c.bf16 %v863, %v862
        %v1871 = vpack.c.bf16 %v1731, %v1730
        %v1872 = vpack.c.bf16 %v1827, %v1826
        %v1873 = vpack.c.bf16 %v865, %v864
        %v1874 = vpack.c.bf16 %v1733, %v1732
        %v1875 = vpack.c.bf16 %v1829, %v1828
        %v1876 = vpack.c.bf16 %v867, %v866
        %v1877 = vpack.c.bf16 %v1735, %v1734
        %v1878 = vpack.c.bf16 %v1831, %v1830
        %v1879 = vpack.c.bf16 %v869, %v868
        %v1881 = vlaneseq
        %v1882 = vshrl.u32 %v1881, 7
        %v1883 = vsub.s32 0, %v1882
        %v1884 = vrot.slane %v510, %v1883
        %v1922 = vunpack.c.l.b16 %v474
        %v1923 = vunpack.c.l.b16 %v475
        %v1924 = vunpack.c.l.b16 %v476
        %v1925 = vunpack.c.l.b16 %v477
        %v1926 = vunpack.c.l.b16 %v478
        %v1927 = vunpack.c.l.b16 %v479
        %v1928 = vunpack.c.l.b16 %v480
        %v1929 = vunpack.c.l.b16 %v481
        %v1930 = vunpack.c.l.b16 %v482
        %v1931 = vunpack.c.l.b16 %v483
        %v1932 = vunpack.c.l.b16 %v484
        %v1933 = vunpack.c.l.b16 %v485
        %v1934 = vunpack.c.l.b16 %v486
        %v1935 = vunpack.c.l.b16 %v487
        %v1936 = vunpack.c.l.b16 %v488
        %v1937 = vunpack.c.l.b16 %v489
        %v1938 = vunpack.c.l.b16 %v490
        %v1939 = vunpack.c.l.b16 %v491
        %v1940 = vunpack.c.l.b16 %v492
        %v1941 = vunpack.c.l.b16 %v493
        %v1942 = vunpack.c.l.b16 %v494
        %v1943 = vunpack.c.l.b16 %v495
        %v1944 = vunpack.c.l.b16 %v496
        %v1945 = vunpack.c.l.b16 %v497
        %v1946 = vunpack.c.l.b16 %v498
        %v1947 = vunpack.c.l.b16 %v499
        %v1948 = vunpack.c.l.b16 %v500
        %v1949 = vunpack.c.l.b16 %v501
        %v1950 = vunpack.c.l.b16 %v502
        %v1951 = vunpack.c.l.b16 %v503
        %v1952 = vunpack.c.l.b16 %v504
        %v1953 = vunpack.c.l.b16 %v505
        %v1954 = vunpack.c.l.b16 %v506
        %v1955 = vunpack.c.l.b16 %v507
        %v1956 = vunpack.c.l.b16 %v508
        %v1957 = vunpack.c.l.b16 %v509
        %v1958 = vpack.c.b16 %v1923, %v1922
        %v1959 = vpack.c.b16 %v1925, %v1924
        %v1960 = vpack.c.b16 %v1927, %v1926
        %v1961 = vpack.c.b16 %v1929, %v1928
        %v1962 = vpack.c.b16 %v1931, %v1930
        %v1963 = vpack.c.b16 %v1933, %v1932
        %v1964 = vpack.c.b16 %v1935, %v1934
        %v1965 = vpack.c.b16 %v1937, %v1936
        %v1966 = vpack.c.b16 %v1939, %v1938
        %v1967 = vpack.c.b16 %v1941, %v1940
        %v1968 = vpack.c.b16 %v1943, %v1942
        %v1969 = vpack.c.b16 %v1945, %v1944
        %v1970 = vpack.c.b16 %v1947, %v1946
        %v1971 = vpack.c.b16 %v1949, %v1948
        %v1972 = vpack.c.b16 %v1951, %v1950
        %v1973 = vpack.c.b16 %v1953, %v1952
        %v1974 = vpack.c.b16 %v1955, %v1954
        %v1975 = vpack.c.b16 %v1957, %v1956
        %v1995 = vsel %vm386, %v1834, 0
        %v1998 = vsel %vm386, %v1837, 0
        %v2001 = vsel %vm386, %v1840, 0
        %v2004 = vsel %vm386, %v1843, 0
        %v2007 = vsel %vm386, %v1846, 0
        %v2010 = vsel %vm386, %v1849, 0
        %v2013 = vsel %vm386, %v1852, 0
        %v2016 = vsel %vm386, %v1855, 0
        %v2019 = vsel %vm386, %v1858, 0
        %v2022 = vsel %vm386, %v1861, 0
        %v2025 = vsel %vm386, %v1864, 0
        %v2028 = vsel %vm386, %v1867, 0
        %v2031 = vsel %vm386, %v1870, 0
        %v2034 = vsel %vm386, %v1873, 0
        %v2037 = vsel %vm386, %v1876, 0
        %v2040 = vsel %vm386, %v1879, 0
        %2042 = vmatprep.subr.bf16.mxu0 0
        %2043 = vmatpush1.bf16.msra.mxu0 %v1958
        %2044 = vmatprep.subr.bf16.mxu0 0
        %2045 = vmatpush1.bf16.msra.mxu0 %v1959
        %2046 = vmatprep.subr.bf16.mxu0 0
        %2047 = vmatpush1.bf16.msra.mxu0 %v1960
        %2048 = vmatprep.subr.bf16.mxu0 0
        %2049 = vmatpush1.bf16.msra.mxu0 %v1961
        %2050 = vmatprep.subr.bf16.mxu0 0
        %2051 = vmatpush1.bf16.msra.mxu0 %v1962
        %2052 = vmatprep.subr.bf16.mxu0 0
        %2053 = vmatpush1.bf16.msra.mxu0 %v1963
        %2054 = vmatprep.subr.bf16.mxu0 0
        %2055 = vmatpush1.bf16.msra.mxu0 %v1964
        %2056 = vmatprep.subr.bf16.mxu0 0
        %2057 = vmatpush1.bf16.msra.mxu0 %v1965
        %2058 = vmatprep.subr.bf16.mxu0 0
        %2059 = vmatpush1.bf16.msra.mxu0 %v1966
        %2060 = vmatprep.subr.bf16.mxu0 0
        %2061 = vmatpush1.bf16.msra.mxu0 %v1967
        %2062 = vmatprep.subr.bf16.mxu0 0
        %2063 = vmatpush1.bf16.msra.mxu0 %v1968
        %2064 = vmatprep.subr.bf16.mxu0 0
        %2065 = vmatpush1.bf16.msra.mxu0 %v1969
        %2066 = vmatprep.subr.bf16.mxu0 0
        %2067 = vmatpush1.bf16.msra.mxu0 %v1970
        %2068 = vmatprep.subr.bf16.mxu0 0
        %2069 = vmatpush1.bf16.msra.mxu0 %v1971
        %2070 = vmatprep.subr.bf16.mxu0 0
        %2071 = vmatpush1.bf16.msra.mxu0 %v1972
        %2072 = vmatprep.subr.bf16.mxu0 0
        %2073 = vmatpush1.bf16.msra.mxu0 %v1973
        %2074 = vmatprep.mubr.bf16.mxu0 %v1833
        %2075 = vmatmul.mubr.bf16.gmra.mrb[0].mxu0 %v1832
        %v2076 = vpop.f32.mrb[0].mxu0
        %v2077 = vadd.f32 %v1884, %v2076
        %v2078 = vpop.f32.mrb[0].mxu0
        %v2079 = vpop.f32.mrb[0].mxu0
        %v2080 = vadd.f32 %v1884, %v2079
        %v2081 = vpop.f32.mrb[0].mxu0
        %2082 = vmatprep.mubr.bf16.mxu0 %v1836
        %2083 = vmatmul.mubr.bf16.gmra.mrb[0].mxu0 %v1835
        %v2084 = vpop.f32.mrb[0].mxu0
        %v2085 = vadd.f32 %v1884, %v2084
        %v2086 = vpop.f32.mrb[0].mxu0
        %v2087 = vpop.f32.mrb[0].mxu0
        %v2088 = vadd.f32 %v1884, %v2087
        %v2089 = vpop.f32.mrb[0].mxu0
        %2090 = vmatprep.mubr.bf16.mxu0 %v1839
        %2091 = vmatmul.mubr.bf16.gmra.mrb[0].mxu0 %v1838
        %v2092 = vpop.f32.mrb[0].mxu0
        %v2093 = vadd.f32 %v1884, %v2092
        %v2094 = vpop.f32.mrb[0].mxu0
        %v2095 = vpop.f32.mrb[0].mxu0
        %v2096 = vadd.f32 %v1884, %v2095
        %v2097 = vpop.f32.mrb[0].mxu0
        %2098 = vmatprep.mubr.bf16.mxu0 %v1842
        %2099 = vmatmul.mubr.bf16.gmra.mrb[0].mxu0 %v1841
        %v2100 = vpop.f32.mrb[0].mxu0
        %v2101 = vadd.f32 %v1884, %v2100
        %v2102 = vpop.f32.mrb[0].mxu0
        %v2103 = vpop.f32.mrb[0].mxu0
        %v2104 = vadd.f32 %v1884, %v2103
        %v2105 = vpop.f32.mrb[0].mxu0
        %2106 = vmatprep.mubr.bf16.mxu0 %v1845
        %2107 = vmatmul.mubr.bf16.gmra.mrb[0].mxu0 %v1844
        %v2108 = vpop.f32.mrb[0].mxu0
        %v2109 = vadd.f32 %v1884, %v2108
        %v2110 = vpop.f32.mrb[0].mxu0
        %v2111 = vpop.f32.mrb[0].mxu0
        %v2112 = vadd.f32 %v1884, %v2111
        %v2113 = vpop.f32.mrb[0].mxu0
        %2114 = vmatprep.mubr.bf16.mxu0 %v1848
        %2115 = vmatmul.mubr.bf16.gmra.mrb[0].mxu0 %v1847
        %v2116 = vpop.f32.mrb[0].mxu0
        %v2117 = vadd.f32 %v1884, %v2116
        %v2118 = vpop.f32.mrb[0].mxu0
        %v2119 = vpop.f32.mrb[0].mxu0
        %v2120 = vadd.f32 %v1884, %v2119
        %v2121 = vpop.f32.mrb[0].mxu0
        %2122 = vmatprep.mubr.bf16.mxu0 %v1851
        %2123 = vmatmul.mubr.bf16.gmra.mrb[0].mxu0 %v1850
        %v2124 = vpop.f32.mrb[0].mxu0
        %v2125 = vadd.f32 %v1884, %v2124
        %v2126 = vpop.f32.mrb[0].mxu0
        %v2127 = vpop.f32.mrb[0].mxu0
        %v2128 = vadd.f32 %v1884, %v2127
        %v2129 = vpop.f32.mrb[0].mxu0
        %2130 = vmatprep.mubr.bf16.mxu0 %v1854
        %2131 = vmatmul.mubr.bf16.gmra.mrb[0].mxu0 %v1853
        %v2132 = vpop.f32.mrb[0].mxu0
        %v2133 = vadd.f32 %v1884, %v2132
        %v2134 = vpop.f32.mrb[0].mxu0
        %v2135 = vpop.f32.mrb[0].mxu0
        %v2136 = vadd.f32 %v1884, %v2135
        %v2137 = vpop.f32.mrb[0].mxu0
        %2138 = vmatprep.mubr.bf16.mxu0 %v1857
        %2139 = vmatmul.mubr.bf16.gmra.mrb[0].mxu0 %v1856
        %v2140 = vpop.f32.mrb[0].mxu0
        %v2141 = vadd.f32 %v1884, %v2140
        %v2142 = vpop.f32.mrb[0].mxu0
        %v2143 = vpop.f32.mrb[0].mxu0
        %v2144 = vadd.f32 %v1884, %v2143
        %v2145 = vpop.f32.mrb[0].mxu0
        %2146 = vmatprep.mubr.bf16.mxu0 %v1860
        %2147 = vmatmul.mubr.bf16.gmra.mrb[0].mxu0 %v1859
        %v2148 = vpop.f32.mrb[0].mxu0
        %v2149 = vadd.f32 %v1884, %v2148
        %v2150 = vpop.f32.mrb[0].mxu0
        %v2151 = vpop.f32.mrb[0].mxu0
        %v2152 = vadd.f32 %v1884, %v2151
        %v2153 = vpop.f32.mrb[0].mxu0
        %2154 = vmatprep.mubr.bf16.mxu0 %v1863
        %2155 = vmatmul.mubr.bf16.gmra.mrb[0].mxu0 %v1862
        %v2156 = vpop.f32.mrb[0].mxu0
        %v2157 = vadd.f32 %v1884, %v2156
        %v2158 = vpop.f32.mrb[0].mxu0
        %v2159 = vpop.f32.mrb[0].mxu0
        %v2160 = vadd.f32 %v1884, %v2159
        %v2161 = vpop.f32.mrb[0].mxu0
        %2162 = vmatprep.mubr.bf16.mxu0 %v1866
        %2163 = vmatmul.mubr.bf16.gmra.mrb[0].mxu0 %v1865
        %v2164 = vpop.f32.mrb[0].mxu0
        %v2165 = vadd.f32 %v1884, %v2164
        %v2166 = vpop.f32.mrb[0].mxu0
        %v2167 = vpop.f32.mrb[0].mxu0
        %v2168 = vadd.f32 %v1884, %v2167
        %v2169 = vpop.f32.mrb[0].mxu0
        %2170 = vmatprep.mubr.bf16.mxu0 %v1869
        %2171 = vmatmul.mubr.bf16.gmra.mrb[0].mxu0 %v1868
        %v2172 = vpop.f32.mrb[0].mxu0
        %v2173 = vadd.f32 %v1884, %v2172
        %v2174 = vpop.f32.mrb[0].mxu0
        %v2175 = vpop.f32.mrb[0].mxu0
        %v2176 = vadd.f32 %v1884, %v2175
        %v2177 = vpop.f32.mrb[0].mxu0
        %2178 = vmatprep.mubr.bf16.mxu0 %v1872
        %2179 = vmatmul.mubr.bf16.gmra.mrb[0].mxu0 %v1871
        %v2180 = vpop.f32.mrb[0].mxu0
        %v2181 = vadd.f32 %v1884, %v2180
        %v2182 = vpop.f32.mrb[0].mxu0
        %v2183 = vpop.f32.mrb[0].mxu0
        %v2184 = vadd.f32 %v1884, %v2183
        %v2185 = vpop.f32.mrb[0].mxu0
        %2186 = vmatprep.mubr.bf16.mxu0 %v1875
        %2187 = vmatmul.mubr.bf16.gmra.mrb[0].mxu0 %v1874
        %v2188 = vpop.f32.mrb[0].mxu0
        %v2189 = vadd.f32 %v1884, %v2188
        %v2190 = vpop.f32.mrb[0].mxu0
        %v2191 = vpop.f32.mrb[0].mxu0
        %v2192 = vadd.f32 %v1884, %v2191
        %v2193 = vpop.f32.mrb[0].mxu0
        %2194 = vmatprep.mubr.bf16.mxu0 %v1878
        %2195 = vmatmul.mubr.bf16.gmra.mrb[0].mxu0 %v1877
        %v2196 = vpop.f32.mrb[0].mxu0
        %v2197 = vadd.f32 %v1884, %v2196
        %v2198 = vpop.f32.mrb[0].mxu0
        %v2199 = vpop.f32.mrb[0].mxu0
        %v2200 = vadd.f32 %v1884, %v2199
        %v2201 = vpop.f32.mrb[0].mxu0
        %2202 = vdwg.mxu0
        %2203 = vmatprep.subr.bf16.mxu0 0
        %2204 = vmatpush1.bf16.msra.mxu0 %v1974
        %2205 = vmatprep.subr.bf16.mxu0 0
        %2206 = vmatpush1.bf16.msra.mxu0 %v1975
        %2207 = vmatprep.subr.bf16.mxu0 0
        %2208 = vmatpush1.bf16.msra.mxu0 0
        %2209 = vmatprep.subr.bf16.mxu0 0
        %2210 = vmatpush1.bf16.msra.mxu0 0
        %2211 = vmatprep.subr.bf16.mxu0 0
        %2212 = vmatpush1.bf16.msra.mxu0 0
        %2213 = vmatprep.subr.bf16.mxu0 0
        %2214 = vmatpush1.bf16.msra.mxu0 0
        %2215 = vmatprep.subr.bf16.mxu0 0
        %2216 = vmatpush1.bf16.msra.mxu0 0
        %2217 = vmatprep.subr.bf16.mxu0 0
        %2218 = vmatpush1.bf16.msra.mxu0 0
        %2219 = vmatprep.subr.bf16.mxu0 0
        %2220 = vmatpush1.bf16.msra.mxu0 0
        %2221 = vmatprep.subr.bf16.mxu0 0
        %2222 = vmatpush1.bf16.msra.mxu0 0
        %2223 = vmatprep.subr.bf16.mxu0 0
        %2224 = vmatpush1.bf16.msra.mxu0 0
        %2225 = vmatprep.subr.bf16.mxu0 0
        %2226 = vmatpush1.bf16.msra.mxu0 0
        %2227 = vmatprep.subr.bf16.mxu0 0
        %2228 = vmatpush1.bf16.msra.mxu0 0
        %2229 = vmatprep.subr.bf16.mxu0 0
        %2230 = vmatpush1.bf16.msra.mxu0 0
        %2231 = vmatprep.subr.bf16.mxu0 0
        %2232 = vmatpush1.bf16.msra.mxu0 0
        %2233 = vmatprep.subr.bf16.mxu0 0
        %2234 = vmatpush1.bf16.msra.mxu0 0
        %2235 = vmatprep.mubr.bf16.mxu0 0
        %2236 = vmatmul.mubr.bf16.gmra.mrb[0].mxu0 %v1995
        %v2237 = vpop.f32.mrb[0].mxu0
        %v2238 = vadd.f32 %v2077, %v2237
        %v2239 = vpop.f32.mrb[0].mxu0
        %v2240 = vpop.f32.mrb[0].mxu0
        %v2241 = vadd.f32 %v2080, %v2240
        %v2242 = vpop.f32.mrb[0].mxu0
        %2243 = vmatprep.mubr.bf16.mxu0 0
        %2244 = vmatmul.mubr.bf16.gmra.mrb[0].mxu0 %v1998
        %v2245 = vpop.f32.mrb[0].mxu0
        %v2246 = vadd.f32 %v2085, %v2245
        %v2247 = vpop.f32.mrb[0].mxu0
        %v2248 = vpop.f32.mrb[0].mxu0
        %v2249 = vadd.f32 %v2088, %v2248
        %v2250 = vpop.f32.mrb[0].mxu0
        %2251 = vmatprep.mubr.bf16.mxu0 0
        %2252 = vmatmul.mubr.bf16.gmra.mrb[0].mxu0 %v2001
        %v2253 = vpop.f32.mrb[0].mxu0
        %v2254 = vadd.f32 %v2093, %v2253
        %v2255 = vpop.f32.mrb[0].mxu0
        %v2256 = vpop.f32.mrb[0].mxu0
        %v2257 = vadd.f32 %v2096, %v2256
        %v2258 = vpop.f32.mrb[0].mxu0
        %2259 = vmatprep.mubr.bf16.mxu0 0
        %2260 = vmatmul.mubr.bf16.gmra.mrb[0].mxu0 %v2004
        %v2261 = vpop.f32.mrb[0].mxu0
        %v2262 = vadd.f32 %v2101, %v2261
        %v2263 = vpop.f32.mrb[0].mxu0
        %v2264 = vpop.f32.mrb[0].mxu0
        %v2265 = vadd.f32 %v2104, %v2264
        %v2266 = vpop.f32.mrb[0].mxu0
        %2267 = vmatprep.mubr.bf16.mxu0 0
        %2268 = vmatmul.mubr.bf16.gmra.mrb[0].mxu0 %v2007
        %v2269 = vpop.f32.mrb[0].mxu0
        %v2270 = vadd.f32 %v2109, %v2269
        %v2271 = vpop.f32.mrb[0].mxu0
        %v2272 = vpop.f32.mrb[0].mxu0
        %v2273 = vadd.f32 %v2112, %v2272
        %v2274 = vpop.f32.mrb[0].mxu0
        %2275 = vmatprep.mubr.bf16.mxu0 0
        %2276 = vmatmul.mubr.bf16.gmra.mrb[0].mxu0 %v2010
        %v2277 = vpop.f32.mrb[0].mxu0
        %v2278 = vadd.f32 %v2117, %v2277
        %v2279 = vpop.f32.mrb[0].mxu0
        %v2280 = vpop.f32.mrb[0].mxu0
        %v2281 = vadd.f32 %v2120, %v2280
        %v2282 = vpop.f32.mrb[0].mxu0
        %2283 = vmatprep.mubr.bf16.mxu0 0
        %2284 = vmatmul.mubr.bf16.gmra.mrb[0].mxu0 %v2013
        %v2285 = vpop.f32.mrb[0].mxu0
        %v2286 = vadd.f32 %v2125, %v2285
        %v2287 = vpop.f32.mrb[0].mxu0
        %v2288 = vpop.f32.mrb[0].mxu0
        %v2289 = vadd.f32 %v2128, %v2288
        %v2290 = vpop.f32.mrb[0].mxu0
        %2291 = vmatprep.mubr.bf16.mxu0 0
        %2292 = vmatmul.mubr.bf16.gmra.mrb[0].mxu0 %v2016
        %v2293 = vpop.f32.mrb[0].mxu0
        %v2294 = vadd.f32 %v2133, %v2293
        %v2295 = vpop.f32.mrb[0].mxu0
        %v2296 = vpop.f32.mrb[0].mxu0
        %v2297 = vadd.f32 %v2136, %v2296
        %v2298 = vpop.f32.mrb[0].mxu0
        %2299 = vmatprep.mubr.bf16.mxu0 0
        %2300 = vmatmul.mubr.bf16.gmra.mrb[0].mxu0 %v2019
        %v2301 = vpop.f32.mrb[0].mxu0
        %v2302 = vadd.f32 %v2141, %v2301
        %v2303 = vpop.f32.mrb[0].mxu0
        %v2304 = vpop.f32.mrb[0].mxu0
        %v2305 = vadd.f32 %v2144, %v2304
        %v2306 = vpop.f32.mrb[0].mxu0
        %2307 = vmatprep.mubr.bf16.mxu0 0
        %2308 = vmatmul.mubr.bf16.gmra.mrb[0].mxu0 %v2022
        %v2309 = vpop.f32.mrb[0].mxu0
        %v2310 = vadd.f32 %v2149, %v2309
        %v2311 = vpop.f32.mrb[0].mxu0
        %v2312 = vpop.f32.mrb[0].mxu0
        %v2313 = vadd.f32 %v2152, %v2312
        %v2314 = vpop.f32.mrb[0].mxu0
        %2315 = vmatprep.mubr.bf16.mxu0 0
        %2316 = vmatmul.mubr.bf16.gmra.mrb[0].mxu0 %v2025
        %v2317 = vpop.f32.mrb[0].mxu0
        %v2318 = vadd.f32 %v2157, %v2317
        %v2319 = vpop.f32.mrb[0].mxu0
        %v2320 = vpop.f32.mrb[0].mxu0
        %v2321 = vadd.f32 %v2160, %v2320
        %v2322 = vpop.f32.mrb[0].mxu0
        %2323 = vmatprep.mubr.bf16.mxu0 0
        %2324 = vmatmul.mubr.bf16.gmra.mrb[0].mxu0 %v2028
        %v2325 = vpop.f32.mrb[0].mxu0
        %v2326 = vadd.f32 %v2165, %v2325
        %v2327 = vpop.f32.mrb[0].mxu0
        %v2328 = vpop.f32.mrb[0].mxu0
        %v2329 = vadd.f32 %v2168, %v2328
        %v2330 = vpop.f32.mrb[0].mxu0
        %2331 = vmatprep.mubr.bf16.mxu0 0
        %2332 = vmatmul.mubr.bf16.gmra.mrb[0].mxu0 %v2031
        %v2333 = vpop.f32.mrb[0].mxu0
        %v2334 = vadd.f32 %v2173, %v2333
        %v2335 = vpop.f32.mrb[0].mxu0
        %v2336 = vpop.f32.mrb[0].mxu0
        %v2337 = vadd.f32 %v2176, %v2336
        %v2338 = vpop.f32.mrb[0].mxu0
        %2339 = vmatprep.mubr.bf16.mxu0 0
        %2340 = vmatmul.mubr.bf16.gmra.mrb[0].mxu0 %v2034
        %v2341 = vpop.f32.mrb[0].mxu0
        %v2342 = vadd.f32 %v2181, %v2341
        %v2343 = vpop.f32.mrb[0].mxu0
        %v2344 = vpop.f32.mrb[0].mxu0
        %v2345 = vadd.f32 %v2184, %v2344
        %v2346 = vpop.f32.mrb[0].mxu0
        %2347 = vmatprep.mubr.bf16.mxu0 0
        %2348 = vmatmul.mubr.bf16.gmra.mrb[0].mxu0 %v2037
        %v2349 = vpop.f32.mrb[0].mxu0
        %v2350 = vadd.f32 %v2189, %v2349
        %v2351 = vpop.f32.mrb[0].mxu0
        %v2352 = vpop.f32.mrb[0].mxu0
        %v2353 = vadd.f32 %v2192, %v2352
        %v2354 = vpop.f32.mrb[0].mxu0
        %2355 = vmatprep.mubr.bf16.mxu0 0
        %2356 = vmatmul.mubr.bf16.gmra.mrb[0].mxu0 %v2040
        %v2357 = vpop.f32.mrb[0].mxu0
        %v2358 = vadd.f32 %v2197, %v2357
        %v2359 = vpop.f32.mrb[0].mxu0
        %v2360 = vpop.f32.mrb[0].mxu0
        %v2361 = vadd.f32 %v2200, %v2360
        %v2362 = vpop.f32.mrb[0].mxu0
        %2363 = vdwg.mxu0
        %v2364 = vmax.f32 %v2238, 0.0
        %v2365 = vmax.f32 %v2241, 0.0
        %v2366 = vmax.f32 %v2246, 0.0
        %v2367 = vmax.f32 %v2249, 0.0
        %v2368 = vmax.f32 %v2254, 0.0
        %v2369 = vmax.f32 %v2257, 0.0
        %v2370 = vmax.f32 %v2262, 0.0
        %v2371 = vmax.f32 %v2265, 0.0
        %v2372 = vmax.f32 %v2270, 0.0
        %v2373 = vmax.f32 %v2273, 0.0
        %v2374 = vmax.f32 %v2278, 0.0
        %v2375 = vmax.f32 %v2281, 0.0
        %v2376 = vmax.f32 %v2286, 0.0
        %v2377 = vmax.f32 %v2289, 0.0
        %v2378 = vmax.f32 %v2294, 0.0
        %v2379 = vmax.f32 %v2297, 0.0
        %v2380 = vmax.f32 %v2302, 0.0
        %v2381 = vmax.f32 %v2305, 0.0
        %v2382 = vmax.f32 %v2310, 0.0
        %v2383 = vmax.f32 %v2313, 0.0
        %v2384 = vmax.f32 %v2318, 0.0
        %v2385 = vmax.f32 %v2321, 0.0
        %v2386 = vmax.f32 %v2326, 0.0
        %v2387 = vmax.f32 %v2329, 0.0
        %v2388 = vmax.f32 %v2334, 0.0
        %v2389 = vmax.f32 %v2337, 0.0
        %v2390 = vmax.f32 %v2342, 0.0
        %v2391 = vmax.f32 %v2345, 0.0
        %v2392 = vmax.f32 %v2350, 0.0
        %v2393 = vmax.f32 %v2353, 0.0
        %v2394 = vmax.f32 %v2358, 0.0
        %v2395 = vmax.f32 %v2361, 0.0
        %2396 = vst.msk [vmem:[%s548 + $0x1] sm:$0xff] %vm386, %v2364
        %2397 = vst.msk [vmem:[%s548 + $0x9] sm:$0xff] %vm386, %v2365
        %2398 = vst.msk [vmem:[%s548 + $0x19] sm:$0xff] %vm386, %v2366
        %2399 = vst.msk [vmem:[%s548 + $0x21] sm:$0xff] %vm386, %v2367
        %2400 = vst.msk [vmem:[%s548 + $0x31] sm:$0xff] %vm386, %v2368
        %2401 = vst.msk [vmem:[%s548 + $0x39] sm:$0xff] %vm386, %v2369
        %2402 = vst.msk [vmem:[%s548 + $0x49] sm:$0xff] %vm386, %v2370
        %2403 = vst.msk [vmem:[%s548 + $0x51] sm:$0xff] %vm386, %v2371
        %2404 = vst.msk [vmem:[%s548 + $0x61] sm:$0xff] %vm386, %v2372
        %2405 = vst.msk [vmem:[%s548 + $0x69] sm:$0xff] %vm386, %v2373
        %2406 = vst.msk [vmem:[%s548 + $0x79] sm:$0xff] %vm386, %v2374
        %2407 = vst.msk [vmem:[%s548 + $0x81] sm:$0xff] %vm386, %v2375
        %2408 = vst.msk [vmem:[%s548 + $0x91] sm:$0xff] %vm386, %v2376
        %2409 = vst.msk [vmem:[%s548 + $0x99] sm:$0xff] %vm386, %v2377
        %2410 = vst.msk [vmem:[%s548 + $0xa9] sm:$0xff] %vm386, %v2378
        %2411 = vst.msk [vmem:[%s548 + $0xb1] sm:$0xff] %vm386, %v2379
        %2412 = vst.msk [vmem:[%s548 + $0xc1] sm:$0xff] %vm386, %v2380
        %2413 = vst.msk [vmem:[%s548 + $0xc9] sm:$0xff] %vm386, %v2381
        %2414 = vst.msk [vmem:[%s548 + $0xd9] sm:$0xff] %vm386, %v2382
        %2415 = vst.msk [vmem:[%s548 + $0xe1] sm:$0xff] %vm386, %v2383
        %2416 = vst.msk [vmem:[%s548 + $0xf1] sm:$0xff] %vm386, %v2384
        %2417 = vst.msk [vmem:[%s548 + $0xf9] sm:$0xff] %vm386, %v2385
        %2418 = vst.msk [vmem:[%s548 + $0x109] sm:$0xff] %vm386, %v2386
        %2419 = vst.msk [vmem:[%s548 + $0x111] sm:$0xff] %vm386, %v2387
        %2420 = vst.msk [vmem:[%s548 + $0x121] sm:$0xff] %vm386, %v2388
        %2421 = vst.msk [vmem:[%s548 + $0x129] sm:$0xff] %vm386, %v2389
        %2422 = vst.msk [vmem:[%s548 + $0x139] sm:$0xff] %vm386, %v2390
        %2423 = vst.msk [vmem:[%s548 + $0x141] sm:$0xff] %vm386, %v2391
        %2424 = vst.msk [vmem:[%s548 + $0x151] sm:$0xff] %vm386, %v2392
        %2425 = vst.msk [vmem:[%s548 + $0x159] sm:$0xff] %vm386, %v2393
        %2426 = vst.msk [vmem:[%s548 + $0x169] sm:$0xff] %vm386, %v2394
        %2427 = vst.msk [vmem:[%s548 + $0x171] sm:$0xff] %vm386, %v2395
        %v2428 = vld [vmem:[#allocation2] sm:$0xff]
        %v2429 = vld [vmem:[#allocation2 + $0x8] sm:$0xff]
        %v2430 = vld [vmem:[#allocation2 + $0x18] sm:$0xff]
        %v2431 = vld [vmem:[#allocation2 + $0x20] sm:$0xff]
        %v2432 = vld [vmem:[#allocation2 + $0x30] sm:$0xff]
        %v2433 = vld [vmem:[#allocation2 + $0x38] sm:$0xff]
        %v2434 = vld [vmem:[#allocation2 + $0x48] sm:$0xff]
        %v2435 = vld [vmem:[#allocation2 + $0x50] sm:$0xff]
        %v2436 = vld [vmem:[#allocation2 + $0x60] sm:$0xff]
        %v2437 = vld [vmem:[#allocation2 + $0x68] sm:$0xff]
        %v2438 = vld [vmem:[#allocation2 + $0x78] sm:$0xff]
        %v2439 = vld [vmem:[#allocation2 + $0x80] sm:$0xff]
        %v2440 = vld [vmem:[#allocation2 + $0x90] sm:$0xff]
        %v2441 = vld [vmem:[#allocation2 + $0x98] sm:$0xff]
        %v2442 = vld [vmem:[#allocation2 + $0xa8] sm:$0xff]
        %v2443 = vld [vmem:[#allocation2 + $0xb0] sm:$0xff]
        %v2444 = vld [vmem:[#allocation2 + $0xc0] sm:$0xff]
        %v2445 = vld [vmem:[#allocation2 + $0xc8] sm:$0xff]
        %v2446 = vld [vmem:[#allocation2 + $0xd8] sm:$0xff]
        %v2447 = vld [vmem:[#allocation2 + $0xe0] sm:$0xff]
        %v2448 = vld [vmem:[#allocation2 + $0xf0] sm:$0xff]
        %v2449 = vld [vmem:[#allocation2 + $0xf8] sm:$0xff]
        %v2450 = vld [vmem:[#allocation2 + $0x108] sm:$0xff]
        %v2451 = vld [vmem:[#allocation2 + $0x110] sm:$0xff]
        %v2452 = vld [vmem:[#allocation2 + $0x120] sm:$0xff]
        %v2453 = vld [vmem:[#allocation2 + $0x128] sm:$0xff]
        %v2454 = vld [vmem:[#allocation2 + $0x138] sm:$0xff]
        %v2455 = vld [vmem:[#allocation2 + $0x140] sm:$0xff]
        %v2456 = vld [vmem:[#allocation2 + $0x150] sm:$0xff]
        %v2457 = vld [vmem:[#allocation2 + $0x158] sm:$0xff]
        %v2458 = vld [vmem:[#allocation2 + $0x168] sm:$0xff]
        %v2459 = vld [vmem:[#allocation2 + $0x170] sm:$0xff]
        %v2460 = vld [vmem:[#allocation2 + $0x1] sm:$0xff]
        %v2461 = vld [vmem:[#allocation2 + $0x9] sm:$0xff]
        %v2462 = vld [vmem:[#allocation2 + $0x19] sm:$0xff]
        %v2463 = vld [vmem:[#allocation2 + $0x21] sm:$0xff]
        %v2464 = vld [vmem:[#allocation2 + $0x31] sm:$0xff]
        %v2465 = vld [vmem:[#allocation2 + $0x39] sm:$0xff]
        %v2466 = vld [vmem:[#allocation2 + $0x49] sm:$0xff]
        %v2467 = vld [vmem:[#allocation2 + $0x51] sm:$0xff]
        %v2468 = vld [vmem:[#allocation2 + $0x61] sm:$0xff]
        %v2469 = vld [vmem:[#allocation2 + $0x69] sm:$0xff]
        %v2470 = vld [vmem:[#allocation2 + $0x79] sm:$0xff]
        %v2471 = vld [vmem:[#allocation2 + $0x81] sm:$0xff]
        %v2472 = vld [vmem:[#allocation2 + $0x91] sm:$0xff]
        %v2473 = vld [vmem:[#allocation2 + $0x99] sm:$0xff]
        %v2474 = vld [vmem:[#allocation2 + $0xa9] sm:$0xff]
        %v2475 = vld [vmem:[#allocation2 + $0xb1] sm:$0xff]
        %v2476 = vld [vmem:[#allocation2 + $0xc1] sm:$0xff]
        %v2477 = vld [vmem:[#allocation2 + $0xc9] sm:$0xff]
        %v2478 = vld [vmem:[#allocation2 + $0xd9] sm:$0xff]
        %v2479 = vld [vmem:[#allocation2 + $0xe1] sm:$0xff]
        %v2480 = vld [vmem:[#allocation2 + $0xf1] sm:$0xff]
        %v2481 = vld [vmem:[#allocation2 + $0xf9] sm:$0xff]
        %v2482 = vld [vmem:[#allocation2 + $0x109] sm:$0xff]
        %v2483 = vld [vmem:[#allocation2 + $0x111] sm:$0xff]
        %v2484 = vld [vmem:[#allocation2 + $0x121] sm:$0xff]
        %v2485 = vld [vmem:[#allocation2 + $0x129] sm:$0xff]
        %v2486 = vld [vmem:[#allocation2 + $0x139] sm:$0xff]
        %v2487 = vld [vmem:[#allocation2 + $0x141] sm:$0xff]
        %v2488 = vld [vmem:[#allocation2 + $0x151] sm:$0xff]
        %v2489 = vld [vmem:[#allocation2 + $0x159] sm:$0xff]
        %v2490 = vld [vmem:[#allocation2 + $0x169] sm:$0xff]
        %v2491 = vld [vmem:[#allocation2 + $0x171] sm:$0xff]
        %v2492 = vld [vmem:[#allocation2 + $0x2] sm:$0xff]
        %v2493 = vld [vmem:[#allocation2 + $0xa] sm:$0xff]
        %v2494 = vld [vmem:[#allocation2 + $0x1a] sm:$0xff]
        %v2495 = vld [vmem:[#allocation2 + $0x22] sm:$0xff]
        %v2496 = vld [vmem:[#allocation2 + $0x32] sm:$0xff]
        %v2497 = vld [vmem:[#allocation2 + $0x3a] sm:$0xff]
        %v2498 = vld [vmem:[#allocation2 + $0x4a] sm:$0xff]
        %v2499 = vld [vmem:[#allocation2 + $0x52] sm:$0xff]
        %v2500 = vld [vmem:[#allocation2 + $0x62] sm:$0xff]
        %v2501 = vld [vmem:[#allocation2 + $0x6a] sm:$0xff]
        %v2502 = vld [vmem:[#allocation2 + $0x7a] sm:$0xff]
        %v2503 = vld [vmem:[#allocation2 + $0x82] sm:$0xff]
        %v2504 = vld [vmem:[#allocation2 + $0x92] sm:$0xff]
        %v2505 = vld [vmem:[#allocation2 + $0x9a] sm:$0xff]
        %v2506 = vld [vmem:[#allocation2 + $0xaa] sm:$0xff]
        %v2507 = vld [vmem:[#allocation2 + $0xb2] sm:$0xff]
        %v2508 = vld [vmem:[#allocation2 + $0xc2] sm:$0xff]
        %v2509 = vld [vmem:[#allocation2 + $0xca] sm:$0xff]
        %v2510 = vld [vmem:[#allocation2 + $0xda] sm:$0xff]
        %v2511 = vld [vmem:[#allocation2 + $0xe2] sm:$0xff]
        %v2512 = vld [vmem:[#allocation2 + $0xf2] sm:$0xff]
        %v2513 = vld [vmem:[#allocation2 + $0xfa] sm:$0xff]
        %v2514 = vld [vmem:[#allocation2 + $0x10a] sm:$0xff]
        %v2515 = vld [vmem:[#allocation2 + $0x112] sm:$0xff]
        %v2516 = vld [vmem:[#allocation2 + $0x122] sm:$0xff]
        %v2517 = vld [vmem:[#allocation2 + $0x12a] sm:$0xff]
        %v2518 = vld [vmem:[#allocation2 + $0x13a] sm:$0xff]
        %v2519 = vld [vmem:[#allocation2 + $0x142] sm:$0xff]
        %v2520 = vld [vmem:[#allocation2 + $0x152] sm:$0xff]
        %v2521 = vld [vmem:[#allocation2 + $0x15a] sm:$0xff]
        %v2522 = vld [vmem:[#allocation2 + $0x16a] sm:$0xff]
        %v2523 = vld [vmem:[#allocation2 + $0x172] sm:$0xff]
        %v2524 = vld [vmem:[%s548] sm:$0xff]
        %v2525 = vld [vmem:[%s548 + $0x8] sm:$0xff]
        %v2526 = vld [vmem:[%s548 + $0x18] sm:$0xff]
        %v2527 = vld [vmem:[%s548 + $0x20] sm:$0xff]
        %v2528 = vld [vmem:[%s548 + $0x30] sm:$0xff]
        %v2529 = vld [vmem:[%s548 + $0x38] sm:$0xff]
        %v2530 = vld [vmem:[%s548 + $0x48] sm:$0xff]
        %v2531 = vld [vmem:[%s548 + $0x50] sm:$0xff]
        %v2532 = vld [vmem:[%s548 + $0x60] sm:$0xff]
        %v2533 = vld [vmem:[%s548 + $0x68] sm:$0xff]
        %v2534 = vld [vmem:[%s548 + $0x78] sm:$0xff]
        %v2535 = vld [vmem:[%s548 + $0x80] sm:$0xff]
        %v2536 = vld [vmem:[%s548 + $0x90] sm:$0xff]
        %v2537 = vld [vmem:[%s548 + $0x98] sm:$0xff]
        %v2538 = vld [vmem:[%s548 + $0xa8] sm:$0xff]
        %v2539 = vld [vmem:[%s548 + $0xb0] sm:$0xff]
        %v2540 = vld [vmem:[%s548 + $0xc0] sm:$0xff]
        %v2541 = vld [vmem:[%s548 + $0xc8] sm:$0xff]
        %v2542 = vld [vmem:[%s548 + $0xd8] sm:$0xff]
        %v2543 = vld [vmem:[%s548 + $0xe0] sm:$0xff]
        %v2544 = vld [vmem:[%s548 + $0xf0] sm:$0xff]
        %v2545 = vld [vmem:[%s548 + $0xf8] sm:$0xff]
        %v2546 = vld [vmem:[%s548 + $0x108] sm:$0xff]
        %v2547 = vld [vmem:[%s548 + $0x110] sm:$0xff]
        %v2548 = vld [vmem:[%s548 + $0x120] sm:$0xff]
        %v2549 = vld [vmem:[%s548 + $0x128] sm:$0xff]
        %v2550 = vld [vmem:[%s548 + $0x138] sm:$0xff]
        %v2551 = vld [vmem:[%s548 + $0x140] sm:$0xff]
        %v2552 = vld [vmem:[%s548 + $0x150] sm:$0xff]
        %v2553 = vld [vmem:[%s548 + $0x158] sm:$0xff]
        %v2554 = vld [vmem:[%s548 + $0x168] sm:$0xff]
        %v2555 = vld [vmem:[%s548 + $0x170] sm:$0xff]
        %v2556 = vld [vmem:[%s548 + $0x1] sm:$0xff]
        %v2557 = vld [vmem:[%s548 + $0x9] sm:$0xff]
        %v2558 = vld [vmem:[%s548 + $0x19] sm:$0xff]
        %v2559 = vld [vmem:[%s548 + $0x21] sm:$0xff]
        %v2560 = vld [vmem:[%s548 + $0x31] sm:$0xff]
        %v2561 = vld [vmem:[%s548 + $0x39] sm:$0xff]
        %v2562 = vld [vmem:[%s548 + $0x49] sm:$0xff]
        %v2563 = vld [vmem:[%s548 + $0x51] sm:$0xff]
        %v2564 = vld [vmem:[%s548 + $0x61] sm:$0xff]
        %v2565 = vld [vmem:[%s548 + $0x69] sm:$0xff]
        %v2566 = vld [vmem:[%s548 + $0x79] sm:$0xff]
        %v2567 = vld [vmem:[%s548 + $0x81] sm:$0xff]
        %v2568 = vld [vmem:[%s548 + $0x91] sm:$0xff]
        %v2569 = vld [vmem:[%s548 + $0x99] sm:$0xff]
        %v2570 = vld [vmem:[%s548 + $0xa9] sm:$0xff]
        %v2571 = vld [vmem:[%s548 + $0xb1] sm:$0xff]
        %v2572 = vld [vmem:[%s548 + $0xc1] sm:$0xff]
        %v2573 = vld [vmem:[%s548 + $0xc9] sm:$0xff]
        %v2574 = vld [vmem:[%s548 + $0xd9] sm:$0xff]
        %v2575 = vld [vmem:[%s548 + $0xe1] sm:$0xff]
        %v2576 = vld [vmem:[%s548 + $0xf1] sm:$0xff]
        %v2577 = vld [vmem:[%s548 + $0xf9] sm:$0xff]
        %v2578 = vld [vmem:[%s548 + $0x109] sm:$0xff]
        %v2579 = vld [vmem:[%s548 + $0x111] sm:$0xff]
        %v2580 = vld [vmem:[%s548 + $0x121] sm:$0xff]
        %v2581 = vld [vmem:[%s548 + $0x129] sm:$0xff]
        %v2582 = vld [vmem:[%s548 + $0x139] sm:$0xff]
        %v2583 = vld [vmem:[%s548 + $0x141] sm:$0xff]
        %v2584 = vld [vmem:[%s548 + $0x151] sm:$0xff]
        %v2585 = vld [vmem:[%s548 + $0x159] sm:$0xff]
        %v2586 = vld [vmem:[%s548 + $0x169] sm:$0xff]
        %v2587 = vld [vmem:[%s548 + $0x171] sm:$0xff]
        %v2588 = vld [vmem:[%s548 + $0x2] sm:$0xff]
        %v2589 = vld [vmem:[%s548 + $0xa] sm:$0xff]
        %v2590 = vld [vmem:[%s548 + $0x1a] sm:$0xff]
        %v2591 = vld [vmem:[%s548 + $0x22] sm:$0xff]
        %v2592 = vld [vmem:[%s548 + $0x32] sm:$0xff]
        %v2593 = vld [vmem:[%s548 + $0x3a] sm:$0xff]
        %v2594 = vld [vmem:[%s548 + $0x4a] sm:$0xff]
        %v2595 = vld [vmem:[%s548 + $0x52] sm:$0xff]
        %v2596 = vld [vmem:[%s548 + $0x62] sm:$0xff]
        %v2597 = vld [vmem:[%s548 + $0x6a] sm:$0xff]
        %v2598 = vld [vmem:[%s548 + $0x7a] sm:$0xff]
        %v2599 = vld [vmem:[%s548 + $0x82] sm:$0xff]
        %v2600 = vld [vmem:[%s548 + $0x92] sm:$0xff]
        %v2601 = vld [vmem:[%s548 + $0x9a] sm:$0xff]
        %v2602 = vld [vmem:[%s548 + $0xaa] sm:$0xff]
        %v2603 = vld [vmem:[%s548 + $0xb2] sm:$0xff]
        %v2604 = vld [vmem:[%s548 + $0xc2] sm:$0xff]
        %v2605 = vld [vmem:[%s548 + $0xca] sm:$0xff]
        %v2606 = vld [vmem:[%s548 + $0xda] sm:$0xff]
        %v2607 = vld [vmem:[%s548 + $0xe2] sm:$0xff]
        %v2608 = vld [vmem:[%s548 + $0xf2] sm:$0xff]
        %v2609 = vld [vmem:[%s548 + $0xfa] sm:$0xff]
        %v2610 = vld [vmem:[%s548 + $0x10a] sm:$0xff]
        %v2611 = vld [vmem:[%s548 + $0x112] sm:$0xff]
        %v2612 = vld [vmem:[%s548 + $0x122] sm:$0xff]
        %v2613 = vld [vmem:[%s548 + $0x12a] sm:$0xff]
        %v2614 = vld [vmem:[%s548 + $0x13a] sm:$0xff]
        %v2615 = vld [vmem:[%s548 + $0x142] sm:$0xff]
        %v2616 = vld [vmem:[%s548 + $0x152] sm:$0xff]
        %v2617 = vld [vmem:[%s548 + $0x15a] sm:$0xff]
        %v2618 = vld [vmem:[%s548 + $0x16a] sm:$0xff]
        %v2619 = vld [vmem:[%s548 + $0x172] sm:$0xff]
        %v2620 = vld [vmem:[%s773] sm:$0xff]
        %v2621 = vld [vmem:[%s773 + $0x8] sm:$0xff]
        %v2622 = vld [vmem:[%s773 + $0x18] sm:$0xff]
        %v2623 = vld [vmem:[%s773 + $0x20] sm:$0xff]
        %v2624 = vld [vmem:[%s773 + $0x30] sm:$0xff]
        %v2625 = vld [vmem:[%s773 + $0x38] sm:$0xff]
        %v2626 = vld [vmem:[%s773 + $0x48] sm:$0xff]
        %v2627 = vld [vmem:[%s773 + $0x50] sm:$0xff]
        %v2628 = vld [vmem:[%s773 + $0x60] sm:$0xff]
        %v2629 = vld [vmem:[%s773 + $0x68] sm:$0xff]
        %v2630 = vld [vmem:[%s773 + $0x78] sm:$0xff]
        %v2631 = vld [vmem:[%s773 + $0x80] sm:$0xff]
        %v2632 = vld [vmem:[%s773 + $0x90] sm:$0xff]
        %v2633 = vld [vmem:[%s773 + $0x98] sm:$0xff]
        %v2634 = vld [vmem:[%s773 + $0xa8] sm:$0xff]
        %v2635 = vld [vmem:[%s773 + $0xb0] sm:$0xff]
        %v2636 = vld [vmem:[%s773 + $0xc0] sm:$0xff]
        %v2637 = vld [vmem:[%s773 + $0xc8] sm:$0xff]
        %v2638 = vld [vmem:[%s773 + $0xd8] sm:$0xff]
        %v2639 = vld [vmem:[%s773 + $0xe0] sm:$0xff]
        %v2640 = vld [vmem:[%s773 + $0xf0] sm:$0xff]
        %v2641 = vld [vmem:[%s773 + $0xf8] sm:$0xff]
        %v2642 = vld [vmem:[%s773 + $0x108] sm:$0xff]
        %v2643 = vld [vmem:[%s773 + $0x110] sm:$0xff]
        %v2644 = vld [vmem:[%s773 + $0x120] sm:$0xff]
        %v2645 = vld [vmem:[%s773 + $0x128] sm:$0xff]
        %v2646 = vld [vmem:[%s773 + $0x138] sm:$0xff]
        %v2647 = vld [vmem:[%s773 + $0x140] sm:$0xff]
        %v2648 = vld [vmem:[%s773 + $0x150] sm:$0xff]
        %v2649 = vld [vmem:[%s773 + $0x158] sm:$0xff]
        %v2650 = vld [vmem:[%s773 + $0x168] sm:$0xff]
        %v2651 = vld [vmem:[%s773 + $0x170] sm:$0xff]
        %v2652 = vld [vmem:[%s773 + $0x1] sm:$0xff]
        %v2653 = vld [vmem:[%s773 + $0x9] sm:$0xff]
        %v2654 = vld [vmem:[%s773 + $0x19] sm:$0xff]
        %v2655 = vld [vmem:[%s773 + $0x21] sm:$0xff]
        %v2656 = vld [vmem:[%s773 + $0x31] sm:$0xff]
        %v2657 = vld [vmem:[%s773 + $0x39] sm:$0xff]
        %v2658 = vld [vmem:[%s773 + $0x49] sm:$0xff]
        %v2659 = vld [vmem:[%s773 + $0x51] sm:$0xff]
        %v2660 = vld [vmem:[%s773 + $0x61] sm:$0xff]
        %v2661 = vld [vmem:[%s773 + $0x69] sm:$0xff]
        %v2662 = vld [vmem:[%s773 + $0x79] sm:$0xff]
        %v2663 = vld [vmem:[%s773 + $0x81] sm:$0xff]
        %v2664 = vld [vmem:[%s773 + $0x91] sm:$0xff]
        %v2665 = vld [vmem:[%s773 + $0x99] sm:$0xff]
        %v2666 = vld [vmem:[%s773 + $0xa9] sm:$0xff]
        %v2667 = vld [vmem:[%s773 + $0xb1] sm:$0xff]
        %v2668 = vld [vmem:[%s773 + $0xc1] sm:$0xff]
        %v2669 = vld [vmem:[%s773 + $0xc9] sm:$0xff]
        %v2670 = vld [vmem:[%s773 + $0xd9] sm:$0xff]
        %v2671 = vld [vmem:[%s773 + $0xe1] sm:$0xff]
        %v2672 = vld [vmem:[%s773 + $0xf1] sm:$0xff]
        %v2673 = vld [vmem:[%s773 + $0xf9] sm:$0xff]
        %v2674 = vld [vmem:[%s773 + $0x109] sm:$0xff]
        %v2675 = vld [vmem:[%s773 + $0x111] sm:$0xff]
        %v2676 = vld [vmem:[%s773 + $0x121] sm:$0xff]
        %v2677 = vld [vmem:[%s773 + $0x129] sm:$0xff]
        %v2678 = vld [vmem:[%s773 + $0x139] sm:$0xff]
        %v2679 = vld [vmem:[%s773 + $0x141] sm:$0xff]
        %v2680 = vld [vmem:[%s773 + $0x151] sm:$0xff]
        %v2681 = vld [vmem:[%s773 + $0x159] sm:$0xff]
        %v2682 = vld [vmem:[%s773 + $0x169] sm:$0xff]
        %v2683 = vld [vmem:[%s773 + $0x171] sm:$0xff]
        %v2684 = vld [vmem:[%s773 + $0x2] sm:$0xff]
        %v2685 = vld [vmem:[%s773 + $0xa] sm:$0xff]
        %v2686 = vld [vmem:[%s773 + $0x1a] sm:$0xff]
        %v2687 = vld [vmem:[%s773 + $0x22] sm:$0xff]
        %v2688 = vld [vmem:[%s773 + $0x32] sm:$0xff]
        %v2689 = vld [vmem:[%s773 + $0x3a] sm:$0xff]
        %v2690 = vld [vmem:[%s773 + $0x4a] sm:$0xff]
        %v2691 = vld [vmem:[%s773 + $0x52] sm:$0xff]
        %v2692 = vld [vmem:[%s773 + $0x62] sm:$0xff]
        %v2693 = vld [vmem:[%s773 + $0x6a] sm:$0xff]
        %v2694 = vld [vmem:[%s773 + $0x7a] sm:$0xff]
        %v2695 = vld [vmem:[%s773 + $0x82] sm:$0xff]
        %v2696 = vld [vmem:[%s773 + $0x92] sm:$0xff]
        %v2697 = vld [vmem:[%s773 + $0x9a] sm:$0xff]
        %v2698 = vld [vmem:[%s773 + $0xaa] sm:$0xff]
        %v2699 = vld [vmem:[%s773 + $0xb2] sm:$0xff]
        %v2700 = vld [vmem:[%s773 + $0xc2] sm:$0xff]
        %v2701 = vld [vmem:[%s773 + $0xca] sm:$0xff]
        %v2702 = vld [vmem:[%s773 + $0xda] sm:$0xff]
        %v2703 = vld [vmem:[%s773 + $0xe2] sm:$0xff]
        %v2704 = vld [vmem:[%s773 + $0xf2] sm:$0xff]
        %v2705 = vld [vmem:[%s773 + $0xfa] sm:$0xff]
        %v2706 = vld [vmem:[%s773 + $0x10a] sm:$0xff]
        %v2707 = vld [vmem:[%s773 + $0x112] sm:$0xff]
        %v2708 = vld [vmem:[%s773 + $0x122] sm:$0xff]
        %v2709 = vld [vmem:[%s773 + $0x12a] sm:$0xff]
        %v2710 = vld [vmem:[%s773 + $0x13a] sm:$0xff]
        %v2711 = vld [vmem:[%s773 + $0x142] sm:$0xff]
        %v2712 = vld [vmem:[%s773 + $0x152] sm:$0xff]
        %v2713 = vld [vmem:[%s773 + $0x15a] sm:$0xff]
        %v2714 = vld [vmem:[%s773 + $0x16a] sm:$0xff]
        %v2715 = vld [vmem:[%s773 + $0x172] sm:$0xff]
        %2748 = vrot.lane.b32.xlu0 %v2460, 32
        %v2749 = vpop.permute.xlu0 %2748
        %2750 = vrot.lane.b32.xlu0 %v2461, 32
        %v2751 = vpop.permute.xlu0 %2750
        %2752 = vrot.lane.b32.xlu0 %v2462, 32
        %v2753 = vpop.permute.xlu0 %2752
        %2754 = vrot.lane.b32.xlu0 %v2463, 32
        %v2755 = vpop.permute.xlu0 %2754
        %2756 = vrot.lane.b32.xlu0 %v2464, 32
        %v2757 = vpop.permute.xlu0 %2756
        %2758 = vrot.lane.b32.xlu0 %v2465, 32
        %v2759 = vpop.permute.xlu0 %2758
        %2760 = vrot.lane.b32.xlu0 %v2466, 32
        %v2761 = vpop.permute.xlu0 %2760
        %2762 = vrot.lane.b32.xlu0 %v2467, 32
        %v2763 = vpop.permute.xlu0 %2762
        %2764 = vrot.lane.b32.xlu0 %v2468, 32
        %v2765 = vpop.permute.xlu0 %2764
        %2766 = vrot.lane.b32.xlu0 %v2469, 32
        %v2767 = vpop.permute.xlu0 %2766
        %2768 = vrot.lane.b32.xlu0 %v2470, 32
        %v2769 = vpop.permute.xlu0 %2768
        %2770 = vrot.lane.b32.xlu0 %v2471, 32
        %v2771 = vpop.permute.xlu0 %2770
        %2772 = vrot.lane.b32.xlu0 %v2472, 32
        %v2773 = vpop.permute.xlu0 %2772
        %2774 = vrot.lane.b32.xlu0 %v2473, 32
        %v2775 = vpop.permute.xlu0 %2774
        %2776 = vrot.lane.b32.xlu0 %v2474, 32
        %v2777 = vpop.permute.xlu0 %2776
        %2778 = vrot.lane.b32.xlu0 %v2475, 32
        %v2779 = vpop.permute.xlu0 %2778
        %2780 = vrot.lane.b32.xlu0 %v2476, 32
        %v2781 = vpop.permute.xlu0 %2780
        %2782 = vrot.lane.b32.xlu0 %v2477, 32
        %v2783 = vpop.permute.xlu0 %2782
        %2784 = vrot.lane.b32.xlu0 %v2478, 32
        %v2785 = vpop.permute.xlu0 %2784
        %2786 = vrot.lane.b32.xlu0 %v2479, 32
        %v2787 = vpop.permute.xlu0 %2786
        %2788 = vrot.lane.b32.xlu0 %v2480, 32
        %v2789 = vpop.permute.xlu0 %2788
        %2790 = vrot.lane.b32.xlu0 %v2481, 32
        %v2791 = vpop.permute.xlu0 %2790
        %2792 = vrot.lane.b32.xlu0 %v2482, 32
        %v2793 = vpop.permute.xlu0 %2792
        %2794 = vrot.lane.b32.xlu0 %v2483, 32
        %v2795 = vpop.permute.xlu0 %2794
        %2796 = vrot.lane.b32.xlu0 %v2484, 32
        %v2797 = vpop.permute.xlu0 %2796
        %2798 = vrot.lane.b32.xlu0 %v2485, 32
        %v2799 = vpop.permute.xlu0 %2798
        %2800 = vrot.lane.b32.xlu0 %v2486, 32
        %v2801 = vpop.permute.xlu0 %2800
        %2802 = vrot.lane.b32.xlu0 %v2487, 32
        %v2803 = vpop.permute.xlu0 %2802
        %2804 = vrot.lane.b32.xlu0 %v2488, 32
        %v2805 = vpop.permute.xlu0 %2804
        %2806 = vrot.lane.b32.xlu0 %v2489, 32
        %v2807 = vpop.permute.xlu0 %2806
        %2808 = vrot.lane.b32.xlu0 %v2490, 32
        %v2809 = vpop.permute.xlu0 %2808
        %2810 = vrot.lane.b32.xlu0 %v2491, 32
        %v2811 = vpop.permute.xlu0 %2810
        %2876 = vrot.lane.b32.xlu0 %v2492, 64
        %v2877 = vpop.permute.xlu0 %2876
        %2878 = vrot.lane.b32.xlu0 %v2493, 64
        %v2879 = vpop.permute.xlu0 %2878
        %2880 = vrot.lane.b32.xlu0 %v2494, 64
        %v2881 = vpop.permute.xlu0 %2880
        %2882 = vrot.lane.b32.xlu0 %v2495, 64
        %v2883 = vpop.permute.xlu0 %2882
        %2884 = vrot.lane.b32.xlu0 %v2496, 64
        %v2885 = vpop.permute.xlu0 %2884
        %2886 = vrot.lane.b32.xlu0 %v2497, 64
        %v2887 = vpop.permute.xlu0 %2886
        %2888 = vrot.lane.b32.xlu0 %v2498, 64
        %v2889 = vpop.permute.xlu0 %2888
        %2890 = vrot.lane.b32.xlu0 %v2499, 64
        %v2891 = vpop.permute.xlu0 %2890
        %2892 = vrot.lane.b32.xlu0 %v2500, 64
        %v2893 = vpop.permute.xlu0 %2892
        %2894 = vrot.lane.b32.xlu0 %v2501, 64
        %v2895 = vpop.permute.xlu0 %2894
        %2896 = vrot.lane.b32.xlu0 %v2502, 64
        %v2897 = vpop.permute.xlu0 %2896
        %2898 = vrot.lane.b32.xlu0 %v2503, 64
        %v2899 = vpop.permute.xlu0 %2898
        %2900 = vrot.lane.b32.xlu0 %v2504, 64
        %v2901 = vpop.permute.xlu0 %2900
        %2902 = vrot.lane.b32.xlu0 %v2505, 64
        %v2903 = vpop.permute.xlu0 %2902
        %2904 = vrot.lane.b32.xlu0 %v2506, 64
        %v2905 = vpop.permute.xlu0 %2904
        %2906 = vrot.lane.b32.xlu0 %v2507, 64
        %v2907 = vpop.permute.xlu0 %2906
        %2908 = vrot.lane.b32.xlu0 %v2508, 64
        %v2909 = vpop.permute.xlu0 %2908
        %2910 = vrot.lane.b32.xlu0 %v2509, 64
        %v2911 = vpop.permute.xlu0 %2910
        %2912 = vrot.lane.b32.xlu0 %v2510, 64
        %v2913 = vpop.permute.xlu0 %2912
        %2914 = vrot.lane.b32.xlu0 %v2511, 64
        %v2915 = vpop.permute.xlu0 %2914
        %2916 = vrot.lane.b32.xlu0 %v2512, 64
        %v2917 = vpop.permute.xlu0 %2916
        %2918 = vrot.lane.b32.xlu0 %v2513, 64
        %v2919 = vpop.permute.xlu0 %2918
        %2920 = vrot.lane.b32.xlu0 %v2514, 64
        %v2921 = vpop.permute.xlu0 %2920
        %2922 = vrot.lane.b32.xlu0 %v2515, 64
        %v2923 = vpop.permute.xlu0 %2922
        %2924 = vrot.lane.b32.xlu0 %v2516, 64
        %v2925 = vpop.permute.xlu0 %2924
        %2926 = vrot.lane.b32.xlu0 %v2517, 64
        %v2927 = vpop.permute.xlu0 %2926
        %2928 = vrot.lane.b32.xlu0 %v2518, 64
        %v2929 = vpop.permute.xlu0 %2928
        %2930 = vrot.lane.b32.xlu0 %v2519, 64
        %v2931 = vpop.permute.xlu0 %2930
        %2932 = vrot.lane.b32.xlu0 %v2520, 64
        %v2933 = vpop.permute.xlu0 %2932
        %2934 = vrot.lane.b32.xlu0 %v2521, 64
        %v2935 = vpop.permute.xlu0 %2934
        %2936 = vrot.lane.b32.xlu0 %v2522, 64
        %v2937 = vpop.permute.xlu0 %2936
        %2938 = vrot.lane.b32.xlu0 %v2523, 64
        %v2939 = vpop.permute.xlu0 %2938
        %3004 = vrot.lane.b32.xlu0 %v2524, 96
        %v3005 = vpop.permute.xlu0 %3004
        %3006 = vrot.lane.b32.xlu0 %v2525, 96
        %v3007 = vpop.permute.xlu0 %3006
        %3008 = vrot.lane.b32.xlu0 %v2526, 96
        %v3009 = vpop.permute.xlu0 %3008
        %3010 = vrot.lane.b32.xlu0 %v2527, 96
        %v3011 = vpop.permute.xlu0 %3010
        %3012 = vrot.lane.b32.xlu0 %v2528, 96
        %v3013 = vpop.permute.xlu0 %3012
        %3014 = vrot.lane.b32.xlu0 %v2529, 96
        %v3015 = vpop.permute.xlu0 %3014
        %3016 = vrot.lane.b32.xlu0 %v2530, 96
        %v3017 = vpop.permute.xlu0 %3016
        %3018 = vrot.lane.b32.xlu0 %v2531, 96
        %v3019 = vpop.permute.xlu0 %3018
        %3020 = vrot.lane.b32.xlu0 %v2532, 96
        %v3021 = vpop.permute.xlu0 %3020
        %3022 = vrot.lane.b32.xlu0 %v2533, 96
        %v3023 = vpop.permute.xlu0 %3022
        %3024 = vrot.lane.b32.xlu0 %v2534, 96
        %v3025 = vpop.permute.xlu0 %3024
        %3026 = vrot.lane.b32.xlu0 %v2535, 96
        %v3027 = vpop.permute.xlu0 %3026
        %3028 = vrot.lane.b32.xlu0 %v2536, 96
        %v3029 = vpop.permute.xlu0 %3028
        %3030 = vrot.lane.b32.xlu0 %v2537, 96
        %v3031 = vpop.permute.xlu0 %3030
        %3032 = vrot.lane.b32.xlu0 %v2538, 96
        %v3033 = vpop.permute.xlu0 %3032
        %3034 = vrot.lane.b32.xlu0 %v2539, 96
        %v3035 = vpop.permute.xlu0 %3034
        %3036 = vrot.lane.b32.xlu0 %v2540, 96
        %v3037 = vpop.permute.xlu0 %3036
        %3038 = vrot.lane.b32.xlu0 %v2541, 96
        %v3039 = vpop.permute.xlu0 %3038
        %3040 = vrot.lane.b32.xlu0 %v2542, 96
        %v3041 = vpop.permute.xlu0 %3040
        %3042 = vrot.lane.b32.xlu0 %v2543, 96
        %v3043 = vpop.permute.xlu0 %3042
        %3044 = vrot.lane.b32.xlu0 %v2544, 96
        %v3045 = vpop.permute.xlu0 %3044
        %3046 = vrot.lane.b32.xlu0 %v2545, 96
        %v3047 = vpop.permute.xlu0 %3046
        %3048 = vrot.lane.b32.xlu0 %v2546, 96
        %v3049 = vpop.permute.xlu0 %3048
        %3050 = vrot.lane.b32.xlu0 %v2547, 96
        %v3051 = vpop.permute.xlu0 %3050
        %3052 = vrot.lane.b32.xlu0 %v2548, 96
        %v3053 = vpop.permute.xlu0 %3052
        %3054 = vrot.lane.b32.xlu0 %v2549, 96
        %v3055 = vpop.permute.xlu0 %3054
        %3056 = vrot.lane.b32.xlu0 %v2550, 96
        %v3057 = vpop.permute.xlu0 %3056
        %3058 = vrot.lane.b32.xlu0 %v2551, 96
        %v3059 = vpop.permute.xlu0 %3058
        %3060 = vrot.lane.b32.xlu0 %v2552, 96
        %v3061 = vpop.permute.xlu0 %3060
        %3062 = vrot.lane.b32.xlu0 %v2553, 96
        %v3063 = vpop.permute.xlu0 %3062
        %3064 = vrot.lane.b32.xlu0 %v2554, 96
        %v3065 = vpop.permute.xlu0 %3064
        %3066 = vrot.lane.b32.xlu0 %v2555, 96
        %v3067 = vpop.permute.xlu0 %3066
        %3132 = vrot.lane.b32.xlu0 %v2588, 32
        %v3133 = vpop.permute.xlu0 %3132
        %3134 = vrot.lane.b32.xlu0 %v2589, 32
        %v3135 = vpop.permute.xlu0 %3134
        %3136 = vrot.lane.b32.xlu0 %v2590, 32
        %v3137 = vpop.permute.xlu0 %3136
        %3138 = vrot.lane.b32.xlu0 %v2591, 32
        %v3139 = vpop.permute.xlu0 %3138
        %3140 = vrot.lane.b32.xlu0 %v2592, 32
        %v3141 = vpop.permute.xlu0 %3140
        %3142 = vrot.lane.b32.xlu0 %v2593, 32
        %v3143 = vpop.permute.xlu0 %3142
        %3144 = vrot.lane.b32.xlu0 %v2594, 32
        %v3145 = vpop.permute.xlu0 %3144
        %3146 = vrot.lane.b32.xlu0 %v2595, 32
        %v3147 = vpop.permute.xlu0 %3146
        %3148 = vrot.lane.b32.xlu0 %v2596, 32
        %v3149 = vpop.permute.xlu0 %3148
        %3150 = vrot.lane.b32.xlu0 %v2597, 32
        %v3151 = vpop.permute.xlu0 %3150
        %3152 = vrot.lane.b32.xlu0 %v2598, 32
        %v3153 = vpop.permute.xlu0 %3152
        %3154 = vrot.lane.b32.xlu0 %v2599, 32
        %v3155 = vpop.permute.xlu0 %3154
        %3156 = vrot.lane.b32.xlu0 %v2600, 32
        %v3157 = vpop.permute.xlu0 %3156
        %3158 = vrot.lane.b32.xlu0 %v2601, 32
        %v3159 = vpop.permute.xlu0 %3158
        %3160 = vrot.lane.b32.xlu0 %v2602, 32
        %v3161 = vpop.permute.xlu0 %3160
        %3162 = vrot.lane.b32.xlu0 %v2603, 32
        %v3163 = vpop.permute.xlu0 %3162
        %3164 = vrot.lane.b32.xlu0 %v2604, 32
        %v3165 = vpop.permute.xlu0 %3164
        %3166 = vrot.lane.b32.xlu0 %v2605, 32
        %v3167 = vpop.permute.xlu0 %3166
        %3168 = vrot.lane.b32.xlu0 %v2606, 32
        %v3169 = vpop.permute.xlu0 %3168
        %3170 = vrot.lane.b32.xlu0 %v2607, 32
        %v3171 = vpop.permute.xlu0 %3170
        %3172 = vrot.lane.b32.xlu0 %v2608, 32
        %v3173 = vpop.permute.xlu0 %3172
        %3174 = vrot.lane.b32.xlu0 %v2609, 32
        %v3175 = vpop.permute.xlu0 %3174
        %3176 = vrot.lane.b32.xlu0 %v2610, 32
        %v3177 = vpop.permute.xlu0 %3176
        %3178 = vrot.lane.b32.xlu0 %v2611, 32
        %v3179 = vpop.permute.xlu0 %3178
        %3180 = vrot.lane.b32.xlu0 %v2612, 32
        %v3181 = vpop.permute.xlu0 %3180
        %3182 = vrot.lane.b32.xlu0 %v2613, 32
        %v3183 = vpop.permute.xlu0 %3182
        %3184 = vrot.lane.b32.xlu0 %v2614, 32
        %v3185 = vpop.permute.xlu0 %3184
        %3186 = vrot.lane.b32.xlu0 %v2615, 32
        %v3187 = vpop.permute.xlu0 %3186
        %3188 = vrot.lane.b32.xlu0 %v2616, 32
        %v3189 = vpop.permute.xlu0 %3188
        %3190 = vrot.lane.b32.xlu0 %v2617, 32
        %v3191 = vpop.permute.xlu0 %3190
        %3192 = vrot.lane.b32.xlu0 %v2618, 32
        %v3193 = vpop.permute.xlu0 %3192
        %3194 = vrot.lane.b32.xlu0 %v2619, 32
        %v3195 = vpop.permute.xlu0 %3194
        %3260 = vrot.lane.b32.xlu0 %v2620, 64
        %v3261 = vpop.permute.xlu0 %3260
        %3262 = vrot.lane.b32.xlu0 %v2621, 64
        %v3263 = vpop.permute.xlu0 %3262
        %3264 = vrot.lane.b32.xlu0 %v2622, 64
        %v3265 = vpop.permute.xlu0 %3264
        %3266 = vrot.lane.b32.xlu0 %v2623, 64
        %v3267 = vpop.permute.xlu0 %3266
        %3268 = vrot.lane.b32.xlu0 %v2624, 64
        %v3269 = vpop.permute.xlu0 %3268
        %3270 = vrot.lane.b32.xlu0 %v2625, 64
        %v3271 = vpop.permute.xlu0 %3270
        %3272 = vrot.lane.b32.xlu0 %v2626, 64
        %v3273 = vpop.permute.xlu0 %3272
        %3274 = vrot.lane.b32.xlu0 %v2627, 64
        %v3275 = vpop.permute.xlu0 %3274
        %3276 = vrot.lane.b32.xlu0 %v2628, 64
        %v3277 = vpop.permute.xlu0 %3276
        %3278 = vrot.lane.b32.xlu0 %v2629, 64
        %v3279 = vpop.permute.xlu0 %3278
        %3280 = vrot.lane.b32.xlu0 %v2630, 64
        %v3281 = vpop.permute.xlu0 %3280
        %3282 = vrot.lane.b32.xlu0 %v2631, 64
        %v3283 = vpop.permute.xlu0 %3282
        %3284 = vrot.lane.b32.xlu0 %v2632, 64
        %v3285 = vpop.permute.xlu0 %3284
        %3286 = vrot.lane.b32.xlu0 %v2633, 64
        %v3287 = vpop.permute.xlu0 %3286
        %3288 = vrot.lane.b32.xlu0 %v2634, 64
        %v3289 = vpop.permute.xlu0 %3288
        %3290 = vrot.lane.b32.xlu0 %v2635, 64
        %v3291 = vpop.permute.xlu0 %3290
        %3292 = vrot.lane.b32.xlu0 %v2636, 64
        %v3293 = vpop.permute.xlu0 %3292
        %3294 = vrot.lane.b32.xlu0 %v2637, 64
        %v3295 = vpop.permute.xlu0 %3294
        %3296 = vrot.lane.b32.xlu0 %v2638, 64
        %v3297 = vpop.permute.xlu0 %3296
        %3298 = vrot.lane.b32.xlu0 %v2639, 64
        %v3299 = vpop.permute.xlu0 %3298
        %3300 = vrot.lane.b32.xlu0 %v2640, 64
        %v3301 = vpop.permute.xlu0 %3300
        %3302 = vrot.lane.b32.xlu0 %v2641, 64
        %v3303 = vpop.permute.xlu0 %3302
        %3304 = vrot.lane.b32.xlu0 %v2642, 64
        %v3305 = vpop.permute.xlu0 %3304
        %3306 = vrot.lane.b32.xlu0 %v2643, 64
        %v3307 = vpop.permute.xlu0 %3306
        %3308 = vrot.lane.b32.xlu0 %v2644, 64
        %v3309 = vpop.permute.xlu0 %3308
        %3310 = vrot.lane.b32.xlu0 %v2645, 64
        %v3311 = vpop.permute.xlu0 %3310
        %3312 = vrot.lane.b32.xlu0 %v2646, 64
        %v3313 = vpop.permute.xlu0 %3312
        %3314 = vrot.lane.b32.xlu0 %v2647, 64
        %v3315 = vpop.permute.xlu0 %3314
        %3316 = vrot.lane.b32.xlu0 %v2648, 64
        %v3317 = vpop.permute.xlu0 %3316
        %3318 = vrot.lane.b32.xlu0 %v2649, 64
        %v3319 = vpop.permute.xlu0 %3318
        %3320 = vrot.lane.b32.xlu0 %v2650, 64
        %v3321 = vpop.permute.xlu0 %3320
        %3322 = vrot.lane.b32.xlu0 %v2651, 64
        %v3323 = vpop.permute.xlu0 %3322
        %3388 = vrot.lane.b32.xlu0 %v2652, 96
        %v3389 = vpop.permute.xlu0 %3388
        %3390 = vrot.lane.b32.xlu0 %v2653, 96
        %v3391 = vpop.permute.xlu0 %3390
        %3392 = vrot.lane.b32.xlu0 %v2654, 96
        %v3393 = vpop.permute.xlu0 %3392
        %3394 = vrot.lane.b32.xlu0 %v2655, 96
        %v3395 = vpop.permute.xlu0 %3394
        %3396 = vrot.lane.b32.xlu0 %v2656, 96
        %v3397 = vpop.permute.xlu0 %3396
        %3398 = vrot.lane.b32.xlu0 %v2657, 96
        %v3399 = vpop.permute.xlu0 %3398
        %3400 = vrot.lane.b32.xlu0 %v2658, 96
        %v3401 = vpop.permute.xlu0 %3400
        %3402 = vrot.lane.b32.xlu0 %v2659, 96
        %v3403 = vpop.permute.xlu0 %3402
        %3404 = vrot.lane.b32.xlu0 %v2660, 96
        %v3405 = vpop.permute.xlu0 %3404
        %3406 = vrot.lane.b32.xlu0 %v2661, 96
        %v3407 = vpop.permute.xlu0 %3406
        %3408 = vrot.lane.b32.xlu0 %v2662, 96
        %v3409 = vpop.permute.xlu0 %3408
        %3410 = vrot.lane.b32.xlu0 %v2663, 96
        %v3411 = vpop.permute.xlu0 %3410
        %3412 = vrot.lane.b32.xlu0 %v2664, 96
        %v3413 = vpop.permute.xlu0 %3412
        %3414 = vrot.lane.b32.xlu0 %v2665, 96
        %v3415 = vpop.permute.xlu0 %3414
        %3416 = vrot.lane.b32.xlu0 %v2666, 96
        %v3417 = vpop.permute.xlu0 %3416
        %3418 = vrot.lane.b32.xlu0 %v2667, 96
        %v3419 = vpop.permute.xlu0 %3418
        %3420 = vrot.lane.b32.xlu0 %v2668, 96
        %v3421 = vpop.permute.xlu0 %3420
        %3422 = vrot.lane.b32.xlu0 %v2669, 96
        %v3423 = vpop.permute.xlu0 %3422
        %3424 = vrot.lane.b32.xlu0 %v2670, 96
        %v3425 = vpop.permute.xlu0 %3424
        %3426 = vrot.lane.b32.xlu0 %v2671, 96
        %v3427 = vpop.permute.xlu0 %3426
        %3428 = vrot.lane.b32.xlu0 %v2672, 96
        %v3429 = vpop.permute.xlu0 %3428
        %3430 = vrot.lane.b32.xlu0 %v2673, 96
        %v3431 = vpop.permute.xlu0 %3430
        %3432 = vrot.lane.b32.xlu0 %v2674, 96
        %v3433 = vpop.permute.xlu0 %3432
        %3434 = vrot.lane.b32.xlu0 %v2675, 96
        %v3435 = vpop.permute.xlu0 %3434
        %3436 = vrot.lane.b32.xlu0 %v2676, 96
        %v3437 = vpop.permute.xlu0 %3436
        %3438 = vrot.lane.b32.xlu0 %v2677, 96
        %v3439 = vpop.permute.xlu0 %3438
        %3440 = vrot.lane.b32.xlu0 %v2678, 96
        %v3441 = vpop.permute.xlu0 %3440
        %3442 = vrot.lane.b32.xlu0 %v2679, 96
        %v3443 = vpop.permute.xlu0 %3442
        %3444 = vrot.lane.b32.xlu0 %v2680, 96
        %v3445 = vpop.permute.xlu0 %3444
        %3446 = vrot.lane.b32.xlu0 %v2681, 96
        %v3447 = vpop.permute.xlu0 %3446
        %3448 = vrot.lane.b32.xlu0 %v2682, 96
        %v3449 = vpop.permute.xlu0 %3448
        %3450 = vrot.lane.b32.xlu0 %v2683, 96
        %v3451 = vpop.permute.xlu0 %3450
        %v3484 = vsel %vm386, %v2428, %v2749
        %v3485 = vsel %vm386, %v2429, %v2751
        %v3486 = vsel %vm386, %v2430, %v2753
        %v3487 = vsel %vm386, %v2431, %v2755
        %v3488 = vsel %vm386, %v2432, %v2757
        %v3489 = vsel %vm386, %v2433, %v2759
        %v3490 = vsel %vm386, %v2434, %v2761
        %v3491 = vsel %vm386, %v2435, %v2763
        %v3492 = vsel %vm386, %v2436, %v2765
        %v3493 = vsel %vm386, %v2437, %v2767
        %v3494 = vsel %vm386, %v2438, %v2769
        %v3495 = vsel %vm386, %v2439, %v2771
        %v3496 = vsel %vm386, %v2440, %v2773
        %v3497 = vsel %vm386, %v2441, %v2775
        %v3498 = vsel %vm386, %v2442, %v2777
        %v3499 = vsel %vm386, %v2443, %v2779
        %v3500 = vsel %vm386, %v2444, %v2781
        %v3501 = vsel %vm386, %v2445, %v2783
        %v3502 = vsel %vm386, %v2446, %v2785
        %v3503 = vsel %vm386, %v2447, %v2787
        %v3504 = vsel %vm386, %v2448, %v2789
        %v3505 = vsel %vm386, %v2449, %v2791
        %v3506 = vsel %vm386, %v2450, %v2793
        %v3507 = vsel %vm386, %v2451, %v2795
        %v3508 = vsel %vm386, %v2452, %v2797
        %v3509 = vsel %vm386, %v2453, %v2799
        %v3510 = vsel %vm386, %v2454, %v2801
        %v3511 = vsel %vm386, %v2455, %v2803
        %v3512 = vsel %vm386, %v2456, %v2805
        %v3513 = vsel %vm386, %v2457, %v2807
        %v3514 = vsel %vm386, %v2458, %v2809
        %v3515 = vsel %vm386, %v2459, %v2811
        %v3516 = vsel %vm1670, %v3484, %v2877
        %v3517 = vsel %vm1670, %v3485, %v2879
        %v3518 = vsel %vm1670, %v3486, %v2881
        %v3519 = vsel %vm1670, %v3487, %v2883
        %v3520 = vsel %vm1670, %v3488, %v2885
        %v3521 = vsel %vm1670, %v3489, %v2887
        %v3522 = vsel %vm1670, %v3490, %v2889
        %v3523 = vsel %vm1670, %v3491, %v2891
        %v3524 = vsel %vm1670, %v3492, %v2893
        %v3525 = vsel %vm1670, %v3493, %v2895
        %v3526 = vsel %vm1670, %v3494, %v2897
        %v3527 = vsel %vm1670, %v3495, %v2899
        %v3528 = vsel %vm1670, %v3496, %v2901
        %v3529 = vsel %vm1670, %v3497, %v2903
        %v3530 = vsel %vm1670, %v3498, %v2905
        %v3531 = vsel %vm1670, %v3499, %v2907
        %v3532 = vsel %vm1670, %v3500, %v2909
        %v3533 = vsel %vm1670, %v3501, %v2911
        %v3534 = vsel %vm1670, %v3502, %v2913
        %v3535 = vsel %vm1670, %v3503, %v2915
        %v3536 = vsel %vm1670, %v3504, %v2917
        %v3537 = vsel %vm1670, %v3505, %v2919
        %v3538 = vsel %vm1670, %v3506, %v2921
        %v3539 = vsel %vm1670, %v3507, %v2923
        %v3540 = vsel %vm1670, %v3508, %v2925
        %v3541 = vsel %vm1670, %v3509, %v2927
        %v3542 = vsel %vm1670, %v3510, %v2929
        %v3543 = vsel %vm1670, %v3511, %v2931
        %v3544 = vsel %vm1670, %v3512, %v2933
        %v3545 = vsel %vm1670, %v3513, %v2935
        %v3546 = vsel %vm1670, %v3514, %v2937
        %v3547 = vsel %vm1670, %v3515, %v2939
        %v3548 = vsel %vm1703, %v3516, %v3005
        %v3549 = vsel %vm1703, %v3517, %v3007
        %v3550 = vsel %vm1703, %v3518, %v3009
        %v3551 = vsel %vm1703, %v3519, %v3011
        %v3552 = vsel %vm1703, %v3520, %v3013
        %v3553 = vsel %vm1703, %v3521, %v3015
        %v3554 = vsel %vm1703, %v3522, %v3017
        %v3555 = vsel %vm1703, %v3523, %v3019
        %v3556 = vsel %vm1703, %v3524, %v3021
        %v3557 = vsel %vm1703, %v3525, %v3023
        %v3558 = vsel %vm1703, %v3526, %v3025
        %v3559 = vsel %vm1703, %v3527, %v3027
        %v3560 = vsel %vm1703, %v3528, %v3029
        %v3561 = vsel %vm1703, %v3529, %v3031
        %v3562 = vsel %vm1703, %v3530, %v3033
        %v3563 = vsel %vm1703, %v3531, %v3035
        %v3564 = vsel %vm1703, %v3532, %v3037
        %v3565 = vsel %vm1703, %v3533, %v3039
        %v3566 = vsel %vm1703, %v3534, %v3041
        %v3567 = vsel %vm1703, %v3535, %v3043
        %v3568 = vsel %vm1703, %v3536, %v3045
        %v3569 = vsel %vm1703, %v3537, %v3047
        %v3570 = vsel %vm1703, %v3538, %v3049
        %v3571 = vsel %vm1703, %v3539, %v3051
        %v3572 = vsel %vm1703, %v3540, %v3053
        %v3573 = vsel %vm1703, %v3541, %v3055
        %v3574 = vsel %vm1703, %v3542, %v3057
        %v3575 = vsel %vm1703, %v3543, %v3059
        %v3576 = vsel %vm1703, %v3544, %v3061
        %v3577 = vsel %vm1703, %v3545, %v3063
        %v3578 = vsel %vm1703, %v3546, %v3065
        %v3579 = vsel %vm1703, %v3547, %v3067
        %v3580 = vsel %vm386, %v2556, %v3133
        %v3581 = vsel %vm386, %v2557, %v3135
        %v3582 = vsel %vm386, %v2558, %v3137
        %v3583 = vsel %vm386, %v2559, %v3139
        %v3584 = vsel %vm386, %v2560, %v3141
        %v3585 = vsel %vm386, %v2561, %v3143
        %v3586 = vsel %vm386, %v2562, %v3145
        %v3587 = vsel %vm386, %v2563, %v3147
        %v3588 = vsel %vm386, %v2564, %v3149
        %v3589 = vsel %vm386, %v2565, %v3151
        %v3590 = vsel %vm386, %v2566, %v3153
        %v3591 = vsel %vm386, %v2567, %v3155
        %v3592 = vsel %vm386, %v2568, %v3157
        %v3593 = vsel %vm386, %v2569, %v3159
        %v3594 = vsel %vm386, %v2570, %v3161
        %v3595 = vsel %vm386, %v2571, %v3163
        %v3596 = vsel %vm386, %v2572, %v3165
        %v3597 = vsel %vm386, %v2573, %v3167
        %v3598 = vsel %vm386, %v2574, %v3169
        %v3599 = vsel %vm386, %v2575, %v3171
        %v3600 = vsel %vm386, %v2576, %v3173
        %v3601 = vsel %vm386, %v2577, %v3175
        %v3602 = vsel %vm386, %v2578, %v3177
        %v3603 = vsel %vm386, %v2579, %v3179
        %v3604 = vsel %vm386, %v2580, %v3181
        %v3605 = vsel %vm386, %v2581, %v3183
        %v3606 = vsel %vm386, %v2582, %v3185
        %v3607 = vsel %vm386, %v2583, %v3187
        %v3608 = vsel %vm386, %v2584, %v3189
        %v3609 = vsel %vm386, %v2585, %v3191
        %v3610 = vsel %vm386, %v2586, %v3193
        %v3611 = vsel %vm386, %v2587, %v3195
        %v3612 = vsel %vm1670, %v3580, %v3261
        %v3613 = vsel %vm1670, %v3581, %v3263
        %v3614 = vsel %vm1670, %v3582, %v3265
        %v3615 = vsel %vm1670, %v3583, %v3267
        %v3616 = vsel %vm1670, %v3584, %v3269
        %v3617 = vsel %vm1670, %v3585, %v3271
        %v3618 = vsel %vm1670, %v3586, %v3273
        %v3619 = vsel %vm1670, %v3587, %v3275
        %v3620 = vsel %vm1670, %v3588, %v3277
        %v3621 = vsel %vm1670, %v3589, %v3279
        %v3622 = vsel %vm1670, %v3590, %v3281
        %v3623 = vsel %vm1670, %v3591, %v3283
        %v3624 = vsel %vm1670, %v3592, %v3285
        %v3625 = vsel %vm1670, %v3593, %v3287
        %v3626 = vsel %vm1670, %v3594, %v3289
        %v3627 = vsel %vm1670, %v3595, %v3291
        %v3628 = vsel %vm1670, %v3596, %v3293
        %v3629 = vsel %vm1670, %v3597, %v3295
        %v3630 = vsel %vm1670, %v3598, %v3297
        %v3631 = vsel %vm1670, %v3599, %v3299
        %v3632 = vsel %vm1670, %v3600, %v3301
        %v3633 = vsel %vm1670, %v3601, %v3303
        %v3634 = vsel %vm1670, %v3602, %v3305
        %v3635 = vsel %vm1670, %v3603, %v3307
        %v3636 = vsel %vm1670, %v3604, %v3309
        %v3637 = vsel %vm1670, %v3605, %v3311
        %v3638 = vsel %vm1670, %v3606, %v3313
        %v3639 = vsel %vm1670, %v3607, %v3315
        %v3640 = vsel %vm1670, %v3608, %v3317
        %v3641 = vsel %vm1670, %v3609, %v3319
        %v3642 = vsel %vm1670, %v3610, %v3321
        %v3643 = vsel %vm1670, %v3611, %v3323
        %v3644 = vsel %vm1703, %v3612, %v3389
        %v3645 = vsel %vm1703, %v3613, %v3391
        %v3646 = vsel %vm1703, %v3614, %v3393
        %v3647 = vsel %vm1703, %v3615, %v3395
        %v3648 = vsel %vm1703, %v3616, %v3397
        %v3649 = vsel %vm1703, %v3617, %v3399
        %v3650 = vsel %vm1703, %v3618, %v3401
        %v3651 = vsel %vm1703, %v3619, %v3403
        %v3652 = vsel %vm1703, %v3620, %v3405
        %v3653 = vsel %vm1703, %v3621, %v3407
        %v3654 = vsel %vm1703, %v3622, %v3409
        %v3655 = vsel %vm1703, %v3623, %v3411
        %v3656 = vsel %vm1703, %v3624, %v3413
        %v3657 = vsel %vm1703, %v3625, %v3415
        %v3658 = vsel %vm1703, %v3626, %v3417
        %v3659 = vsel %vm1703, %v3627, %v3419
        %v3660 = vsel %vm1703, %v3628, %v3421
        %v3661 = vsel %vm1703, %v3629, %v3423
        %v3662 = vsel %vm1703, %v3630, %v3425
        %v3663 = vsel %vm1703, %v3631, %v3427
        %v3664 = vsel %vm1703, %v3632, %v3429
        %v3665 = vsel %vm1703, %v3633, %v3431
        %v3666 = vsel %vm1703, %v3634, %v3433
        %v3667 = vsel %vm1703, %v3635, %v3435
        %v3668 = vsel %vm1703, %v3636, %v3437
        %v3669 = vsel %vm1703, %v3637, %v3439
        %v3670 = vsel %vm1703, %v3638, %v3441
        %v3671 = vsel %vm1703, %v3639, %v3443
        %v3672 = vsel %vm1703, %v3640, %v3445
        %v3673 = vsel %vm1703, %v3641, %v3447
        %v3674 = vsel %vm1703, %v3642, %v3449
        %v3675 = vsel %vm1703, %v3643, %v3451
        %v3676 = vpack.c.bf16 %v3549, %v3548
        %v3677 = vpack.c.bf16 %v3645, %v3644
        %v3678 = vpack.c.bf16 %v2685, %v2684
        %v3679 = vpack.c.bf16 %v3551, %v3550
        %v3680 = vpack.c.bf16 %v3647, %v3646
        %v3681 = vpack.c.bf16 %v2687, %v2686
        %v3682 = vpack.c.bf16 %v3553, %v3552
        %v3683 = vpack.c.bf16 %v3649, %v3648
        %v3684 = vpack.c.bf16 %v2689, %v2688
        %v3685 = vpack.c.bf16 %v3555, %v3554
        %v3686 = vpack.c.bf16 %v3651, %v3650
        %v3687 = vpack.c.bf16 %v2691, %v2690
        %v3688 = vpack.c.bf16 %v3557, %v3556
        %v3689 = vpack.c.bf16 %v3653, %v3652
        %v3690 = vpack.c.bf16 %v2693, %v2692
        %v3691 = vpack.c.bf16 %v3559, %v3558
        %v3692 = vpack.c.bf16 %v3655, %v3654
        %v3693 = vpack.c.bf16 %v2695, %v2694
        %v3694 = vpack.c.bf16 %v3561, %v3560
        %v3695 = vpack.c.bf16 %v3657, %v3656
        %v3696 = vpack.c.bf16 %v2697, %v2696
        %v3697 = vpack.c.bf16 %v3563, %v3562
        %v3698 = vpack.c.bf16 %v3659, %v3658
        %v3699 = vpack.c.bf16 %v2699, %v2698
        %v3700 = vpack.c.bf16 %v3565, %v3564
        %v3701 = vpack.c.bf16 %v3661, %v3660
        %v3702 = vpack.c.bf16 %v2701, %v2700
        %v3703 = vpack.c.bf16 %v3567, %v3566
        %v3704 = vpack.c.bf16 %v3663, %v3662
        %v3705 = vpack.c.bf16 %v2703, %v2702
        %v3706 = vpack.c.bf16 %v3569, %v3568
        %v3707 = vpack.c.bf16 %v3665, %v3664
        %v3708 = vpack.c.bf16 %v2705, %v2704
        %v3709 = vpack.c.bf16 %v3571, %v3570
        %v3710 = vpack.c.bf16 %v3667, %v3666
        %v3711 = vpack.c.bf16 %v2707, %v2706
        %v3712 = vpack.c.bf16 %v3573, %v3572
        %v3713 = vpack.c.bf16 %v3669, %v3668
        %v3714 = vpack.c.bf16 %v2709, %v2708
        %v3715 = vpack.c.bf16 %v3575, %v3574
        %v3716 = vpack.c.bf16 %v3671, %v3670
        %v3717 = vpack.c.bf16 %v2711, %v2710
        %v3718 = vpack.c.bf16 %v3577, %v3576
        %v3719 = vpack.c.bf16 %v3673, %v3672
        %v3720 = vpack.c.bf16 %v2713, %v2712
        %v3721 = vpack.c.bf16 %v3579, %v3578
        %v3722 = vpack.c.bf16 %v3675, %v3674
        %v3723 = vpack.c.bf16 %v2715, %v2714
        %v3725 = vlaneseq
        %v3726 = vshrl.u32 %v3725, 7
        %v3727 = vsub.s32 0, %v3726
        %v3728 = vrot.slane %v547, %v3727
        %v3766 = vunpack.c.l.b16 %v511
        %v3767 = vunpack.c.l.b16 %v512
        %v3768 = vunpack.c.l.b16 %v513
        %v3769 = vunpack.c.l.b16 %v514
        %v3770 = vunpack.c.l.b16 %v515
        %v3771 = vunpack.c.l.b16 %v516
        %v3772 = vunpack.c.l.b16 %v517
        %v3773 = vunpack.c.l.b16 %v518
        %v3774 = vunpack.c.l.b16 %v519
        %v3775 = vunpack.c.l.b16 %v520
        %v3776 = vunpack.c.l.b16 %v521
        %v3777 = vunpack.c.l.b16 %v522
        %v3778 = vunpack.c.l.b16 %v523
        %v3779 = vunpack.c.l.b16 %v524
        %v3780 = vunpack.c.l.b16 %v525
        %v3781 = vunpack.c.l.b16 %v526
        %v3782 = vunpack.c.l.b16 %v527
        %v3783 = vunpack.c.l.b16 %v528
        %v3784 = vunpack.c.l.b16 %v529
        %v3785 = vunpack.c.l.b16 %v530
        %v3786 = vunpack.c.l.b16 %v531
        %v3787 = vunpack.c.l.b16 %v532
        %v3788 = vunpack.c.l.b16 %v533
        %v3789 = vunpack.c.l.b16 %v534
        %v3790 = vunpack.c.l.b16 %v535
        %v3791 = vunpack.c.l.b16 %v536
        %v3792 = vunpack.c.l.b16 %v537
        %v3793 = vunpack.c.l.b16 %v538
        %v3794 = vunpack.c.l.b16 %v539
        %v3795 = vunpack.c.l.b16 %v540
        %v3796 = vunpack.c.l.b16 %v541
        %v3797 = vunpack.c.l.b16 %v542
        %v3798 = vunpack.c.l.b16 %v543
        %v3799 = vunpack.c.l.b16 %v544
        %v3800 = vunpack.c.l.b16 %v545
        %v3801 = vunpack.c.l.b16 %v546
        %v3802 = vpack.c.b16 %v3767, %v3766
        %v3803 = vpack.c.b16 %v3769, %v3768
        %v3804 = vpack.c.b16 %v3771, %v3770
        %v3805 = vpack.c.b16 %v3773, %v3772
        %v3806 = vpack.c.b16 %v3775, %v3774
        %v3807 = vpack.c.b16 %v3777, %v3776
        %v3808 = vpack.c.b16 %v3779, %v3778
        %v3809 = vpack.c.b16 %v3781, %v3780
        %v3810 = vpack.c.b16 %v3783, %v3782
        %v3811 = vpack.c.b16 %v3785, %v3784
        %v3812 = vpack.c.b16 %v3787, %v3786
        %v3813 = vpack.c.b16 %v3789, %v3788
        %v3814 = vpack.c.b16 %v3791, %v3790
        %v3815 = vpack.c.b16 %v3793, %v3792
        %v3816 = vpack.c.b16 %v3795, %v3794
        %v3817 = vpack.c.b16 %v3797, %v3796
        %v3818 = vpack.c.b16 %v3799, %v3798
        %v3819 = vpack.c.b16 %v3801, %v3800
        %v3839 = vsel %vm386, %v3678, 0
        %v3842 = vsel %vm386, %v3681, 0
        %v3845 = vsel %vm386, %v3684, 0
        %v3848 = vsel %vm386, %v3687, 0
        %v3851 = vsel %vm386, %v3690, 0
        %v3854 = vsel %vm386, %v3693, 0
        %v3857 = vsel %vm386, %v3696, 0
        %v3860 = vsel %vm386, %v3699, 0
        %v3863 = vsel %vm386, %v3702, 0
        %v3866 = vsel %vm386, %v3705, 0
        %v3869 = vsel %vm386, %v3708, 0
        %v3872 = vsel %vm386, %v3711, 0
        %v3875 = vsel %vm386, %v3714, 0
        %v3878 = vsel %vm386, %v3717, 0
        %v3881 = vsel %vm386, %v3720, 0
        %v3884 = vsel %vm386, %v3723, 0
        %3886 = vmatprep.subr.bf16.mxu0 0
        %3887 = vmatpush1.bf16.msra.mxu0 %v3802
        %3888 = vmatprep.subr.bf16.mxu0 0
        %3889 = vmatpush1.bf16.msra.mxu0 %v3803
        %3890 = vmatprep.subr.bf16.mxu0 0
        %3891 = vmatpush1.bf16.msra.mxu0 %v3804
        %3892 = vmatprep.subr.bf16.mxu0 0
        %3893 = vmatpush1.bf16.msra.mxu0 %v3805
        %3894 = vmatprep.subr.bf16.mxu0 0
        %3895 = vmatpush1.bf16.msra.mxu0 %v3806
        %3896 = vmatprep.subr.bf16.mxu0 0
        %3897 = vmatpush1.bf16.msra.mxu0 %v3807
        %3898 = vmatprep.subr.bf16.mxu0 0
        %3899 = vmatpush1.bf16.msra.mxu0 %v3808
        %3900 = vmatprep.subr.bf16.mxu0 0
        %3901 = vmatpush1.bf16.msra.mxu0 %v3809
        %3902 = vmatprep.subr.bf16.mxu0 0
        %3903 = vmatpush1.bf16.msra.mxu0 %v3810
        %3904 = vmatprep.subr.bf16.mxu0 0
        %3905 = vmatpush1.bf16.msra.mxu0 %v3811
        %3906 = vmatprep.subr.bf16.mxu0 0
        %3907 = vmatpush1.bf16.msra.mxu0 %v3812
        %3908 = vmatprep.subr.bf16.mxu0 0
        %3909 = vmatpush1.bf16.msra.mxu0 %v3813
        %3910 = vmatprep.subr.bf16.mxu0 0
        %3911 = vmatpush1.bf16.msra.mxu0 %v3814
        %3912 = vmatprep.subr.bf16.mxu0 0
        %3913 = vmatpush1.bf16.msra.mxu0 %v3815
        %3914 = vmatprep.subr.bf16.mxu0 0
        %3915 = vmatpush1.bf16.msra.mxu0 %v3816
        %3916 = vmatprep.subr.bf16.mxu0 0
        %3917 = vmatpush1.bf16.msra.mxu0 %v3817
        %3918 = vmatprep.mubr.bf16.mxu0 %v3677
        %3919 = vmatmul.mubr.bf16.gmra.mrb[0].mxu0 %v3676
        %v3920 = vpop.f32.mrb[0].mxu0
        %v3921 = vadd.f32 %v3728, %v3920
        %v3922 = vpop.f32.mrb[0].mxu0
        %v3923 = vpop.f32.mrb[0].mxu0
        %v3924 = vadd.f32 %v3728, %v3923
        %v3925 = vpop.f32.mrb[0].mxu0
        %3926 = vmatprep.mubr.bf16.mxu0 %v3680
        %3927 = vmatmul.mubr.bf16.gmra.mrb[0].mxu0 %v3679
        %v3928 = vpop.f32.mrb[0].mxu0
        %v3929 = vadd.f32 %v3728, %v3928
        %v3930 = vpop.f32.mrb[0].mxu0
        %v3931 = vpop.f32.mrb[0].mxu0
        %v3932 = vadd.f32 %v3728, %v3931
        %v3933 = vpop.f32.mrb[0].mxu0
        %3934 = vmatprep.mubr.bf16.mxu0 %v3683
        %3935 = vmatmul.mubr.bf16.gmra.mrb[0].mxu0 %v3682
        %v3936 = vpop.f32.mrb[0].mxu0
        %v3937 = vadd.f32 %v3728, %v3936
        %v3938 = vpop.f32.mrb[0].mxu0
        %v3939 = vpop.f32.mrb[0].mxu0
        %v3940 = vadd.f32 %v3728, %v3939
        %v3941 = vpop.f32.mrb[0].mxu0
        %3942 = vmatprep.mubr.bf16.mxu0 %v3686
        %3943 = vmatmul.mubr.bf16.gmra.mrb[0].mxu0 %v3685
        %v3944 = vpop.f32.mrb[0].mxu0
        %v3945 = vadd.f32 %v3728, %v3944
        %v3946 = vpop.f32.mrb[0].mxu0
        %v3947 = vpop.f32.mrb[0].mxu0
        %v3948 = vadd.f32 %v3728, %v3947
        %v3949 = vpop.f32.mrb[0].mxu0
        %3950 = vmatprep.mubr.bf16.mxu0 %v3689
        %3951 = vmatmul.mubr.bf16.gmra.mrb[0].mxu0 %v3688
        %v3952 = vpop.f32.mrb[0].mxu0
        %v3953 = vadd.f32 %v3728, %v3952
        %v3954 = vpop.f32.mrb[0].mxu0
        %v3955 = vpop.f32.mrb[0].mxu0
        %v3956 = vadd.f32 %v3728, %v3955
        %v3957 = vpop.f32.mrb[0].mxu0
        %3958 = vmatprep.mubr.bf16.mxu0 %v3692
        %3959 = vmatmul.mubr.bf16.gmra.mrb[0].mxu0 %v3691
        %v3960 = vpop.f32.mrb[0].mxu0
        %v3961 = vadd.f32 %v3728, %v3960
        %v3962 = vpop.f32.mrb[0].mxu0
        %v3963 = vpop.f32.mrb[0].mxu0
        %v3964 = vadd.f32 %v3728, %v3963
        %v3965 = vpop.f32.mrb[0].mxu0
        %3966 = vmatprep.mubr.bf16.mxu0 %v3695
        %3967 = vmatmul.mubr.bf16.gmra.mrb[0].mxu0 %v3694
        %v3968 = vpop.f32.mrb[0].mxu0
        %v3969 = vadd.f32 %v3728, %v3968
        %v3970 = vpop.f32.mrb[0].mxu0
        %v3971 = vpop.f32.mrb[0].mxu0
        %v3972 = vadd.f32 %v3728, %v3971
        %v3973 = vpop.f32.mrb[0].mxu0
        %3974 = vmatprep.mubr.bf16.mxu0 %v3698
        %3975 = vmatmul.mubr.bf16.gmra.mrb[0].mxu0 %v3697
        %v3976 = vpop.f32.mrb[0].mxu0
        %v3977 = vadd.f32 %v3728, %v3976
        %v3978 = vpop.f32.mrb[0].mxu0
        %v3979 = vpop.f32.mrb[0].mxu0
        %v3980 = vadd.f32 %v3728, %v3979
        %v3981 = vpop.f32.mrb[0].mxu0
        %3982 = vmatprep.mubr.bf16.mxu0 %v3701
        %3983 = vmatmul.mubr.bf16.gmra.mrb[0].mxu0 %v3700
        %v3984 = vpop.f32.mrb[0].mxu0
        %v3985 = vadd.f32 %v3728, %v3984
        %v3986 = vpop.f32.mrb[0].mxu0
        %v3987 = vpop.f32.mrb[0].mxu0
        %v3988 = vadd.f32 %v3728, %v3987
        %v3989 = vpop.f32.mrb[0].mxu0
        %3990 = vmatprep.mubr.bf16.mxu0 %v3704
        %3991 = vmatmul.mubr.bf16.gmra.mrb[0].mxu0 %v3703
        %v3992 = vpop.f32.mrb[0].mxu0
        %v3993 = vadd.f32 %v3728, %v3992
        %v3994 = vpop.f32.mrb[0].mxu0
        %v3995 = vpop.f32.mrb[0].mxu0
        %v3996 = vadd.f32 %v3728, %v3995
        %v3997 = vpop.f32.mrb[0].mxu0
        %3998 = vmatprep.mubr.bf16.mxu0 %v3707
        %3999 = vmatmul.mubr.bf16.gmra.mrb[0].mxu0 %v3706
        %v4000 = vpop.f32.mrb[0].mxu0
        %v4001 = vadd.f32 %v3728, %v4000
        %v4002 = vpop.f32.mrb[0].mxu0
        %v4003 = vpop.f32.mrb[0].mxu0
        %v4004 = vadd.f32 %v3728, %v4003
        %v4005 = vpop.f32.mrb[0].mxu0
        %4006 = vmatprep.mubr.bf16.mxu0 %v3710
        %4007 = vmatmul.mubr.bf16.gmra.mrb[0].mxu0 %v3709
        %v4008 = vpop.f32.mrb[0].mxu0
        %v4009 = vadd.f32 %v3728, %v4008
        %v4010 = vpop.f32.mrb[0].mxu0
        %v4011 = vpop.f32.mrb[0].mxu0
        %v4012 = vadd.f32 %v3728, %v4011
        %v4013 = vpop.f32.mrb[0].mxu0
        %4014 = vmatprep.mubr.bf16.mxu0 %v3713
        %4015 = vmatmul.mubr.bf16.gmra.mrb[0].mxu0 %v3712
        %v4016 = vpop.f32.mrb[0].mxu0
        %v4017 = vadd.f32 %v3728, %v4016
        %v4018 = vpop.f32.mrb[0].mxu0
        %v4019 = vpop.f32.mrb[0].mxu0
        %v4020 = vadd.f32 %v3728, %v4019
        %v4021 = vpop.f32.mrb[0].mxu0
        %4022 = vmatprep.mubr.bf16.mxu0 %v3716
        %4023 = vmatmul.mubr.bf16.gmra.mrb[0].mxu0 %v3715
        %v4024 = vpop.f32.mrb[0].mxu0
        %v4025 = vadd.f32 %v3728, %v4024
        %v4026 = vpop.f32.mrb[0].mxu0
        %v4027 = vpop.f32.mrb[0].mxu0
        %v4028 = vadd.f32 %v3728, %v4027
        %v4029 = vpop.f32.mrb[0].mxu0
        %4030 = vmatprep.mubr.bf16.mxu0 %v3719
        %4031 = vmatmul.mubr.bf16.gmra.mrb[0].mxu0 %v3718
        %v4032 = vpop.f32.mrb[0].mxu0
        %v4033 = vadd.f32 %v3728, %v4032
        %v4034 = vpop.f32.mrb[0].mxu0
        %v4035 = vpop.f32.mrb[0].mxu0
        %v4036 = vadd.f32 %v3728, %v4035
        %v4037 = vpop.f32.mrb[0].mxu0
        %4038 = vmatprep.mubr.bf16.mxu0 %v3722
        %4039 = vmatmul.mubr.bf16.gmra.mrb[0].mxu0 %v3721
        %v4040 = vpop.f32.mrb[0].mxu0
        %v4041 = vadd.f32 %v3728, %v4040
        %v4042 = vpop.f32.mrb[0].mxu0
        %v4043 = vpop.f32.mrb[0].mxu0
        %v4044 = vadd.f32 %v3728, %v4043
        %v4045 = vpop.f32.mrb[0].mxu0
        %4046 = vdwg.mxu0
        %4047 = vmatprep.subr.bf16.mxu0 0
        %4048 = vmatpush1.bf16.msra.mxu0 %v3818
        %4049 = vmatprep.subr.bf16.mxu0 0
        %4050 = vmatpush1.bf16.msra.mxu0 %v3819
        %4051 = vmatprep.subr.bf16.mxu0 0
        %4052 = vmatpush1.bf16.msra.mxu0 0
        %4053 = vmatprep.subr.bf16.mxu0 0
        %4054 = vmatpush1.bf16.msra.mxu0 0
        %4055 = vmatprep.subr.bf16.mxu0 0
        %4056 = vmatpush1.bf16.msra.mxu0 0
        %4057 = vmatprep.subr.bf16.mxu0 0
        %4058 = vmatpush1.bf16.msra.mxu0 0
        %4059 = vmatprep.subr.bf16.mxu0 0
        %4060 = vmatpush1.bf16.msra.mxu0 0
        %4061 = vmatprep.subr.bf16.mxu0 0
        %4062 = vmatpush1.bf16.msra.mxu0 0
        %4063 = vmatprep.subr.bf16.mxu0 0
        %4064 = vmatpush1.bf16.msra.mxu0 0
        %4065 = vmatprep.subr.bf16.mxu0 0
        %4066 = vmatpush1.bf16.msra.mxu0 0
        %4067 = vmatprep.subr.bf16.mxu0 0
        %4068 = vmatpush1.bf16.msra.mxu0 0
        %4069 = vmatprep.subr.bf16.mxu0 0
        %4070 = vmatpush1.bf16.msra.mxu0 0
        %4071 = vmatprep.subr.bf16.mxu0 0
        %4072 = vmatpush1.bf16.msra.mxu0 0
        %4073 = vmatprep.subr.bf16.mxu0 0
        %4074 = vmatpush1.bf16.msra.mxu0 0
        %4075 = vmatprep.subr.bf16.mxu0 0
        %4076 = vmatpush1.bf16.msra.mxu0 0
        %4077 = vmatprep.subr.bf16.mxu0 0
        %4078 = vmatpush1.bf16.msra.mxu0 0
        %4079 = vmatprep.mubr.bf16.mxu0 0
        %4080 = vmatmul.mubr.bf16.gmra.mrb[0].mxu0 %v3839
        %v4081 = vpop.f32.mrb[0].mxu0
        %v4082 = vadd.f32 %v3921, %v4081
        %v4083 = vpop.f32.mrb[0].mxu0
        %v4084 = vpop.f32.mrb[0].mxu0
        %v4085 = vadd.f32 %v3924, %v4084
        %v4086 = vpop.f32.mrb[0].mxu0
        %4087 = vmatprep.mubr.bf16.mxu0 0
        %4088 = vmatmul.mubr.bf16.gmra.mrb[0].mxu0 %v3842
        %v4089 = vpop.f32.mrb[0].mxu0
        %v4090 = vadd.f32 %v3929, %v4089
        %v4091 = vpop.f32.mrb[0].mxu0
        %v4092 = vpop.f32.mrb[0].mxu0
        %v4093 = vadd.f32 %v3932, %v4092
        %v4094 = vpop.f32.mrb[0].mxu0
        %4095 = vmatprep.mubr.bf16.mxu0 0
        %4096 = vmatmul.mubr.bf16.gmra.mrb[0].mxu0 %v3845
        %v4097 = vpop.f32.mrb[0].mxu0
        %v4098 = vadd.f32 %v3937, %v4097
        %v4099 = vpop.f32.mrb[0].mxu0
        %v4100 = vpop.f32.mrb[0].mxu0
        %v4101 = vadd.f32 %v3940, %v4100
        %v4102 = vpop.f32.mrb[0].mxu0
        %4103 = vmatprep.mubr.bf16.mxu0 0
        %4104 = vmatmul.mubr.bf16.gmra.mrb[0].mxu0 %v3848
        %v4105 = vpop.f32.mrb[0].mxu0
        %v4106 = vadd.f32 %v3945, %v4105
        %v4107 = vpop.f32.mrb[0].mxu0
        %v4108 = vpop.f32.mrb[0].mxu0
        %v4109 = vadd.f32 %v3948, %v4108
        %v4110 = vpop.f32.mrb[0].mxu0
        %4111 = vmatprep.mubr.bf16.mxu0 0
        %4112 = vmatmul.mubr.bf16.gmra.mrb[0].mxu0 %v3851
        %v4113 = vpop.f32.mrb[0].mxu0
        %v4114 = vadd.f32 %v3953, %v4113
        %v4115 = vpop.f32.mrb[0].mxu0
        %v4116 = vpop.f32.mrb[0].mxu0
        %v4117 = vadd.f32 %v3956, %v4116
        %v4118 = vpop.f32.mrb[0].mxu0
        %4119 = vmatprep.mubr.bf16.mxu0 0
        %4120 = vmatmul.mubr.bf16.gmra.mrb[0].mxu0 %v3854
        %v4121 = vpop.f32.mrb[0].mxu0
        %v4122 = vadd.f32 %v3961, %v4121
        %v4123 = vpop.f32.mrb[0].mxu0
        %v4124 = vpop.f32.mrb[0].mxu0
        %v4125 = vadd.f32 %v3964, %v4124
        %v4126 = vpop.f32.mrb[0].mxu0
        %4127 = vmatprep.mubr.bf16.mxu0 0
        %4128 = vmatmul.mubr.bf16.gmra.mrb[0].mxu0 %v3857
        %v4129 = vpop.f32.mrb[0].mxu0
        %v4130 = vadd.f32 %v3969, %v4129
        %v4131 = vpop.f32.mrb[0].mxu0
        %v4132 = vpop.f32.mrb[0].mxu0
        %v4133 = vadd.f32 %v3972, %v4132
        %v4134 = vpop.f32.mrb[0].mxu0
        %4135 = vmatprep.mubr.bf16.mxu0 0
        %4136 = vmatmul.mubr.bf16.gmra.mrb[0].mxu0 %v3860
        %v4137 = vpop.f32.mrb[0].mxu0
        %v4138 = vadd.f32 %v3977, %v4137
        %v4139 = vpop.f32.mrb[0].mxu0
        %v4140 = vpop.f32.mrb[0].mxu0
        %v4141 = vadd.f32 %v3980, %v4140
        %v4142 = vpop.f32.mrb[0].mxu0
        %4143 = vmatprep.mubr.bf16.mxu0 0
        %4144 = vmatmul.mubr.bf16.gmra.mrb[0].mxu0 %v3863
        %v4145 = vpop.f32.mrb[0].mxu0
        %v4146 = vadd.f32 %v3985, %v4145
        %v4147 = vpop.f32.mrb[0].mxu0
        %v4148 = vpop.f32.mrb[0].mxu0
        %v4149 = vadd.f32 %v3988, %v4148
        %v4150 = vpop.f32.mrb[0].mxu0
        %4151 = vmatprep.mubr.bf16.mxu0 0
        %4152 = vmatmul.mubr.bf16.gmra.mrb[0].mxu0 %v3866
        %v4153 = vpop.f32.mrb[0].mxu0
        %v4154 = vadd.f32 %v3993, %v4153
        %v4155 = vpop.f32.mrb[0].mxu0
        %v4156 = vpop.f32.mrb[0].mxu0
        %v4157 = vadd.f32 %v3996, %v4156
        %v4158 = vpop.f32.mrb[0].mxu0
        %4159 = vmatprep.mubr.bf16.mxu0 0
        %4160 = vmatmul.mubr.bf16.gmra.mrb[0].mxu0 %v3869
        %v4161 = vpop.f32.mrb[0].mxu0
        %v4162 = vadd.f32 %v4001, %v4161
        %v4163 = vpop.f32.mrb[0].mxu0
        %v4164 = vpop.f32.mrb[0].mxu0
        %v4165 = vadd.f32 %v4004, %v4164
        %v4166 = vpop.f32.mrb[0].mxu0
        %4167 = vmatprep.mubr.bf16.mxu0 0
        %4168 = vmatmul.mubr.bf16.gmra.mrb[0].mxu0 %v3872
        %v4169 = vpop.f32.mrb[0].mxu0
        %v4170 = vadd.f32 %v4009, %v4169
        %v4171 = vpop.f32.mrb[0].mxu0
        %v4172 = vpop.f32.mrb[0].mxu0
        %v4173 = vadd.f32 %v4012, %v4172
        %v4174 = vpop.f32.mrb[0].mxu0
        %4175 = vmatprep.mubr.bf16.mxu0 0
        %4176 = vmatmul.mubr.bf16.gmra.mrb[0].mxu0 %v3875
        %v4177 = vpop.f32.mrb[0].mxu0
        %v4178 = vadd.f32 %v4017, %v4177
        %v4179 = vpop.f32.mrb[0].mxu0
        %v4180 = vpop.f32.mrb[0].mxu0
        %v4181 = vadd.f32 %v4020, %v4180
        %v4182 = vpop.f32.mrb[0].mxu0
        %4183 = vmatprep.mubr.bf16.mxu0 0
        %4184 = vmatmul.mubr.bf16.gmra.mrb[0].mxu0 %v3878
        %v4185 = vpop.f32.mrb[0].mxu0
        %v4186 = vadd.f32 %v4025, %v4185
        %v4187 = vpop.f32.mrb[0].mxu0
        %v4188 = vpop.f32.mrb[0].mxu0
        %v4189 = vadd.f32 %v4028, %v4188
        %v4190 = vpop.f32.mrb[0].mxu0
        %4191 = vmatprep.mubr.bf16.mxu0 0
        %4192 = vmatmul.mubr.bf16.gmra.mrb[0].mxu0 %v3881
        %v4193 = vpop.f32.mrb[0].mxu0
        %v4194 = vadd.f32 %v4033, %v4193
        %v4195 = vpop.f32.mrb[0].mxu0
        %v4196 = vpop.f32.mrb[0].mxu0
        %v4197 = vadd.f32 %v4036, %v4196
        %v4198 = vpop.f32.mrb[0].mxu0
        %4199 = vmatprep.mubr.bf16.mxu0 0
        %4200 = vmatmul.mubr.bf16.gmra.mrb[0].mxu0 %v3884
        %v4201 = vpop.f32.mrb[0].mxu0
        %v4202 = vadd.f32 %v4041, %v4201
        %v4203 = vpop.f32.mrb[0].mxu0
        %v4204 = vpop.f32.mrb[0].mxu0
        %v4205 = vadd.f32 %v4044, %v4204
        %v4206 = vpop.f32.mrb[0].mxu0
        %4207 = vdwg.mxu0
        %v4208 = vsel %vm386, %v4082, 0.0
        %v4209 = vsel %vm386, %v4085, 0.0
        %v4210 = vadd.f32 %v4208, %v4209
        %v4211 = vsel %vm386, %v4090, 0.0
        %v4212 = vadd.f32 %v4210, %v4211
        %v4213 = vsel %vm386, %v4093, 0.0
        %v4214 = vadd.f32 %v4212, %v4213
        %v4215 = vsel %vm386, %v4098, 0.0
        %v4216 = vadd.f32 %v4214, %v4215
        %v4217 = vsel %vm386, %v4101, 0.0
        %v4218 = vadd.f32 %v4216, %v4217
        %v4219 = vsel %vm386, %v4106, 0.0
        %v4220 = vadd.f32 %v4218, %v4219
        %v4221 = vsel %vm386, %v4109, 0.0
        %v4222 = vadd.f32 %v4220, %v4221
        %v4223 = vsel %vm386, %v4114, 0.0
        %v4224 = vadd.f32 %v4222, %v4223
        %v4225 = vsel %vm386, %v4117, 0.0
        %v4226 = vadd.f32 %v4224, %v4225
        %v4227 = vsel %vm386, %v4122, 0.0
        %v4228 = vadd.f32 %v4226, %v4227
        %v4229 = vsel %vm386, %v4125, 0.0
        %v4230 = vadd.f32 %v4228, %v4229
        %v4231 = vsel %vm386, %v4130, 0.0
        %v4232 = vadd.f32 %v4230, %v4231
        %v4233 = vsel %vm386, %v4133, 0.0
        %v4234 = vadd.f32 %v4232, %v4233
        %v4235 = vsel %vm386, %v4138, 0.0
        %v4236 = vadd.f32 %v4234, %v4235
        %v4237 = vsel %vm386, %v4141, 0.0
        %v4238 = vadd.f32 %v4236, %v4237
        %v4239 = vsel %vm386, %v4146, 0.0
        %v4240 = vadd.f32 %v4238, %v4239
        %v4241 = vsel %vm386, %v4149, 0.0
        %v4242 = vadd.f32 %v4240, %v4241
        %v4243 = vsel %vm386, %v4154, 0.0
        %v4244 = vadd.f32 %v4242, %v4243
        %v4245 = vsel %vm386, %v4157, 0.0
        %v4246 = vadd.f32 %v4244, %v4245
        %v4247 = vsel %vm386, %v4162, 0.0
        %v4248 = vadd.f32 %v4246, %v4247
        %v4249 = vsel %vm386, %v4165, 0.0
        %v4250 = vadd.f32 %v4248, %v4249
        %v4251 = vsel %vm386, %v4170, 0.0
        %v4252 = vadd.f32 %v4250, %v4251
        %v4253 = vsel %vm386, %v4173, 0.0
        %v4254 = vadd.f32 %v4252, %v4253
        %v4255 = vsel %vm386, %v4178, 0.0
        %v4256 = vadd.f32 %v4254, %v4255
        %v4257 = vsel %vm386, %v4181, 0.0
        %v4258 = vadd.f32 %v4256, %v4257
        %v4259 = vsel %vm386, %v4186, 0.0
        %v4260 = vadd.f32 %v4258, %v4259
        %v4261 = vsel %vm386, %v4189, 0.0
        %v4262 = vadd.f32 %v4260, %v4261
        %v4263 = vsel %vm386, %v4194, 0.0
        %v4264 = vadd.f32 %v4262, %v4263
        %v4265 = vsel %vm386, %v4197, 0.0
        %v4266 = vadd.f32 %v4264, %v4265
        %v4267 = vsel %vm386, %v4202, 0.0
        %v4268 = vadd.f32 %v4266, %v4267
        %v4269 = vsel %vm386, %v4205, 0.0
        %v4270 = vadd.f32 %v4268, %v4269
        %v4271 = vrot.slane %v4270, 4
        %v4272 = vadd.f32 %v4270, %v4271
        %v4273 = vrot.slane %v4272, 2
        %v4274 = vadd.f32 %v4272, %v4273
        %v4275 = vrot.slane %v4274, 1
        %v4276 = vadd.f32 %v4274, %v4275
        %v4277 = vrcp.pop 256.0
        %v4278 = vmul.f32 %v4276, %v4277
        %v4279 = vld [vmem:[%s5] sm:$0xff]
        %v4280 = vld [vmem:[%s5 + $0x8] sm:$0xff]
        %v4281 = vld [vmem:[%s5 + $0x10] sm:$0xff]
        %v4282 = vld [vmem:[%s5 + $0x18] sm:$0xff]
        %v4283 = vld [vmem:[%s6] sm:$0x1]
        %v4285 = vsel %vm386, %v4278, 0
        %4287 = vmatprep.subr.mxu0 0.0
        %4288 = vmatpush1.msra.mxu0 %v4279
        %4289 = vmatprep.subr.mxu0 0.0
        %4290 = vmatpush1.msra.mxu0 %v4280
        %4291 = vmatprep.subr.mxu0 0.0
        %4292 = vmatpush1.msra.mxu0 %v4281
        %4293 = vmatprep.subr.mxu0 0.0
        %4294 = vmatpush1.msra.mxu0 %v4282
        %4295 = vmatprep.subr.mxu0 0.0
        %4296 = vmatpush1.msra.mxu0 0.0
        %4297 = vmatprep.subr.mxu0 0.0
        %4298 = vmatpush1.msra.mxu0 0.0
        %4299 = vmatprep.subr.mxu0 0.0
        %4300 = vmatpush1.msra.mxu0 0.0
        %4301 = vmatprep.subr.mxu0 0.0
        %4302 = vmatpush1.msra.mxu0 0.0
        %4303 = vmatprep.subr.mxu0 0.0
        %4304 = vmatpush1.msra.mxu0 0.0
        %4305 = vmatprep.subr.mxu0 0.0
        %4306 = vmatpush1.msra.mxu0 0.0
        %4307 = vmatprep.subr.mxu0 0.0
        %4308 = vmatpush1.msra.mxu0 0.0
        %4309 = vmatprep.subr.mxu0 0.0
        %4310 = vmatpush1.msra.mxu0 0.0
        %4311 = vmatprep.subr.mxu0 0.0
        %4312 = vmatpush1.msra.mxu0 0.0
        %4313 = vmatprep.subr.mxu0 0.0
        %4314 = vmatpush1.msra.mxu0 0.0
        %4315 = vmatprep.subr.mxu0 0.0
        %4316 = vmatpush1.msra.mxu0 0.0
        %4317 = vmatprep.subr.mxu0 0.0
        %4318 = vmatpush1.msra.mxu0 0.0
        %4319 = vmatprep.subr.mxu0 0.0
        %4320 = vmatpush1.msra.mxu0 0.0
        %4321 = vmatprep.subr.mxu0 0.0
        %4322 = vmatpush1.msra.mxu0 0.0
        %4323 = vmatprep.subr.mxu0 0.0
        %4324 = vmatpush1.msra.mxu0 0.0
        %4325 = vmatprep.subr.mxu0 0.0
        %4326 = vmatpush1.msra.mxu0 0.0
        %4327 = vmatprep.subr.mxu0 0.0
        %4328 = vmatpush1.msra.mxu0 0.0
        %4329 = vmatprep.subr.mxu0 0.0
        %4330 = vmatpush1.msra.mxu0 0.0
        %4331 = vmatprep.subr.mxu0 0.0
        %4332 = vmatpush1.msra.mxu0 0.0
        %4333 = vmatprep.subr.mxu0 0.0
        %4334 = vmatpush1.msra.mxu0 0.0
        %4335 = vmatprep.subr.mxu0 0.0
        %4336 = vmatpush1.msra.mxu0 0.0
        %4337 = vmatprep.subr.mxu0 0.0
        %4338 = vmatpush1.msra.mxu0 0.0
        %4339 = vmatprep.subr.mxu0 0.0
        %4340 = vmatpush1.msra.mxu0 0.0
        %4341 = vmatprep.subr.mxu0 0.0
        %4342 = vmatpush1.msra.mxu0 0.0
        %4343 = vmatprep.subr.mxu0 0.0
        %4344 = vmatpush1.msra.mxu0 0.0
        %4345 = vmatprep.subr.mxu0 0.0
        %4346 = vmatpush1.msra.mxu0 0.0
        %4347 = vmatprep.subr.mxu0 0.0
        %4348 = vmatpush1.msra.mxu0 0.0
        %4349 = vmatprep.subr.mxu0 0.0
        %4350 = vmatpush1.msra.mxu0 0.0
        %4351 = vmatprep.mubr.f32.mxu0 0.0
        %4352 = vmatmul.mubr.f32.gmra.mrb[0].mxu0 %v4285
        %v4353 = vpop.f32.mrb[0].mxu0
        %v4354 = vadd.f32 %v4283, %v4353
        %v4355 = vpop.f32.mrb[0].mxu0
        %4356 = vdwg.mxu0
        %v4357 = vmax.f32 %v4354, 0.0
        %v4358 = vld [vmem:[%s7] sm:$0xf]
        %v4359 = vld [vmem:[%s8] sm:$0x1]
        %vm4360 = vcmask 31744
        %v4362 = vsel %vm4360, %v4357, 0
        %vm4364 = vcmask 1043456
        %v4366 = vsel %vm4364, %v4358, 0
        %4368 = vmatprep.subr.mxu0 0.0
        %4369 = vmatpush1.msra.mxu0 %v4366
        %4370 = vmatprep.subr.mxu0 0.0
        %4371 = vmatpush1.msra.mxu0 0.0
        %4372 = vmatprep.subr.mxu0 0.0
        %4373 = vmatpush1.msra.mxu0 0.0
        %4374 = vmatprep.subr.mxu0 0.0
        %4375 = vmatpush1.msra.mxu0 0.0
        %4376 = vmatprep.subr.mxu0 0.0
        %4377 = vmatpush1.msra.mxu0 0.0
        %4378 = vmatprep.subr.mxu0 0.0
        %4379 = vmatpush1.msra.mxu0 0.0
        %4380 = vmatprep.subr.mxu0 0.0
        %4381 = vmatpush1.msra.mxu0 0.0
        %4382 = vmatprep.subr.mxu0 0.0
        %4383 = vmatpush1.msra.mxu0 0.0
        %4384 = vmatprep.subr.mxu0 0.0
        %4385 = vmatpush1.msra.mxu0 0.0
        %4386 = vmatprep.subr.mxu0 0.0
        %4387 = vmatpush1.msra.mxu0 0.0
        %4388 = vmatprep.subr.mxu0 0.0
        %4389 = vmatpush1.msra.mxu0 0.0
        %4390 = vmatprep.subr.mxu0 0.0
        %4391 = vmatpush1.msra.mxu0 0.0
        %4392 = vmatprep.subr.mxu0 0.0
        %4393 = vmatpush1.msra.mxu0 0.0
        %4394 = vmatprep.subr.mxu0 0.0
        %4395 = vmatpush1.msra.mxu0 0.0
        %4396 = vmatprep.subr.mxu0 0.0
        %4397 = vmatpush1.msra.mxu0 0.0
        %4398 = vmatprep.subr.mxu0 0.0
        %4399 = vmatpush1.msra.mxu0 0.0
        %4400 = vmatprep.subr.mxu0 0.0
        %4401 = vmatpush1.msra.mxu0 0.0
        %4402 = vmatprep.subr.mxu0 0.0
        %4403 = vmatpush1.msra.mxu0 0.0
        %4404 = vmatprep.subr.mxu0 0.0
        %4405 = vmatpush1.msra.mxu0 0.0
        %4406 = vmatprep.subr.mxu0 0.0
        %4407 = vmatpush1.msra.mxu0 0.0
        %4408 = vmatprep.subr.mxu0 0.0
        %4409 = vmatpush1.msra.mxu0 0.0
        %4410 = vmatprep.subr.mxu0 0.0
        %4411 = vmatpush1.msra.mxu0 0.0
        %4412 = vmatprep.subr.mxu0 0.0
        %4413 = vmatpush1.msra.mxu0 0.0
        %4414 = vmatprep.subr.mxu0 0.0
        %4415 = vmatpush1.msra.mxu0 0.0
        %4416 = vmatprep.subr.mxu0 0.0
        %4417 = vmatpush1.msra.mxu0 0.0
        %4418 = vmatprep.subr.mxu0 0.0
        %4419 = vmatpush1.msra.mxu0 0.0
        %4420 = vmatprep.subr.mxu0 0.0
        %4421 = vmatpush1.msra.mxu0 0.0
        %4422 = vmatprep.subr.mxu0 0.0
        %4423 = vmatpush1.msra.mxu0 0.0
        %4424 = vmatprep.subr.mxu0 0.0
        %4425 = vmatpush1.msra.mxu0 0.0
        %4426 = vmatprep.subr.mxu0 0.0
        %4427 = vmatpush1.msra.mxu0 0.0
        %4428 = vmatprep.subr.mxu0 0.0
        %4429 = vmatpush1.msra.mxu0 0.0
        %4430 = vmatprep.subr.mxu0 0.0
        %4431 = vmatpush1.msra.mxu0 0.0
        %4432 = vmatprep.mubr.f32.mxu0 0.0
        %4433 = vmatmul.mubr.f32.gmra.mrb[0].mxu0 %v4362
        %v4434 = vpop.f32.mrb[0].mxu0
        %v4435 = vadd.f32 %v4359, %v4434
        %v4436 = vpop.f32.mrb[0].mxu0
        %4437 = vdwg.mxu0
        %v4438 = vxor.u32 %v4435, 2147483648
        %v4439 = vmul.f32 %v4438, 1.442695
        %v4440 = vpow.pop %v4439
        %v4441 = vadd.f32 %v4440, 1.0
        %v4442 = vrcp.pop %v4441
        %v4443 = vmul.f32 1.0, %v4442
        %v4444 = vlaneseq
        %v4445 = vshrl.u32 %v4444, 7
        %v4446 = vsub.s32 0, %v4445
        %v4447 = vrot.slane %v4443, %v4446
        %v4448 = vmul.f32 %v4082, %v4447
        %v4449 = vmul.f32 %v4085, %v4447
        %v4450 = vmul.f32 %v4090, %v4447
        %v4451 = vmul.f32 %v4093, %v4447
        %v4452 = vmul.f32 %v4098, %v4447
        %v4453 = vmul.f32 %v4101, %v4447
        %v4454 = vmul.f32 %v4106, %v4447
        %v4455 = vmul.f32 %v4109, %v4447
        %v4456 = vmul.f32 %v4114, %v4447
        %v4457 = vmul.f32 %v4117, %v4447
        %v4458 = vmul.f32 %v4122, %v4447
        %v4459 = vmul.f32 %v4125, %v4447
        %v4460 = vmul.f32 %v4130, %v4447
        %v4461 = vmul.f32 %v4133, %v4447
        %v4462 = vmul.f32 %v4138, %v4447
        %v4463 = vmul.f32 %v4141, %v4447
        %v4464 = vmul.f32 %v4146, %v4447
        %v4465 = vmul.f32 %v4149, %v4447
        %v4466 = vmul.f32 %v4154, %v4447
        %v4467 = vmul.f32 %v4157, %v4447
        %v4468 = vmul.f32 %v4162, %v4447
        %v4469 = vmul.f32 %v4165, %v4447
        %v4470 = vmul.f32 %v4170, %v4447
        %v4471 = vmul.f32 %v4173, %v4447
        %v4472 = vmul.f32 %v4178, %v4447
        %v4473 = vmul.f32 %v4181, %v4447
        %v4474 = vmul.f32 %v4186, %v4447
        %v4475 = vmul.f32 %v4189, %v4447
        %v4476 = vmul.f32 %v4194, %v4447
        %v4477 = vmul.f32 %v4197, %v4447
        %v4478 = vmul.f32 %v4202, %v4447
        %v4479 = vmul.f32 %v4205, %v4447
        %v4480 = vadd.f32 %v4448, %v442
        %v4481 = vadd.f32 %v4449, %v443
        %v4482 = vadd.f32 %v4450, %v444
        %v4483 = vadd.f32 %v4451, %v445
        %v4484 = vadd.f32 %v4452, %v446
        %v4485 = vadd.f32 %v4453, %v447
        %v4486 = vadd.f32 %v4454, %v448
        %v4487 = vadd.f32 %v4455, %v449
        %v4488 = vadd.f32 %v4456, %v450
        %v4489 = vadd.f32 %v4457, %v451
        %v4490 = vadd.f32 %v4458, %v452
        %v4491 = vadd.f32 %v4459, %v453
        %v4492 = vadd.f32 %v4460, %v454
        %v4493 = vadd.f32 %v4461, %v455
        %v4494 = vadd.f32 %v4462, %v456
        %v4495 = vadd.f32 %v4463, %v457
        %v4496 = vadd.f32 %v4464, %v458
        %v4497 = vadd.f32 %v4465, %v459
        %v4498 = vadd.f32 %v4466, %v460
        %v4499 = vadd.f32 %v4467, %v461
        %v4500 = vadd.f32 %v4468, %v462
        %v4501 = vadd.f32 %v4469, %v463
        %v4502 = vadd.f32 %v4470, %v464
        %v4503 = vadd.f32 %v4471, %v465
        %v4504 = vadd.f32 %v4472, %v466
        %v4505 = vadd.f32 %v4473, %v467
        %v4506 = vadd.f32 %v4474, %v468
        %v4507 = vadd.f32 %v4475, %v469
        %v4508 = vadd.f32 %v4476, %v470
        %v4509 = vadd.f32 %v4477, %v471
        %v4510 = vadd.f32 %v4478, %v472
        %v4511 = vadd.f32 %v4479, %v473
        %s4512 = scalar_lea.vmem %s1, 144
        %v4513 = vld [vmem:[%s4512] sm:$0xf]
        %v4514 = vld [vmem:[%s4512 + $0x4] sm:$0xf]
        %v4515 = vld [vmem:[%s4512 + $0x8] sm:$0xf]
        %v4516 = vld [vmem:[%s4512 + $0xc] sm:$0xf]
        %v4517 = vld [vmem:[%s4512 + $0x10] sm:$0xf]
        %v4518 = vld [vmem:[%s4512 + $0x14] sm:$0xf]
        %v4519 = vld [vmem:[%s4512 + $0x18] sm:$0xf]
        %v4520 = vld [vmem:[%s4512 + $0x1c] sm:$0xf]
        %v4521 = vld [vmem:[%s4512 + $0x20] sm:$0xf]
        %v4522 = vld [vmem:[%s4512 + $0x24] sm:$0xf]
        %v4523 = vld [vmem:[%s4512 + $0x28] sm:$0xf]
        %v4524 = vld [vmem:[%s4512 + $0x2c] sm:$0xf]
        %v4525 = vld [vmem:[%s4512 + $0x30] sm:$0xf]
        %v4526 = vld [vmem:[%s4512 + $0x34] sm:$0xf]
        %v4527 = vld [vmem:[%s4512 + $0x38] sm:$0xf]
        %v4528 = vld [vmem:[%s4512 + $0x3c] sm:$0xf]
        %v4529 = vld [vmem:[%s4512 + $0x40] sm:$0xf]
        %v4530 = vld [vmem:[%s4512 + $0x44] sm:$0xf]
        %v4531 = vld [vmem:[%s4512 + $0x48] sm:$0xf]
        %v4532 = vld [vmem:[%s4512 + $0x4c] sm:$0xf]
        %v4533 = vld [vmem:[%s4512 + $0x50] sm:$0xf]
        %v4534 = vld [vmem:[%s4512 + $0x54] sm:$0xf]
        %v4535 = vld [vmem:[%s4512 + $0x58] sm:$0xf]
        %v4536 = vld [vmem:[%s4512 + $0x5c] sm:$0xf]
        %v4537 = vld [vmem:[%s4512 + $0x60] sm:$0xf]
        %v4538 = vld [vmem:[%s4512 + $0x64] sm:$0xf]
        %v4539 = vld [vmem:[%s4512 + $0x68] sm:$0xf]
        %v4540 = vld [vmem:[%s4512 + $0x6c] sm:$0xf]
        %v4541 = vld [vmem:[%s4512 + $0x70] sm:$0xf]
        %v4542 = vld [vmem:[%s4512 + $0x74] sm:$0xf]
        %v4543 = vld [vmem:[%s4512 + $0x78] sm:$0xf]
        %v4544 = vld [vmem:[%s4512 + $0x7c] sm:$0xf]
        %v4545 = vld [vmem:[%s4512 + $0x80] sm:$0xf]
        %v4546 = vld [vmem:[%s4512 + $0x84] sm:$0xf]
        %v4547 = vld [vmem:[%s4512 + $0x88] sm:$0xf]
        %v4548 = vld [vmem:[%s4512 + $0x8c] sm:$0xf]
        %s4549 = scalar_lea.vmem %s2, 1
        %v4550 = vld [vmem:[%s4549] sm:$0x1]
        %s4551 = scalar_lea.vmem %s3, 144
        %v4552 = vld [vmem:[%s4551] sm:$0xf]
        %v4553 = vld [vmem:[%s4551 + $0x4] sm:$0xf]
        %v4554 = vld [vmem:[%s4551 + $0x8] sm:$0xf]
        %v4555 = vld [vmem:[%s4551 + $0xc] sm:$0xf]
        %v4556 = vld [vmem:[%s4551 + $0x10] sm:$0xf]
        %v4557 = vld [vmem:[%s4551 + $0x14] sm:$0xf]
        %v4558 = vld [vmem:[%s4551 + $0x18] sm:$0xf]
        %v4559 = vld [vmem:[%s4551 + $0x1c] sm:$0xf]
        %v4560 = vld [vmem:[%s4551 + $0x20] sm:$0xf]
        %v4561 = vld [vmem:[%s4551 + $0x24] sm:$0xf]
        %v4562 = vld [vmem:[%s4551 + $0x28] sm:$0xf]
        %v4563 = vld [vmem:[%s4551 + $0x2c] sm:$0xf]
        %v4564 = vld [vmem:[%s4551 + $0x30] sm:$0xf]
        %v4565 = vld [vmem:[%s4551 + $0x34] sm:$0xf]
        %v4566 = vld [vmem:[%s4551 + $0x38] sm:$0xf]
        %v4567 = vld [vmem:[%s4551 + $0x3c] sm:$0xf]
        %v4568 = vld [vmem:[%s4551 + $0x40] sm:$0xf]
        %v4569 = vld [vmem:[%s4551 + $0x44] sm:$0xf]
        %v4570 = vld [vmem:[%s4551 + $0x48] sm:$0xf]
        %v4571 = vld [vmem:[%s4551 + $0x4c] sm:$0xf]
        %v4572 = vld [vmem:[%s4551 + $0x50] sm:$0xf]
        %v4573 = vld [vmem:[%s4551 + $0x54] sm:$0xf]
        %v4574 = vld [vmem:[%s4551 + $0x58] sm:$0xf]
        %v4575 = vld [vmem:[%s4551 + $0x5c] sm:$0xf]
        %v4576 = vld [vmem:[%s4551 + $0x60] sm:$0xf]
        %v4577 = vld [vmem:[%s4551 + $0x64] sm:$0xf]
        %v4578 = vld [vmem:[%s4551 + $0x68] sm:$0xf]
        %v4579 = vld [vmem:[%s4551 + $0x6c] sm:$0xf]
        %v4580 = vld [vmem:[%s4551 + $0x70] sm:$0xf]
        %v4581 = vld [vmem:[%s4551 + $0x74] sm:$0xf]
        %v4582 = vld [vmem:[%s4551 + $0x78] sm:$0xf]
        %v4583 = vld [vmem:[%s4551 + $0x7c] sm:$0xf]
        %v4584 = vld [vmem:[%s4551 + $0x80] sm:$0xf]
        %v4585 = vld [vmem:[%s4551 + $0x84] sm:$0xf]
        %v4586 = vld [vmem:[%s4551 + $0x88] sm:$0xf]
        %v4587 = vld [vmem:[%s4551 + $0x8c] sm:$0xf]
        %s4588 = scalar_lea.vmem %s4, 1
        %v4589 = vld [vmem:[%s4588] sm:$0x1]
        %4590 = vst.msk [vmem:[%s548 + $0x1] sm:$0xff] %vm386, %v4480
        %4591 = vst.msk [vmem:[%s548 + $0x9] sm:$0xff] %vm386, %v4481
        %4592 = vst.msk [vmem:[%s548 + $0x19] sm:$0xff] %vm386, %v4482
        %4593 = vst.msk [vmem:[%s548 + $0x21] sm:$0xff] %vm386, %v4483
        %4594 = vst.msk [vmem:[%s548 + $0x31] sm:$0xff] %vm386, %v4484
        %4595 = vst.msk [vmem:[%s548 + $0x39] sm:$0xff] %vm386, %v4485
        %4596 = vst.msk [vmem:[%s548 + $0x49] sm:$0xff] %vm386, %v4486
        %4597 = vst.msk [vmem:[%s548 + $0x51] sm:$0xff] %vm386, %v4487
        %4598 = vst.msk [vmem:[%s548 + $0x61] sm:$0xff] %vm386, %v4488
        %4599 = vst.msk [vmem:[%s548 + $0x69] sm:$0xff] %vm386, %v4489
        %4600 = vst.msk [vmem:[%s548 + $0x79] sm:$0xff] %vm386, %v4490
        %4601 = vst.msk [vmem:[%s548 + $0x81] sm:$0xff] %vm386, %v4491
        %4602 = vst.msk [vmem:[%s548 + $0x91] sm:$0xff] %vm386, %v4492
        %4603 = vst.msk [vmem:[%s548 + $0x99] sm:$0xff] %vm386, %v4493
        %4604 = vst.msk [vmem:[%s548 + $0xa9] sm:$0xff] %vm386, %v4494
        %4605 = vst.msk [vmem:[%s548 + $0xb1] sm:$0xff] %vm386, %v4495
        %4606 = vst.msk [vmem:[%s548 + $0xc1] sm:$0xff] %vm386, %v4496
        %4607 = vst.msk [vmem:[%s548 + $0xc9] sm:$0xff] %vm386, %v4497
        %4608 = vst.msk [vmem:[%s548 + $0xd9] sm:$0xff] %vm386, %v4498
        %4609 = vst.msk [vmem:[%s548 + $0xe1] sm:$0xff] %vm386, %v4499
        %4610 = vst.msk [vmem:[%s548 + $0xf1] sm:$0xff] %vm386, %v4500
        %4611 = vst.msk [vmem:[%s548 + $0xf9] sm:$0xff] %vm386, %v4501
        %4612 = vst.msk [vmem:[%s548 + $0x109] sm:$0xff] %vm386, %v4502
        %4613 = vst.msk [vmem:[%s548 + $0x111] sm:$0xff] %vm386, %v4503
        %4614 = vst.msk [vmem:[%s548 + $0x121] sm:$0xff] %vm386, %v4504
        %4615 = vst.msk [vmem:[%s548 + $0x129] sm:$0xff] %vm386, %v4505
        %4616 = vst.msk [vmem:[%s548 + $0x139] sm:$0xff] %vm386, %v4506
        %4617 = vst.msk [vmem:[%s548 + $0x141] sm:$0xff] %vm386, %v4507
        %4618 = vst.msk [vmem:[%s548 + $0x151] sm:$0xff] %vm386, %v4508
        %4619 = vst.msk [vmem:[%s548 + $0x159] sm:$0xff] %vm386, %v4509
        %4620 = vst.msk [vmem:[%s548 + $0x169] sm:$0xff] %vm386, %v4510
        %4621 = vst.msk [vmem:[%s548 + $0x171] sm:$0xff] %vm386, %v4511
        %v4622 = vld [vmem:[#allocation2] sm:$0xff]
        %v4623 = vld [vmem:[#allocation2 + $0x8] sm:$0xff]
        %v4624 = vld [vmem:[#allocation2 + $0x18] sm:$0xff]
        %v4625 = vld [vmem:[#allocation2 + $0x20] sm:$0xff]
        %v4626 = vld [vmem:[#allocation2 + $0x30] sm:$0xff]
        %v4627 = vld [vmem:[#allocation2 + $0x38] sm:$0xff]
        %v4628 = vld [vmem:[#allocation2 + $0x48] sm:$0xff]
        %v4629 = vld [vmem:[#allocation2 + $0x50] sm:$0xff]
        %v4630 = vld [vmem:[#allocation2 + $0x60] sm:$0xff]
        %v4631 = vld [vmem:[#allocation2 + $0x68] sm:$0xff]
        %v4632 = vld [vmem:[#allocation2 + $0x78] sm:$0xff]
        %v4633 = vld [vmem:[#allocation2 + $0x80] sm:$0xff]
        %v4634 = vld [vmem:[#allocation2 + $0x90] sm:$0xff]
        %v4635 = vld [vmem:[#allocation2 + $0x98] sm:$0xff]
        %v4636 = vld [vmem:[#allocation2 + $0xa8] sm:$0xff]
        %v4637 = vld [vmem:[#allocation2 + $0xb0] sm:$0xff]
        %v4638 = vld [vmem:[#allocation2 + $0xc0] sm:$0xff]
        %v4639 = vld [vmem:[#allocation2 + $0xc8] sm:$0xff]
        %v4640 = vld [vmem:[#allocation2 + $0xd8] sm:$0xff]
        %v4641 = vld [vmem:[#allocation2 + $0xe0] sm:$0xff]
        %v4642 = vld [vmem:[#allocation2 + $0xf0] sm:$0xff]
        %v4643 = vld [vmem:[#allocation2 + $0xf8] sm:$0xff]
        %v4644 = vld [vmem:[#allocation2 + $0x108] sm:$0xff]
        %v4645 = vld [vmem:[#allocation2 + $0x110] sm:$0xff]
        %v4646 = vld [vmem:[#allocation2 + $0x120] sm:$0xff]
        %v4647 = vld [vmem:[#allocation2 + $0x128] sm:$0xff]
        %v4648 = vld [vmem:[#allocation2 + $0x138] sm:$0xff]
        %v4649 = vld [vmem:[#allocation2 + $0x140] sm:$0xff]
        %v4650 = vld [vmem:[#allocation2 + $0x150] sm:$0xff]
        %v4651 = vld [vmem:[#allocation2 + $0x158] sm:$0xff]
        %v4652 = vld [vmem:[#allocation2 + $0x168] sm:$0xff]
        %v4653 = vld [vmem:[#allocation2 + $0x170] sm:$0xff]
        %v4654 = vld [vmem:[#allocation2 + $0x1] sm:$0xff]
        %v4655 = vld [vmem:[#allocation2 + $0x9] sm:$0xff]
        %v4656 = vld [vmem:[#allocation2 + $0x19] sm:$0xff]
        %v4657 = vld [vmem:[#allocation2 + $0x21] sm:$0xff]
        %v4658 = vld [vmem:[#allocation2 + $0x31] sm:$0xff]
        %v4659 = vld [vmem:[#allocation2 + $0x39] sm:$0xff]
        %v4660 = vld [vmem:[#allocation2 + $0x49] sm:$0xff]
        %v4661 = vld [vmem:[#allocation2 + $0x51] sm:$0xff]
        %v4662 = vld [vmem:[#allocation2 + $0x61] sm:$0xff]
        %v4663 = vld [vmem:[#allocation2 + $0x69] sm:$0xff]
        %v4664 = vld [vmem:[#allocation2 + $0x79] sm:$0xff]
        %v4665 = vld [vmem:[#allocation2 + $0x81] sm:$0xff]
        %v4666 = vld [vmem:[#allocation2 + $0x91] sm:$0xff]
        %v4667 = vld [vmem:[#allocation2 + $0x99] sm:$0xff]
        %v4668 = vld [vmem:[#allocation2 + $0xa9] sm:$0xff]
        %v4669 = vld [vmem:[#allocation2 + $0xb1] sm:$0xff]
        %v4670 = vld [vmem:[#allocation2 + $0xc1] sm:$0xff]
        %v4671 = vld [vmem:[#allocation2 + $0xc9] sm:$0xff]
        %v4672 = vld [vmem:[#allocation2 + $0xd9] sm:$0xff]
        %v4673 = vld [vmem:[#allocation2 + $0xe1] sm:$0xff]
        %v4674 = vld [vmem:[#allocation2 + $0xf1] sm:$0xff]
        %v4675 = vld [vmem:[#allocation2 + $0xf9] sm:$0xff]
        %v4676 = vld [vmem:[#allocation2 + $0x109] sm:$0xff]
        %v4677 = vld [vmem:[#allocation2 + $0x111] sm:$0xff]
        %v4678 = vld [vmem:[#allocation2 + $0x121] sm:$0xff]
        %v4679 = vld [vmem:[#allocation2 + $0x129] sm:$0xff]
        %v4680 = vld [vmem:[#allocation2 + $0x139] sm:$0xff]
        %v4681 = vld [vmem:[#allocation2 + $0x141] sm:$0xff]
        %v4682 = vld [vmem:[#allocation2 + $0x151] sm:$0xff]
        %v4683 = vld [vmem:[#allocation2 + $0x159] sm:$0xff]
        %v4684 = vld [vmem:[#allocation2 + $0x169] sm:$0xff]
        %v4685 = vld [vmem:[#allocation2 + $0x171] sm:$0xff]
        %v4686 = vld [vmem:[#allocation2 + $0x2] sm:$0xff]
        %v4687 = vld [vmem:[#allocation2 + $0xa] sm:$0xff]
        %v4688 = vld [vmem:[#allocation2 + $0x1a] sm:$0xff]
        %v4689 = vld [vmem:[#allocation2 + $0x22] sm:$0xff]
        %v4690 = vld [vmem:[#allocation2 + $0x32] sm:$0xff]
        %v4691 = vld [vmem:[#allocation2 + $0x3a] sm:$0xff]
        %v4692 = vld [vmem:[#allocation2 + $0x4a] sm:$0xff]
        %v4693 = vld [vmem:[#allocation2 + $0x52] sm:$0xff]
        %v4694 = vld [vmem:[#allocation2 + $0x62] sm:$0xff]
        %v4695 = vld [vmem:[#allocation2 + $0x6a] sm:$0xff]
        %v4696 = vld [vmem:[#allocation2 + $0x7a] sm:$0xff]
        %v4697 = vld [vmem:[#allocation2 + $0x82] sm:$0xff]
        %v4698 = vld [vmem:[#allocation2 + $0x92] sm:$0xff]
        %v4699 = vld [vmem:[#allocation2 + $0x9a] sm:$0xff]
        %v4700 = vld [vmem:[#allocation2 + $0xaa] sm:$0xff]
        %v4701 = vld [vmem:[#allocation2 + $0xb2] sm:$0xff]
        %v4702 = vld [vmem:[#allocation2 + $0xc2] sm:$0xff]
        %v4703 = vld [vmem:[#allocation2 + $0xca] sm:$0xff]
        %v4704 = vld [vmem:[#allocation2 + $0xda] sm:$0xff]
        %v4705 = vld [vmem:[#allocation2 + $0xe2] sm:$0xff]
        %v4706 = vld [vmem:[#allocation2 + $0xf2] sm:$0xff]
        %v4707 = vld [vmem:[#allocation2 + $0xfa] sm:$0xff]
        %v4708 = vld [vmem:[#allocation2 + $0x10a] sm:$0xff]
        %v4709 = vld [vmem:[#allocation2 + $0x112] sm:$0xff]
        %v4710 = vld [vmem:[#allocation2 + $0x122] sm:$0xff]
        %v4711 = vld [vmem:[#allocation2 + $0x12a] sm:$0xff]
        %v4712 = vld [vmem:[#allocation2 + $0x13a] sm:$0xff]
        %v4713 = vld [vmem:[#allocation2 + $0x142] sm:$0xff]
        %v4714 = vld [vmem:[#allocation2 + $0x152] sm:$0xff]
        %v4715 = vld [vmem:[#allocation2 + $0x15a] sm:$0xff]
        %v4716 = vld [vmem:[#allocation2 + $0x16a] sm:$0xff]
        %v4717 = vld [vmem:[#allocation2 + $0x172] sm:$0xff]
        %v4718 = vld [vmem:[%s548] sm:$0xff]
        %v4719 = vld [vmem:[%s548 + $0x8] sm:$0xff]
        %v4720 = vld [vmem:[%s548 + $0x18] sm:$0xff]
        %v4721 = vld [vmem:[%s548 + $0x20] sm:$0xff]
        %v4722 = vld [vmem:[%s548 + $0x30] sm:$0xff]
        %v4723 = vld [vmem:[%s548 + $0x38] sm:$0xff]
        %v4724 = vld [vmem:[%s548 + $0x48] sm:$0xff]
        %v4725 = vld [vmem:[%s548 + $0x50] sm:$0xff]
        %v4726 = vld [vmem:[%s548 + $0x60] sm:$0xff]
        %v4727 = vld [vmem:[%s548 + $0x68] sm:$0xff]
        %v4728 = vld [vmem:[%s548 + $0x78] sm:$0xff]
        %v4729 = vld [vmem:[%s548 + $0x80] sm:$0xff]
        %v4730 = vld [vmem:[%s548 + $0x90] sm:$0xff]
        %v4731 = vld [vmem:[%s548 + $0x98] sm:$0xff]
        %v4732 = vld [vmem:[%s548 + $0xa8] sm:$0xff]
        %v4733 = vld [vmem:[%s548 + $0xb0] sm:$0xff]
        %v4734 = vld [vmem:[%s548 + $0xc0] sm:$0xff]
        %v4735 = vld [vmem:[%s548 + $0xc8] sm:$0xff]
        %v4736 = vld [vmem:[%s548 + $0xd8] sm:$0xff]
        %v4737 = vld [vmem:[%s548 + $0xe0] sm:$0xff]
        %v4738 = vld [vmem:[%s548 + $0xf0] sm:$0xff]
        %v4739 = vld [vmem:[%s548 + $0xf8] sm:$0xff]
        %v4740 = vld [vmem:[%s548 + $0x108] sm:$0xff]
        %v4741 = vld [vmem:[%s548 + $0x110] sm:$0xff]
        %v4742 = vld [vmem:[%s548 + $0x120] sm:$0xff]
        %v4743 = vld [vmem:[%s548 + $0x128] sm:$0xff]
        %v4744 = vld [vmem:[%s548 + $0x138] sm:$0xff]
        %v4745 = vld [vmem:[%s548 + $0x140] sm:$0xff]
        %v4746 = vld [vmem:[%s548 + $0x150] sm:$0xff]
        %v4747 = vld [vmem:[%s548 + $0x158] sm:$0xff]
        %v4748 = vld [vmem:[%s548 + $0x168] sm:$0xff]
        %v4749 = vld [vmem:[%s548 + $0x170] sm:$0xff]
        %v4750 = vld [vmem:[%s548 + $0x1] sm:$0xff]
        %v4751 = vld [vmem:[%s548 + $0x9] sm:$0xff]
        %v4752 = vld [vmem:[%s548 + $0x19] sm:$0xff]
        %v4753 = vld [vmem:[%s548 + $0x21] sm:$0xff]
        %v4754 = vld [vmem:[%s548 + $0x31] sm:$0xff]
        %v4755 = vld [vmem:[%s548 + $0x39] sm:$0xff]
        %v4756 = vld [vmem:[%s548 + $0x49] sm:$0xff]
        %v4757 = vld [vmem:[%s548 + $0x51] sm:$0xff]
        %v4758 = vld [vmem:[%s548 + $0x61] sm:$0xff]
        %v4759 = vld [vmem:[%s548 + $0x69] sm:$0xff]
        %v4760 = vld [vmem:[%s548 + $0x79] sm:$0xff]
        %v4761 = vld [vmem:[%s548 + $0x81] sm:$0xff]
        %v4762 = vld [vmem:[%s548 + $0x91] sm:$0xff]
        %v4763 = vld [vmem:[%s548 + $0x99] sm:$0xff]
        %v4764 = vld [vmem:[%s548 + $0xa9] sm:$0xff]
        %v4765 = vld [vmem:[%s548 + $0xb1] sm:$0xff]
        %v4766 = vld [vmem:[%s548 + $0xc1] sm:$0xff]
        %v4767 = vld [vmem:[%s548 + $0xc9] sm:$0xff]
        %v4768 = vld [vmem:[%s548 + $0xd9] sm:$0xff]
        %v4769 = vld [vmem:[%s548 + $0xe1] sm:$0xff]
        %v4770 = vld [vmem:[%s548 + $0xf1] sm:$0xff]
        %v4771 = vld [vmem:[%s548 + $0xf9] sm:$0xff]
        %v4772 = vld [vmem:[%s548 + $0x109] sm:$0xff]
        %v4773 = vld [vmem:[%s548 + $0x111] sm:$0xff]
        %v4774 = vld [vmem:[%s548 + $0x121] sm:$0xff]
        %v4775 = vld [vmem:[%s548 + $0x129] sm:$0xff]
        %v4776 = vld [vmem:[%s548 + $0x139] sm:$0xff]
        %v4777 = vld [vmem:[%s548 + $0x141] sm:$0xff]
        %v4778 = vld [vmem:[%s548 + $0x151] sm:$0xff]
        %v4779 = vld [vmem:[%s548 + $0x159] sm:$0xff]
        %v4780 = vld [vmem:[%s548 + $0x169] sm:$0xff]
        %v4781 = vld [vmem:[%s548 + $0x171] sm:$0xff]
        %v4782 = vld [vmem:[%s548 + $0x2] sm:$0xff]
        %v4783 = vld [vmem:[%s548 + $0xa] sm:$0xff]
        %v4784 = vld [vmem:[%s548 + $0x1a] sm:$0xff]
        %v4785 = vld [vmem:[%s548 + $0x22] sm:$0xff]
        %v4786 = vld [vmem:[%s548 + $0x32] sm:$0xff]
        %v4787 = vld [vmem:[%s548 + $0x3a] sm:$0xff]
        %v4788 = vld [vmem:[%s548 + $0x4a] sm:$0xff]
        %v4789 = vld [vmem:[%s548 + $0x52] sm:$0xff]
        %v4790 = vld [vmem:[%s548 + $0x62] sm:$0xff]
        %v4791 = vld [vmem:[%s548 + $0x6a] sm:$0xff]
        %v4792 = vld [vmem:[%s548 + $0x7a] sm:$0xff]
        %v4793 = vld [vmem:[%s548 + $0x82] sm:$0xff]
        %v4794 = vld [vmem:[%s548 + $0x92] sm:$0xff]
        %v4795 = vld [vmem:[%s548 + $0x9a] sm:$0xff]
        %v4796 = vld [vmem:[%s548 + $0xaa] sm:$0xff]
        %v4797 = vld [vmem:[%s548 + $0xb2] sm:$0xff]
        %v4798 = vld [vmem:[%s548 + $0xc2] sm:$0xff]
        %v4799 = vld [vmem:[%s548 + $0xca] sm:$0xff]
        %v4800 = vld [vmem:[%s548 + $0xda] sm:$0xff]
        %v4801 = vld [vmem:[%s548 + $0xe2] sm:$0xff]
        %v4802 = vld [vmem:[%s548 + $0xf2] sm:$0xff]
        %v4803 = vld [vmem:[%s548 + $0xfa] sm:$0xff]
        %v4804 = vld [vmem:[%s548 + $0x10a] sm:$0xff]
        %v4805 = vld [vmem:[%s548 + $0x112] sm:$0xff]
        %v4806 = vld [vmem:[%s548 + $0x122] sm:$0xff]
        %v4807 = vld [vmem:[%s548 + $0x12a] sm:$0xff]
        %v4808 = vld [vmem:[%s548 + $0x13a] sm:$0xff]
        %v4809 = vld [vmem:[%s548 + $0x142] sm:$0xff]
        %v4810 = vld [vmem:[%s548 + $0x152] sm:$0xff]
        %v4811 = vld [vmem:[%s548 + $0x15a] sm:$0xff]
        %v4812 = vld [vmem:[%s548 + $0x16a] sm:$0xff]
        %v4813 = vld [vmem:[%s548 + $0x172] sm:$0xff]
        %v4814 = vld [vmem:[%s773] sm:$0xff]
        %v4815 = vld [vmem:[%s773 + $0x8] sm:$0xff]
        %v4816 = vld [vmem:[%s773 + $0x18] sm:$0xff]
        %v4817 = vld [vmem:[%s773 + $0x20] sm:$0xff]
        %v4818 = vld [vmem:[%s773 + $0x30] sm:$0xff]
        %v4819 = vld [vmem:[%s773 + $0x38] sm:$0xff]
        %v4820 = vld [vmem:[%s773 + $0x48] sm:$0xff]
        %v4821 = vld [vmem:[%s773 + $0x50] sm:$0xff]
        %v4822 = vld [vmem:[%s773 + $0x60] sm:$0xff]
        %v4823 = vld [vmem:[%s773 + $0x68] sm:$0xff]
        %v4824 = vld [vmem:[%s773 + $0x78] sm:$0xff]
        %v4825 = vld [vmem:[%s773 + $0x80] sm:$0xff]
        %v4826 = vld [vmem:[%s773 + $0x90] sm:$0xff]
        %v4827 = vld [vmem:[%s773 + $0x98] sm:$0xff]
        %v4828 = vld [vmem:[%s773 + $0xa8] sm:$0xff]
        %v4829 = vld [vmem:[%s773 + $0xb0] sm:$0xff]
        %v4830 = vld [vmem:[%s773 + $0xc0] sm:$0xff]
        %v4831 = vld [vmem:[%s773 + $0xc8] sm:$0xff]
        %v4832 = vld [vmem:[%s773 + $0xd8] sm:$0xff]
        %v4833 = vld [vmem:[%s773 + $0xe0] sm:$0xff]
        %v4834 = vld [vmem:[%s773 + $0xf0] sm:$0xff]
        %v4835 = vld [vmem:[%s773 + $0xf8] sm:$0xff]
        %v4836 = vld [vmem:[%s773 + $0x108] sm:$0xff]
        %v4837 = vld [vmem:[%s773 + $0x110] sm:$0xff]
        %v4838 = vld [vmem:[%s773 + $0x120] sm:$0xff]
        %v4839 = vld [vmem:[%s773 + $0x128] sm:$0xff]
        %v4840 = vld [vmem:[%s773 + $0x138] sm:$0xff]
        %v4841 = vld [vmem:[%s773 + $0x140] sm:$0xff]
        %v4842 = vld [vmem:[%s773 + $0x150] sm:$0xff]
        %v4843 = vld [vmem:[%s773 + $0x158] sm:$0xff]
        %v4844 = vld [vmem:[%s773 + $0x168] sm:$0xff]
        %v4845 = vld [vmem:[%s773 + $0x170] sm:$0xff]
        %v4846 = vld [vmem:[%s773 + $0x1] sm:$0xff]
        %v4847 = vld [vmem:[%s773 + $0x9] sm:$0xff]
        %v4848 = vld [vmem:[%s773 + $0x19] sm:$0xff]
        %v4849 = vld [vmem:[%s773 + $0x21] sm:$0xff]
        %v4850 = vld [vmem:[%s773 + $0x31] sm:$0xff]
        %v4851 = vld [vmem:[%s773 + $0x39] sm:$0xff]
        %v4852 = vld [vmem:[%s773 + $0x49] sm:$0xff]
        %v4853 = vld [vmem:[%s773 + $0x51] sm:$0xff]
        %v4854 = vld [vmem:[%s773 + $0x61] sm:$0xff]
        %v4855 = vld [vmem:[%s773 + $0x69] sm:$0xff]
        %v4856 = vld [vmem:[%s773 + $0x79] sm:$0xff]
        %v4857 = vld [vmem:[%s773 + $0x81] sm:$0xff]
        %v4858 = vld [vmem:[%s773 + $0x91] sm:$0xff]
        %v4859 = vld [vmem:[%s773 + $0x99] sm:$0xff]
        %v4860 = vld [vmem:[%s773 + $0xa9] sm:$0xff]
        %v4861 = vld [vmem:[%s773 + $0xb1] sm:$0xff]
        %v4862 = vld [vmem:[%s773 + $0xc1] sm:$0xff]
        %v4863 = vld [vmem:[%s773 + $0xc9] sm:$0xff]
        %v4864 = vld [vmem:[%s773 + $0xd9] sm:$0xff]
        %v4865 = vld [vmem:[%s773 + $0xe1] sm:$0xff]
        %v4866 = vld [vmem:[%s773 + $0xf1] sm:$0xff]
        %v4867 = vld [vmem:[%s773 + $0xf9] sm:$0xff]
        %v4868 = vld [vmem:[%s773 + $0x109] sm:$0xff]
        %v4869 = vld [vmem:[%s773 + $0x111] sm:$0xff]
        %v4870 = vld [vmem:[%s773 + $0x121] sm:$0xff]
        %v4871 = vld [vmem:[%s773 + $0x129] sm:$0xff]
        %v4872 = vld [vmem:[%s773 + $0x139] sm:$0xff]
        %v4873 = vld [vmem:[%s773 + $0x141] sm:$0xff]
        %v4874 = vld [vmem:[%s773 + $0x151] sm:$0xff]
        %v4875 = vld [vmem:[%s773 + $0x159] sm:$0xff]
        %v4876 = vld [vmem:[%s773 + $0x169] sm:$0xff]
        %v4877 = vld [vmem:[%s773 + $0x171] sm:$0xff]
        %v4878 = vld [vmem:[%s773 + $0x2] sm:$0xff]
        %v4879 = vld [vmem:[%s773 + $0xa] sm:$0xff]
        %v4880 = vld [vmem:[%s773 + $0x1a] sm:$0xff]
        %v4881 = vld [vmem:[%s773 + $0x22] sm:$0xff]
        %v4882 = vld [vmem:[%s773 + $0x32] sm:$0xff]
        %v4883 = vld [vmem:[%s773 + $0x3a] sm:$0xff]
        %v4884 = vld [vmem:[%s773 + $0x4a] sm:$0xff]
        %v4885 = vld [vmem:[%s773 + $0x52] sm:$0xff]
        %v4886 = vld [vmem:[%s773 + $0x62] sm:$0xff]
        %v4887 = vld [vmem:[%s773 + $0x6a] sm:$0xff]
        %v4888 = vld [vmem:[%s773 + $0x7a] sm:$0xff]
        %v4889 = vld [vmem:[%s773 + $0x82] sm:$0xff]
        %v4890 = vld [vmem:[%s773 + $0x92] sm:$0xff]
        %v4891 = vld [vmem:[%s773 + $0x9a] sm:$0xff]
        %v4892 = vld [vmem:[%s773 + $0xaa] sm:$0xff]
        %v4893 = vld [vmem:[%s773 + $0xb2] sm:$0xff]
        %v4894 = vld [vmem:[%s773 + $0xc2] sm:$0xff]
        %v4895 = vld [vmem:[%s773 + $0xca] sm:$0xff]
        %v4896 = vld [vmem:[%s773 + $0xda] sm:$0xff]
        %v4897 = vld [vmem:[%s773 + $0xe2] sm:$0xff]
        %v4898 = vld [vmem:[%s773 + $0xf2] sm:$0xff]
        %v4899 = vld [vmem:[%s773 + $0xfa] sm:$0xff]
        %v4900 = vld [vmem:[%s773 + $0x10a] sm:$0xff]
        %v4901 = vld [vmem:[%s773 + $0x112] sm:$0xff]
        %v4902 = vld [vmem:[%s773 + $0x122] sm:$0xff]
        %v4903 = vld [vmem:[%s773 + $0x12a] sm:$0xff]
        %v4904 = vld [vmem:[%s773 + $0x13a] sm:$0xff]
        %v4905 = vld [vmem:[%s773 + $0x142] sm:$0xff]
        %v4906 = vld [vmem:[%s773 + $0x152] sm:$0xff]
        %v4907 = vld [vmem:[%s773 + $0x15a] sm:$0xff]
        %v4908 = vld [vmem:[%s773 + $0x16a] sm:$0xff]
        %v4909 = vld [vmem:[%s773 + $0x172] sm:$0xff]
        %4942 = vrot.lane.b32.xlu0 %v4654, 32
        %v4943 = vpop.permute.xlu0 %4942
        %4944 = vrot.lane.b32.xlu0 %v4655, 32
        %v4945 = vpop.permute.xlu0 %4944
        %4946 = vrot.lane.b32.xlu0 %v4656, 32
        %v4947 = vpop.permute.xlu0 %4946
        %4948 = vrot.lane.b32.xlu0 %v4657, 32
        %v4949 = vpop.permute.xlu0 %4948
        %4950 = vrot.lane.b32.xlu0 %v4658, 32
        %v4951 = vpop.permute.xlu0 %4950
        %4952 = vrot.lane.b32.xlu0 %v4659, 32
        %v4953 = vpop.permute.xlu0 %4952
        %4954 = vrot.lane.b32.xlu0 %v4660, 32
        %v4955 = vpop.permute.xlu0 %4954
        %4956 = vrot.lane.b32.xlu0 %v4661, 32
        %v4957 = vpop.permute.xlu0 %4956
        %4958 = vrot.lane.b32.xlu0 %v4662, 32
        %v4959 = vpop.permute.xlu0 %4958
        %4960 = vrot.lane.b32.xlu0 %v4663, 32
        %v4961 = vpop.permute.xlu0 %4960
        %4962 = vrot.lane.b32.xlu0 %v4664, 32
        %v4963 = vpop.permute.xlu0 %4962
        %4964 = vrot.lane.b32.xlu0 %v4665, 32
        %v4965 = vpop.permute.xlu0 %4964
        %4966 = vrot.lane.b32.xlu0 %v4666, 32
        %v4967 = vpop.permute.xlu0 %4966
        %4968 = vrot.lane.b32.xlu0 %v4667, 32
        %v4969 = vpop.permute.xlu0 %4968
        %4970 = vrot.lane.b32.xlu0 %v4668, 32
        %v4971 = vpop.permute.xlu0 %4970
        %4972 = vrot.lane.b32.xlu0 %v4669, 32
        %v4973 = vpop.permute.xlu0 %4972
        %4974 = vrot.lane.b32.xlu0 %v4670, 32
        %v4975 = vpop.permute.xlu0 %4974
        %4976 = vrot.lane.b32.xlu0 %v4671, 32
        %v4977 = vpop.permute.xlu0 %4976
        %4978 = vrot.lane.b32.xlu0 %v4672, 32
        %v4979 = vpop.permute.xlu0 %4978
        %4980 = vrot.lane.b32.xlu0 %v4673, 32
        %v4981 = vpop.permute.xlu0 %4980
        %4982 = vrot.lane.b32.xlu0 %v4674, 32
        %v4983 = vpop.permute.xlu0 %4982
        %4984 = vrot.lane.b32.xlu0 %v4675, 32
        %v4985 = vpop.permute.xlu0 %4984
        %4986 = vrot.lane.b32.xlu0 %v4676, 32
        %v4987 = vpop.permute.xlu0 %4986
        %4988 = vrot.lane.b32.xlu0 %v4677, 32
        %v4989 = vpop.permute.xlu0 %4988
        %4990 = vrot.lane.b32.xlu0 %v4678, 32
        %v4991 = vpop.permute.xlu0 %4990
        %4992 = vrot.lane.b32.xlu0 %v4679, 32
        %v4993 = vpop.permute.xlu0 %4992
        %4994 = vrot.lane.b32.xlu0 %v4680, 32
        %v4995 = vpop.permute.xlu0 %4994
        %4996 = vrot.lane.b32.xlu0 %v4681, 32
        %v4997 = vpop.permute.xlu0 %4996
        %4998 = vrot.lane.b32.xlu0 %v4682, 32
        %v4999 = vpop.permute.xlu0 %4998
        %5000 = vrot.lane.b32.xlu0 %v4683, 32
        %v5001 = vpop.permute.xlu0 %5000
        %5002 = vrot.lane.b32.xlu0 %v4684, 32
        %v5003 = vpop.permute.xlu0 %5002
        %5004 = vrot.lane.b32.xlu0 %v4685, 32
        %v5005 = vpop.permute.xlu0 %5004
        %5070 = vrot.lane.b32.xlu0 %v4686, 64
        %v5071 = vpop.permute.xlu0 %5070
        %5072 = vrot.lane.b32.xlu0 %v4687, 64
        %v5073 = vpop.permute.xlu0 %5072
        %5074 = vrot.lane.b32.xlu0 %v4688, 64
        %v5075 = vpop.permute.xlu0 %5074
        %5076 = vrot.lane.b32.xlu0 %v4689, 64
        %v5077 = vpop.permute.xlu0 %5076
        %5078 = vrot.lane.b32.xlu0 %v4690, 64
        %v5079 = vpop.permute.xlu0 %5078
        %5080 = vrot.lane.b32.xlu0 %v4691, 64
        %v5081 = vpop.permute.xlu0 %5080
        %5082 = vrot.lane.b32.xlu0 %v4692, 64
        %v5083 = vpop.permute.xlu0 %5082
        %5084 = vrot.lane.b32.xlu0 %v4693, 64
        %v5085 = vpop.permute.xlu0 %5084
        %5086 = vrot.lane.b32.xlu0 %v4694, 64
        %v5087 = vpop.permute.xlu0 %5086
        %5088 = vrot.lane.b32.xlu0 %v4695, 64
        %v5089 = vpop.permute.xlu0 %5088
        %5090 = vrot.lane.b32.xlu0 %v4696, 64
        %v5091 = vpop.permute.xlu0 %5090
        %5092 = vrot.lane.b32.xlu0 %v4697, 64
        %v5093 = vpop.permute.xlu0 %5092
        %5094 = vrot.lane.b32.xlu0 %v4698, 64
        %v5095 = vpop.permute.xlu0 %5094
        %5096 = vrot.lane.b32.xlu0 %v4699, 64
        %v5097 = vpop.permute.xlu0 %5096
        %5098 = vrot.lane.b32.xlu0 %v4700, 64
        %v5099 = vpop.permute.xlu0 %5098
        %5100 = vrot.lane.b32.xlu0 %v4701, 64
        %v5101 = vpop.permute.xlu0 %5100
        %5102 = vrot.lane.b32.xlu0 %v4702, 64
        %v5103 = vpop.permute.xlu0 %5102
        %5104 = vrot.lane.b32.xlu0 %v4703, 64
        %v5105 = vpop.permute.xlu0 %5104
        %5106 = vrot.lane.b32.xlu0 %v4704, 64
        %v5107 = vpop.permute.xlu0 %5106
        %5108 = vrot.lane.b32.xlu0 %v4705, 64
        %v5109 = vpop.permute.xlu0 %5108
        %5110 = vrot.lane.b32.xlu0 %v4706, 64
        %v5111 = vpop.permute.xlu0 %5110
        %5112 = vrot.lane.b32.xlu0 %v4707, 64
        %v5113 = vpop.permute.xlu0 %5112
        %5114 = vrot.lane.b32.xlu0 %v4708, 64
        %v5115 = vpop.permute.xlu0 %5114
        %5116 = vrot.lane.b32.xlu0 %v4709, 64
        %v5117 = vpop.permute.xlu0 %5116
        %5118 = vrot.lane.b32.xlu0 %v4710, 64
        %v5119 = vpop.permute.xlu0 %5118
        %5120 = vrot.lane.b32.xlu0 %v4711, 64
        %v5121 = vpop.permute.xlu0 %5120
        %5122 = vrot.lane.b32.xlu0 %v4712, 64
        %v5123 = vpop.permute.xlu0 %5122
        %5124 = vrot.lane.b32.xlu0 %v4713, 64
        %v5125 = vpop.permute.xlu0 %5124
        %5126 = vrot.lane.b32.xlu0 %v4714, 64
        %v5127 = vpop.permute.xlu0 %5126
        %5128 = vrot.lane.b32.xlu0 %v4715, 64
        %v5129 = vpop.permute.xlu0 %5128
        %5130 = vrot.lane.b32.xlu0 %v4716, 64
        %v5131 = vpop.permute.xlu0 %5130
        %5132 = vrot.lane.b32.xlu0 %v4717, 64
        %v5133 = vpop.permute.xlu0 %5132
        %5198 = vrot.lane.b32.xlu0 %v4718, 96
        %v5199 = vpop.permute.xlu0 %5198
        %5200 = vrot.lane.b32.xlu0 %v4719, 96
        %v5201 = vpop.permute.xlu0 %5200
        %5202 = vrot.lane.b32.xlu0 %v4720, 96
        %v5203 = vpop.permute.xlu0 %5202
        %5204 = vrot.lane.b32.xlu0 %v4721, 96
        %v5205 = vpop.permute.xlu0 %5204
        %5206 = vrot.lane.b32.xlu0 %v4722, 96
        %v5207 = vpop.permute.xlu0 %5206
        %5208 = vrot.lane.b32.xlu0 %v4723, 96
        %v5209 = vpop.permute.xlu0 %5208
        %5210 = vrot.lane.b32.xlu0 %v4724, 96
        %v5211 = vpop.permute.xlu0 %5210
        %5212 = vrot.lane.b32.xlu0 %v4725, 96
        %v5213 = vpop.permute.xlu0 %5212
        %5214 = vrot.lane.b32.xlu0 %v4726, 96
        %v5215 = vpop.permute.xlu0 %5214
        %5216 = vrot.lane.b32.xlu0 %v4727, 96
        %v5217 = vpop.permute.xlu0 %5216
        %5218 = vrot.lane.b32.xlu0 %v4728, 96
        %v5219 = vpop.permute.xlu0 %5218
        %5220 = vrot.lane.b32.xlu0 %v4729, 96
        %v5221 = vpop.permute.xlu0 %5220
        %5222 = vrot.lane.b32.xlu0 %v4730, 96
        %v5223 = vpop.permute.xlu0 %5222
        %5224 = vrot.lane.b32.xlu0 %v4731, 96
        %v5225 = vpop.permute.xlu0 %5224
        %5226 = vrot.lane.b32.xlu0 %v4732, 96
        %v5227 = vpop.permute.xlu0 %5226
        %5228 = vrot.lane.b32.xlu0 %v4733, 96
        %v5229 = vpop.permute.xlu0 %5228
        %5230 = vrot.lane.b32.xlu0 %v4734, 96
        %v5231 = vpop.permute.xlu0 %5230
        %5232 = vrot.lane.b32.xlu0 %v4735, 96
        %v5233 = vpop.permute.xlu0 %5232
        %5234 = vrot.lane.b32.xlu0 %v4736, 96
        %v5235 = vpop.permute.xlu0 %5234
        %5236 = vrot.lane.b32.xlu0 %v4737, 96
        %v5237 = vpop.permute.xlu0 %5236
        %5238 = vrot.lane.b32.xlu0 %v4738, 96
        %v5239 = vpop.permute.xlu0 %5238
        %5240 = vrot.lane.b32.xlu0 %v4739, 96
        %v5241 = vpop.permute.xlu0 %5240
        %5242 = vrot.lane.b32.xlu0 %v4740, 96
        %v5243 = vpop.permute.xlu0 %5242
        %5244 = vrot.lane.b32.xlu0 %v4741, 96
        %v5245 = vpop.permute.xlu0 %5244
        %5246 = vrot.lane.b32.xlu0 %v4742, 96
        %v5247 = vpop.permute.xlu0 %5246
        %5248 = vrot.lane.b32.xlu0 %v4743, 96
        %v5249 = vpop.permute.xlu0 %5248
        %5250 = vrot.lane.b32.xlu0 %v4744, 96
        %v5251 = vpop.permute.xlu0 %5250
        %5252 = vrot.lane.b32.xlu0 %v4745, 96
        %v5253 = vpop.permute.xlu0 %5252
        %5254 = vrot.lane.b32.xlu0 %v4746, 96
        %v5255 = vpop.permute.xlu0 %5254
        %5256 = vrot.lane.b32.xlu0 %v4747, 96
        %v5257 = vpop.permute.xlu0 %5256
        %5258 = vrot.lane.b32.xlu0 %v4748, 96
        %v5259 = vpop.permute.xlu0 %5258
        %5260 = vrot.lane.b32.xlu0 %v4749, 96
        %v5261 = vpop.permute.xlu0 %5260
        %5326 = vrot.lane.b32.xlu0 %v4782, 32
        %v5327 = vpop.permute.xlu0 %5326
        %5328 = vrot.lane.b32.xlu0 %v4783, 32
        %v5329 = vpop.permute.xlu0 %5328
        %5330 = vrot.lane.b32.xlu0 %v4784, 32
        %v5331 = vpop.permute.xlu0 %5330
        %5332 = vrot.lane.b32.xlu0 %v4785, 32
        %v5333 = vpop.permute.xlu0 %5332
        %5334 = vrot.lane.b32.xlu0 %v4786, 32
        %v5335 = vpop.permute.xlu0 %5334
        %5336 = vrot.lane.b32.xlu0 %v4787, 32
        %v5337 = vpop.permute.xlu0 %5336
        %5338 = vrot.lane.b32.xlu0 %v4788, 32
        %v5339 = vpop.permute.xlu0 %5338
        %5340 = vrot.lane.b32.xlu0 %v4789, 32
        %v5341 = vpop.permute.xlu0 %5340
        %5342 = vrot.lane.b32.xlu0 %v4790, 32
        %v5343 = vpop.permute.xlu0 %5342
        %5344 = vrot.lane.b32.xlu0 %v4791, 32
        %v5345 = vpop.permute.xlu0 %5344
        %5346 = vrot.lane.b32.xlu0 %v4792, 32
        %v5347 = vpop.permute.xlu0 %5346
        %5348 = vrot.lane.b32.xlu0 %v4793, 32
        %v5349 = vpop.permute.xlu0 %5348
        %5350 = vrot.lane.b32.xlu0 %v4794, 32
        %v5351 = vpop.permute.xlu0 %5350
        %5352 = vrot.lane.b32.xlu0 %v4795, 32
        %v5353 = vpop.permute.xlu0 %5352
        %5354 = vrot.lane.b32.xlu0 %v4796, 32
        %v5355 = vpop.permute.xlu0 %5354
        %5356 = vrot.lane.b32.xlu0 %v4797, 32
        %v5357 = vpop.permute.xlu0 %5356
        %5358 = vrot.lane.b32.xlu0 %v4798, 32
        %v5359 = vpop.permute.xlu0 %5358
        %5360 = vrot.lane.b32.xlu0 %v4799, 32
        %v5361 = vpop.permute.xlu0 %5360
        %5362 = vrot.lane.b32.xlu0 %v4800, 32
        %v5363 = vpop.permute.xlu0 %5362
        %5364 = vrot.lane.b32.xlu0 %v4801, 32
        %v5365 = vpop.permute.xlu0 %5364
        %5366 = vrot.lane.b32.xlu0 %v4802, 32
        %v5367 = vpop.permute.xlu0 %5366
        %5368 = vrot.lane.b32.xlu0 %v4803, 32
        %v5369 = vpop.permute.xlu0 %5368
        %5370 = vrot.lane.b32.xlu0 %v4804, 32
        %v5371 = vpop.permute.xlu0 %5370
        %5372 = vrot.lane.b32.xlu0 %v4805, 32
        %v5373 = vpop.permute.xlu0 %5372
        %5374 = vrot.lane.b32.xlu0 %v4806, 32
        %v5375 = vpop.permute.xlu0 %5374
        %5376 = vrot.lane.b32.xlu0 %v4807, 32
        %v5377 = vpop.permute.xlu0 %5376
        %5378 = vrot.lane.b32.xlu0 %v4808, 32
        %v5379 = vpop.permute.xlu0 %5378
        %5380 = vrot.lane.b32.xlu0 %v4809, 32
        %v5381 = vpop.permute.xlu0 %5380
        %5382 = vrot.lane.b32.xlu0 %v4810, 32
        %v5383 = vpop.permute.xlu0 %5382
        %5384 = vrot.lane.b32.xlu0 %v4811, 32
        %v5385 = vpop.permute.xlu0 %5384
        %5386 = vrot.lane.b32.xlu0 %v4812, 32
        %v5387 = vpop.permute.xlu0 %5386
        %5388 = vrot.lane.b32.xlu0 %v4813, 32
        %v5389 = vpop.permute.xlu0 %5388
        %5454 = vrot.lane.b32.xlu0 %v4814, 64
        %v5455 = vpop.permute.xlu0 %5454
        %5456 = vrot.lane.b32.xlu0 %v4815, 64
        %v5457 = vpop.permute.xlu0 %5456
        %5458 = vrot.lane.b32.xlu0 %v4816, 64
        %v5459 = vpop.permute.xlu0 %5458
        %5460 = vrot.lane.b32.xlu0 %v4817, 64
        %v5461 = vpop.permute.xlu0 %5460
        %5462 = vrot.lane.b32.xlu0 %v4818, 64
        %v5463 = vpop.permute.xlu0 %5462
        %5464 = vrot.lane.b32.xlu0 %v4819, 64
        %v5465 = vpop.permute.xlu0 %5464
        %5466 = vrot.lane.b32.xlu0 %v4820, 64
        %v5467 = vpop.permute.xlu0 %5466
        %5468 = vrot.lane.b32.xlu0 %v4821, 64
        %v5469 = vpop.permute.xlu0 %5468
        %5470 = vrot.lane.b32.xlu0 %v4822, 64
        %v5471 = vpop.permute.xlu0 %5470
        %5472 = vrot.lane.b32.xlu0 %v4823, 64
        %v5473 = vpop.permute.xlu0 %5472
        %5474 = vrot.lane.b32.xlu0 %v4824, 64
        %v5475 = vpop.permute.xlu0 %5474
        %5476 = vrot.lane.b32.xlu0 %v4825, 64
        %v5477 = vpop.permute.xlu0 %5476
        %5478 = vrot.lane.b32.xlu0 %v4826, 64
        %v5479 = vpop.permute.xlu0 %5478
        %5480 = vrot.lane.b32.xlu0 %v4827, 64
        %v5481 = vpop.permute.xlu0 %5480
        %5482 = vrot.lane.b32.xlu0 %v4828, 64
        %v5483 = vpop.permute.xlu0 %5482
        %5484 = vrot.lane.b32.xlu0 %v4829, 64
        %v5485 = vpop.permute.xlu0 %5484
        %5486 = vrot.lane.b32.xlu0 %v4830, 64
        %v5487 = vpop.permute.xlu0 %5486
        %5488 = vrot.lane.b32.xlu0 %v4831, 64
        %v5489 = vpop.permute.xlu0 %5488
        %5490 = vrot.lane.b32.xlu0 %v4832, 64
        %v5491 = vpop.permute.xlu0 %5490
        %5492 = vrot.lane.b32.xlu0 %v4833, 64
        %v5493 = vpop.permute.xlu0 %5492
        %5494 = vrot.lane.b32.xlu0 %v4834, 64
        %v5495 = vpop.permute.xlu0 %5494
        %5496 = vrot.lane.b32.xlu0 %v4835, 64
        %v5497 = vpop.permute.xlu0 %5496
        %5498 = vrot.lane.b32.xlu0 %v4836, 64
        %v5499 = vpop.permute.xlu0 %5498
        %5500 = vrot.lane.b32.xlu0 %v4837, 64
        %v5501 = vpop.permute.xlu0 %5500
        %5502 = vrot.lane.b32.xlu0 %v4838, 64
        %v5503 = vpop.permute.xlu0 %5502
        %5504 = vrot.lane.b32.xlu0 %v4839, 64
        %v5505 = vpop.permute.xlu0 %5504
        %5506 = vrot.lane.b32.xlu0 %v4840, 64
        %v5507 = vpop.permute.xlu0 %5506
        %5508 = vrot.lane.b32.xlu0 %v4841, 64
        %v5509 = vpop.permute.xlu0 %5508
        %5510 = vrot.lane.b32.xlu0 %v4842, 64
        %v5511 = vpop.permute.xlu0 %5510
        %5512 = vrot.lane.b32.xlu0 %v4843, 64
        %v5513 = vpop.permute.xlu0 %5512
        %5514 = vrot.lane.b32.xlu0 %v4844, 64
        %v5515 = vpop.permute.xlu0 %5514
        %5516 = vrot.lane.b32.xlu0 %v4845, 64
        %v5517 = vpop.permute.xlu0 %5516
        %5582 = vrot.lane.b32.xlu0 %v4846, 96
        %v5583 = vpop.permute.xlu0 %5582
        %5584 = vrot.lane.b32.xlu0 %v4847, 96
        %v5585 = vpop.permute.xlu0 %5584
        %5586 = vrot.lane.b32.xlu0 %v4848, 96
        %v5587 = vpop.permute.xlu0 %5586
        %5588 = vrot.lane.b32.xlu0 %v4849, 96
        %v5589 = vpop.permute.xlu0 %5588
        %5590 = vrot.lane.b32.xlu0 %v4850, 96
        %v5591 = vpop.permute.xlu0 %5590
        %5592 = vrot.lane.b32.xlu0 %v4851, 96
        %v5593 = vpop.permute.xlu0 %5592
        %5594 = vrot.lane.b32.xlu0 %v4852, 96
        %v5595 = vpop.permute.xlu0 %5594
        %5596 = vrot.lane.b32.xlu0 %v4853, 96
        %v5597 = vpop.permute.xlu0 %5596
        %5598 = vrot.lane.b32.xlu0 %v4854, 96
        %v5599 = vpop.permute.xlu0 %5598
        %5600 = vrot.lane.b32.xlu0 %v4855, 96
        %v5601 = vpop.permute.xlu0 %5600
        %5602 = vrot.lane.b32.xlu0 %v4856, 96
        %v5603 = vpop.permute.xlu0 %5602
        %5604 = vrot.lane.b32.xlu0 %v4857, 96
        %v5605 = vpop.permute.xlu0 %5604
        %5606 = vrot.lane.b32.xlu0 %v4858, 96
        %v5607 = vpop.permute.xlu0 %5606
        %5608 = vrot.lane.b32.xlu0 %v4859, 96
        %v5609 = vpop.permute.xlu0 %5608
        %5610 = vrot.lane.b32.xlu0 %v4860, 96
        %v5611 = vpop.permute.xlu0 %5610
        %5612 = vrot.lane.b32.xlu0 %v4861, 96
        %v5613 = vpop.permute.xlu0 %5612
        %5614 = vrot.lane.b32.xlu0 %v4862, 96
        %v5615 = vpop.permute.xlu0 %5614
        %5616 = vrot.lane.b32.xlu0 %v4863, 96
        %v5617 = vpop.permute.xlu0 %5616
        %5618 = vrot.lane.b32.xlu0 %v4864, 96
        %v5619 = vpop.permute.xlu0 %5618
        %5620 = vrot.lane.b32.xlu0 %v4865, 96
        %v5621 = vpop.permute.xlu0 %5620
        %5622 = vrot.lane.b32.xlu0 %v4866, 96
        %v5623 = vpop.permute.xlu0 %5622
        %5624 = vrot.lane.b32.xlu0 %v4867, 96
        %v5625 = vpop.permute.xlu0 %5624
        %5626 = vrot.lane.b32.xlu0 %v4868, 96
        %v5627 = vpop.permute.xlu0 %5626
        %5628 = vrot.lane.b32.xlu0 %v4869, 96
        %v5629 = vpop.permute.xlu0 %5628
        %5630 = vrot.lane.b32.xlu0 %v4870, 96
        %v5631 = vpop.permute.xlu0 %5630
        %5632 = vrot.lane.b32.xlu0 %v4871, 96
        %v5633 = vpop.permute.xlu0 %5632
        %5634 = vrot.lane.b32.xlu0 %v4872, 96
        %v5635 = vpop.permute.xlu0 %5634
        %5636 = vrot.lane.b32.xlu0 %v4873, 96
        %v5637 = vpop.permute.xlu0 %5636
        %5638 = vrot.lane.b32.xlu0 %v4874, 96
        %v5639 = vpop.permute.xlu0 %5638
        %5640 = vrot.lane.b32.xlu0 %v4875, 96
        %v5641 = vpop.permute.xlu0 %5640
        %5642 = vrot.lane.b32.xlu0 %v4876, 96
        %v5643 = vpop.permute.xlu0 %5642
        %5644 = vrot.lane.b32.xlu0 %v4877, 96
        %v5645 = vpop.permute.xlu0 %5644
        %v5678 = vsel %vm386, %v4622, %v4943
        %v5679 = vsel %vm386, %v4623, %v4945
        %v5680 = vsel %vm386, %v4624, %v4947
        %v5681 = vsel %vm386, %v4625, %v4949
        %v5682 = vsel %vm386, %v4626, %v4951
        %v5683 = vsel %vm386, %v4627, %v4953
        %v5684 = vsel %vm386, %v4628, %v4955
        %v5685 = vsel %vm386, %v4629, %v4957
        %v5686 = vsel %vm386, %v4630, %v4959
        %v5687 = vsel %vm386, %v4631, %v4961
        %v5688 = vsel %vm386, %v4632, %v4963
        %v5689 = vsel %vm386, %v4633, %v4965
        %v5690 = vsel %vm386, %v4634, %v4967
        %v5691 = vsel %vm386, %v4635, %v4969
        %v5692 = vsel %vm386, %v4636, %v4971
        %v5693 = vsel %vm386, %v4637, %v4973
        %v5694 = vsel %vm386, %v4638, %v4975
        %v5695 = vsel %vm386, %v4639, %v4977
        %v5696 = vsel %vm386, %v4640, %v4979
        %v5697 = vsel %vm386, %v4641, %v4981
        %v5698 = vsel %vm386, %v4642, %v4983
        %v5699 = vsel %vm386, %v4643, %v4985
        %v5700 = vsel %vm386, %v4644, %v4987
        %v5701 = vsel %vm386, %v4645, %v4989
        %v5702 = vsel %vm386, %v4646, %v4991
        %v5703 = vsel %vm386, %v4647, %v4993
        %v5704 = vsel %vm386, %v4648, %v4995
        %v5705 = vsel %vm386, %v4649, %v4997
        %v5706 = vsel %vm386, %v4650, %v4999
        %v5707 = vsel %vm386, %v4651, %v5001
        %v5708 = vsel %vm386, %v4652, %v5003
        %v5709 = vsel %vm386, %v4653, %v5005
        %v5710 = vsel %vm1670, %v5678, %v5071
        %v5711 = vsel %vm1670, %v5679, %v5073
        %v5712 = vsel %vm1670, %v5680, %v5075
        %v5713 = vsel %vm1670, %v5681, %v5077
        %v5714 = vsel %vm1670, %v5682, %v5079
        %v5715 = vsel %vm1670, %v5683, %v5081
        %v5716 = vsel %vm1670, %v5684, %v5083
        %v5717 = vsel %vm1670, %v5685, %v5085
        %v5718 = vsel %vm1670, %v5686, %v5087
        %v5719 = vsel %vm1670, %v5687, %v5089
        %v5720 = vsel %vm1670, %v5688, %v5091
        %v5721 = vsel %vm1670, %v5689, %v5093
        %v5722 = vsel %vm1670, %v5690, %v5095
        %v5723 = vsel %vm1670, %v5691, %v5097
        %v5724 = vsel %vm1670, %v5692, %v5099
        %v5725 = vsel %vm1670, %v5693, %v5101
        %v5726 = vsel %vm1670, %v5694, %v5103
        %v5727 = vsel %vm1670, %v5695, %v5105
        %v5728 = vsel %vm1670, %v5696, %v5107
        %v5729 = vsel %vm1670, %v5697, %v5109
        %v5730 = vsel %vm1670, %v5698, %v5111
        %v5731 = vsel %vm1670, %v5699, %v5113
        %v5732 = vsel %vm1670, %v5700, %v5115
        %v5733 = vsel %vm1670, %v5701, %v5117
        %v5734 = vsel %vm1670, %v5702, %v5119
        %v5735 = vsel %vm1670, %v5703, %v5121
        %v5736 = vsel %vm1670, %v5704, %v5123
        %v5737 = vsel %vm1670, %v5705, %v5125
        %v5738 = vsel %vm1670, %v5706, %v5127
        %v5739 = vsel %vm1670, %v5707, %v5129
        %v5740 = vsel %vm1670, %v5708, %v5131
        %v5741 = vsel %vm1670, %v5709, %v5133
        %v5742 = vsel %vm1703, %v5710, %v5199
        %v5743 = vsel %vm1703, %v5711, %v5201
        %v5744 = vsel %vm1703, %v5712, %v5203
        %v5745 = vsel %vm1703, %v5713, %v5205
        %v5746 = vsel %vm1703, %v5714, %v5207
        %v5747 = vsel %vm1703, %v5715, %v5209
        %v5748 = vsel %vm1703, %v5716, %v5211
        %v5749 = vsel %vm1703, %v5717, %v5213
        %v5750 = vsel %vm1703, %v5718, %v5215
        %v5751 = vsel %vm1703, %v5719, %v5217
        %v5752 = vsel %vm1703, %v5720, %v5219
        %v5753 = vsel %vm1703, %v5721, %v5221
        %v5754 = vsel %vm1703, %v5722, %v5223
        %v5755 = vsel %vm1703, %v5723, %v5225
        %v5756 = vsel %vm1703, %v5724, %v5227
        %v5757 = vsel %vm1703, %v5725, %v5229
        %v5758 = vsel %vm1703, %v5726, %v5231
        %v5759 = vsel %vm1703, %v5727, %v5233
        %v5760 = vsel %vm1703, %v5728, %v5235
        %v5761 = vsel %vm1703, %v5729, %v5237
        %v5762 = vsel %vm1703, %v5730, %v5239
        %v5763 = vsel %vm1703, %v5731, %v5241
        %v5764 = vsel %vm1703, %v5732, %v5243
        %v5765 = vsel %vm1703, %v5733, %v5245
        %v5766 = vsel %vm1703, %v5734, %v5247
        %v5767 = vsel %vm1703, %v5735, %v5249
        %v5768 = vsel %vm1703, %v5736, %v5251
        %v5769 = vsel %vm1703, %v5737, %v5253
        %v5770 = vsel %vm1703, %v5738, %v5255
        %v5771 = vsel %vm1703, %v5739, %v5257
        %v5772 = vsel %vm1703, %v5740, %v5259
        %v5773 = vsel %vm1703, %v5741, %v5261
        %v5774 = vsel %vm386, %v4750, %v5327
        %v5775 = vsel %vm386, %v4751, %v5329
        %v5776 = vsel %vm386, %v4752, %v5331
        %v5777 = vsel %vm386, %v4753, %v5333
        %v5778 = vsel %vm386, %v4754, %v5335
        %v5779 = vsel %vm386, %v4755, %v5337
        %v5780 = vsel %vm386, %v4756, %v5339
        %v5781 = vsel %vm386, %v4757, %v5341
        %v5782 = vsel %vm386, %v4758, %v5343
        %v5783 = vsel %vm386, %v4759, %v5345
        %v5784 = vsel %vm386, %v4760, %v5347
        %v5785 = vsel %vm386, %v4761, %v5349
        %v5786 = vsel %vm386, %v4762, %v5351
        %v5787 = vsel %vm386, %v4763, %v5353
        %v5788 = vsel %vm386, %v4764, %v5355
        %v5789 = vsel %vm386, %v4765, %v5357
        %v5790 = vsel %vm386, %v4766, %v5359
        %v5791 = vsel %vm386, %v4767, %v5361
        %v5792 = vsel %vm386, %v4768, %v5363
        %v5793 = vsel %vm386, %v4769, %v5365
        %v5794 = vsel %vm386, %v4770, %v5367
        %v5795 = vsel %vm386, %v4771, %v5369
        %v5796 = vsel %vm386, %v4772, %v5371
        %v5797 = vsel %vm386, %v4773, %v5373
        %v5798 = vsel %vm386, %v4774, %v5375
        %v5799 = vsel %vm386, %v4775, %v5377
        %v5800 = vsel %vm386, %v4776, %v5379
        %v5801 = vsel %vm386, %v4777, %v5381
        %v5802 = vsel %vm386, %v4778, %v5383
        %v5803 = vsel %vm386, %v4779, %v5385
        %v5804 = vsel %vm386, %v4780, %v5387
        %v5805 = vsel %vm386, %v4781, %v5389
        %v5806 = vsel %vm1670, %v5774, %v5455
        %v5807 = vsel %vm1670, %v5775, %v5457
        %v5808 = vsel %vm1670, %v5776, %v5459
        %v5809 = vsel %vm1670, %v5777, %v5461
        %v5810 = vsel %vm1670, %v5778, %v5463
        %v5811 = vsel %vm1670, %v5779, %v5465
        %v5812 = vsel %vm1670, %v5780, %v5467
        %v5813 = vsel %vm1670, %v5781, %v5469
        %v5814 = vsel %vm1670, %v5782, %v5471
        %v5815 = vsel %vm1670, %v5783, %v5473
        %v5816 = vsel %vm1670, %v5784, %v5475
        %v5817 = vsel %vm1670, %v5785, %v5477
        %v5818 = vsel %vm1670, %v5786, %v5479
        %v5819 = vsel %vm1670, %v5787, %v5481
        %v5820 = vsel %vm1670, %v5788, %v5483
        %v5821 = vsel %vm1670, %v5789, %v5485
        %v5822 = vsel %vm1670, %v5790, %v5487
        %v5823 = vsel %vm1670, %v5791, %v5489
        %v5824 = vsel %vm1670, %v5792, %v5491
        %v5825 = vsel %vm1670, %v5793, %v5493
        %v5826 = vsel %vm1670, %v5794, %v5495
        %v5827 = vsel %vm1670, %v5795, %v5497
        %v5828 = vsel %vm1670, %v5796, %v5499
        %v5829 = vsel %vm1670, %v5797, %v5501
        %v5830 = vsel %vm1670, %v5798, %v5503
        %v5831 = vsel %vm1670, %v5799, %v5505
        %v5832 = vsel %vm1670, %v5800, %v5507
        %v5833 = vsel %vm1670, %v5801, %v5509
        %v5834 = vsel %vm1670, %v5802, %v5511
        %v5835 = vsel %vm1670, %v5803, %v5513
        %v5836 = vsel %vm1670, %v5804, %v5515
        %v5837 = vsel %vm1670, %v5805, %v5517
        %v5838 = vsel %vm1703, %v5806, %v5583
        %v5839 = vsel %vm1703, %v5807, %v5585
        %v5840 = vsel %vm1703, %v5808, %v5587
        %v5841 = vsel %vm1703, %v5809, %v5589
        %v5842 = vsel %vm1703, %v5810, %v5591
        %v5843 = vsel %vm1703, %v5811, %v5593
        %v5844 = vsel %vm1703, %v5812, %v5595
        %v5845 = vsel %vm1703, %v5813, %v5597
        %v5846 = vsel %vm1703, %v5814, %v5599
        %v5847 = vsel %vm1703, %v5815, %v5601
        %v5848 = vsel %vm1703, %v5816, %v5603
        %v5849 = vsel %vm1703, %v5817, %v5605
        %v5850 = vsel %vm1703, %v5818, %v5607
        %v5851 = vsel %vm1703, %v5819, %v5609
        %v5852 = vsel %vm1703, %v5820, %v5611
        %v5853 = vsel %vm1703, %v5821, %v5613
        %v5854 = vsel %vm1703, %v5822, %v5615
        %v5855 = vsel %vm1703, %v5823, %v5617
        %v5856 = vsel %vm1703, %v5824, %v5619
        %v5857 = vsel %vm1703, %v5825, %v5621
        %v5858 = vsel %vm1703, %v5826, %v5623
        %v5859 = vsel %vm1703, %v5827, %v5625
        %v5860 = vsel %vm1703, %v5828, %v5627
        %v5861 = vsel %vm1703, %v5829, %v5629
        %v5862 = vsel %vm1703, %v5830, %v5631
        %v5863 = vsel %vm1703, %v5831, %v5633
        %v5864 = vsel %vm1703, %v5832, %v5635
        %v5865 = vsel %vm1703, %v5833, %v5637
        %v5866 = vsel %vm1703, %v5834, %v5639
        %v5867 = vsel %vm1703, %v5835, %v5641
        %v5868 = vsel %vm1703, %v5836, %v5643
        %v5869 = vsel %vm1703, %v5837, %v5645
        %v5870 = vpack.c.bf16 %v5743, %v5742
        %v5871 = vpack.c.bf16 %v5839, %v5838
        %v5872 = vpack.c.bf16 %v4879, %v4878
        %v5873 = vpack.c.bf16 %v5745, %v5744
        %v5874 = vpack.c.bf16 %v5841, %v5840
        %v5875 = vpack.c.bf16 %v4881, %v4880
        %v5876 = vpack.c.bf16 %v5747, %v5746
        %v5877 = vpack.c.bf16 %v5843, %v5842
        %v5878 = vpack.c.bf16 %v4883, %v4882
        %v5879 = vpack.c.bf16 %v5749, %v5748
        %v5880 = vpack.c.bf16 %v5845, %v5844
        %v5881 = vpack.c.bf16 %v4885, %v4884
        %v5882 = vpack.c.bf16 %v5751, %v5750
        %v5883 = vpack.c.bf16 %v5847, %v5846
        %v5884 = vpack.c.bf16 %v4887, %v4886
        %v5885 = vpack.c.bf16 %v5753, %v5752
        %v5886 = vpack.c.bf16 %v5849, %v5848
        %v5887 = vpack.c.bf16 %v4889, %v4888
        %v5888 = vpack.c.bf16 %v5755, %v5754
        %v5889 = vpack.c.bf16 %v5851, %v5850
        %v5890 = vpack.c.bf16 %v4891, %v4890
        %v5891 = vpack.c.bf16 %v5757, %v5756
        %v5892 = vpack.c.bf16 %v5853, %v5852
        %v5893 = vpack.c.bf16 %v4893, %v4892
        %v5894 = vpack.c.bf16 %v5759, %v5758
        %v5895 = vpack.c.bf16 %v5855, %v5854
        %v5896 = vpack.c.bf16 %v4895, %v4894
        %v5897 = vpack.c.bf16 %v5761, %v5760
        %v5898 = vpack.c.bf16 %v5857, %v5856
        %v5899 = vpack.c.bf16 %v4897, %v4896
        %v5900 = vpack.c.bf16 %v5763, %v5762
        %v5901 = vpack.c.bf16 %v5859, %v5858
        %v5902 = vpack.c.bf16 %v4899, %v4898
        %v5903 = vpack.c.bf16 %v5765, %v5764
        %v5904 = vpack.c.bf16 %v5861, %v5860
        %v5905 = vpack.c.bf16 %v4901, %v4900
        %v5906 = vpack.c.bf16 %v5767, %v5766
        %v5907 = vpack.c.bf16 %v5863, %v5862
        %v5908 = vpack.c.bf16 %v4903, %v4902
        %v5909 = vpack.c.bf16 %v5769, %v5768
        %v5910 = vpack.c.bf16 %v5865, %v5864
        %v5911 = vpack.c.bf16 %v4905, %v4904
        %v5912 = vpack.c.bf16 %v5771, %v5770
        %v5913 = vpack.c.bf16 %v5867, %v5866
        %v5914 = vpack.c.bf16 %v4907, %v4906
        %v5915 = vpack.c.bf16 %v5773, %v5772
        %v5916 = vpack.c.bf16 %v5869, %v5868
        %v5917 = vpack.c.bf16 %v4909, %v4908
        %v5919 = vlaneseq
        %v5920 = vshrl.u32 %v5919, 7
        %v5921 = vsub.s32 0, %v5920
        %v5922 = vrot.slane %v4550, %v5921
        %v5960 = vunpack.c.l.b16 %v4513
        %v5961 = vunpack.c.l.b16 %v4514
        %v5962 = vunpack.c.l.b16 %v4515
        %v5963 = vunpack.c.l.b16 %v4516
        %v5964 = vunpack.c.l.b16 %v4517
        %v5965 = vunpack.c.l.b16 %v4518
        %v5966 = vunpack.c.l.b16 %v4519
        %v5967 = vunpack.c.l.b16 %v4520
        %v5968 = vunpack.c.l.b16 %v4521
        %v5969 = vunpack.c.l.b16 %v4522
        %v5970 = vunpack.c.l.b16 %v4523
        %v5971 = vunpack.c.l.b16 %v4524
        %v5972 = vunpack.c.l.b16 %v4525
        %v5973 = vunpack.c.l.b16 %v4526
        %v5974 = vunpack.c.l.b16 %v4527
        %v5975 = vunpack.c.l.b16 %v4528
        %v5976 = vunpack.c.l.b16 %v4529
        %v5977 = vunpack.c.l.b16 %v4530
        %v5978 = vunpack.c.l.b16 %v4531
        %v5979 = vunpack.c.l.b16 %v4532
        %v5980 = vunpack.c.l.b16 %v4533
        %v5981 = vunpack.c.l.b16 %v4534
        %v5982 = vunpack.c.l.b16 %v4535
        %v5983 = vunpack.c.l.b16 %v4536
        %v5984 = vunpack.c.l.b16 %v4537
        %v5985 = vunpack.c.l.b16 %v4538
        %v5986 = vunpack.c.l.b16 %v4539
        %v5987 = vunpack.c.l.b16 %v4540
        %v5988 = vunpack.c.l.b16 %v4541
        %v5989 = vunpack.c.l.b16 %v4542
        %v5990 = vunpack.c.l.b16 %v4543
        %v5991 = vunpack.c.l.b16 %v4544
        %v5992 = vunpack.c.l.b16 %v4545
        %v5993 = vunpack.c.l.b16 %v4546
        %v5994 = vunpack.c.l.b16 %v4547
        %v5995 = vunpack.c.l.b16 %v4548
        %v5996 = vpack.c.b16 %v5961, %v5960
        %v5997 = vpack.c.b16 %v5963, %v5962
        %v5998 = vpack.c.b16 %v5965, %v5964
        %v5999 = vpack.c.b16 %v5967, %v5966
        %v6000 = vpack.c.b16 %v5969, %v5968
        %v6001 = vpack.c.b16 %v5971, %v5970
        %v6002 = vpack.c.b16 %v5973, %v5972
        %v6003 = vpack.c.b16 %v5975, %v5974
        %v6004 = vpack.c.b16 %v5977, %v5976
        %v6005 = vpack.c.b16 %v5979, %v5978
        %v6006 = vpack.c.b16 %v5981, %v5980
        %v6007 = vpack.c.b16 %v5983, %v5982
        %v6008 = vpack.c.b16 %v5985, %v5984
        %v6009 = vpack.c.b16 %v5987, %v5986
        %v6010 = vpack.c.b16 %v5989, %v5988
        %v6011 = vpack.c.b16 %v5991, %v5990
        %v6012 = vpack.c.b16 %v5993, %v5992
        %v6013 = vpack.c.b16 %v5995, %v5994
        %v6033 = vsel %vm386, %v5872, 0
        %v6036 = vsel %vm386, %v5875, 0
        %v6039 = vsel %vm386, %v5878, 0
        %v6042 = vsel %vm386, %v5881, 0
        %v6045 = vsel %vm386, %v5884, 0
        %v6048 = vsel %vm386, %v5887, 0
        %v6051 = vsel %vm386, %v5890, 0
        %v6054 = vsel %vm386, %v5893, 0
        %v6057 = vsel %vm386, %v5896, 0
        %v6060 = vsel %vm386, %v5899, 0
        %v6063 = vsel %vm386, %v5902, 0
        %v6066 = vsel %vm386, %v5905, 0
        %v6069 = vsel %vm386, %v5908, 0
        %v6072 = vsel %vm386, %v5911, 0
        %v6075 = vsel %vm386, %v5914, 0
        %v6078 = vsel %vm386, %v5917, 0
        %6080 = vmatprep.subr.bf16.mxu0 0
        %6081 = vmatpush1.bf16.msra.mxu0 %v5996
        %6082 = vmatprep.subr.bf16.mxu0 0
        %6083 = vmatpush1.bf16.msra.mxu0 %v5997
        %6084 = vmatprep.subr.bf16.mxu0 0
        %6085 = vmatpush1.bf16.msra.mxu0 %v5998
        %6086 = vmatprep.subr.bf16.mxu0 0
        %6087 = vmatpush1.bf16.msra.mxu0 %v5999
        %6088 = vmatprep.subr.bf16.mxu0 0
        %6089 = vmatpush1.bf16.msra.mxu0 %v6000
        %6090 = vmatprep.subr.bf16.mxu0 0
        %6091 = vmatpush1.bf16.msra.mxu0 %v6001
        %6092 = vmatprep.subr.bf16.mxu0 0
        %6093 = vmatpush1.bf16.msra.mxu0 %v6002
        %6094 = vmatprep.subr.bf16.mxu0 0
        %6095 = vmatpush1.bf16.msra.mxu0 %v6003
        %6096 = vmatprep.subr.bf16.mxu0 0
        %6097 = vmatpush1.bf16.msra.mxu0 %v6004
        %6098 = vmatprep.subr.bf16.mxu0 0
        %6099 = vmatpush1.bf16.msra.mxu0 %v6005
        %6100 = vmatprep.subr.bf16.mxu0 0
        %6101 = vmatpush1.bf16.msra.mxu0 %v6006
        %6102 = vmatprep.subr.bf16.mxu0 0
        %6103 = vmatpush1.bf16.msra.mxu0 %v6007
        %6104 = vmatprep.subr.bf16.mxu0 0
        %6105 = vmatpush1.bf16.msra.mxu0 %v6008
        %6106 = vmatprep.subr.bf16.mxu0 0
        %6107 = vmatpush1.bf16.msra.mxu0 %v6009
        %6108 = vmatprep.subr.bf16.mxu0 0
        %6109 = vmatpush1.bf16.msra.mxu0 %v6010
        %6110 = vmatprep.subr.bf16.mxu0 0
        %6111 = vmatpush1.bf16.msra.mxu0 %v6011
        %6112 = vmatprep.mubr.bf16.mxu0 %v5871
        %6113 = vmatmul.mubr.bf16.gmra.mrb[0].mxu0 %v5870
        %v6114 = vpop.f32.mrb[0].mxu0
        %v6115 = vadd.f32 %v5922, %v6114
        %v6116 = vpop.f32.mrb[0].mxu0
        %v6117 = vpop.f32.mrb[0].mxu0
        %v6118 = vadd.f32 %v5922, %v6117
        %v6119 = vpop.f32.mrb[0].mxu0
        %6120 = vmatprep.mubr.bf16.mxu0 %v5874
        %6121 = vmatmul.mubr.bf16.gmra.mrb[0].mxu0 %v5873
        %v6122 = vpop.f32.mrb[0].mxu0
        %v6123 = vadd.f32 %v5922, %v6122
        %v6124 = vpop.f32.mrb[0].mxu0
        %v6125 = vpop.f32.mrb[0].mxu0
        %v6126 = vadd.f32 %v5922, %v6125
        %v6127 = vpop.f32.mrb[0].mxu0
        %6128 = vmatprep.mubr.bf16.mxu0 %v5877
        %6129 = vmatmul.mubr.bf16.gmra.mrb[0].mxu0 %v5876
        %v6130 = vpop.f32.mrb[0].mxu0
        %v6131 = vadd.f32 %v5922, %v6130
        %v6132 = vpop.f32.mrb[0].mxu0
        %v6133 = vpop.f32.mrb[0].mxu0
        %v6134 = vadd.f32 %v5922, %v6133
        %v6135 = vpop.f32.mrb[0].mxu0
        %6136 = vmatprep.mubr.bf16.mxu0 %v5880
        %6137 = vmatmul.mubr.bf16.gmra.mrb[0].mxu0 %v5879
        %v6138 = vpop.f32.mrb[0].mxu0
        %v6139 = vadd.f32 %v5922, %v6138
        %v6140 = vpop.f32.mrb[0].mxu0
        %v6141 = vpop.f32.mrb[0].mxu0
        %v6142 = vadd.f32 %v5922, %v6141
        %v6143 = vpop.f32.mrb[0].mxu0
        %6144 = vmatprep.mubr.bf16.mxu0 %v5883
        %6145 = vmatmul.mubr.bf16.gmra.mrb[0].mxu0 %v5882
        %v6146 = vpop.f32.mrb[0].mxu0
        %v6147 = vadd.f32 %v5922, %v6146
        %v6148 = vpop.f32.mrb[0].mxu0
        %v6149 = vpop.f32.mrb[0].mxu0
        %v6150 = vadd.f32 %v5922, %v6149
        %v6151 = vpop.f32.mrb[0].mxu0
        %6152 = vmatprep.mubr.bf16.mxu0 %v5886
        %6153 = vmatmul.mubr.bf16.gmra.mrb[0].mxu0 %v5885
        %v6154 = vpop.f32.mrb[0].mxu0
        %v6155 = vadd.f32 %v5922, %v6154
        %v6156 = vpop.f32.mrb[0].mxu0
        %v6157 = vpop.f32.mrb[0].mxu0
        %v6158 = vadd.f32 %v5922, %v6157
        %v6159 = vpop.f32.mrb[0].mxu0
        %6160 = vmatprep.mubr.bf16.mxu0 %v5889
        %6161 = vmatmul.mubr.bf16.gmra.mrb[0].mxu0 %v5888
        %v6162 = vpop.f32.mrb[0].mxu0
        %v6163 = vadd.f32 %v5922, %v6162
        %v6164 = vpop.f32.mrb[0].mxu0
        %v6165 = vpop.f32.mrb[0].mxu0
        %v6166 = vadd.f32 %v5922, %v6165
        %v6167 = vpop.f32.mrb[0].mxu0
        %6168 = vmatprep.mubr.bf16.mxu0 %v5892
        %6169 = vmatmul.mubr.bf16.gmra.mrb[0].mxu0 %v5891
        %v6170 = vpop.f32.mrb[0].mxu0
        %v6171 = vadd.f32 %v5922, %v6170
        %v6172 = vpop.f32.mrb[0].mxu0
        %v6173 = vpop.f32.mrb[0].mxu0
        %v6174 = vadd.f32 %v5922, %v6173
        %v6175 = vpop.f32.mrb[0].mxu0
        %6176 = vmatprep.mubr.bf16.mxu0 %v5895
        %6177 = vmatmul.mubr.bf16.gmra.mrb[0].mxu0 %v5894
        %v6178 = vpop.f32.mrb[0].mxu0
        %v6179 = vadd.f32 %v5922, %v6178
        %v6180 = vpop.f32.mrb[0].mxu0
        %v6181 = vpop.f32.mrb[0].mxu0
        %v6182 = vadd.f32 %v5922, %v6181
        %v6183 = vpop.f32.mrb[0].mxu0
        %6184 = vmatprep.mubr.bf16.mxu0 %v5898
        %6185 = vmatmul.mubr.bf16.gmra.mrb[0].mxu0 %v5897
        %v6186 = vpop.f32.mrb[0].mxu0
        %v6187 = vadd.f32 %v5922, %v6186
        %v6188 = vpop.f32.mrb[0].mxu0
        %v6189 = vpop.f32.mrb[0].mxu0
        %v6190 = vadd.f32 %v5922, %v6189
        %v6191 = vpop.f32.mrb[0].mxu0
        %6192 = vmatprep.mubr.bf16.mxu0 %v5901
        %6193 = vmatmul.mubr.bf16.gmra.mrb[0].mxu0 %v5900
        %v6194 = vpop.f32.mrb[0].mxu0
        %v6195 = vadd.f32 %v5922, %v6194
        %v6196 = vpop.f32.mrb[0].mxu0
        %v6197 = vpop.f32.mrb[0].mxu0
        %v6198 = vadd.f32 %v5922, %v6197
        %v6199 = vpop.f32.mrb[0].mxu0
        %6200 = vmatprep.mubr.bf16.mxu0 %v5904
        %6201 = vmatmul.mubr.bf16.gmra.mrb[0].mxu0 %v5903
        %v6202 = vpop.f32.mrb[0].mxu0
        %v6203 = vadd.f32 %v5922, %v6202
        %v6204 = vpop.f32.mrb[0].mxu0
        %v6205 = vpop.f32.mrb[0].mxu0
        %v6206 = vadd.f32 %v5922, %v6205
        %v6207 = vpop.f32.mrb[0].mxu0
        %6208 = vmatprep.mubr.bf16.mxu0 %v5907
        %6209 = vmatmul.mubr.bf16.gmra.mrb[0].mxu0 %v5906
        %v6210 = vpop.f32.mrb[0].mxu0
        %v6211 = vadd.f32 %v5922, %v6210
        %v6212 = vpop.f32.mrb[0].mxu0
        %v6213 = vpop.f32.mrb[0].mxu0
        %v6214 = vadd.f32 %v5922, %v6213
        %v6215 = vpop.f32.mrb[0].mxu0
        %6216 = vmatprep.mubr.bf16.mxu0 %v5910
        %6217 = vmatmul.mubr.bf16.gmra.mrb[0].mxu0 %v5909
        %v6218 = vpop.f32.mrb[0].mxu0
        %v6219 = vadd.f32 %v5922, %v6218
        %v6220 = vpop.f32.mrb[0].mxu0
        %v6221 = vpop.f32.mrb[0].mxu0
        %v6222 = vadd.f32 %v5922, %v6221
        %v6223 = vpop.f32.mrb[0].mxu0
        %6224 = vmatprep.mubr.bf16.mxu0 %v5913
        %6225 = vmatmul.mubr.bf16.gmra.mrb[0].mxu0 %v5912
        %v6226 = vpop.f32.mrb[0].mxu0
        %v6227 = vadd.f32 %v5922, %v6226
        %v6228 = vpop.f32.mrb[0].mxu0
        %v6229 = vpop.f32.mrb[0].mxu0
        %v6230 = vadd.f32 %v5922, %v6229
        %v6231 = vpop.f32.mrb[0].mxu0
        %6232 = vmatprep.mubr.bf16.mxu0 %v5916
        %6233 = vmatmul.mubr.bf16.gmra.mrb[0].mxu0 %v5915
        %v6234 = vpop.f32.mrb[0].mxu0
        %v6235 = vadd.f32 %v5922, %v6234
        %v6236 = vpop.f32.mrb[0].mxu0
        %v6237 = vpop.f32.mrb[0].mxu0
        %v6238 = vadd.f32 %v5922, %v6237
        %v6239 = vpop.f32.mrb[0].mxu0
        %6240 = vdwg.mxu0
        %6241 = vmatprep.subr.bf16.mxu0 0
        %6242 = vmatpush1.bf16.msra.mxu0 %v6012
        %6243 = vmatprep.subr.bf16.mxu0 0
        %6244 = vmatpush1.bf16.msra.mxu0 %v6013
        %6245 = vmatprep.subr.bf16.mxu0 0
        %6246 = vmatpush1.bf16.msra.mxu0 0
        %6247 = vmatprep.subr.bf16.mxu0 0
        %6248 = vmatpush1.bf16.msra.mxu0 0
        %6249 = vmatprep.subr.bf16.mxu0 0
        %6250 = vmatpush1.bf16.msra.mxu0 0
        %6251 = vmatprep.subr.bf16.mxu0 0
        %6252 = vmatpush1.bf16.msra.mxu0 0
        %6253 = vmatprep.subr.bf16.mxu0 0
        %6254 = vmatpush1.bf16.msra.mxu0 0
        %6255 = vmatprep.subr.bf16.mxu0 0
        %6256 = vmatpush1.bf16.msra.mxu0 0
        %6257 = vmatprep.subr.bf16.mxu0 0
        %6258 = vmatpush1.bf16.msra.mxu0 0
        %6259 = vmatprep.subr.bf16.mxu0 0
        %6260 = vmatpush1.bf16.msra.mxu0 0
        %6261 = vmatprep.subr.bf16.mxu0 0
        %6262 = vmatpush1.bf16.msra.mxu0 0
        %6263 = vmatprep.subr.bf16.mxu0 0
        %6264 = vmatpush1.bf16.msra.mxu0 0
        %6265 = vmatprep.subr.bf16.mxu0 0
        %6266 = vmatpush1.bf16.msra.mxu0 0
        %6267 = vmatprep.subr.bf16.mxu0 0
        %6268 = vmatpush1.bf16.msra.mxu0 0
        %6269 = vmatprep.subr.bf16.mxu0 0
        %6270 = vmatpush1.bf16.msra.mxu0 0
        %6271 = vmatprep.subr.bf16.mxu0 0
        %6272 = vmatpush1.bf16.msra.mxu0 0
        %6273 = vmatprep.mubr.bf16.mxu0 0
        %6274 = vmatmul.mubr.bf16.gmra.mrb[0].mxu0 %v6033
        %v6275 = vpop.f32.mrb[0].mxu0
        %v6276 = vadd.f32 %v6115, %v6275
        %v6277 = vpop.f32.mrb[0].mxu0
        %v6278 = vpop.f32.mrb[0].mxu0
        %v6279 = vadd.f32 %v6118, %v6278
        %v6280 = vpop.f32.mrb[0].mxu0
        %6281 = vmatprep.mubr.bf16.mxu0 0
        %6282 = vmatmul.mubr.bf16.gmra.mrb[0].mxu0 %v6036
        %v6283 = vpop.f32.mrb[0].mxu0
        %v6284 = vadd.f32 %v6123, %v6283
        %v6285 = vpop.f32.mrb[0].mxu0
        %v6286 = vpop.f32.mrb[0].mxu0
        %v6287 = vadd.f32 %v6126, %v6286
        %v6288 = vpop.f32.mrb[0].mxu0
        %6289 = vmatprep.mubr.bf16.mxu0 0
        %6290 = vmatmul.mubr.bf16.gmra.mrb[0].mxu0 %v6039
        %v6291 = vpop.f32.mrb[0].mxu0
        %v6292 = vadd.f32 %v6131, %v6291
        %v6293 = vpop.f32.mrb[0].mxu0
        %v6294 = vpop.f32.mrb[0].mxu0
        %v6295 = vadd.f32 %v6134, %v6294
        %v6296 = vpop.f32.mrb[0].mxu0
        %6297 = vmatprep.mubr.bf16.mxu0 0
        %6298 = vmatmul.mubr.bf16.gmra.mrb[0].mxu0 %v6042
        %v6299 = vpop.f32.mrb[0].mxu0
        %v6300 = vadd.f32 %v6139, %v6299
        %v6301 = vpop.f32.mrb[0].mxu0
        %v6302 = vpop.f32.mrb[0].mxu0
        %v6303 = vadd.f32 %v6142, %v6302
        %v6304 = vpop.f32.mrb[0].mxu0
        %6305 = vmatprep.mubr.bf16.mxu0 0
        %6306 = vmatmul.mubr.bf16.gmra.mrb[0].mxu0 %v6045
        %v6307 = vpop.f32.mrb[0].mxu0
        %v6308 = vadd.f32 %v6147, %v6307
        %v6309 = vpop.f32.mrb[0].mxu0
        %v6310 = vpop.f32.mrb[0].mxu0
        %v6311 = vadd.f32 %v6150, %v6310
        %v6312 = vpop.f32.mrb[0].mxu0
        %6313 = vmatprep.mubr.bf16.mxu0 0
        %6314 = vmatmul.mubr.bf16.gmra.mrb[0].mxu0 %v6048
        %v6315 = vpop.f32.mrb[0].mxu0
        %v6316 = vadd.f32 %v6155, %v6315
        %v6317 = vpop.f32.mrb[0].mxu0
        %v6318 = vpop.f32.mrb[0].mxu0
        %v6319 = vadd.f32 %v6158, %v6318
        %v6320 = vpop.f32.mrb[0].mxu0
        %6321 = vmatprep.mubr.bf16.mxu0 0
        %6322 = vmatmul.mubr.bf16.gmra.mrb[0].mxu0 %v6051
        %v6323 = vpop.f32.mrb[0].mxu0
        %v6324 = vadd.f32 %v6163, %v6323
        %v6325 = vpop.f32.mrb[0].mxu0
        %v6326 = vpop.f32.mrb[0].mxu0
        %v6327 = vadd.f32 %v6166, %v6326
        %v6328 = vpop.f32.mrb[0].mxu0
        %6329 = vmatprep.mubr.bf16.mxu0 0
        %6330 = vmatmul.mubr.bf16.gmra.mrb[0].mxu0 %v6054
        %v6331 = vpop.f32.mrb[0].mxu0
        %v6332 = vadd.f32 %v6171, %v6331
        %v6333 = vpop.f32.mrb[0].mxu0
        %v6334 = vpop.f32.mrb[0].mxu0
        %v6335 = vadd.f32 %v6174, %v6334
        %v6336 = vpop.f32.mrb[0].mxu0
        %6337 = vmatprep.mubr.bf16.mxu0 0
        %6338 = vmatmul.mubr.bf16.gmra.mrb[0].mxu0 %v6057
        %v6339 = vpop.f32.mrb[0].mxu0
        %v6340 = vadd.f32 %v6179, %v6339
        %v6341 = vpop.f32.mrb[0].mxu0
        %v6342 = vpop.f32.mrb[0].mxu0
        %v6343 = vadd.f32 %v6182, %v6342
        %v6344 = vpop.f32.mrb[0].mxu0
        %6345 = vmatprep.mubr.bf16.mxu0 0
        %6346 = vmatmul.mubr.bf16.gmra.mrb[0].mxu0 %v6060
        %v6347 = vpop.f32.mrb[0].mxu0
        %v6348 = vadd.f32 %v6187, %v6347
        %v6349 = vpop.f32.mrb[0].mxu0
        %v6350 = vpop.f32.mrb[0].mxu0
        %v6351 = vadd.f32 %v6190, %v6350
        %v6352 = vpop.f32.mrb[0].mxu0
        %6353 = vmatprep.mubr.bf16.mxu0 0
        %6354 = vmatmul.mubr.bf16.gmra.mrb[0].mxu0 %v6063
        %v6355 = vpop.f32.mrb[0].mxu0
        %v6356 = vadd.f32 %v6195, %v6355
        %v6357 = vpop.f32.mrb[0].mxu0
        %v6358 = vpop.f32.mrb[0].mxu0
        %v6359 = vadd.f32 %v6198, %v6358
        %v6360 = vpop.f32.mrb[0].mxu0
        %6361 = vmatprep.mubr.bf16.mxu0 0
        %6362 = vmatmul.mubr.bf16.gmra.mrb[0].mxu0 %v6066
        %v6363 = vpop.f32.mrb[0].mxu0
        %v6364 = vadd.f32 %v6203, %v6363
        %v6365 = vpop.f32.mrb[0].mxu0
        %v6366 = vpop.f32.mrb[0].mxu0
        %v6367 = vadd.f32 %v6206, %v6366
        %v6368 = vpop.f32.mrb[0].mxu0
        %6369 = vmatprep.mubr.bf16.mxu0 0
        %6370 = vmatmul.mubr.bf16.gmra.mrb[0].mxu0 %v6069
        %v6371 = vpop.f32.mrb[0].mxu0
        %v6372 = vadd.f32 %v6211, %v6371
        %v6373 = vpop.f32.mrb[0].mxu0
        %v6374 = vpop.f32.mrb[0].mxu0
        %v6375 = vadd.f32 %v6214, %v6374
        %v6376 = vpop.f32.mrb[0].mxu0
        %6377 = vmatprep.mubr.bf16.mxu0 0
        %6378 = vmatmul.mubr.bf16.gmra.mrb[0].mxu0 %v6072
        %v6379 = vpop.f32.mrb[0].mxu0
        %v6380 = vadd.f32 %v6219, %v6379
        %v6381 = vpop.f32.mrb[0].mxu0
        %v6382 = vpop.f32.mrb[0].mxu0
        %v6383 = vadd.f32 %v6222, %v6382
        %v6384 = vpop.f32.mrb[0].mxu0
        %6385 = vmatprep.mubr.bf16.mxu0 0
        %6386 = vmatmul.mubr.bf16.gmra.mrb[0].mxu0 %v6075
        %v6387 = vpop.f32.mrb[0].mxu0
        %v6388 = vadd.f32 %v6227, %v6387
        %v6389 = vpop.f32.mrb[0].mxu0
        %v6390 = vpop.f32.mrb[0].mxu0
        %v6391 = vadd.f32 %v6230, %v6390
        %v6392 = vpop.f32.mrb[0].mxu0
        %6393 = vmatprep.mubr.bf16.mxu0 0
        %6394 = vmatmul.mubr.bf16.gmra.mrb[0].mxu0 %v6078
        %v6395 = vpop.f32.mrb[0].mxu0
        %v6396 = vadd.f32 %v6235, %v6395
        %v6397 = vpop.f32.mrb[0].mxu0
        %v6398 = vpop.f32.mrb[0].mxu0
        %v6399 = vadd.f32 %v6238, %v6398
        %v6400 = vpop.f32.mrb[0].mxu0
        %6401 = vdwg.mxu0
        %v6402 = vmax.f32 %v6276, 0.0
        %v6403 = vmax.f32 %v6279, 0.0
        %v6404 = vmax.f32 %v6284, 0.0
        %v6405 = vmax.f32 %v6287, 0.0
        %v6406 = vmax.f32 %v6292, 0.0
        %v6407 = vmax.f32 %v6295, 0.0
        %v6408 = vmax.f32 %v6300, 0.0
        %v6409 = vmax.f32 %v6303, 0.0
        %v6410 = vmax.f32 %v6308, 0.0
        %v6411 = vmax.f32 %v6311, 0.0
        %v6412 = vmax.f32 %v6316, 0.0
        %v6413 = vmax.f32 %v6319, 0.0
        %v6414 = vmax.f32 %v6324, 0.0
        %v6415 = vmax.f32 %v6327, 0.0
        %v6416 = vmax.f32 %v6332, 0.0
        %v6417 = vmax.f32 %v6335, 0.0
        %v6418 = vmax.f32 %v6340, 0.0
        %v6419 = vmax.f32 %v6343, 0.0
        %v6420 = vmax.f32 %v6348, 0.0
        %v6421 = vmax.f32 %v6351, 0.0
        %v6422 = vmax.f32 %v6356, 0.0
        %v6423 = vmax.f32 %v6359, 0.0
        %v6424 = vmax.f32 %v6364, 0.0
        %v6425 = vmax.f32 %v6367, 0.0
        %v6426 = vmax.f32 %v6372, 0.0
        %v6427 = vmax.f32 %v6375, 0.0
        %v6428 = vmax.f32 %v6380, 0.0
        %v6429 = vmax.f32 %v6383, 0.0
        %v6430 = vmax.f32 %v6388, 0.0
        %v6431 = vmax.f32 %v6391, 0.0
        %v6432 = vmax.f32 %v6396, 0.0
        %v6433 = vmax.f32 %v6399, 0.0
        %6434 = vst.msk [vmem:[%s548 + $0x1] sm:$0xff] %vm386, %v6402
        %6435 = vst.msk [vmem:[%s548 + $0x9] sm:$0xff] %vm386, %v6403
        %6436 = vst.msk [vmem:[%s548 + $0x19] sm:$0xff] %vm386, %v6404
        %6437 = vst.msk [vmem:[%s548 + $0x21] sm:$0xff] %vm386, %v6405
        %6438 = vst.msk [vmem:[%s548 + $0x31] sm:$0xff] %vm386, %v6406
        %6439 = vst.msk [vmem:[%s548 + $0x39] sm:$0xff] %vm386, %v6407
        %6440 = vst.msk [vmem:[%s548 + $0x49] sm:$0xff] %vm386, %v6408
        %6441 = vst.msk [vmem:[%s548 + $0x51] sm:$0xff] %vm386, %v6409
        %6442 = vst.msk [vmem:[%s548 + $0x61] sm:$0xff] %vm386, %v6410
        %6443 = vst.msk [vmem:[%s548 + $0x69] sm:$0xff] %vm386, %v6411
        %6444 = vst.msk [vmem:[%s548 + $0x79] sm:$0xff] %vm386, %v6412
        %6445 = vst.msk [vmem:[%s548 + $0x81] sm:$0xff] %vm386, %v6413
        %6446 = vst.msk [vmem:[%s548 + $0x91] sm:$0xff] %vm386, %v6414
        %6447 = vst.msk [vmem:[%s548 + $0x99] sm:$0xff] %vm386, %v6415
        %6448 = vst.msk [vmem:[%s548 + $0xa9] sm:$0xff] %vm386, %v6416
        %6449 = vst.msk [vmem:[%s548 + $0xb1] sm:$0xff] %vm386, %v6417
        %6450 = vst.msk [vmem:[%s548 + $0xc1] sm:$0xff] %vm386, %v6418
        %6451 = vst.msk [vmem:[%s548 + $0xc9] sm:$0xff] %vm386, %v6419
        %6452 = vst.msk [vmem:[%s548 + $0xd9] sm:$0xff] %vm386, %v6420
        %6453 = vst.msk [vmem:[%s548 + $0xe1] sm:$0xff] %vm386, %v6421
        %6454 = vst.msk [vmem:[%s548 + $0xf1] sm:$0xff] %vm386, %v6422
        %6455 = vst.msk [vmem:[%s548 + $0xf9] sm:$0xff] %vm386, %v6423
        %6456 = vst.msk [vmem:[%s548 + $0x109] sm:$0xff] %vm386, %v6424
        %6457 = vst.msk [vmem:[%s548 + $0x111] sm:$0xff] %vm386, %v6425
        %6458 = vst.msk [vmem:[%s548 + $0x121] sm:$0xff] %vm386, %v6426
        %6459 = vst.msk [vmem:[%s548 + $0x129] sm:$0xff] %vm386, %v6427
        %6460 = vst.msk [vmem:[%s548 + $0x139] sm:$0xff] %vm386, %v6428
        %6461 = vst.msk [vmem:[%s548 + $0x141] sm:$0xff] %vm386, %v6429
        %6462 = vst.msk [vmem:[%s548 + $0x151] sm:$0xff] %vm386, %v6430
        %6463 = vst.msk [vmem:[%s548 + $0x159] sm:$0xff] %vm386, %v6431
        %6464 = vst.msk [vmem:[%s548 + $0x169] sm:$0xff] %vm386, %v6432
        %6465 = vst.msk [vmem:[%s548 + $0x171] sm:$0xff] %vm386, %v6433
        %v6466 = vld [vmem:[#allocation2] sm:$0xff]
        %v6467 = vld [vmem:[#allocation2 + $0x8] sm:$0xff]
        %v6468 = vld [vmem:[#allocation2 + $0x18] sm:$0xff]
        %v6469 = vld [vmem:[#allocation2 + $0x20] sm:$0xff]
        %v6470 = vld [vmem:[#allocation2 + $0x30] sm:$0xff]
        %v6471 = vld [vmem:[#allocation2 + $0x38] sm:$0xff]
        %v6472 = vld [vmem:[#allocation2 + $0x48] sm:$0xff]
        %v6473 = vld [vmem:[#allocation2 + $0x50] sm:$0xff]
        %v6474 = vld [vmem:[#allocation2 + $0x60] sm:$0xff]
        %v6475 = vld [vmem:[#allocation2 + $0x68] sm:$0xff]
        %v6476 = vld [vmem:[#allocation2 + $0x78] sm:$0xff]
        %v6477 = vld [vmem:[#allocation2 + $0x80] sm:$0xff]
        %v6478 = vld [vmem:[#allocation2 + $0x90] sm:$0xff]
        %v6479 = vld [vmem:[#allocation2 + $0x98] sm:$0xff]
        %v6480 = vld [vmem:[#allocation2 + $0xa8] sm:$0xff]
        %v6481 = vld [vmem:[#allocation2 + $0xb0] sm:$0xff]
        %v6482 = vld [vmem:[#allocation2 + $0xc0] sm:$0xff]
        %v6483 = vld [vmem:[#allocation2 + $0xc8] sm:$0xff]
        %v6484 = vld [vmem:[#allocation2 + $0xd8] sm:$0xff]
        %v6485 = vld [vmem:[#allocation2 + $0xe0] sm:$0xff]
        %v6486 = vld [vmem:[#allocation2 + $0xf0] sm:$0xff]
        %v6487 = vld [vmem:[#allocation2 + $0xf8] sm:$0xff]
        %v6488 = vld [vmem:[#allocation2 + $0x108] sm:$0xff]
        %v6489 = vld [vmem:[#allocation2 + $0x110] sm:$0xff]
        %v6490 = vld [vmem:[#allocation2 + $0x120] sm:$0xff]
        %v6491 = vld [vmem:[#allocation2 + $0x128] sm:$0xff]
        %v6492 = vld [vmem:[#allocation2 + $0x138] sm:$0xff]
        %v6493 = vld [vmem:[#allocation2 + $0x140] sm:$0xff]
        %v6494 = vld [vmem:[#allocation2 + $0x150] sm:$0xff]
        %v6495 = vld [vmem:[#allocation2 + $0x158] sm:$0xff]
        %v6496 = vld [vmem:[#allocation2 + $0x168] sm:$0xff]
        %v6497 = vld [vmem:[#allocation2 + $0x170] sm:$0xff]
        %v6498 = vld [vmem:[#allocation2 + $0x1] sm:$0xff]
        %v6499 = vld [vmem:[#allocation2 + $0x9] sm:$0xff]
        %v6500 = vld [vmem:[#allocation2 + $0x19] sm:$0xff]
        %v6501 = vld [vmem:[#allocation2 + $0x21] sm:$0xff]
        %v6502 = vld [vmem:[#allocation2 + $0x31] sm:$0xff]
        %v6503 = vld [vmem:[#allocation2 + $0x39] sm:$0xff]
        %v6504 = vld [vmem:[#allocation2 + $0x49] sm:$0xff]
        %v6505 = vld [vmem:[#allocation2 + $0x51] sm:$0xff]
        %v6506 = vld [vmem:[#allocation2 + $0x61] sm:$0xff]
        %v6507 = vld [vmem:[#allocation2 + $0x69] sm:$0xff]
        %v6508 = vld [vmem:[#allocation2 + $0x79] sm:$0xff]
        %v6509 = vld [vmem:[#allocation2 + $0x81] sm:$0xff]
        %v6510 = vld [vmem:[#allocation2 + $0x91] sm:$0xff]
        %v6511 = vld [vmem:[#allocation2 + $0x99] sm:$0xff]
        %v6512 = vld [vmem:[#allocation2 + $0xa9] sm:$0xff]
        %v6513 = vld [vmem:[#allocation2 + $0xb1] sm:$0xff]
        %v6514 = vld [vmem:[#allocation2 + $0xc1] sm:$0xff]
        %v6515 = vld [vmem:[#allocation2 + $0xc9] sm:$0xff]
        %v6516 = vld [vmem:[#allocation2 + $0xd9] sm:$0xff]
        %v6517 = vld [vmem:[#allocation2 + $0xe1] sm:$0xff]
        %v6518 = vld [vmem:[#allocation2 + $0xf1] sm:$0xff]
        %v6519 = vld [vmem:[#allocation2 + $0xf9] sm:$0xff]
        %v6520 = vld [vmem:[#allocation2 + $0x109] sm:$0xff]
        %v6521 = vld [vmem:[#allocation2 + $0x111] sm:$0xff]
        %v6522 = vld [vmem:[#allocation2 + $0x121] sm:$0xff]
        %v6523 = vld [vmem:[#allocation2 + $0x129] sm:$0xff]
        %v6524 = vld [vmem:[#allocation2 + $0x139] sm:$0xff]
        %v6525 = vld [vmem:[#allocation2 + $0x141] sm:$0xff]
        %v6526 = vld [vmem:[#allocation2 + $0x151] sm:$0xff]
        %v6527 = vld [vmem:[#allocation2 + $0x159] sm:$0xff]
        %v6528 = vld [vmem:[#allocation2 + $0x169] sm:$0xff]
        %v6529 = vld [vmem:[#allocation2 + $0x171] sm:$0xff]
        %v6530 = vld [vmem:[#allocation2 + $0x2] sm:$0xff]
        %v6531 = vld [vmem:[#allocation2 + $0xa] sm:$0xff]
        %v6532 = vld [vmem:[#allocation2 + $0x1a] sm:$0xff]
        %v6533 = vld [vmem:[#allocation2 + $0x22] sm:$0xff]
        %v6534 = vld [vmem:[#allocation2 + $0x32] sm:$0xff]
        %v6535 = vld [vmem:[#allocation2 + $0x3a] sm:$0xff]
        %v6536 = vld [vmem:[#allocation2 + $0x4a] sm:$0xff]
        %v6537 = vld [vmem:[#allocation2 + $0x52] sm:$0xff]
        %v6538 = vld [vmem:[#allocation2 + $0x62] sm:$0xff]
        %v6539 = vld [vmem:[#allocation2 + $0x6a] sm:$0xff]
        %v6540 = vld [vmem:[#allocation2 + $0x7a] sm:$0xff]
        %v6541 = vld [vmem:[#allocation2 + $0x82] sm:$0xff]
        %v6542 = vld [vmem:[#allocation2 + $0x92] sm:$0xff]
        %v6543 = vld [vmem:[#allocation2 + $0x9a] sm:$0xff]
        %v6544 = vld [vmem:[#allocation2 + $0xaa] sm:$0xff]
        %v6545 = vld [vmem:[#allocation2 + $0xb2] sm:$0xff]
        %v6546 = vld [vmem:[#allocation2 + $0xc2] sm:$0xff]
        %v6547 = vld [vmem:[#allocation2 + $0xca] sm:$0xff]
        %v6548 = vld [vmem:[#allocation2 + $0xda] sm:$0xff]
        %v6549 = vld [vmem:[#allocation2 + $0xe2] sm:$0xff]
        %v6550 = vld [vmem:[#allocation2 + $0xf2] sm:$0xff]
        %v6551 = vld [vmem:[#allocation2 + $0xfa] sm:$0xff]
        %v6552 = vld [vmem:[#allocation2 + $0x10a] sm:$0xff]
        %v6553 = vld [vmem:[#allocation2 + $0x112] sm:$0xff]
        %v6554 = vld [vmem:[#allocation2 + $0x122] sm:$0xff]
        %v6555 = vld [vmem:[#allocation2 + $0x12a] sm:$0xff]
        %v6556 = vld [vmem:[#allocation2 + $0x13a] sm:$0xff]
        %v6557 = vld [vmem:[#allocation2 + $0x142] sm:$0xff]
        %v6558 = vld [vmem:[#allocation2 + $0x152] sm:$0xff]
        %v6559 = vld [vmem:[#allocation2 + $0x15a] sm:$0xff]
        %v6560 = vld [vmem:[#allocation2 + $0x16a] sm:$0xff]
        %v6561 = vld [vmem:[#allocation2 + $0x172] sm:$0xff]
        %v6562 = vld [vmem:[%s548] sm:$0xff]
        %v6563 = vld [vmem:[%s548 + $0x8] sm:$0xff]
        %v6564 = vld [vmem:[%s548 + $0x18] sm:$0xff]
        %v6565 = vld [vmem:[%s548 + $0x20] sm:$0xff]
        %v6566 = vld [vmem:[%s548 + $0x30] sm:$0xff]
        %v6567 = vld [vmem:[%s548 + $0x38] sm:$0xff]
        %v6568 = vld [vmem:[%s548 + $0x48] sm:$0xff]
        %v6569 = vld [vmem:[%s548 + $0x50] sm:$0xff]
        %v6570 = vld [vmem:[%s548 + $0x60] sm:$0xff]
        %v6571 = vld [vmem:[%s548 + $0x68] sm:$0xff]
        %v6572 = vld [vmem:[%s548 + $0x78] sm:$0xff]
        %v6573 = vld [vmem:[%s548 + $0x80] sm:$0xff]
        %v6574 = vld [vmem:[%s548 + $0x90] sm:$0xff]
        %v6575 = vld [vmem:[%s548 + $0x98] sm:$0xff]
        %v6576 = vld [vmem:[%s548 + $0xa8] sm:$0xff]
        %v6577 = vld [vmem:[%s548 + $0xb0] sm:$0xff]
        %v6578 = vld [vmem:[%s548 + $0xc0] sm:$0xff]
        %v6579 = vld [vmem:[%s548 + $0xc8] sm:$0xff]
        %v6580 = vld [vmem:[%s548 + $0xd8] sm:$0xff]
        %v6581 = vld [vmem:[%s548 + $0xe0] sm:$0xff]
        %v6582 = vld [vmem:[%s548 + $0xf0] sm:$0xff]
        %v6583 = vld [vmem:[%s548 + $0xf8] sm:$0xff]
        %v6584 = vld [vmem:[%s548 + $0x108] sm:$0xff]
        %v6585 = vld [vmem:[%s548 + $0x110] sm:$0xff]
        %v6586 = vld [vmem:[%s548 + $0x120] sm:$0xff]
        %v6587 = vld [vmem:[%s548 + $0x128] sm:$0xff]
        %v6588 = vld [vmem:[%s548 + $0x138] sm:$0xff]
        %v6589 = vld [vmem:[%s548 + $0x140] sm:$0xff]
        %v6590 = vld [vmem:[%s548 + $0x150] sm:$0xff]
        %v6591 = vld [vmem:[%s548 + $0x158] sm:$0xff]
        %v6592 = vld [vmem:[%s548 + $0x168] sm:$0xff]
        %v6593 = vld [vmem:[%s548 + $0x170] sm:$0xff]
        %v6594 = vld [vmem:[%s548 + $0x1] sm:$0xff]
        %v6595 = vld [vmem:[%s548 + $0x9] sm:$0xff]
        %v6596 = vld [vmem:[%s548 + $0x19] sm:$0xff]
        %v6597 = vld [vmem:[%s548 + $0x21] sm:$0xff]
        %v6598 = vld [vmem:[%s548 + $0x31] sm:$0xff]
        %v6599 = vld [vmem:[%s548 + $0x39] sm:$0xff]
        %v6600 = vld [vmem:[%s548 + $0x49] sm:$0xff]
        %v6601 = vld [vmem:[%s548 + $0x51] sm:$0xff]
        %v6602 = vld [vmem:[%s548 + $0x61] sm:$0xff]
        %v6603 = vld [vmem:[%s548 + $0x69] sm:$0xff]
        %v6604 = vld [vmem:[%s548 + $0x79] sm:$0xff]
        %v6605 = vld [vmem:[%s548 + $0x81] sm:$0xff]
        %v6606 = vld [vmem:[%s548 + $0x91] sm:$0xff]
        %v6607 = vld [vmem:[%s548 + $0x99] sm:$0xff]
        %v6608 = vld [vmem:[%s548 + $0xa9] sm:$0xff]
        %v6609 = vld [vmem:[%s548 + $0xb1] sm:$0xff]
        %v6610 = vld [vmem:[%s548 + $0xc1] sm:$0xff]
        %v6611 = vld [vmem:[%s548 + $0xc9] sm:$0xff]
        %v6612 = vld [vmem:[%s548 + $0xd9] sm:$0xff]
        %v6613 = vld [vmem:[%s548 + $0xe1] sm:$0xff]
        %v6614 = vld [vmem:[%s548 + $0xf1] sm:$0xff]
        %v6615 = vld [vmem:[%s548 + $0xf9] sm:$0xff]
        %v6616 = vld [vmem:[%s548 + $0x109] sm:$0xff]
        %v6617 = vld [vmem:[%s548 + $0x111] sm:$0xff]
        %v6618 = vld [vmem:[%s548 + $0x121] sm:$0xff]
        %v6619 = vld [vmem:[%s548 + $0x129] sm:$0xff]
        %v6620 = vld [vmem:[%s548 + $0x139] sm:$0xff]
        %v6621 = vld [vmem:[%s548 + $0x141] sm:$0xff]
        %v6622 = vld [vmem:[%s548 + $0x151] sm:$0xff]
        %v6623 = vld [vmem:[%s548 + $0x159] sm:$0xff]
        %v6624 = vld [vmem:[%s548 + $0x169] sm:$0xff]
        %v6625 = vld [vmem:[%s548 + $0x171] sm:$0xff]
        %v6626 = vld [vmem:[%s548 + $0x2] sm:$0xff]
        %v6627 = vld [vmem:[%s548 + $0xa] sm:$0xff]
        %v6628 = vld [vmem:[%s548 + $0x1a] sm:$0xff]
        %v6629 = vld [vmem:[%s548 + $0x22] sm:$0xff]
        %v6630 = vld [vmem:[%s548 + $0x32] sm:$0xff]
        %v6631 = vld [vmem:[%s548 + $0x3a] sm:$0xff]
        %v6632 = vld [vmem:[%s548 + $0x4a] sm:$0xff]
        %v6633 = vld [vmem:[%s548 + $0x52] sm:$0xff]
        %v6634 = vld [vmem:[%s548 + $0x62] sm:$0xff]
        %v6635 = vld [vmem:[%s548 + $0x6a] sm:$0xff]
        %v6636 = vld [vmem:[%s548 + $0x7a] sm:$0xff]
        %v6637 = vld [vmem:[%s548 + $0x82] sm:$0xff]
        %v6638 = vld [vmem:[%s548 + $0x92] sm:$0xff]
        %v6639 = vld [vmem:[%s548 + $0x9a] sm:$0xff]
        %v6640 = vld [vmem:[%s548 + $0xaa] sm:$0xff]
        %v6641 = vld [vmem:[%s548 + $0xb2] sm:$0xff]
        %v6642 = vld [vmem:[%s548 + $0xc2] sm:$0xff]
        %v6643 = vld [vmem:[%s548 + $0xca] sm:$0xff]
        %v6644 = vld [vmem:[%s548 + $0xda] sm:$0xff]
        %v6645 = vld [vmem:[%s548 + $0xe2] sm:$0xff]
        %v6646 = vld [vmem:[%s548 + $0xf2] sm:$0xff]
        %v6647 = vld [vmem:[%s548 + $0xfa] sm:$0xff]
        %v6648 = vld [vmem:[%s548 + $0x10a] sm:$0xff]
        %v6649 = vld [vmem:[%s548 + $0x112] sm:$0xff]
        %v6650 = vld [vmem:[%s548 + $0x122] sm:$0xff]
        %v6651 = vld [vmem:[%s548 + $0x12a] sm:$0xff]
        %v6652 = vld [vmem:[%s548 + $0x13a] sm:$0xff]
        %v6653 = vld [vmem:[%s548 + $0x142] sm:$0xff]
        %v6654 = vld [vmem:[%s548 + $0x152] sm:$0xff]
        %v6655 = vld [vmem:[%s548 + $0x15a] sm:$0xff]
        %v6656 = vld [vmem:[%s548 + $0x16a] sm:$0xff]
        %v6657 = vld [vmem:[%s548 + $0x172] sm:$0xff]
        %v6658 = vld [vmem:[%s773] sm:$0xff]
        %v6659 = vld [vmem:[%s773 + $0x8] sm:$0xff]
        %v6660 = vld [vmem:[%s773 + $0x18] sm:$0xff]
        %v6661 = vld [vmem:[%s773 + $0x20] sm:$0xff]
        %v6662 = vld [vmem:[%s773 + $0x30] sm:$0xff]
        %v6663 = vld [vmem:[%s773 + $0x38] sm:$0xff]
        %v6664 = vld [vmem:[%s773 + $0x48] sm:$0xff]
        %v6665 = vld [vmem:[%s773 + $0x50] sm:$0xff]
        %v6666 = vld [vmem:[%s773 + $0x60] sm:$0xff]
        %v6667 = vld [vmem:[%s773 + $0x68] sm:$0xff]
        %v6668 = vld [vmem:[%s773 + $0x78] sm:$0xff]
        %v6669 = vld [vmem:[%s773 + $0x80] sm:$0xff]
        %v6670 = vld [vmem:[%s773 + $0x90] sm:$0xff]
        %v6671 = vld [vmem:[%s773 + $0x98] sm:$0xff]
        %v6672 = vld [vmem:[%s773 + $0xa8] sm:$0xff]
        %v6673 = vld [vmem:[%s773 + $0xb0] sm:$0xff]
        %v6674 = vld [vmem:[%s773 + $0xc0] sm:$0xff]
        %v6675 = vld [vmem:[%s773 + $0xc8] sm:$0xff]
        %v6676 = vld [vmem:[%s773 + $0xd8] sm:$0xff]
        %v6677 = vld [vmem:[%s773 + $0xe0] sm:$0xff]
        %v6678 = vld [vmem:[%s773 + $0xf0] sm:$0xff]
        %v6679 = vld [vmem:[%s773 + $0xf8] sm:$0xff]
        %v6680 = vld [vmem:[%s773 + $0x108] sm:$0xff]
        %v6681 = vld [vmem:[%s773 + $0x110] sm:$0xff]
        %v6682 = vld [vmem:[%s773 + $0x120] sm:$0xff]
        %v6683 = vld [vmem:[%s773 + $0x128] sm:$0xff]
        %v6684 = vld [vmem:[%s773 + $0x138] sm:$0xff]
        %v6685 = vld [vmem:[%s773 + $0x140] sm:$0xff]
        %v6686 = vld [vmem:[%s773 + $0x150] sm:$0xff]
        %v6687 = vld [vmem:[%s773 + $0x158] sm:$0xff]
        %v6688 = vld [vmem:[%s773 + $0x168] sm:$0xff]
        %v6689 = vld [vmem:[%s773 + $0x170] sm:$0xff]
        %v6690 = vld [vmem:[%s773 + $0x1] sm:$0xff]
        %v6691 = vld [vmem:[%s773 + $0x9] sm:$0xff]
        %v6692 = vld [vmem:[%s773 + $0x19] sm:$0xff]
        %v6693 = vld [vmem:[%s773 + $0x21] sm:$0xff]
        %v6694 = vld [vmem:[%s773 + $0x31] sm:$0xff]
        %v6695 = vld [vmem:[%s773 + $0x39] sm:$0xff]
        %v6696 = vld [vmem:[%s773 + $0x49] sm:$0xff]
        %v6697 = vld [vmem:[%s773 + $0x51] sm:$0xff]
        %v6698 = vld [vmem:[%s773 + $0x61] sm:$0xff]
        %v6699 = vld [vmem:[%s773 + $0x69] sm:$0xff]
        %v6700 = vld [vmem:[%s773 + $0x79] sm:$0xff]
        %v6701 = vld [vmem:[%s773 + $0x81] sm:$0xff]
        %v6702 = vld [vmem:[%s773 + $0x91] sm:$0xff]
        %v6703 = vld [vmem:[%s773 + $0x99] sm:$0xff]
        %v6704 = vld [vmem:[%s773 + $0xa9] sm:$0xff]
        %v6705 = vld [vmem:[%s773 + $0xb1] sm:$0xff]
        %v6706 = vld [vmem:[%s773 + $0xc1] sm:$0xff]
        %v6707 = vld [vmem:[%s773 + $0xc9] sm:$0xff]
        %v6708 = vld [vmem:[%s773 + $0xd9] sm:$0xff]
        %v6709 = vld [vmem:[%s773 + $0xe1] sm:$0xff]
        %v6710 = vld [vmem:[%s773 + $0xf1] sm:$0xff]
        %v6711 = vld [vmem:[%s773 + $0xf9] sm:$0xff]
        %v6712 = vld [vmem:[%s773 + $0x109] sm:$0xff]
        %v6713 = vld [vmem:[%s773 + $0x111] sm:$0xff]
        %v6714 = vld [vmem:[%s773 + $0x121] sm:$0xff]
        %v6715 = vld [vmem:[%s773 + $0x129] sm:$0xff]
        %v6716 = vld [vmem:[%s773 + $0x139] sm:$0xff]
        %v6717 = vld [vmem:[%s773 + $0x141] sm:$0xff]
        %v6718 = vld [vmem:[%s773 + $0x151] sm:$0xff]
        %v6719 = vld [vmem:[%s773 + $0x159] sm:$0xff]
        %v6720 = vld [vmem:[%s773 + $0x169] sm:$0xff]
        %v6721 = vld [vmem:[%s773 + $0x171] sm:$0xff]
        %v6722 = vld [vmem:[%s773 + $0x2] sm:$0xff]
        %v6723 = vld [vmem:[%s773 + $0xa] sm:$0xff]
        %v6724 = vld [vmem:[%s773 + $0x1a] sm:$0xff]
        %v6725 = vld [vmem:[%s773 + $0x22] sm:$0xff]
        %v6726 = vld [vmem:[%s773 + $0x32] sm:$0xff]
        %v6727 = vld [vmem:[%s773 + $0x3a] sm:$0xff]
        %v6728 = vld [vmem:[%s773 + $0x4a] sm:$0xff]
        %v6729 = vld [vmem:[%s773 + $0x52] sm:$0xff]
        %v6730 = vld [vmem:[%s773 + $0x62] sm:$0xff]
        %v6731 = vld [vmem:[%s773 + $0x6a] sm:$0xff]
        %v6732 = vld [vmem:[%s773 + $0x7a] sm:$0xff]
        %v6733 = vld [vmem:[%s773 + $0x82] sm:$0xff]
        %v6734 = vld [vmem:[%s773 + $0x92] sm:$0xff]
        %v6735 = vld [vmem:[%s773 + $0x9a] sm:$0xff]
        %v6736 = vld [vmem:[%s773 + $0xaa] sm:$0xff]
        %v6737 = vld [vmem:[%s773 + $0xb2] sm:$0xff]
        %v6738 = vld [vmem:[%s773 + $0xc2] sm:$0xff]
        %v6739 = vld [vmem:[%s773 + $0xca] sm:$0xff]
        %v6740 = vld [vmem:[%s773 + $0xda] sm:$0xff]
        %v6741 = vld [vmem:[%s773 + $0xe2] sm:$0xff]
        %v6742 = vld [vmem:[%s773 + $0xf2] sm:$0xff]
        %v6743 = vld [vmem:[%s773 + $0xfa] sm:$0xff]
        %v6744 = vld [vmem:[%s773 + $0x10a] sm:$0xff]
        %v6745 = vld [vmem:[%s773 + $0x112] sm:$0xff]
        %v6746 = vld [vmem:[%s773 + $0x122] sm:$0xff]
        %v6747 = vld [vmem:[%s773 + $0x12a] sm:$0xff]
        %v6748 = vld [vmem:[%s773 + $0x13a] sm:$0xff]
        %v6749 = vld [vmem:[%s773 + $0x142] sm:$0xff]
        %v6750 = vld [vmem:[%s773 + $0x152] sm:$0xff]
        %v6751 = vld [vmem:[%s773 + $0x15a] sm:$0xff]
        %v6752 = vld [vmem:[%s773 + $0x16a] sm:$0xff]
        %v6753 = vld [vmem:[%s773 + $0x172] sm:$0xff]
        %6786 = vrot.lane.b32.xlu0 %v6498, 32
        %v6787 = vpop.permute.xlu0 %6786
        %6788 = vrot.lane.b32.xlu0 %v6499, 32
        %v6789 = vpop.permute.xlu0 %6788
        %6790 = vrot.lane.b32.xlu0 %v6500, 32
        %v6791 = vpop.permute.xlu0 %6790
        %6792 = vrot.lane.b32.xlu0 %v6501, 32
        %v6793 = vpop.permute.xlu0 %6792
        %6794 = vrot.lane.b32.xlu0 %v6502, 32
        %v6795 = vpop.permute.xlu0 %6794
        %6796 = vrot.lane.b32.xlu0 %v6503, 32
        %v6797 = vpop.permute.xlu0 %6796
        %6798 = vrot.lane.b32.xlu0 %v6504, 32
        %v6799 = vpop.permute.xlu0 %6798
        %6800 = vrot.lane.b32.xlu0 %v6505, 32
        %v6801 = vpop.permute.xlu0 %6800
        %6802 = vrot.lane.b32.xlu0 %v6506, 32
        %v6803 = vpop.permute.xlu0 %6802
        %6804 = vrot.lane.b32.xlu0 %v6507, 32
        %v6805 = vpop.permute.xlu0 %6804
        %6806 = vrot.lane.b32.xlu0 %v6508, 32
        %v6807 = vpop.permute.xlu0 %6806
        %6808 = vrot.lane.b32.xlu0 %v6509, 32
        %v6809 = vpop.permute.xlu0 %6808
        %6810 = vrot.lane.b32.xlu0 %v6510, 32
        %v6811 = vpop.permute.xlu0 %6810
        %6812 = vrot.lane.b32.xlu0 %v6511, 32
        %v6813 = vpop.permute.xlu0 %6812
        %6814 = vrot.lane.b32.xlu0 %v6512, 32
        %v6815 = vpop.permute.xlu0 %6814
        %6816 = vrot.lane.b32.xlu0 %v6513, 32
        %v6817 = vpop.permute.xlu0 %6816
        %6818 = vrot.lane.b32.xlu0 %v6514, 32
        %v6819 = vpop.permute.xlu0 %6818
        %6820 = vrot.lane.b32.xlu0 %v6515, 32
        %v6821 = vpop.permute.xlu0 %6820
        %6822 = vrot.lane.b32.xlu0 %v6516, 32
        %v6823 = vpop.permute.xlu0 %6822
        %6824 = vrot.lane.b32.xlu0 %v6517, 32
        %v6825 = vpop.permute.xlu0 %6824
        %6826 = vrot.lane.b32.xlu0 %v6518, 32
        %v6827 = vpop.permute.xlu0 %6826
        %6828 = vrot.lane.b32.xlu0 %v6519, 32
        %v6829 = vpop.permute.xlu0 %6828
        %6830 = vrot.lane.b32.xlu0 %v6520, 32
        %v6831 = vpop.permute.xlu0 %6830
        %6832 = vrot.lane.b32.xlu0 %v6521, 32
        %v6833 = vpop.permute.xlu0 %6832
        %6834 = vrot.lane.b32.xlu0 %v6522, 32
        %v6835 = vpop.permute.xlu0 %6834
        %6836 = vrot.lane.b32.xlu0 %v6523, 32
        %v6837 = vpop.permute.xlu0 %6836
        %6838 = vrot.lane.b32.xlu0 %v6524, 32
        %v6839 = vpop.permute.xlu0 %6838
        %6840 = vrot.lane.b32.xlu0 %v6525, 32
        %v6841 = vpop.permute.xlu0 %6840
        %6842 = vrot.lane.b32.xlu0 %v6526, 32
        %v6843 = vpop.permute.xlu0 %6842
        %6844 = vrot.lane.b32.xlu0 %v6527, 32
        %v6845 = vpop.permute.xlu0 %6844
        %6846 = vrot.lane.b32.xlu0 %v6528, 32
        %v6847 = vpop.permute.xlu0 %6846
        %6848 = vrot.lane.b32.xlu0 %v6529, 32
        %v6849 = vpop.permute.xlu0 %6848
        %6914 = vrot.lane.b32.xlu0 %v6530, 64
        %v6915 = vpop.permute.xlu0 %6914
        %6916 = vrot.lane.b32.xlu0 %v6531, 64
        %v6917 = vpop.permute.xlu0 %6916
        %6918 = vrot.lane.b32.xlu0 %v6532, 64
        %v6919 = vpop.permute.xlu0 %6918
        %6920 = vrot.lane.b32.xlu0 %v6533, 64
        %v6921 = vpop.permute.xlu0 %6920
        %6922 = vrot.lane.b32.xlu0 %v6534, 64
        %v6923 = vpop.permute.xlu0 %6922
        %6924 = vrot.lane.b32.xlu0 %v6535, 64
        %v6925 = vpop.permute.xlu0 %6924
        %6926 = vrot.lane.b32.xlu0 %v6536, 64
        %v6927 = vpop.permute.xlu0 %6926
        %6928 = vrot.lane.b32.xlu0 %v6537, 64
        %v6929 = vpop.permute.xlu0 %6928
        %6930 = vrot.lane.b32.xlu0 %v6538, 64
        %v6931 = vpop.permute.xlu0 %6930
        %6932 = vrot.lane.b32.xlu0 %v6539, 64
        %v6933 = vpop.permute.xlu0 %6932
        %6934 = vrot.lane.b32.xlu0 %v6540, 64
        %v6935 = vpop.permute.xlu0 %6934
        %6936 = vrot.lane.b32.xlu0 %v6541, 64
        %v6937 = vpop.permute.xlu0 %6936
        %6938 = vrot.lane.b32.xlu0 %v6542, 64
        %v6939 = vpop.permute.xlu0 %6938
        %6940 = vrot.lane.b32.xlu0 %v6543, 64
        %v6941 = vpop.permute.xlu0 %6940
        %6942 = vrot.lane.b32.xlu0 %v6544, 64
        %v6943 = vpop.permute.xlu0 %6942
        %6944 = vrot.lane.b32.xlu0 %v6545, 64
        %v6945 = vpop.permute.xlu0 %6944
        %6946 = vrot.lane.b32.xlu0 %v6546, 64
        %v6947 = vpop.permute.xlu0 %6946
        %6948 = vrot.lane.b32.xlu0 %v6547, 64
        %v6949 = vpop.permute.xlu0 %6948
        %6950 = vrot.lane.b32.xlu0 %v6548, 64
        %v6951 = vpop.permute.xlu0 %6950
        %6952 = vrot.lane.b32.xlu0 %v6549, 64
        %v6953 = vpop.permute.xlu0 %6952
        %6954 = vrot.lane.b32.xlu0 %v6550, 64
        %v6955 = vpop.permute.xlu0 %6954
        %6956 = vrot.lane.b32.xlu0 %v6551, 64
        %v6957 = vpop.permute.xlu0 %6956
        %6958 = vrot.lane.b32.xlu0 %v6552, 64
        %v6959 = vpop.permute.xlu0 %6958
        %6960 = vrot.lane.b32.xlu0 %v6553, 64
        %v6961 = vpop.permute.xlu0 %6960
        %6962 = vrot.lane.b32.xlu0 %v6554, 64
        %v6963 = vpop.permute.xlu0 %6962
        %6964 = vrot.lane.b32.xlu0 %v6555, 64
        %v6965 = vpop.permute.xlu0 %6964
        %6966 = vrot.lane.b32.xlu0 %v6556, 64
        %v6967 = vpop.permute.xlu0 %6966
        %6968 = vrot.lane.b32.xlu0 %v6557, 64
        %v6969 = vpop.permute.xlu0 %6968
        %6970 = vrot.lane.b32.xlu0 %v6558, 64
        %v6971 = vpop.permute.xlu0 %6970
        %6972 = vrot.lane.b32.xlu0 %v6559, 64
        %v6973 = vpop.permute.xlu0 %6972
        %6974 = vrot.lane.b32.xlu0 %v6560, 64
        %v6975 = vpop.permute.xlu0 %6974
        %6976 = vrot.lane.b32.xlu0 %v6561, 64
        %v6977 = vpop.permute.xlu0 %6976
        %7042 = vrot.lane.b32.xlu0 %v6562, 96
        %v7043 = vpop.permute.xlu0 %7042
        %7044 = vrot.lane.b32.xlu0 %v6563, 96
        %v7045 = vpop.permute.xlu0 %7044
        %7046 = vrot.lane.b32.xlu0 %v6564, 96
        %v7047 = vpop.permute.xlu0 %7046
        %7048 = vrot.lane.b32.xlu0 %v6565, 96
        %v7049 = vpop.permute.xlu0 %7048
        %7050 = vrot.lane.b32.xlu0 %v6566, 96
        %v7051 = vpop.permute.xlu0 %7050
        %7052 = vrot.lane.b32.xlu0 %v6567, 96
        %v7053 = vpop.permute.xlu0 %7052
        %7054 = vrot.lane.b32.xlu0 %v6568, 96
        %v7055 = vpop.permute.xlu0 %7054
        %7056 = vrot.lane.b32.xlu0 %v6569, 96
        %v7057 = vpop.permute.xlu0 %7056
        %7058 = vrot.lane.b32.xlu0 %v6570, 96
        %v7059 = vpop.permute.xlu0 %7058
        %7060 = vrot.lane.b32.xlu0 %v6571, 96
        %v7061 = vpop.permute.xlu0 %7060
        %7062 = vrot.lane.b32.xlu0 %v6572, 96
        %v7063 = vpop.permute.xlu0 %7062
        %7064 = vrot.lane.b32.xlu0 %v6573, 96
        %v7065 = vpop.permute.xlu0 %7064
        %7066 = vrot.lane.b32.xlu0 %v6574, 96
        %v7067 = vpop.permute.xlu0 %7066
        %7068 = vrot.lane.b32.xlu0 %v6575, 96
        %v7069 = vpop.permute.xlu0 %7068
        %7070 = vrot.lane.b32.xlu0 %v6576, 96
        %v7071 = vpop.permute.xlu0 %7070
        %7072 = vrot.lane.b32.xlu0 %v6577, 96
        %v7073 = vpop.permute.xlu0 %7072
        %7074 = vrot.lane.b32.xlu0 %v6578, 96
        %v7075 = vpop.permute.xlu0 %7074
        %7076 = vrot.lane.b32.xlu0 %v6579, 96
        %v7077 = vpop.permute.xlu0 %7076
        %7078 = vrot.lane.b32.xlu0 %v6580, 96
        %v7079 = vpop.permute.xlu0 %7078
        %7080 = vrot.lane.b32.xlu0 %v6581, 96
        %v7081 = vpop.permute.xlu0 %7080
        %7082 = vrot.lane.b32.xlu0 %v6582, 96
        %v7083 = vpop.permute.xlu0 %7082
        %7084 = vrot.lane.b32.xlu0 %v6583, 96
        %v7085 = vpop.permute.xlu0 %7084
        %7086 = vrot.lane.b32.xlu0 %v6584, 96
        %v7087 = vpop.permute.xlu0 %7086
        %7088 = vrot.lane.b32.xlu0 %v6585, 96
        %v7089 = vpop.permute.xlu0 %7088
        %7090 = vrot.lane.b32.xlu0 %v6586, 96
        %v7091 = vpop.permute.xlu0 %7090
        %7092 = vrot.lane.b32.xlu0 %v6587, 96
        %v7093 = vpop.permute.xlu0 %7092
        %7094 = vrot.lane.b32.xlu0 %v6588, 96
        %v7095 = vpop.permute.xlu0 %7094
        %7096 = vrot.lane.b32.xlu0 %v6589, 96
        %v7097 = vpop.permute.xlu0 %7096
        %7098 = vrot.lane.b32.xlu0 %v6590, 96
        %v7099 = vpop.permute.xlu0 %7098
        %7100 = vrot.lane.b32.xlu0 %v6591, 96
        %v7101 = vpop.permute.xlu0 %7100
        %7102 = vrot.lane.b32.xlu0 %v6592, 96
        %v7103 = vpop.permute.xlu0 %7102
        %7104 = vrot.lane.b32.xlu0 %v6593, 96
        %v7105 = vpop.permute.xlu0 %7104
        %7170 = vrot.lane.b32.xlu0 %v6626, 32
        %v7171 = vpop.permute.xlu0 %7170
        %7172 = vrot.lane.b32.xlu0 %v6627, 32
        %v7173 = vpop.permute.xlu0 %7172
        %7174 = vrot.lane.b32.xlu0 %v6628, 32
        %v7175 = vpop.permute.xlu0 %7174
        %7176 = vrot.lane.b32.xlu0 %v6629, 32
        %v7177 = vpop.permute.xlu0 %7176
        %7178 = vrot.lane.b32.xlu0 %v6630, 32
        %v7179 = vpop.permute.xlu0 %7178
        %7180 = vrot.lane.b32.xlu0 %v6631, 32
        %v7181 = vpop.permute.xlu0 %7180
        %7182 = vrot.lane.b32.xlu0 %v6632, 32
        %v7183 = vpop.permute.xlu0 %7182
        %7184 = vrot.lane.b32.xlu0 %v6633, 32
        %v7185 = vpop.permute.xlu0 %7184
        %7186 = vrot.lane.b32.xlu0 %v6634, 32
        %v7187 = vpop.permute.xlu0 %7186
        %7188 = vrot.lane.b32.xlu0 %v6635, 32
        %v7189 = vpop.permute.xlu0 %7188
        %7190 = vrot.lane.b32.xlu0 %v6636, 32
        %v7191 = vpop.permute.xlu0 %7190
        %7192 = vrot.lane.b32.xlu0 %v6637, 32
        %v7193 = vpop.permute.xlu0 %7192
        %7194 = vrot.lane.b32.xlu0 %v6638, 32
        %v7195 = vpop.permute.xlu0 %7194
        %7196 = vrot.lane.b32.xlu0 %v6639, 32
        %v7197 = vpop.permute.xlu0 %7196
        %7198 = vrot.lane.b32.xlu0 %v6640, 32
        %v7199 = vpop.permute.xlu0 %7198
        %7200 = vrot.lane.b32.xlu0 %v6641, 32
        %v7201 = vpop.permute.xlu0 %7200
        %7202 = vrot.lane.b32.xlu0 %v6642, 32
        %v7203 = vpop.permute.xlu0 %7202
        %7204 = vrot.lane.b32.xlu0 %v6643, 32
        %v7205 = vpop.permute.xlu0 %7204
        %7206 = vrot.lane.b32.xlu0 %v6644, 32
        %v7207 = vpop.permute.xlu0 %7206
        %7208 = vrot.lane.b32.xlu0 %v6645, 32
        %v7209 = vpop.permute.xlu0 %7208
        %7210 = vrot.lane.b32.xlu0 %v6646, 32
        %v7211 = vpop.permute.xlu0 %7210
        %7212 = vrot.lane.b32.xlu0 %v6647, 32
        %v7213 = vpop.permute.xlu0 %7212
        %7214 = vrot.lane.b32.xlu0 %v6648, 32
        %v7215 = vpop.permute.xlu0 %7214
        %7216 = vrot.lane.b32.xlu0 %v6649, 32
        %v7217 = vpop.permute.xlu0 %7216
        %7218 = vrot.lane.b32.xlu0 %v6650, 32
        %v7219 = vpop.permute.xlu0 %7218
        %7220 = vrot.lane.b32.xlu0 %v6651, 32
        %v7221 = vpop.permute.xlu0 %7220
        %7222 = vrot.lane.b32.xlu0 %v6652, 32
        %v7223 = vpop.permute.xlu0 %7222
        %7224 = vrot.lane.b32.xlu0 %v6653, 32
        %v7225 = vpop.permute.xlu0 %7224
        %7226 = vrot.lane.b32.xlu0 %v6654, 32
        %v7227 = vpop.permute.xlu0 %7226
        %7228 = vrot.lane.b32.xlu0 %v6655, 32
        %v7229 = vpop.permute.xlu0 %7228
        %7230 = vrot.lane.b32.xlu0 %v6656, 32
        %v7231 = vpop.permute.xlu0 %7230
        %7232 = vrot.lane.b32.xlu0 %v6657, 32
        %v7233 = vpop.permute.xlu0 %7232
        %7298 = vrot.lane.b32.xlu0 %v6658, 64
        %v7299 = vpop.permute.xlu0 %7298
        %7300 = vrot.lane.b32.xlu0 %v6659, 64
        %v7301 = vpop.permute.xlu0 %7300
        %7302 = vrot.lane.b32.xlu0 %v6660, 64
        %v7303 = vpop.permute.xlu0 %7302
        %7304 = vrot.lane.b32.xlu0 %v6661, 64
        %v7305 = vpop.permute.xlu0 %7304
        %7306 = vrot.lane.b32.xlu0 %v6662, 64
        %v7307 = vpop.permute.xlu0 %7306
        %7308 = vrot.lane.b32.xlu0 %v6663, 64
        %v7309 = vpop.permute.xlu0 %7308
        %7310 = vrot.lane.b32.xlu0 %v6664, 64
        %v7311 = vpop.permute.xlu0 %7310
        %7312 = vrot.lane.b32.xlu0 %v6665, 64
        %v7313 = vpop.permute.xlu0 %7312
        %7314 = vrot.lane.b32.xlu0 %v6666, 64
        %v7315 = vpop.permute.xlu0 %7314
        %7316 = vrot.lane.b32.xlu0 %v6667, 64
        %v7317 = vpop.permute.xlu0 %7316
        %7318 = vrot.lane.b32.xlu0 %v6668, 64
        %v7319 = vpop.permute.xlu0 %7318
        %7320 = vrot.lane.b32.xlu0 %v6669, 64
        %v7321 = vpop.permute.xlu0 %7320
        %7322 = vrot.lane.b32.xlu0 %v6670, 64
        %v7323 = vpop.permute.xlu0 %7322
        %7324 = vrot.lane.b32.xlu0 %v6671, 64
        %v7325 = vpop.permute.xlu0 %7324
        %7326 = vrot.lane.b32.xlu0 %v6672, 64
        %v7327 = vpop.permute.xlu0 %7326
        %7328 = vrot.lane.b32.xlu0 %v6673, 64
        %v7329 = vpop.permute.xlu0 %7328
        %7330 = vrot.lane.b32.xlu0 %v6674, 64
        %v7331 = vpop.permute.xlu0 %7330
        %7332 = vrot.lane.b32.xlu0 %v6675, 64
        %v7333 = vpop.permute.xlu0 %7332
        %7334 = vrot.lane.b32.xlu0 %v6676, 64
        %v7335 = vpop.permute.xlu0 %7334
        %7336 = vrot.lane.b32.xlu0 %v6677, 64
        %v7337 = vpop.permute.xlu0 %7336
        %7338 = vrot.lane.b32.xlu0 %v6678, 64
        %v7339 = vpop.permute.xlu0 %7338
        %7340 = vrot.lane.b32.xlu0 %v6679, 64
        %v7341 = vpop.permute.xlu0 %7340
        %7342 = vrot.lane.b32.xlu0 %v6680, 64
        %v7343 = vpop.permute.xlu0 %7342
        %7344 = vrot.lane.b32.xlu0 %v6681, 64
        %v7345 = vpop.permute.xlu0 %7344
        %7346 = vrot.lane.b32.xlu0 %v6682, 64
        %v7347 = vpop.permute.xlu0 %7346
        %7348 = vrot.lane.b32.xlu0 %v6683, 64
        %v7349 = vpop.permute.xlu0 %7348
        %7350 = vrot.lane.b32.xlu0 %v6684, 64
        %v7351 = vpop.permute.xlu0 %7350
        %7352 = vrot.lane.b32.xlu0 %v6685, 64
        %v7353 = vpop.permute.xlu0 %7352
        %7354 = vrot.lane.b32.xlu0 %v6686, 64
        %v7355 = vpop.permute.xlu0 %7354
        %7356 = vrot.lane.b32.xlu0 %v6687, 64
        %v7357 = vpop.permute.xlu0 %7356
        %7358 = vrot.lane.b32.xlu0 %v6688, 64
        %v7359 = vpop.permute.xlu0 %7358
        %7360 = vrot.lane.b32.xlu0 %v6689, 64
        %v7361 = vpop.permute.xlu0 %7360
        %7426 = vrot.lane.b32.xlu0 %v6690, 96
        %v7427 = vpop.permute.xlu0 %7426
        %7428 = vrot.lane.b32.xlu0 %v6691, 96
        %v7429 = vpop.permute.xlu0 %7428
        %7430 = vrot.lane.b32.xlu0 %v6692, 96
        %v7431 = vpop.permute.xlu0 %7430
        %7432 = vrot.lane.b32.xlu0 %v6693, 96
        %v7433 = vpop.permute.xlu0 %7432
        %7434 = vrot.lane.b32.xlu0 %v6694, 96
        %v7435 = vpop.permute.xlu0 %7434
        %7436 = vrot.lane.b32.xlu0 %v6695, 96
        %v7437 = vpop.permute.xlu0 %7436
        %7438 = vrot.lane.b32.xlu0 %v6696, 96
        %v7439 = vpop.permute.xlu0 %7438
        %7440 = vrot.lane.b32.xlu0 %v6697, 96
        %v7441 = vpop.permute.xlu0 %7440
        %7442 = vrot.lane.b32.xlu0 %v6698, 96
        %v7443 = vpop.permute.xlu0 %7442
        %7444 = vrot.lane.b32.xlu0 %v6699, 96
        %v7445 = vpop.permute.xlu0 %7444
        %7446 = vrot.lane.b32.xlu0 %v6700, 96
        %v7447 = vpop.permute.xlu0 %7446
        %7448 = vrot.lane.b32.xlu0 %v6701, 96
        %v7449 = vpop.permute.xlu0 %7448
        %7450 = vrot.lane.b32.xlu0 %v6702, 96
        %v7451 = vpop.permute.xlu0 %7450
        %7452 = vrot.lane.b32.xlu0 %v6703, 96
        %v7453 = vpop.permute.xlu0 %7452
        %7454 = vrot.lane.b32.xlu0 %v6704, 96
        %v7455 = vpop.permute.xlu0 %7454
        %7456 = vrot.lane.b32.xlu0 %v6705, 96
        %v7457 = vpop.permute.xlu0 %7456
        %7458 = vrot.lane.b32.xlu0 %v6706, 96
        %v7459 = vpop.permute.xlu0 %7458
        %7460 = vrot.lane.b32.xlu0 %v6707, 96
        %v7461 = vpop.permute.xlu0 %7460
        %7462 = vrot.lane.b32.xlu0 %v6708, 96
        %v7463 = vpop.permute.xlu0 %7462
        %7464 = vrot.lane.b32.xlu0 %v6709, 96
        %v7465 = vpop.permute.xlu0 %7464
        %7466 = vrot.lane.b32.xlu0 %v6710, 96
        %v7467 = vpop.permute.xlu0 %7466
        %7468 = vrot.lane.b32.xlu0 %v6711, 96
        %v7469 = vpop.permute.xlu0 %7468
        %7470 = vrot.lane.b32.xlu0 %v6712, 96
        %v7471 = vpop.permute.xlu0 %7470
        %7472 = vrot.lane.b32.xlu0 %v6713, 96
        %v7473 = vpop.permute.xlu0 %7472
        %7474 = vrot.lane.b32.xlu0 %v6714, 96
        %v7475 = vpop.permute.xlu0 %7474
        %7476 = vrot.lane.b32.xlu0 %v6715, 96
        %v7477 = vpop.permute.xlu0 %7476
        %7478 = vrot.lane.b32.xlu0 %v6716, 96
        %v7479 = vpop.permute.xlu0 %7478
        %7480 = vrot.lane.b32.xlu0 %v6717, 96
        %v7481 = vpop.permute.xlu0 %7480
        %7482 = vrot.lane.b32.xlu0 %v6718, 96
        %v7483 = vpop.permute.xlu0 %7482
        %7484 = vrot.lane.b32.xlu0 %v6719, 96
        %v7485 = vpop.permute.xlu0 %7484
        %7486 = vrot.lane.b32.xlu0 %v6720, 96
        %v7487 = vpop.permute.xlu0 %7486
        %7488 = vrot.lane.b32.xlu0 %v6721, 96
        %v7489 = vpop.permute.xlu0 %7488
        %v7522 = vsel %vm386, %v6466, %v6787
        %v7523 = vsel %vm386, %v6467, %v6789
        %v7524 = vsel %vm386, %v6468, %v6791
        %v7525 = vsel %vm386, %v6469, %v6793
        %v7526 = vsel %vm386, %v6470, %v6795
        %v7527 = vsel %vm386, %v6471, %v6797
        %v7528 = vsel %vm386, %v6472, %v6799
        %v7529 = vsel %vm386, %v6473, %v6801
        %v7530 = vsel %vm386, %v6474, %v6803
        %v7531 = vsel %vm386, %v6475, %v6805
        %v7532 = vsel %vm386, %v6476, %v6807
        %v7533 = vsel %vm386, %v6477, %v6809
        %v7534 = vsel %vm386, %v6478, %v6811
        %v7535 = vsel %vm386, %v6479, %v6813
        %v7536 = vsel %vm386, %v6480, %v6815
        %v7537 = vsel %vm386, %v6481, %v6817
        %v7538 = vsel %vm386, %v6482, %v6819
        %v7539 = vsel %vm386, %v6483, %v6821
        %v7540 = vsel %vm386, %v6484, %v6823
        %v7541 = vsel %vm386, %v6485, %v6825
        %v7542 = vsel %vm386, %v6486, %v6827
        %v7543 = vsel %vm386, %v6487, %v6829
        %v7544 = vsel %vm386, %v6488, %v6831
        %v7545 = vsel %vm386, %v6489, %v6833
        %v7546 = vsel %vm386, %v6490, %v6835
        %v7547 = vsel %vm386, %v6491, %v6837
        %v7548 = vsel %vm386, %v6492, %v6839
        %v7549 = vsel %vm386, %v6493, %v6841
        %v7550 = vsel %vm386, %v6494, %v6843
        %v7551 = vsel %vm386, %v6495, %v6845
        %v7552 = vsel %vm386, %v6496, %v6847
        %v7553 = vsel %vm386, %v6497, %v6849
        %v7554 = vsel %vm1670, %v7522, %v6915
        %v7555 = vsel %vm1670, %v7523, %v6917
        %v7556 = vsel %vm1670, %v7524, %v6919
        %v7557 = vsel %vm1670, %v7525, %v6921
        %v7558 = vsel %vm1670, %v7526, %v6923
        %v7559 = vsel %vm1670, %v7527, %v6925
        %v7560 = vsel %vm1670, %v7528, %v6927
        %v7561 = vsel %vm1670, %v7529, %v6929
        %v7562 = vsel %vm1670, %v7530, %v6931
        %v7563 = vsel %vm1670, %v7531, %v6933
        %v7564 = vsel %vm1670, %v7532, %v6935
        %v7565 = vsel %vm1670, %v7533, %v6937
        %v7566 = vsel %vm1670, %v7534, %v6939
        %v7567 = vsel %vm1670, %v7535, %v6941
        %v7568 = vsel %vm1670, %v7536, %v6943
        %v7569 = vsel %vm1670, %v7537, %v6945
        %v7570 = vsel %vm1670, %v7538, %v6947
        %v7571 = vsel %vm1670, %v7539, %v6949
        %v7572 = vsel %vm1670, %v7540, %v6951
        %v7573 = vsel %vm1670, %v7541, %v6953
        %v7574 = vsel %vm1670, %v7542, %v6955
        %v7575 = vsel %vm1670, %v7543, %v6957
        %v7576 = vsel %vm1670, %v7544, %v6959
        %v7577 = vsel %vm1670, %v7545, %v6961
        %v7578 = vsel %vm1670, %v7546, %v6963
        %v7579 = vsel %vm1670, %v7547, %v6965
        %v7580 = vsel %vm1670, %v7548, %v6967
        %v7581 = vsel %vm1670, %v7549, %v6969
        %v7582 = vsel %vm1670, %v7550, %v6971
        %v7583 = vsel %vm1670, %v7551, %v6973
        %v7584 = vsel %vm1670, %v7552, %v6975
        %v7585 = vsel %vm1670, %v7553, %v6977
        %v7586 = vsel %vm1703, %v7554, %v7043
        %v7587 = vsel %vm1703, %v7555, %v7045
        %v7588 = vsel %vm1703, %v7556, %v7047
        %v7589 = vsel %vm1703, %v7557, %v7049
        %v7590 = vsel %vm1703, %v7558, %v7051
        %v7591 = vsel %vm1703, %v7559, %v7053
        %v7592 = vsel %vm1703, %v7560, %v7055
        %v7593 = vsel %vm1703, %v7561, %v7057
        %v7594 = vsel %vm1703, %v7562, %v7059
        %v7595 = vsel %vm1703, %v7563, %v7061
        %v7596 = vsel %vm1703, %v7564, %v7063
        %v7597 = vsel %vm1703, %v7565, %v7065
        %v7598 = vsel %vm1703, %v7566, %v7067
        %v7599 = vsel %vm1703, %v7567, %v7069
        %v7600 = vsel %vm1703, %v7568, %v7071
        %v7601 = vsel %vm1703, %v7569, %v7073
        %v7602 = vsel %vm1703, %v7570, %v7075
        %v7603 = vsel %vm1703, %v7571, %v7077
        %v7604 = vsel %vm1703, %v7572, %v7079
        %v7605 = vsel %vm1703, %v7573, %v7081
        %v7606 = vsel %vm1703, %v7574, %v7083
        %v7607 = vsel %vm1703, %v7575, %v7085
        %v7608 = vsel %vm1703, %v7576, %v7087
        %v7609 = vsel %vm1703, %v7577, %v7089
        %v7610 = vsel %vm1703, %v7578, %v7091
        %v7611 = vsel %vm1703, %v7579, %v7093
        %v7612 = vsel %vm1703, %v7580, %v7095
        %v7613 = vsel %vm1703, %v7581, %v7097
        %v7614 = vsel %vm1703, %v7582, %v7099
        %v7615 = vsel %vm1703, %v7583, %v7101
        %v7616 = vsel %vm1703, %v7584, %v7103
        %v7617 = vsel %vm1703, %v7585, %v7105
        %v7618 = vsel %vm386, %v6594, %v7171
        %v7619 = vsel %vm386, %v6595, %v7173
        %v7620 = vsel %vm386, %v6596, %v7175
        %v7621 = vsel %vm386, %v6597, %v7177
        %v7622 = vsel %vm386, %v6598, %v7179
        %v7623 = vsel %vm386, %v6599, %v7181
        %v7624 = vsel %vm386, %v6600, %v7183
        %v7625 = vsel %vm386, %v6601, %v7185
        %v7626 = vsel %vm386, %v6602, %v7187
        %v7627 = vsel %vm386, %v6603, %v7189
        %v7628 = vsel %vm386, %v6604, %v7191
        %v7629 = vsel %vm386, %v6605, %v7193
        %v7630 = vsel %vm386, %v6606, %v7195
        %v7631 = vsel %vm386, %v6607, %v7197
        %v7632 = vsel %vm386, %v6608, %v7199
        %v7633 = vsel %vm386, %v6609, %v7201
        %v7634 = vsel %vm386, %v6610, %v7203
        %v7635 = vsel %vm386, %v6611, %v7205
        %v7636 = vsel %vm386, %v6612, %v7207
        %v7637 = vsel %vm386, %v6613, %v7209
        %v7638 = vsel %vm386, %v6614, %v7211
        %v7639 = vsel %vm386, %v6615, %v7213
        %v7640 = vsel %vm386, %v6616, %v7215
        %v7641 = vsel %vm386, %v6617, %v7217
        %v7642 = vsel %vm386, %v6618, %v7219
        %v7643 = vsel %vm386, %v6619, %v7221
        %v7644 = vsel %vm386, %v6620, %v7223
        %v7645 = vsel %vm386, %v6621, %v7225
        %v7646 = vsel %vm386, %v6622, %v7227
        %v7647 = vsel %vm386, %v6623, %v7229
        %v7648 = vsel %vm386, %v6624, %v7231
        %v7649 = vsel %vm386, %v6625, %v7233
        %v7650 = vsel %vm1670, %v7618, %v7299
        %v7651 = vsel %vm1670, %v7619, %v7301
        %v7652 = vsel %vm1670, %v7620, %v7303
        %v7653 = vsel %vm1670, %v7621, %v7305
        %v7654 = vsel %vm1670, %v7622, %v7307
        %v7655 = vsel %vm1670, %v7623, %v7309
        %v7656 = vsel %vm1670, %v7624, %v7311
        %v7657 = vsel %vm1670, %v7625, %v7313
        %v7658 = vsel %vm1670, %v7626, %v7315
        %v7659 = vsel %vm1670, %v7627, %v7317
        %v7660 = vsel %vm1670, %v7628, %v7319
        %v7661 = vsel %vm1670, %v7629, %v7321
        %v7662 = vsel %vm1670, %v7630, %v7323
        %v7663 = vsel %vm1670, %v7631, %v7325
        %v7664 = vsel %vm1670, %v7632, %v7327
        %v7665 = vsel %vm1670, %v7633, %v7329
        %v7666 = vsel %vm1670, %v7634, %v7331
        %v7667 = vsel %vm1670, %v7635, %v7333
        %v7668 = vsel %vm1670, %v7636, %v7335
        %v7669 = vsel %vm1670, %v7637, %v7337
        %v7670 = vsel %vm1670, %v7638, %v7339
        %v7671 = vsel %vm1670, %v7639, %v7341
        %v7672 = vsel %vm1670, %v7640, %v7343
        %v7673 = vsel %vm1670, %v7641, %v7345
        %v7674 = vsel %vm1670, %v7642, %v7347
        %v7675 = vsel %vm1670, %v7643, %v7349
        %v7676 = vsel %vm1670, %v7644, %v7351
        %v7677 = vsel %vm1670, %v7645, %v7353
        %v7678 = vsel %vm1670, %v7646, %v7355
        %v7679 = vsel %vm1670, %v7647, %v7357
        %v7680 = vsel %vm1670, %v7648, %v7359
        %v7681 = vsel %vm1670, %v7649, %v7361
        %v7682 = vsel %vm1703, %v7650, %v7427
        %v7683 = vsel %vm1703, %v7651, %v7429
        %v7684 = vsel %vm1703, %v7652, %v7431
        %v7685 = vsel %vm1703, %v7653, %v7433
        %v7686 = vsel %vm1703, %v7654, %v7435
        %v7687 = vsel %vm1703, %v7655, %v7437
        %v7688 = vsel %vm1703, %v7656, %v7439
        %v7689 = vsel %vm1703, %v7657, %v7441
        %v7690 = vsel %vm1703, %v7658, %v7443
        %v7691 = vsel %vm1703, %v7659, %v7445
        %v7692 = vsel %vm1703, %v7660, %v7447
        %v7693 = vsel %vm1703, %v7661, %v7449
        %v7694 = vsel %vm1703, %v7662, %v7451
        %v7695 = vsel %vm1703, %v7663, %v7453
        %v7696 = vsel %vm1703, %v7664, %v7455
        %v7697 = vsel %vm1703, %v7665, %v7457
        %v7698 = vsel %vm1703, %v7666, %v7459
        %v7699 = vsel %vm1703, %v7667, %v7461
        %v7700 = vsel %vm1703, %v7668, %v7463
        %v7701 = vsel %vm1703, %v7669, %v7465
        %v7702 = vsel %vm1703, %v7670, %v7467
        %v7703 = vsel %vm1703, %v7671, %v7469
        %v7704 = vsel %vm1703, %v7672, %v7471
        %v7705 = vsel %vm1703, %v7673, %v7473
        %v7706 = vsel %vm1703, %v7674, %v7475
        %v7707 = vsel %vm1703, %v7675, %v7477
        %v7708 = vsel %vm1703, %v7676, %v7479
        %v7709 = vsel %vm1703, %v7677, %v7481
        %v7710 = vsel %vm1703, %v7678, %v7483
        %v7711 = vsel %vm1703, %v7679, %v7485
        %v7712 = vsel %vm1703, %v7680, %v7487
        %v7713 = vsel %vm1703, %v7681, %v7489
        %v7714 = vpack.c.bf16 %v7587, %v7586
        %v7715 = vpack.c.bf16 %v7683, %v7682
        %v7716 = vpack.c.bf16 %v6723, %v6722
        %v7717 = vpack.c.bf16 %v7589, %v7588
        %v7718 = vpack.c.bf16 %v7685, %v7684
        %v7719 = vpack.c.bf16 %v6725, %v6724
        %v7720 = vpack.c.bf16 %v7591, %v7590
        %v7721 = vpack.c.bf16 %v7687, %v7686
        %v7722 = vpack.c.bf16 %v6727, %v6726
        %v7723 = vpack.c.bf16 %v7593, %v7592
        %v7724 = vpack.c.bf16 %v7689, %v7688
        %v7725 = vpack.c.bf16 %v6729, %v6728
        %v7726 = vpack.c.bf16 %v7595, %v7594
        %v7727 = vpack.c.bf16 %v7691, %v7690
        %v7728 = vpack.c.bf16 %v6731, %v6730
        %v7729 = vpack.c.bf16 %v7597, %v7596
        %v7730 = vpack.c.bf16 %v7693, %v7692
        %v7731 = vpack.c.bf16 %v6733, %v6732
        %v7732 = vpack.c.bf16 %v7599, %v7598
        %v7733 = vpack.c.bf16 %v7695, %v7694
        %v7734 = vpack.c.bf16 %v6735, %v6734
        %v7735 = vpack.c.bf16 %v7601, %v7600
        %v7736 = vpack.c.bf16 %v7697, %v7696
        %v7737 = vpack.c.bf16 %v6737, %v6736
        %v7738 = vpack.c.bf16 %v7603, %v7602
        %v7739 = vpack.c.bf16 %v7699, %v7698
        %v7740 = vpack.c.bf16 %v6739, %v6738
        %v7741 = vpack.c.bf16 %v7605, %v7604
        %v7742 = vpack.c.bf16 %v7701, %v7700
        %v7743 = vpack.c.bf16 %v6741, %v6740
        %v7744 = vpack.c.bf16 %v7607, %v7606
        %v7745 = vpack.c.bf16 %v7703, %v7702
        %v7746 = vpack.c.bf16 %v6743, %v6742
        %v7747 = vpack.c.bf16 %v7609, %v7608
        %v7748 = vpack.c.bf16 %v7705, %v7704
        %v7749 = vpack.c.bf16 %v6745, %v6744
        %v7750 = vpack.c.bf16 %v7611, %v7610
        %v7751 = vpack.c.bf16 %v7707, %v7706
        %v7752 = vpack.c.bf16 %v6747, %v6746
        %v7753 = vpack.c.bf16 %v7613, %v7612
        %v7754 = vpack.c.bf16 %v7709, %v7708
        %v7755 = vpack.c.bf16 %v6749, %v6748
        %v7756 = vpack.c.bf16 %v7615, %v7614
        %v7757 = vpack.c.bf16 %v7711, %v7710
        %v7758 = vpack.c.bf16 %v6751, %v6750
        %v7759 = vpack.c.bf16 %v7617, %v7616
        %v7760 = vpack.c.bf16 %v7713, %v7712
        %v7761 = vpack.c.bf16 %v6753, %v6752
        %v7763 = vlaneseq
        %v7764 = vshrl.u32 %v7763, 7
        %v7765 = vsub.s32 0, %v7764
        %v7766 = vrot.slane %v4589, %v7765
        %v7804 = vunpack.c.l.b16 %v4552
        %v7805 = vunpack.c.l.b16 %v4553
        %v7806 = vunpack.c.l.b16 %v4554
        %v7807 = vunpack.c.l.b16 %v4555
        %v7808 = vunpack.c.l.b16 %v4556
        %v7809 = vunpack.c.l.b16 %v4557
        %v7810 = vunpack.c.l.b16 %v4558
        %v7811 = vunpack.c.l.b16 %v4559
        %v7812 = vunpack.c.l.b16 %v4560
        %v7813 = vunpack.c.l.b16 %v4561
        %v7814 = vunpack.c.l.b16 %v4562
        %v7815 = vunpack.c.l.b16 %v4563
        %v7816 = vunpack.c.l.b16 %v4564
        %v7817 = vunpack.c.l.b16 %v4565
        %v7818 = vunpack.c.l.b16 %v4566
        %v7819 = vunpack.c.l.b16 %v4567
        %v7820 = vunpack.c.l.b16 %v4568
        %v7821 = vunpack.c.l.b16 %v4569
        %v7822 = vunpack.c.l.b16 %v4570
        %v7823 = vunpack.c.l.b16 %v4571
        %v7824 = vunpack.c.l.b16 %v4572
        %v7825 = vunpack.c.l.b16 %v4573
        %v7826 = vunpack.c.l.b16 %v4574
        %v7827 = vunpack.c.l.b16 %v4575
        %v7828 = vunpack.c.l.b16 %v4576
        %v7829 = vunpack.c.l.b16 %v4577
        %v7830 = vunpack.c.l.b16 %v4578
        %v7831 = vunpack.c.l.b16 %v4579
        %v7832 = vunpack.c.l.b16 %v4580
        %v7833 = vunpack.c.l.b16 %v4581
        %v7834 = vunpack.c.l.b16 %v4582
        %v7835 = vunpack.c.l.b16 %v4583
        %v7836 = vunpack.c.l.b16 %v4584
        %v7837 = vunpack.c.l.b16 %v4585
        %v7838 = vunpack.c.l.b16 %v4586
        %v7839 = vunpack.c.l.b16 %v4587
        %v7840 = vpack.c.b16 %v7805, %v7804
        %v7841 = vpack.c.b16 %v7807, %v7806
        %v7842 = vpack.c.b16 %v7809, %v7808
        %v7843 = vpack.c.b16 %v7811, %v7810
        %v7844 = vpack.c.b16 %v7813, %v7812
        %v7845 = vpack.c.b16 %v7815, %v7814
        %v7846 = vpack.c.b16 %v7817, %v7816
        %v7847 = vpack.c.b16 %v7819, %v7818
        %v7848 = vpack.c.b16 %v7821, %v7820
        %v7849 = vpack.c.b16 %v7823, %v7822
        %v7850 = vpack.c.b16 %v7825, %v7824
        %v7851 = vpack.c.b16 %v7827, %v7826
        %v7852 = vpack.c.b16 %v7829, %v7828
        %v7853 = vpack.c.b16 %v7831, %v7830
        %v7854 = vpack.c.b16 %v7833, %v7832
        %v7855 = vpack.c.b16 %v7835, %v7834
        %v7856 = vpack.c.b16 %v7837, %v7836
        %v7857 = vpack.c.b16 %v7839, %v7838
        %v7877 = vsel %vm386, %v7716, 0
        %v7880 = vsel %vm386, %v7719, 0
        %v7883 = vsel %vm386, %v7722, 0
        %v7886 = vsel %vm386, %v7725, 0
        %v7889 = vsel %vm386, %v7728, 0
        %v7892 = vsel %vm386, %v7731, 0
        %v7895 = vsel %vm386, %v7734, 0
        %v7898 = vsel %vm386, %v7737, 0
        %v7901 = vsel %vm386, %v7740, 0
        %v7904 = vsel %vm386, %v7743, 0
        %v7907 = vsel %vm386, %v7746, 0
        %v7910 = vsel %vm386, %v7749, 0
        %v7913 = vsel %vm386, %v7752, 0
        %v7916 = vsel %vm386, %v7755, 0
        %v7919 = vsel %vm386, %v7758, 0
        %v7922 = vsel %vm386, %v7761, 0
        %7924 = vmatprep.subr.bf16.mxu0 0
        %7925 = vmatpush1.bf16.msra.mxu0 %v7840
        %7926 = vmatprep.subr.bf16.mxu0 0
        %7927 = vmatpush1.bf16.msra.mxu0 %v7841
        %7928 = vmatprep.subr.bf16.mxu0 0
        %7929 = vmatpush1.bf16.msra.mxu0 %v7842
        %7930 = vmatprep.subr.bf16.mxu0 0
        %7931 = vmatpush1.bf16.msra.mxu0 %v7843
        %7932 = vmatprep.subr.bf16.mxu0 0
        %7933 = vmatpush1.bf16.msra.mxu0 %v7844
        %7934 = vmatprep.subr.bf16.mxu0 0
        %7935 = vmatpush1.bf16.msra.mxu0 %v7845
        %7936 = vmatprep.subr.bf16.mxu0 0
        %7937 = vmatpush1.bf16.msra.mxu0 %v7846
        %7938 = vmatprep.subr.bf16.mxu0 0
        %7939 = vmatpush1.bf16.msra.mxu0 %v7847
        %7940 = vmatprep.subr.bf16.mxu0 0
        %7941 = vmatpush1.bf16.msra.mxu0 %v7848
        %7942 = vmatprep.subr.bf16.mxu0 0
        %7943 = vmatpush1.bf16.msra.mxu0 %v7849
        %7944 = vmatprep.subr.bf16.mxu0 0
        %7945 = vmatpush1.bf16.msra.mxu0 %v7850
        %7946 = vmatprep.subr.bf16.mxu0 0
        %7947 = vmatpush1.bf16.msra.mxu0 %v7851
        %7948 = vmatprep.subr.bf16.mxu0 0
        %7949 = vmatpush1.bf16.msra.mxu0 %v7852
        %7950 = vmatprep.subr.bf16.mxu0 0
        %7951 = vmatpush1.bf16.msra.mxu0 %v7853
        %7952 = vmatprep.subr.bf16.mxu0 0
        %7953 = vmatpush1.bf16.msra.mxu0 %v7854
        %7954 = vmatprep.subr.bf16.mxu0 0
        %7955 = vmatpush1.bf16.msra.mxu0 %v7855
        %7956 = vmatprep.mubr.bf16.mxu0 %v7715
        %7957 = vmatmul.mubr.bf16.gmra.mrb[0].mxu0 %v7714
        %v7958 = vpop.f32.mrb[0].mxu0
        %v7959 = vadd.f32 %v7766, %v7958
        %v7960 = vpop.f32.mrb[0].mxu0
        %v7961 = vpop.f32.mrb[0].mxu0
        %v7962 = vadd.f32 %v7766, %v7961
        %v7963 = vpop.f32.mrb[0].mxu0
        %7964 = vmatprep.mubr.bf16.mxu0 %v7718
        %7965 = vmatmul.mubr.bf16.gmra.mrb[0].mxu0 %v7717
        %v7966 = vpop.f32.mrb[0].mxu0
        %v7967 = vadd.f32 %v7766, %v7966
        %v7968 = vpop.f32.mrb[0].mxu0
        %v7969 = vpop.f32.mrb[0].mxu0
        %v7970 = vadd.f32 %v7766, %v7969
        %v7971 = vpop.f32.mrb[0].mxu0
        %7972 = vmatprep.mubr.bf16.mxu0 %v7721
        %7973 = vmatmul.mubr.bf16.gmra.mrb[0].mxu0 %v7720
        %v7974 = vpop.f32.mrb[0].mxu0
        %v7975 = vadd.f32 %v7766, %v7974
        %v7976 = vpop.f32.mrb[0].mxu0
        %v7977 = vpop.f32.mrb[0].mxu0
        %v7978 = vadd.f32 %v7766, %v7977
        %v7979 = vpop.f32.mrb[0].mxu0
        %7980 = vmatprep.mubr.bf16.mxu0 %v7724
        %7981 = vmatmul.mubr.bf16.gmra.mrb[0].mxu0 %v7723
        %v7982 = vpop.f32.mrb[0].mxu0
        %v7983 = vadd.f32 %v7766, %v7982
        %v7984 = vpop.f32.mrb[0].mxu0
        %v7985 = vpop.f32.mrb[0].mxu0
        %v7986 = vadd.f32 %v7766, %v7985
        %v7987 = vpop.f32.mrb[0].mxu0
        %7988 = vmatprep.mubr.bf16.mxu0 %v7727
        %7989 = vmatmul.mubr.bf16.gmra.mrb[0].mxu0 %v7726
        %v7990 = vpop.f32.mrb[0].mxu0
        %v7991 = vadd.f32 %v7766, %v7990
        %v7992 = vpop.f32.mrb[0].mxu0
        %v7993 = vpop.f32.mrb[0].mxu0
        %v7994 = vadd.f32 %v7766, %v7993
        %v7995 = vpop.f32.mrb[0].mxu0
        %7996 = vmatprep.mubr.bf16.mxu0 %v7730
        %7997 = vmatmul.mubr.bf16.gmra.mrb[0].mxu0 %v7729
        %v7998 = vpop.f32.mrb[0].mxu0
        %v7999 = vadd.f32 %v7766, %v7998
        %v8000 = vpop.f32.mrb[0].mxu0
        %v8001 = vpop.f32.mrb[0].mxu0
        %v8002 = vadd.f32 %v7766, %v8001
        %v8003 = vpop.f32.mrb[0].mxu0
        %8004 = vmatprep.mubr.bf16.mxu0 %v7733
        %8005 = vmatmul.mubr.bf16.gmra.mrb[0].mxu0 %v7732
        %v8006 = vpop.f32.mrb[0].mxu0
        %v8007 = vadd.f32 %v7766, %v8006
        %v8008 = vpop.f32.mrb[0].mxu0
        %v8009 = vpop.f32.mrb[0].mxu0
        %v8010 = vadd.f32 %v7766, %v8009
        %v8011 = vpop.f32.mrb[0].mxu0
        %8012 = vmatprep.mubr.bf16.mxu0 %v7736
        %8013 = vmatmul.mubr.bf16.gmra.mrb[0].mxu0 %v7735
        %v8014 = vpop.f32.mrb[0].mxu0
        %v8015 = vadd.f32 %v7766, %v8014
        %v8016 = vpop.f32.mrb[0].mxu0
        %v8017 = vpop.f32.mrb[0].mxu0
        %v8018 = vadd.f32 %v7766, %v8017
        %v8019 = vpop.f32.mrb[0].mxu0
        %8020 = vmatprep.mubr.bf16.mxu0 %v7739
        %8021 = vmatmul.mubr.bf16.gmra.mrb[0].mxu0 %v7738
        %v8022 = vpop.f32.mrb[0].mxu0
        %v8023 = vadd.f32 %v7766, %v8022
        %v8024 = vpop.f32.mrb[0].mxu0
        %v8025 = vpop.f32.mrb[0].mxu0
        %v8026 = vadd.f32 %v7766, %v8025
        %v8027 = vpop.f32.mrb[0].mxu0
        %8028 = vmatprep.mubr.bf16.mxu0 %v7742
        %8029 = vmatmul.mubr.bf16.gmra.mrb[0].mxu0 %v7741
        %v8030 = vpop.f32.mrb[0].mxu0
        %v8031 = vadd.f32 %v7766, %v8030
        %v8032 = vpop.f32.mrb[0].mxu0
        %v8033 = vpop.f32.mrb[0].mxu0
        %v8034 = vadd.f32 %v7766, %v8033
        %v8035 = vpop.f32.mrb[0].mxu0
        %8036 = vmatprep.mubr.bf16.mxu0 %v7745
        %8037 = vmatmul.mubr.bf16.gmra.mrb[0].mxu0 %v7744
        %v8038 = vpop.f32.mrb[0].mxu0
        %v8039 = vadd.f32 %v7766, %v8038
        %v8040 = vpop.f32.mrb[0].mxu0
        %v8041 = vpop.f32.mrb[0].mxu0
        %v8042 = vadd.f32 %v7766, %v8041
        %v8043 = vpop.f32.mrb[0].mxu0
        %8044 = vmatprep.mubr.bf16.mxu0 %v7748
        %8045 = vmatmul.mubr.bf16.gmra.mrb[0].mxu0 %v7747
        %v8046 = vpop.f32.mrb[0].mxu0
        %v8047 = vadd.f32 %v7766, %v8046
        %v8048 = vpop.f32.mrb[0].mxu0
        %v8049 = vpop.f32.mrb[0].mxu0
        %v8050 = vadd.f32 %v7766, %v8049
        %v8051 = vpop.f32.mrb[0].mxu0
        %8052 = vmatprep.mubr.bf16.mxu0 %v7751
        %8053 = vmatmul.mubr.bf16.gmra.mrb[0].mxu0 %v7750
        %v8054 = vpop.f32.mrb[0].mxu0
        %v8055 = vadd.f32 %v7766, %v8054
        %v8056 = vpop.f32.mrb[0].mxu0
        %v8057 = vpop.f32.mrb[0].mxu0
        %v8058 = vadd.f32 %v7766, %v8057
        %v8059 = vpop.f32.mrb[0].mxu0
        %8060 = vmatprep.mubr.bf16.mxu0 %v7754
        %8061 = vmatmul.mubr.bf16.gmra.mrb[0].mxu0 %v7753
        %v8062 = vpop.f32.mrb[0].mxu0
        %v8063 = vadd.f32 %v7766, %v8062
        %v8064 = vpop.f32.mrb[0].mxu0
        %v8065 = vpop.f32.mrb[0].mxu0
        %v8066 = vadd.f32 %v7766, %v8065
        %v8067 = vpop.f32.mrb[0].mxu0
        %8068 = vmatprep.mubr.bf16.mxu0 %v7757
        %8069 = vmatmul.mubr.bf16.gmra.mrb[0].mxu0 %v7756
        %v8070 = vpop.f32.mrb[0].mxu0
        %v8071 = vadd.f32 %v7766, %v8070
        %v8072 = vpop.f32.mrb[0].mxu0
        %v8073 = vpop.f32.mrb[0].mxu0
        %v8074 = vadd.f32 %v7766, %v8073
        %v8075 = vpop.f32.mrb[0].mxu0
        %8076 = vmatprep.mubr.bf16.mxu0 %v7760
        %8077 = vmatmul.mubr.bf16.gmra.mrb[0].mxu0 %v7759
        %v8078 = vpop.f32.mrb[0].mxu0
        %v8079 = vadd.f32 %v7766, %v8078
        %v8080 = vpop.f32.mrb[0].mxu0
        %v8081 = vpop.f32.mrb[0].mxu0
        %v8082 = vadd.f32 %v7766, %v8081
        %v8083 = vpop.f32.mrb[0].mxu0
        %8084 = vdwg.mxu0
        %8085 = vmatprep.subr.bf16.mxu0 0
        %8086 = vmatpush1.bf16.msra.mxu0 %v7856
        %8087 = vmatprep.subr.bf16.mxu0 0
        %8088 = vmatpush1.bf16.msra.mxu0 %v7857
        %8089 = vmatprep.subr.bf16.mxu0 0
        %8090 = vmatpush1.bf16.msra.mxu0 0
        %8091 = vmatprep.subr.bf16.mxu0 0
        %8092 = vmatpush1.bf16.msra.mxu0 0
        %8093 = vmatprep.subr.bf16.mxu0 0
        %8094 = vmatpush1.bf16.msra.mxu0 0
        %8095 = vmatprep.subr.bf16.mxu0 0
        %8096 = vmatpush1.bf16.msra.mxu0 0
        %8097 = vmatprep.subr.bf16.mxu0 0
        %8098 = vmatpush1.bf16.msra.mxu0 0
        %8099 = vmatprep.subr.bf16.mxu0 0
        %8100 = vmatpush1.bf16.msra.mxu0 0
        %8101 = vmatprep.subr.bf16.mxu0 0
        %8102 = vmatpush1.bf16.msra.mxu0 0
        %8103 = vmatprep.subr.bf16.mxu0 0
        %8104 = vmatpush1.bf16.msra.mxu0 0
        %8105 = vmatprep.subr.bf16.mxu0 0
        %8106 = vmatpush1.bf16.msra.mxu0 0
        %8107 = vmatprep.subr.bf16.mxu0 0
        %8108 = vmatpush1.bf16.msra.mxu0 0
        %8109 = vmatprep.subr.bf16.mxu0 0
        %8110 = vmatpush1.bf16.msra.mxu0 0
        %8111 = vmatprep.subr.bf16.mxu0 0
        %8112 = vmatpush1.bf16.msra.mxu0 0
        %8113 = vmatprep.subr.bf16.mxu0 0
        %8114 = vmatpush1.bf16.msra.mxu0 0
        %8115 = vmatprep.subr.bf16.mxu0 0
        %8116 = vmatpush1.bf16.msra.mxu0 0
        %8117 = vmatprep.mubr.bf16.mxu0 0
        %8118 = vmatmul.mubr.bf16.gmra.mrb[0].mxu0 %v7877
        %v8119 = vpop.f32.mrb[0].mxu0
        %v8120 = vadd.f32 %v7959, %v8119
        %v8121 = vpop.f32.mrb[0].mxu0
        %v8122 = vpop.f32.mrb[0].mxu0
        %v8123 = vadd.f32 %v7962, %v8122
        %v8124 = vpop.f32.mrb[0].mxu0
        %8125 = vmatprep.mubr.bf16.mxu0 0
        %8126 = vmatmul.mubr.bf16.gmra.mrb[0].mxu0 %v7880
        %v8127 = vpop.f32.mrb[0].mxu0
        %v8128 = vadd.f32 %v7967, %v8127
        %v8129 = vpop.f32.mrb[0].mxu0
        %v8130 = vpop.f32.mrb[0].mxu0
        %v8131 = vadd.f32 %v7970, %v8130
        %v8132 = vpop.f32.mrb[0].mxu0
        %8133 = vmatprep.mubr.bf16.mxu0 0
        %8134 = vmatmul.mubr.bf16.gmra.mrb[0].mxu0 %v7883
        %v8135 = vpop.f32.mrb[0].mxu0
        %v8136 = vadd.f32 %v7975, %v8135
        %v8137 = vpop.f32.mrb[0].mxu0
        %v8138 = vpop.f32.mrb[0].mxu0
        %v8139 = vadd.f32 %v7978, %v8138
        %v8140 = vpop.f32.mrb[0].mxu0
        %8141 = vmatprep.mubr.bf16.mxu0 0
        %8142 = vmatmul.mubr.bf16.gmra.mrb[0].mxu0 %v7886
        %v8143 = vpop.f32.mrb[0].mxu0
        %v8144 = vadd.f32 %v7983, %v8143
        %v8145 = vpop.f32.mrb[0].mxu0
        %v8146 = vpop.f32.mrb[0].mxu0
        %v8147 = vadd.f32 %v7986, %v8146
        %v8148 = vpop.f32.mrb[0].mxu0
        %8149 = vmatprep.mubr.bf16.mxu0 0
        %8150 = vmatmul.mubr.bf16.gmra.mrb[0].mxu0 %v7889
        %v8151 = vpop.f32.mrb[0].mxu0
        %v8152 = vadd.f32 %v7991, %v8151
        %v8153 = vpop.f32.mrb[0].mxu0
        %v8154 = vpop.f32.mrb[0].mxu0
        %v8155 = vadd.f32 %v7994, %v8154
        %v8156 = vpop.f32.mrb[0].mxu0
        %8157 = vmatprep.mubr.bf16.mxu0 0
        %8158 = vmatmul.mubr.bf16.gmra.mrb[0].mxu0 %v7892
        %v8159 = vpop.f32.mrb[0].mxu0
        %v8160 = vadd.f32 %v7999, %v8159
        %v8161 = vpop.f32.mrb[0].mxu0
        %v8162 = vpop.f32.mrb[0].mxu0
        %v8163 = vadd.f32 %v8002, %v8162
        %v8164 = vpop.f32.mrb[0].mxu0
        %8165 = vmatprep.mubr.bf16.mxu0 0
        %8166 = vmatmul.mubr.bf16.gmra.mrb[0].mxu0 %v7895
        %v8167 = vpop.f32.mrb[0].mxu0
        %v8168 = vadd.f32 %v8007, %v8167
        %v8169 = vpop.f32.mrb[0].mxu0
        %v8170 = vpop.f32.mrb[0].mxu0
        %v8171 = vadd.f32 %v8010, %v8170
        %v8172 = vpop.f32.mrb[0].mxu0
        %8173 = vmatprep.mubr.bf16.mxu0 0
        %8174 = vmatmul.mubr.bf16.gmra.mrb[0].mxu0 %v7898
        %v8175 = vpop.f32.mrb[0].mxu0
        %v8176 = vadd.f32 %v8015, %v8175
        %v8177 = vpop.f32.mrb[0].mxu0
        %v8178 = vpop.f32.mrb[0].mxu0
        %v8179 = vadd.f32 %v8018, %v8178
        %v8180 = vpop.f32.mrb[0].mxu0
        %8181 = vmatprep.mubr.bf16.mxu0 0
        %8182 = vmatmul.mubr.bf16.gmra.mrb[0].mxu0 %v7901
        %v8183 = vpop.f32.mrb[0].mxu0
        %v8184 = vadd.f32 %v8023, %v8183
        %v8185 = vpop.f32.mrb[0].mxu0
        %v8186 = vpop.f32.mrb[0].mxu0
        %v8187 = vadd.f32 %v8026, %v8186
        %v8188 = vpop.f32.mrb[0].mxu0
        %8189 = vmatprep.mubr.bf16.mxu0 0
        %8190 = vmatmul.mubr.bf16.gmra.mrb[0].mxu0 %v7904
        %v8191 = vpop.f32.mrb[0].mxu0
        %v8192 = vadd.f32 %v8031, %v8191
        %v8193 = vpop.f32.mrb[0].mxu0
        %v8194 = vpop.f32.mrb[0].mxu0
        %v8195 = vadd.f32 %v8034, %v8194
        %v8196 = vpop.f32.mrb[0].mxu0
        %8197 = vmatprep.mubr.bf16.mxu0 0
        %8198 = vmatmul.mubr.bf16.gmra.mrb[0].mxu0 %v7907
        %v8199 = vpop.f32.mrb[0].mxu0
        %v8200 = vadd.f32 %v8039, %v8199
        %v8201 = vpop.f32.mrb[0].mxu0
        %v8202 = vpop.f32.mrb[0].mxu0
        %v8203 = vadd.f32 %v8042, %v8202
        %v8204 = vpop.f32.mrb[0].mxu0
        %8205 = vmatprep.mubr.bf16.mxu0 0
        %8206 = vmatmul.mubr.bf16.gmra.mrb[0].mxu0 %v7910
        %v8207 = vpop.f32.mrb[0].mxu0
        %v8208 = vadd.f32 %v8047, %v8207
        %v8209 = vpop.f32.mrb[0].mxu0
        %v8210 = vpop.f32.mrb[0].mxu0
        %v8211 = vadd.f32 %v8050, %v8210
        %v8212 = vpop.f32.mrb[0].mxu0
        %8213 = vmatprep.mubr.bf16.mxu0 0
        %8214 = vmatmul.mubr.bf16.gmra.mrb[0].mxu0 %v7913
        %v8215 = vpop.f32.mrb[0].mxu0
        %v8216 = vadd.f32 %v8055, %v8215
        %v8217 = vpop.f32.mrb[0].mxu0
        %v8218 = vpop.f32.mrb[0].mxu0
        %v8219 = vadd.f32 %v8058, %v8218
        %v8220 = vpop.f32.mrb[0].mxu0
        %8221 = vmatprep.mubr.bf16.mxu0 0
        %8222 = vmatmul.mubr.bf16.gmra.mrb[0].mxu0 %v7916
        %v8223 = vpop.f32.mrb[0].mxu0
        %v8224 = vadd.f32 %v8063, %v8223
        %v8225 = vpop.f32.mrb[0].mxu0
        %v8226 = vpop.f32.mrb[0].mxu0
        %v8227 = vadd.f32 %v8066, %v8226
        %v8228 = vpop.f32.mrb[0].mxu0
        %8229 = vmatprep.mubr.bf16.mxu0 0
        %8230 = vmatmul.mubr.bf16.gmra.mrb[0].mxu0 %v7919
        %v8231 = vpop.f32.mrb[0].mxu0
        %v8232 = vadd.f32 %v8071, %v8231
        %v8233 = vpop.f32.mrb[0].mxu0
        %v8234 = vpop.f32.mrb[0].mxu0
        %v8235 = vadd.f32 %v8074, %v8234
        %v8236 = vpop.f32.mrb[0].mxu0
        %8237 = vmatprep.mubr.bf16.mxu0 0
        %8238 = vmatmul.mubr.bf16.gmra.mrb[0].mxu0 %v7922
        %v8239 = vpop.f32.mrb[0].mxu0
        %v8240 = vadd.f32 %v8079, %v8239
        %v8241 = vpop.f32.mrb[0].mxu0
        %v8242 = vpop.f32.mrb[0].mxu0
        %v8243 = vadd.f32 %v8082, %v8242
        %v8244 = vpop.f32.mrb[0].mxu0
        %8245 = vdwg.mxu0
        %v8246 = vsel %vm386, %v8120, 0.0
        %v8247 = vsel %vm386, %v8123, 0.0
        %v8248 = vadd.f32 %v8246, %v8247
        %v8249 = vsel %vm386, %v8128, 0.0
        %v8250 = vadd.f32 %v8248, %v8249
        %v8251 = vsel %vm386, %v8131, 0.0
        %v8252 = vadd.f32 %v8250, %v8251
        %v8253 = vsel %vm386, %v8136, 0.0
        %v8254 = vadd.f32 %v8252, %v8253
        %v8255 = vsel %vm386, %v8139, 0.0
        %v8256 = vadd.f32 %v8254, %v8255
        %v8257 = vsel %vm386, %v8144, 0.0
        %v8258 = vadd.f32 %v8256, %v8257
        %v8259 = vsel %vm386, %v8147, 0.0
        %v8260 = vadd.f32 %v8258, %v8259
        %v8261 = vsel %vm386, %v8152, 0.0
        %v8262 = vadd.f32 %v8260, %v8261
        %v8263 = vsel %vm386, %v8155, 0.0
        %v8264 = vadd.f32 %v8262, %v8263
        %v8265 = vsel %vm386, %v8160, 0.0
        %v8266 = vadd.f32 %v8264, %v8265
        %v8267 = vsel %vm386, %v8163, 0.0
        %v8268 = vadd.f32 %v8266, %v8267
        %v8269 = vsel %vm386, %v8168, 0.0
        %v8270 = vadd.f32 %v8268, %v8269
        %v8271 = vsel %vm386, %v8171, 0.0
        %v8272 = vadd.f32 %v8270, %v8271
        %v8273 = vsel %vm386, %v8176, 0.0
        %v8274 = vadd.f32 %v8272, %v8273
        %v8275 = vsel %vm386, %v8179, 0.0
        %v8276 = vadd.f32 %v8274, %v8275
        %v8277 = vsel %vm386, %v8184, 0.0
        %v8278 = vadd.f32 %v8276, %v8277
        %v8279 = vsel %vm386, %v8187, 0.0
        %v8280 = vadd.f32 %v8278, %v8279
        %v8281 = vsel %vm386, %v8192, 0.0
        %v8282 = vadd.f32 %v8280, %v8281
        %v8283 = vsel %vm386, %v8195, 0.0
        %v8284 = vadd.f32 %v8282, %v8283
        %v8285 = vsel %vm386, %v8200, 0.0
        %v8286 = vadd.f32 %v8284, %v8285
        %v8287 = vsel %vm386, %v8203, 0.0
        %v8288 = vadd.f32 %v8286, %v8287
        %v8289 = vsel %vm386, %v8208, 0.0
        %v8290 = vadd.f32 %v8288, %v8289
        %v8291 = vsel %vm386, %v8211, 0.0
        %v8292 = vadd.f32 %v8290, %v8291
        %v8293 = vsel %vm386, %v8216, 0.0
        %v8294 = vadd.f32 %v8292, %v8293
        %v8295 = vsel %vm386, %v8219, 0.0
        %v8296 = vadd.f32 %v8294, %v8295
        %v8297 = vsel %vm386, %v8224, 0.0
        %v8298 = vadd.f32 %v8296, %v8297
        %v8299 = vsel %vm386, %v8227, 0.0
        %v8300 = vadd.f32 %v8298, %v8299
        %v8301 = vsel %vm386, %v8232, 0.0
        %v8302 = vadd.f32 %v8300, %v8301
        %v8303 = vsel %vm386, %v8235, 0.0
        %v8304 = vadd.f32 %v8302, %v8303
        %v8305 = vsel %vm386, %v8240, 0.0
        %v8306 = vadd.f32 %v8304, %v8305
        %v8307 = vsel %vm386, %v8243, 0.0
        %v8308 = vadd.f32 %v8306, %v8307
        %v8309 = vrot.slane %v8308, 4
        %v8310 = vadd.f32 %v8308, %v8309
        %v8311 = vrot.slane %v8310, 2
        %v8312 = vadd.f32 %v8310, %v8311
        %v8313 = vrot.slane %v8312, 1
        %v8314 = vadd.f32 %v8312, %v8313
        %v8315 = vmul.f32 %v8314, %v4277
        %s8316 = scalar_lea.vmem %s5, 32
        %v8317 = vld [vmem:[%s8316] sm:$0xff]
        %v8318 = vld [vmem:[%s8316 + $0x8] sm:$0xff]
        %v8319 = vld [vmem:[%s8316 + $0x10] sm:$0xff]
        %v8320 = vld [vmem:[%s8316 + $0x18] sm:$0xff]
        %s8321 = scalar_lea.vmem %s6, 1
        %v8322 = vld [vmem:[%s8321] sm:$0x1]
        %v8324 = vsel %vm386, %v8315, 0
        %8326 = vmatprep.subr.mxu0 0.0
        %8327 = vmatpush1.msra.mxu0 %v8317
        %8328 = vmatprep.subr.mxu0 0.0
        %8329 = vmatpush1.msra.mxu0 %v8318
        %8330 = vmatprep.subr.mxu0 0.0
        %8331 = vmatpush1.msra.mxu0 %v8319
        %8332 = vmatprep.subr.mxu0 0.0
        %8333 = vmatpush1.msra.mxu0 %v8320
        %8334 = vmatprep.subr.mxu0 0.0
        %8335 = vmatpush1.msra.mxu0 0.0
        %8336 = vmatprep.subr.mxu0 0.0
        %8337 = vmatpush1.msra.mxu0 0.0
        %8338 = vmatprep.subr.mxu0 0.0
        %8339 = vmatpush1.msra.mxu0 0.0
        %8340 = vmatprep.subr.mxu0 0.0
        %8341 = vmatpush1.msra.mxu0 0.0
        %8342 = vmatprep.subr.mxu0 0.0
        %8343 = vmatpush1.msra.mxu0 0.0
        %8344 = vmatprep.subr.mxu0 0.0
        %8345 = vmatpush1.msra.mxu0 0.0
        %8346 = vmatprep.subr.mxu0 0.0
        %8347 = vmatpush1.msra.mxu0 0.0
        %8348 = vmatprep.subr.mxu0 0.0
        %8349 = vmatpush1.msra.mxu0 0.0
        %8350 = vmatprep.subr.mxu0 0.0
        %8351 = vmatpush1.msra.mxu0 0.0
        %8352 = vmatprep.subr.mxu0 0.0
        %8353 = vmatpush1.msra.mxu0 0.0
        %8354 = vmatprep.subr.mxu0 0.0
        %8355 = vmatpush1.msra.mxu0 0.0
        %8356 = vmatprep.subr.mxu0 0.0
        %8357 = vmatpush1.msra.mxu0 0.0
        %8358 = vmatprep.subr.mxu0 0.0
        %8359 = vmatpush1.msra.mxu0 0.0
        %8360 = vmatprep.subr.mxu0 0.0
        %8361 = vmatpush1.msra.mxu0 0.0
        %8362 = vmatprep.subr.mxu0 0.0
        %8363 = vmatpush1.msra.mxu0 0.0
        %8364 = vmatprep.subr.mxu0 0.0
        %8365 = vmatpush1.msra.mxu0 0.0
        %8366 = vmatprep.subr.mxu0 0.0
        %8367 = vmatpush1.msra.mxu0 0.0
        %8368 = vmatprep.subr.mxu0 0.0
        %8369 = vmatpush1.msra.mxu0 0.0
        %8370 = vmatprep.subr.mxu0 0.0
        %8371 = vmatpush1.msra.mxu0 0.0
        %8372 = vmatprep.subr.mxu0 0.0
        %8373 = vmatpush1.msra.mxu0 0.0
        %8374 = vmatprep.subr.mxu0 0.0
        %8375 = vmatpush1.msra.mxu0 0.0
        %8376 = vmatprep.subr.mxu0 0.0
        %8377 = vmatpush1.msra.mxu0 0.0
        %8378 = vmatprep.subr.mxu0 0.0
        %8379 = vmatpush1.msra.mxu0 0.0
        %8380 = vmatprep.subr.mxu0 0.0
        %8381 = vmatpush1.msra.mxu0 0.0
        %8382 = vmatprep.subr.mxu0 0.0
        %8383 = vmatpush1.msra.mxu0 0.0
        %8384 = vmatprep.subr.mxu0 0.0
        %8385 = vmatpush1.msra.mxu0 0.0
        %8386 = vmatprep.subr.mxu0 0.0
        %8387 = vmatpush1.msra.mxu0 0.0
        %8388 = vmatprep.subr.mxu0 0.0
        %8389 = vmatpush1.msra.mxu0 0.0
        %8390 = vmatprep.mubr.f32.mxu0 0.0
        %8391 = vmatmul.mubr.f32.gmra.mrb[0].mxu0 %v8324
        %v8392 = vpop.f32.mrb[0].mxu0
        %v8393 = vadd.f32 %v8322, %v8392
        %v8394 = vpop.f32.mrb[0].mxu0
        %8395 = vdwg.mxu0
        %v8396 = vmax.f32 %v8393, 0.0
        %s8397 = scalar_lea.vmem %s7, 4
        %v8398 = vld [vmem:[%s8397] sm:$0xf]
        %s8399 = scalar_lea.vmem %s8, 1
        %v8400 = vld [vmem:[%s8399] sm:$0x1]
        %v8402 = vsel %vm4360, %v8396, 0
        %v8405 = vsel %vm4364, %v8398, 0
        %8407 = vmatprep.subr.mxu0 0.0
        %8408 = vmatpush1.msra.mxu0 %v8405
        %8409 = vmatprep.subr.mxu0 0.0
        %8410 = vmatpush1.msra.mxu0 0.0
        %8411 = vmatprep.subr.mxu0 0.0
        %8412 = vmatpush1.msra.mxu0 0.0
        %8413 = vmatprep.subr.mxu0 0.0
        %8414 = vmatpush1.msra.mxu0 0.0
        %8415 = vmatprep.subr.mxu0 0.0
        %8416 = vmatpush1.msra.mxu0 0.0
        %8417 = vmatprep.subr.mxu0 0.0
        %8418 = vmatpush1.msra.mxu0 0.0
        %8419 = vmatprep.subr.mxu0 0.0
        %8420 = vmatpush1.msra.mxu0 0.0
        %8421 = vmatprep.subr.mxu0 0.0
        %8422 = vmatpush1.msra.mxu0 0.0
        %8423 = vmatprep.subr.mxu0 0.0
        %8424 = vmatpush1.msra.mxu0 0.0
        %8425 = vmatprep.subr.mxu0 0.0
        %8426 = vmatpush1.msra.mxu0 0.0
        %8427 = vmatprep.subr.mxu0 0.0
        %8428 = vmatpush1.msra.mxu0 0.0
        %8429 = vmatprep.subr.mxu0 0.0
        %8430 = vmatpush1.msra.mxu0 0.0
        %8431 = vmatprep.subr.mxu0 0.0
        %8432 = vmatpush1.msra.mxu0 0.0
        %8433 = vmatprep.subr.mxu0 0.0
        %8434 = vmatpush1.msra.mxu0 0.0
        %8435 = vmatprep.subr.mxu0 0.0
        %8436 = vmatpush1.msra.mxu0 0.0
        %8437 = vmatprep.subr.mxu0 0.0
        %8438 = vmatpush1.msra.mxu0 0.0
        %8439 = vmatprep.subr.mxu0 0.0
        %8440 = vmatpush1.msra.mxu0 0.0
        %8441 = vmatprep.subr.mxu0 0.0
        %8442 = vmatpush1.msra.mxu0 0.0
        %8443 = vmatprep.subr.mxu0 0.0
        %8444 = vmatpush1.msra.mxu0 0.0
        %8445 = vmatprep.subr.mxu0 0.0
        %8446 = vmatpush1.msra.mxu0 0.0
        %8447 = vmatprep.subr.mxu0 0.0
        %8448 = vmatpush1.msra.mxu0 0.0
        %8449 = vmatprep.subr.mxu0 0.0
        %8450 = vmatpush1.msra.mxu0 0.0
        %8451 = vmatprep.subr.mxu0 0.0
        %8452 = vmatpush1.msra.mxu0 0.0
        %8453 = vmatprep.subr.mxu0 0.0
        %8454 = vmatpush1.msra.mxu0 0.0
        %8455 = vmatprep.subr.mxu0 0.0
        %8456 = vmatpush1.msra.mxu0 0.0
        %8457 = vmatprep.subr.mxu0 0.0
        %8458 = vmatpush1.msra.mxu0 0.0
        %8459 = vmatprep.subr.mxu0 0.0
        %8460 = vmatpush1.msra.mxu0 0.0
        %8461 = vmatprep.subr.mxu0 0.0
        %8462 = vmatpush1.msra.mxu0 0.0
        %8463 = vmatprep.subr.mxu0 0.0
        %8464 = vmatpush1.msra.mxu0 0.0
        %8465 = vmatprep.subr.mxu0 0.0
        %8466 = vmatpush1.msra.mxu0 0.0
        %8467 = vmatprep.subr.mxu0 0.0
        %8468 = vmatpush1.msra.mxu0 0.0
        %8469 = vmatprep.subr.mxu0 0.0
        %8470 = vmatpush1.msra.mxu0 0.0
        %8471 = vmatprep.mubr.f32.mxu0 0.0
        %8472 = vmatmul.mubr.f32.gmra.mrb[0].mxu0 %v8402
        %v8473 = vpop.f32.mrb[0].mxu0
        %v8474 = vadd.f32 %v8400, %v8473
        %v8475 = vpop.f32.mrb[0].mxu0
        %8476 = vdwg.mxu0
        %v8477 = vxor.u32 %v8474, 2147483648
        %v8478 = vmul.f32 %v8477, 1.442695
        %v8479 = vpow.pop %v8478
        %v8480 = vadd.f32 %v8479, 1.0
        %v8481 = vrcp.pop %v8480
        %v8482 = vmul.f32 1.0, %v8481
        %v8483 = vlaneseq
        %v8484 = vshrl.u32 %v8483, 7
        %v8485 = vsub.s32 0, %v8484
        %v8486 = vrot.slane %v8482, %v8485
        %v8487 = vmul.f32 %v8120, %v8486
        %v8488 = vmul.f32 %v8123, %v8486
        %v8489 = vmul.f32 %v8128, %v8486
        %v8490 = vmul.f32 %v8131, %v8486
        %v8491 = vmul.f32 %v8136, %v8486
        %v8492 = vmul.f32 %v8139, %v8486
        %v8493 = vmul.f32 %v8144, %v8486
        %v8494 = vmul.f32 %v8147, %v8486
        %v8495 = vmul.f32 %v8152, %v8486
        %v8496 = vmul.f32 %v8155, %v8486
        %v8497 = vmul.f32 %v8160, %v8486
        %v8498 = vmul.f32 %v8163, %v8486
        %v8499 = vmul.f32 %v8168, %v8486
        %v8500 = vmul.f32 %v8171, %v8486
        %v8501 = vmul.f32 %v8176, %v8486
        %v8502 = vmul.f32 %v8179, %v8486
        %v8503 = vmul.f32 %v8184, %v8486
        %v8504 = vmul.f32 %v8187, %v8486
        %v8505 = vmul.f32 %v8192, %v8486
        %v8506 = vmul.f32 %v8195, %v8486
        %v8507 = vmul.f32 %v8200, %v8486
        %v8508 = vmul.f32 %v8203, %v8486
        %v8509 = vmul.f32 %v8208, %v8486
        %v8510 = vmul.f32 %v8211, %v8486
        %v8511 = vmul.f32 %v8216, %v8486
        %v8512 = vmul.f32 %v8219, %v8486
        %v8513 = vmul.f32 %v8224, %v8486
        %v8514 = vmul.f32 %v8227, %v8486
        %v8515 = vmul.f32 %v8232, %v8486
        %v8516 = vmul.f32 %v8235, %v8486
        %v8517 = vmul.f32 %v8240, %v8486
        %v8518 = vmul.f32 %v8243, %v8486
        %v8519 = vadd.f32 %v8487, %v4480
        %v8520 = vadd.f32 %v8488, %v4481
        %v8521 = vadd.f32 %v8489, %v4482
        %v8522 = vadd.f32 %v8490, %v4483
        %v8523 = vadd.f32 %v8491, %v4484
        %v8524 = vadd.f32 %v8492, %v4485
        %v8525 = vadd.f32 %v8493, %v4486
        %v8526 = vadd.f32 %v8494, %v4487
        %v8527 = vadd.f32 %v8495, %v4488
        %v8528 = vadd.f32 %v8496, %v4489
        %v8529 = vadd.f32 %v8497, %v4490
        %v8530 = vadd.f32 %v8498, %v4491
        %v8531 = vadd.f32 %v8499, %v4492
        %v8532 = vadd.f32 %v8500, %v4493
        %v8533 = vadd.f32 %v8501, %v4494
        %v8534 = vadd.f32 %v8502, %v4495
        %v8535 = vadd.f32 %v8503, %v4496
        %v8536 = vadd.f32 %v8504, %v4497
        %v8537 = vadd.f32 %v8505, %v4498
        %v8538 = vadd.f32 %v8506, %v4499
        %v8539 = vadd.f32 %v8507, %v4500
        %v8540 = vadd.f32 %v8508, %v4501
        %v8541 = vadd.f32 %v8509, %v4502
        %v8542 = vadd.f32 %v8510, %v4503
        %v8543 = vadd.f32 %v8511, %v4504
        %v8544 = vadd.f32 %v8512, %v4505
        %v8545 = vadd.f32 %v8513, %v4506
        %v8546 = vadd.f32 %v8514, %v4507
        %v8547 = vadd.f32 %v8515, %v4508
        %v8548 = vadd.f32 %v8516, %v4509
        %v8549 = vadd.f32 %v8517, %v4510
        %v8550 = vadd.f32 %v8518, %v4511
        %8551 = vst.msk [vmem:[%s548 + $0x1] sm:$0xff] %vm386, %v8519
        %8552 = vst.msk [vmem:[%s548 + $0x9] sm:$0xff] %vm386, %v8520
        %8553 = vst.msk [vmem:[%s548 + $0x19] sm:$0xff] %vm386, %v8521
        %8554 = vst.msk [vmem:[%s548 + $0x21] sm:$0xff] %vm386, %v8522
        %8555 = vst.msk [vmem:[%s548 + $0x31] sm:$0xff] %vm386, %v8523
        %8556 = vst.msk [vmem:[%s548 + $0x39] sm:$0xff] %vm386, %v8524
        %8557 = vst.msk [vmem:[%s548 + $0x49] sm:$0xff] %vm386, %v8525
        %8558 = vst.msk [vmem:[%s548 + $0x51] sm:$0xff] %vm386, %v8526
        %8559 = vst.msk [vmem:[%s548 + $0x61] sm:$0xff] %vm386, %v8527
        %8560 = vst.msk [vmem:[%s548 + $0x69] sm:$0xff] %vm386, %v8528
        %8561 = vst.msk [vmem:[%s548 + $0x79] sm:$0xff] %vm386, %v8529
        %8562 = vst.msk [vmem:[%s548 + $0x81] sm:$0xff] %vm386, %v8530
        %8563 = vst.msk [vmem:[%s548 + $0x91] sm:$0xff] %vm386, %v8531
        %8564 = vst.msk [vmem:[%s548 + $0x99] sm:$0xff] %vm386, %v8532
        %8565 = vst.msk [vmem:[%s548 + $0xa9] sm:$0xff] %vm386, %v8533
        %8566 = vst.msk [vmem:[%s548 + $0xb1] sm:$0xff] %vm386, %v8534
        %8567 = vst.msk [vmem:[%s548 + $0xc1] sm:$0xff] %vm386, %v8535
        %8568 = vst.msk [vmem:[%s548 + $0xc9] sm:$0xff] %vm386, %v8536
        %8569 = vst.msk [vmem:[%s548 + $0xd9] sm:$0xff] %vm386, %v8537
        %8570 = vst.msk [vmem:[%s548 + $0xe1] sm:$0xff] %vm386, %v8538
        %8571 = vst.msk [vmem:[%s548 + $0xf1] sm:$0xff] %vm386, %v8539
        %8572 = vst.msk [vmem:[%s548 + $0xf9] sm:$0xff] %vm386, %v8540
        %8573 = vst.msk [vmem:[%s548 + $0x109] sm:$0xff] %vm386, %v8541
        %8574 = vst.msk [vmem:[%s548 + $0x111] sm:$0xff] %vm386, %v8542
        %8575 = vst.msk [vmem:[%s548 + $0x121] sm:$0xff] %vm386, %v8543
        %8576 = vst.msk [vmem:[%s548 + $0x129] sm:$0xff] %vm386, %v8544
        %8577 = vst.msk [vmem:[%s548 + $0x139] sm:$0xff] %vm386, %v8545
        %8578 = vst.msk [vmem:[%s548 + $0x141] sm:$0xff] %vm386, %v8546
        %8579 = vst.msk [vmem:[%s548 + $0x151] sm:$0xff] %vm386, %v8547
        %8580 = vst.msk [vmem:[%s548 + $0x159] sm:$0xff] %vm386, %v8548
        %8581 = vst.msk [vmem:[%s548 + $0x169] sm:$0xff] %vm386, %v8549
        %8582 = vst.msk [vmem:[%s548 + $0x171] sm:$0xff] %vm386, %v8550
        %v8583 = vld [vmem:[%s9] sm:$0xf]
        %v8584 = vld [vmem:[%s9 + $0x4] sm:$0xf]
        %v8585 = vld [vmem:[%s9 + $0x8] sm:$0xf]
        %v8586 = vld [vmem:[%s9 + $0xc] sm:$0xf]
        %v8587 = vld [vmem:[%s9 + $0x10] sm:$0xf]
        %v8588 = vld [vmem:[%s9 + $0x14] sm:$0xf]
        %v8589 = vld [vmem:[%s9 + $0x18] sm:$0xf]
        %v8590 = vld [vmem:[%s9 + $0x1c] sm:$0xf]
        %v8591 = vld [vmem:[%s9 + $0x20] sm:$0xf]
        %v8592 = vld [vmem:[%s9 + $0x24] sm:$0xf]
        %v8593 = vld [vmem:[%s9 + $0x28] sm:$0xf]
        %v8594 = vld [vmem:[%s9 + $0x2c] sm:$0xf]
        %v8595 = vld [vmem:[%s9 + $0x30] sm:$0xf]
        %v8596 = vld [vmem:[%s9 + $0x34] sm:$0xf]
        %v8597 = vld [vmem:[%s9 + $0x38] sm:$0xf]
        %v8598 = vld [vmem:[%s9 + $0x3c] sm:$0xf]
        %v8599 = vld [vmem:[%s9 + $0x40] sm:$0xf]
        %v8600 = vld [vmem:[%s9 + $0x44] sm:$0xf]
        %v8601 = vld [vmem:[%s9 + $0x48] sm:$0xf]
        %v8602 = vld [vmem:[%s9 + $0x4c] sm:$0xf]
        %v8603 = vld [vmem:[%s9 + $0x50] sm:$0xf]
        %v8604 = vld [vmem:[%s9 + $0x54] sm:$0xf]
        %v8605 = vld [vmem:[%s9 + $0x58] sm:$0xf]
        %v8606 = vld [vmem:[%s9 + $0x5c] sm:$0xf]
        %v8607 = vld [vmem:[%s9 + $0x60] sm:$0xf]
        %v8608 = vld [vmem:[%s9 + $0x64] sm:$0xf]
        %v8609 = vld [vmem:[%s9 + $0x68] sm:$0xf]
        %v8610 = vld [vmem:[%s9 + $0x6c] sm:$0xf]
        %v8611 = vld [vmem:[%s9 + $0x70] sm:$0xf]
        %v8612 = vld [vmem:[%s9 + $0x74] sm:$0xf]
        %v8613 = vld [vmem:[%s9 + $0x78] sm:$0xf]
        %v8614 = vld [vmem:[%s9 + $0x7c] sm:$0xf]
        %v8615 = vld [vmem:[%s9 + $0x80] sm:$0xf]
        %v8616 = vld [vmem:[%s9 + $0x84] sm:$0xf]
        %v8617 = vld [vmem:[%s9 + $0x88] sm:$0xf]
        %v8618 = vld [vmem:[%s9 + $0x8c] sm:$0xf]
        %v8619 = vld [vmem:[%s10] sm:$0x1]
        %v8620 = vld [vmem:[#allocation2] sm:$0xff]
        %v8621 = vld [vmem:[#allocation2 + $0x8] sm:$0xff]
        %v8622 = vld [vmem:[#allocation2 + $0x18] sm:$0xff]
        %v8623 = vld [vmem:[#allocation2 + $0x20] sm:$0xff]
        %v8624 = vld [vmem:[#allocation2 + $0x30] sm:$0xff]
        %v8625 = vld [vmem:[#allocation2 + $0x38] sm:$0xff]
        %v8626 = vld [vmem:[#allocation2 + $0x48] sm:$0xff]
        %v8627 = vld [vmem:[#allocation2 + $0x50] sm:$0xff]
        %v8628 = vld [vmem:[#allocation2 + $0x60] sm:$0xff]
        %v8629 = vld [vmem:[#allocation2 + $0x68] sm:$0xff]
        %v8630 = vld [vmem:[#allocation2 + $0x78] sm:$0xff]
        %v8631 = vld [vmem:[#allocation2 + $0x80] sm:$0xff]
        %v8632 = vld [vmem:[#allocation2 + $0x90] sm:$0xff]
        %v8633 = vld [vmem:[#allocation2 + $0x98] sm:$0xff]
        %v8634 = vld [vmem:[#allocation2 + $0xa8] sm:$0xff]
        %v8635 = vld [vmem:[#allocation2 + $0xb0] sm:$0xff]
        %v8636 = vld [vmem:[#allocation2 + $0xc0] sm:$0xff]
        %v8637 = vld [vmem:[#allocation2 + $0xc8] sm:$0xff]
        %v8638 = vld [vmem:[#allocation2 + $0xd8] sm:$0xff]
        %v8639 = vld [vmem:[#allocation2 + $0xe0] sm:$0xff]
        %v8640 = vld [vmem:[#allocation2 + $0xf0] sm:$0xff]
        %v8641 = vld [vmem:[#allocation2 + $0xf8] sm:$0xff]
        %v8642 = vld [vmem:[#allocation2 + $0x108] sm:$0xff]
        %v8643 = vld [vmem:[#allocation2 + $0x110] sm:$0xff]
        %v8644 = vld [vmem:[#allocation2 + $0x120] sm:$0xff]
        %v8645 = vld [vmem:[#allocation2 + $0x128] sm:$0xff]
        %v8646 = vld [vmem:[#allocation2 + $0x138] sm:$0xff]
        %v8647 = vld [vmem:[#allocation2 + $0x140] sm:$0xff]
        %v8648 = vld [vmem:[#allocation2 + $0x150] sm:$0xff]
        %v8649 = vld [vmem:[#allocation2 + $0x158] sm:$0xff]
        %v8650 = vld [vmem:[#allocation2 + $0x168] sm:$0xff]
        %v8651 = vld [vmem:[#allocation2 + $0x170] sm:$0xff]
        %v8652 = vld [vmem:[#allocation2 + $0x1] sm:$0xff]
        %v8653 = vld [vmem:[#allocation2 + $0x9] sm:$0xff]
        %v8654 = vld [vmem:[#allocation2 + $0x19] sm:$0xff]
        %v8655 = vld [vmem:[#allocation2 + $0x21] sm:$0xff]
        %v8656 = vld [vmem:[#allocation2 + $0x31] sm:$0xff]
        %v8657 = vld [vmem:[#allocation2 + $0x39] sm:$0xff]
        %v8658 = vld [vmem:[#allocation2 + $0x49] sm:$0xff]
        %v8659 = vld [vmem:[#allocation2 + $0x51] sm:$0xff]
        %v8660 = vld [vmem:[#allocation2 + $0x61] sm:$0xff]
        %v8661 = vld [vmem:[#allocation2 + $0x69] sm:$0xff]
        %v8662 = vld [vmem:[#allocation2 + $0x79] sm:$0xff]
        %v8663 = vld [vmem:[#allocation2 + $0x81] sm:$0xff]
        %v8664 = vld [vmem:[#allocation2 + $0x91] sm:$0xff]
        %v8665 = vld [vmem:[#allocation2 + $0x99] sm:$0xff]
        %v8666 = vld [vmem:[#allocation2 + $0xa9] sm:$0xff]
        %v8667 = vld [vmem:[#allocation2 + $0xb1] sm:$0xff]
        %v8668 = vld [vmem:[#allocation2 + $0xc1] sm:$0xff]
        %v8669 = vld [vmem:[#allocation2 + $0xc9] sm:$0xff]
        %v8670 = vld [vmem:[#allocation2 + $0xd9] sm:$0xff]
        %v8671 = vld [vmem:[#allocation2 + $0xe1] sm:$0xff]
        %v8672 = vld [vmem:[#allocation2 + $0xf1] sm:$0xff]
        %v8673 = vld [vmem:[#allocation2 + $0xf9] sm:$0xff]
        %v8674 = vld [vmem:[#allocation2 + $0x109] sm:$0xff]
        %v8675 = vld [vmem:[#allocation2 + $0x111] sm:$0xff]
        %v8676 = vld [vmem:[#allocation2 + $0x121] sm:$0xff]
        %v8677 = vld [vmem:[#allocation2 + $0x129] sm:$0xff]
        %v8678 = vld [vmem:[#allocation2 + $0x139] sm:$0xff]
        %v8679 = vld [vmem:[#allocation2 + $0x141] sm:$0xff]
        %v8680 = vld [vmem:[#allocation2 + $0x151] sm:$0xff]
        %v8681 = vld [vmem:[#allocation2 + $0x159] sm:$0xff]
        %v8682 = vld [vmem:[#allocation2 + $0x169] sm:$0xff]
        %v8683 = vld [vmem:[#allocation2 + $0x171] sm:$0xff]
        %v8684 = vld [vmem:[#allocation2 + $0x2] sm:$0xff]
        %v8685 = vld [vmem:[#allocation2 + $0xa] sm:$0xff]
        %v8686 = vld [vmem:[#allocation2 + $0x1a] sm:$0xff]
        %v8687 = vld [vmem:[#allocation2 + $0x22] sm:$0xff]
        %v8688 = vld [vmem:[#allocation2 + $0x32] sm:$0xff]
        %v8689 = vld [vmem:[#allocation2 + $0x3a] sm:$0xff]
        %v8690 = vld [vmem:[#allocation2 + $0x4a] sm:$0xff]
        %v8691 = vld [vmem:[#allocation2 + $0x52] sm:$0xff]
        %v8692 = vld [vmem:[#allocation2 + $0x62] sm:$0xff]
        %v8693 = vld [vmem:[#allocation2 + $0x6a] sm:$0xff]
        %v8694 = vld [vmem:[#allocation2 + $0x7a] sm:$0xff]
        %v8695 = vld [vmem:[#allocation2 + $0x82] sm:$0xff]
        %v8696 = vld [vmem:[#allocation2 + $0x92] sm:$0xff]
        %v8697 = vld [vmem:[#allocation2 + $0x9a] sm:$0xff]
        %v8698 = vld [vmem:[#allocation2 + $0xaa] sm:$0xff]
        %v8699 = vld [vmem:[#allocation2 + $0xb2] sm:$0xff]
        %v8700 = vld [vmem:[#allocation2 + $0xc2] sm:$0xff]
        %v8701 = vld [vmem:[#allocation2 + $0xca] sm:$0xff]
        %v8702 = vld [vmem:[#allocation2 + $0xda] sm:$0xff]
        %v8703 = vld [vmem:[#allocation2 + $0xe2] sm:$0xff]
        %v8704 = vld [vmem:[#allocation2 + $0xf2] sm:$0xff]
        %v8705 = vld [vmem:[#allocation2 + $0xfa] sm:$0xff]
        %v8706 = vld [vmem:[#allocation2 + $0x10a] sm:$0xff]
        %v8707 = vld [vmem:[#allocation2 + $0x112] sm:$0xff]
        %v8708 = vld [vmem:[#allocation2 + $0x122] sm:$0xff]
        %v8709 = vld [vmem:[#allocation2 + $0x12a] sm:$0xff]
        %v8710 = vld [vmem:[#allocation2 + $0x13a] sm:$0xff]
        %v8711 = vld [vmem:[#allocation2 + $0x142] sm:$0xff]
        %v8712 = vld [vmem:[#allocation2 + $0x152] sm:$0xff]
        %v8713 = vld [vmem:[#allocation2 + $0x15a] sm:$0xff]
        %v8714 = vld [vmem:[#allocation2 + $0x16a] sm:$0xff]
        %v8715 = vld [vmem:[#allocation2 + $0x172] sm:$0xff]
        %v8716 = vld [vmem:[%s548] sm:$0xff]
        %v8717 = vld [vmem:[%s548 + $0x8] sm:$0xff]
        %v8718 = vld [vmem:[%s548 + $0x18] sm:$0xff]
        %v8719 = vld [vmem:[%s548 + $0x20] sm:$0xff]
        %v8720 = vld [vmem:[%s548 + $0x30] sm:$0xff]
        %v8721 = vld [vmem:[%s548 + $0x38] sm:$0xff]
        %v8722 = vld [vmem:[%s548 + $0x48] sm:$0xff]
        %v8723 = vld [vmem:[%s548 + $0x50] sm:$0xff]
        %v8724 = vld [vmem:[%s548 + $0x60] sm:$0xff]
        %v8725 = vld [vmem:[%s548 + $0x68] sm:$0xff]
        %v8726 = vld [vmem:[%s548 + $0x78] sm:$0xff]
        %v8727 = vld [vmem:[%s548 + $0x80] sm:$0xff]
        %v8728 = vld [vmem:[%s548 + $0x90] sm:$0xff]
        %v8729 = vld [vmem:[%s548 + $0x98] sm:$0xff]
        %v8730 = vld [vmem:[%s548 + $0xa8] sm:$0xff]
        %v8731 = vld [vmem:[%s548 + $0xb0] sm:$0xff]
        %v8732 = vld [vmem:[%s548 + $0xc0] sm:$0xff]
        %v8733 = vld [vmem:[%s548 + $0xc8] sm:$0xff]
        %v8734 = vld [vmem:[%s548 + $0xd8] sm:$0xff]
        %v8735 = vld [vmem:[%s548 + $0xe0] sm:$0xff]
        %v8736 = vld [vmem:[%s548 + $0xf0] sm:$0xff]
        %v8737 = vld [vmem:[%s548 + $0xf8] sm:$0xff]
        %v8738 = vld [vmem:[%s548 + $0x108] sm:$0xff]
        %v8739 = vld [vmem:[%s548 + $0x110] sm:$0xff]
        %v8740 = vld [vmem:[%s548 + $0x120] sm:$0xff]
        %v8741 = vld [vmem:[%s548 + $0x128] sm:$0xff]
        %v8742 = vld [vmem:[%s548 + $0x138] sm:$0xff]
        %v8743 = vld [vmem:[%s548 + $0x140] sm:$0xff]
        %v8744 = vld [vmem:[%s548 + $0x150] sm:$0xff]
        %v8745 = vld [vmem:[%s548 + $0x158] sm:$0xff]
        %v8746 = vld [vmem:[%s548 + $0x168] sm:$0xff]
        %v8747 = vld [vmem:[%s548 + $0x170] sm:$0xff]
        %v8748 = vld [vmem:[%s548 + $0x1] sm:$0xff]
        %v8749 = vld [vmem:[%s548 + $0x9] sm:$0xff]
        %v8750 = vld [vmem:[%s548 + $0x19] sm:$0xff]
        %v8751 = vld [vmem:[%s548 + $0x21] sm:$0xff]
        %v8752 = vld [vmem:[%s548 + $0x31] sm:$0xff]
        %v8753 = vld [vmem:[%s548 + $0x39] sm:$0xff]
        %v8754 = vld [vmem:[%s548 + $0x49] sm:$0xff]
        %v8755 = vld [vmem:[%s548 + $0x51] sm:$0xff]
        %v8756 = vld [vmem:[%s548 + $0x61] sm:$0xff]
        %v8757 = vld [vmem:[%s548 + $0x69] sm:$0xff]
        %v8758 = vld [vmem:[%s548 + $0x79] sm:$0xff]
        %v8759 = vld [vmem:[%s548 + $0x81] sm:$0xff]
        %v8760 = vld [vmem:[%s548 + $0x91] sm:$0xff]
        %v8761 = vld [vmem:[%s548 + $0x99] sm:$0xff]
        %v8762 = vld [vmem:[%s548 + $0xa9] sm:$0xff]
        %v8763 = vld [vmem:[%s548 + $0xb1] sm:$0xff]
        %v8764 = vld [vmem:[%s548 + $0xc1] sm:$0xff]
        %v8765 = vld [vmem:[%s548 + $0xc9] sm:$0xff]
        %v8766 = vld [vmem:[%s548 + $0xd9] sm:$0xff]
        %v8767 = vld [vmem:[%s548 + $0xe1] sm:$0xff]
        %v8768 = vld [vmem:[%s548 + $0xf1] sm:$0xff]
        %v8769 = vld [vmem:[%s548 + $0xf9] sm:$0xff]
        %v8770 = vld [vmem:[%s548 + $0x109] sm:$0xff]
        %v8771 = vld [vmem:[%s548 + $0x111] sm:$0xff]
        %v8772 = vld [vmem:[%s548 + $0x121] sm:$0xff]
        %v8773 = vld [vmem:[%s548 + $0x129] sm:$0xff]
        %v8774 = vld [vmem:[%s548 + $0x139] sm:$0xff]
        %v8775 = vld [vmem:[%s548 + $0x141] sm:$0xff]
        %v8776 = vld [vmem:[%s548 + $0x151] sm:$0xff]
        %v8777 = vld [vmem:[%s548 + $0x159] sm:$0xff]
        %v8778 = vld [vmem:[%s548 + $0x169] sm:$0xff]
        %v8779 = vld [vmem:[%s548 + $0x171] sm:$0xff]
        %v8780 = vld [vmem:[%s548 + $0x2] sm:$0xff]
        %v8781 = vld [vmem:[%s548 + $0xa] sm:$0xff]
        %v8782 = vld [vmem:[%s548 + $0x1a] sm:$0xff]
        %v8783 = vld [vmem:[%s548 + $0x22] sm:$0xff]
        %v8784 = vld [vmem:[%s548 + $0x32] sm:$0xff]
        %v8785 = vld [vmem:[%s548 + $0x3a] sm:$0xff]
        %v8786 = vld [vmem:[%s548 + $0x4a] sm:$0xff]
        %v8787 = vld [vmem:[%s548 + $0x52] sm:$0xff]
        %v8788 = vld [vmem:[%s548 + $0x62] sm:$0xff]
        %v8789 = vld [vmem:[%s548 + $0x6a] sm:$0xff]
        %v8790 = vld [vmem:[%s548 + $0x7a] sm:$0xff]
        %v8791 = vld [vmem:[%s548 + $0x82] sm:$0xff]
        %v8792 = vld [vmem:[%s548 + $0x92] sm:$0xff]
        %v8793 = vld [vmem:[%s548 + $0x9a] sm:$0xff]
        %v8794 = vld [vmem:[%s548 + $0xaa] sm:$0xff]
        %v8795 = vld [vmem:[%s548 + $0xb2] sm:$0xff]
        %v8796 = vld [vmem:[%s548 + $0xc2] sm:$0xff]
        %v8797 = vld [vmem:[%s548 + $0xca] sm:$0xff]
        %v8798 = vld [vmem:[%s548 + $0xda] sm:$0xff]
        %v8799 = vld [vmem:[%s548 + $0xe2] sm:$0xff]
        %v8800 = vld [vmem:[%s548 + $0xf2] sm:$0xff]
        %v8801 = vld [vmem:[%s548 + $0xfa] sm:$0xff]
        %v8802 = vld [vmem:[%s548 + $0x10a] sm:$0xff]
        %v8803 = vld [vmem:[%s548 + $0x112] sm:$0xff]
        %v8804 = vld [vmem:[%s548 + $0x122] sm:$0xff]
        %v8805 = vld [vmem:[%s548 + $0x12a] sm:$0xff]
        %v8806 = vld [vmem:[%s548 + $0x13a] sm:$0xff]
        %v8807 = vld [vmem:[%s548 + $0x142] sm:$0xff]
        %v8808 = vld [vmem:[%s548 + $0x152] sm:$0xff]
        %v8809 = vld [vmem:[%s548 + $0x15a] sm:$0xff]
        %v8810 = vld [vmem:[%s548 + $0x16a] sm:$0xff]
        %v8811 = vld [vmem:[%s548 + $0x172] sm:$0xff]
        %v8812 = vld [vmem:[%s773] sm:$0xff]
        %v8813 = vld [vmem:[%s773 + $0x8] sm:$0xff]
        %v8814 = vld [vmem:[%s773 + $0x18] sm:$0xff]
        %v8815 = vld [vmem:[%s773 + $0x20] sm:$0xff]
        %v8816 = vld [vmem:[%s773 + $0x30] sm:$0xff]
        %v8817 = vld [vmem:[%s773 + $0x38] sm:$0xff]
        %v8818 = vld [vmem:[%s773 + $0x48] sm:$0xff]
        %v8819 = vld [vmem:[%s773 + $0x50] sm:$0xff]
        %v8820 = vld [vmem:[%s773 + $0x60] sm:$0xff]
        %v8821 = vld [vmem:[%s773 + $0x68] sm:$0xff]
        %v8822 = vld [vmem:[%s773 + $0x78] sm:$0xff]
        %v8823 = vld [vmem:[%s773 + $0x80] sm:$0xff]
        %v8824 = vld [vmem:[%s773 + $0x90] sm:$0xff]
        %v8825 = vld [vmem:[%s773 + $0x98] sm:$0xff]
        %v8826 = vld [vmem:[%s773 + $0xa8] sm:$0xff]
        %v8827 = vld [vmem:[%s773 + $0xb0] sm:$0xff]
        %v8828 = vld [vmem:[%s773 + $0xc0] sm:$0xff]
        %v8829 = vld [vmem:[%s773 + $0xc8] sm:$0xff]
        %v8830 = vld [vmem:[%s773 + $0xd8] sm:$0xff]
        %v8831 = vld [vmem:[%s773 + $0xe0] sm:$0xff]
        %v8832 = vld [vmem:[%s773 + $0xf0] sm:$0xff]
        %v8833 = vld [vmem:[%s773 + $0xf8] sm:$0xff]
        %v8834 = vld [vmem:[%s773 + $0x108] sm:$0xff]
        %v8835 = vld [vmem:[%s773 + $0x110] sm:$0xff]
        %v8836 = vld [vmem:[%s773 + $0x120] sm:$0xff]
        %v8837 = vld [vmem:[%s773 + $0x128] sm:$0xff]
        %v8838 = vld [vmem:[%s773 + $0x138] sm:$0xff]
        %v8839 = vld [vmem:[%s773 + $0x140] sm:$0xff]
        %v8840 = vld [vmem:[%s773 + $0x150] sm:$0xff]
        %v8841 = vld [vmem:[%s773 + $0x158] sm:$0xff]
        %v8842 = vld [vmem:[%s773 + $0x168] sm:$0xff]
        %v8843 = vld [vmem:[%s773 + $0x170] sm:$0xff]
        %v8844 = vld [vmem:[%s773 + $0x1] sm:$0xff]
        %v8845 = vld [vmem:[%s773 + $0x9] sm:$0xff]
        %v8846 = vld [vmem:[%s773 + $0x19] sm:$0xff]
        %v8847 = vld [vmem:[%s773 + $0x21] sm:$0xff]
        %v8848 = vld [vmem:[%s773 + $0x31] sm:$0xff]
        %v8849 = vld [vmem:[%s773 + $0x39] sm:$0xff]
        %v8850 = vld [vmem:[%s773 + $0x49] sm:$0xff]
        %v8851 = vld [vmem:[%s773 + $0x51] sm:$0xff]
        %v8852 = vld [vmem:[%s773 + $0x61] sm:$0xff]
        %v8853 = vld [vmem:[%s773 + $0x69] sm:$0xff]
        %v8854 = vld [vmem:[%s773 + $0x79] sm:$0xff]
        %v8855 = vld [vmem:[%s773 + $0x81] sm:$0xff]
        %v8856 = vld [vmem:[%s773 + $0x91] sm:$0xff]
        %v8857 = vld [vmem:[%s773 + $0x99] sm:$0xff]
        %v8858 = vld [vmem:[%s773 + $0xa9] sm:$0xff]
        %v8859 = vld [vmem:[%s773 + $0xb1] sm:$0xff]
        %v8860 = vld [vmem:[%s773 + $0xc1] sm:$0xff]
        %v8861 = vld [vmem:[%s773 + $0xc9] sm:$0xff]
        %v8862 = vld [vmem:[%s773 + $0xd9] sm:$0xff]
        %v8863 = vld [vmem:[%s773 + $0xe1] sm:$0xff]
        %v8864 = vld [vmem:[%s773 + $0xf1] sm:$0xff]
        %v8865 = vld [vmem:[%s773 + $0xf9] sm:$0xff]
        %v8866 = vld [vmem:[%s773 + $0x109] sm:$0xff]
        %v8867 = vld [vmem:[%s773 + $0x111] sm:$0xff]
        %v8868 = vld [vmem:[%s773 + $0x121] sm:$0xff]
        %v8869 = vld [vmem:[%s773 + $0x129] sm:$0xff]
        %v8870 = vld [vmem:[%s773 + $0x139] sm:$0xff]
        %v8871 = vld [vmem:[%s773 + $0x141] sm:$0xff]
        %v8872 = vld [vmem:[%s773 + $0x151] sm:$0xff]
        %v8873 = vld [vmem:[%s773 + $0x159] sm:$0xff]
        %v8874 = vld [vmem:[%s773 + $0x169] sm:$0xff]
        %v8875 = vld [vmem:[%s773 + $0x171] sm:$0xff]
        %v8876 = vld [vmem:[%s773 + $0x2] sm:$0xff]
        %v8877 = vld [vmem:[%s773 + $0xa] sm:$0xff]
        %v8878 = vld [vmem:[%s773 + $0x1a] sm:$0xff]
        %v8879 = vld [vmem:[%s773 + $0x22] sm:$0xff]
        %v8880 = vld [vmem:[%s773 + $0x32] sm:$0xff]
        %v8881 = vld [vmem:[%s773 + $0x3a] sm:$0xff]
        %v8882 = vld [vmem:[%s773 + $0x4a] sm:$0xff]
        %v8883 = vld [vmem:[%s773 + $0x52] sm:$0xff]
        %v8884 = vld [vmem:[%s773 + $0x62] sm:$0xff]
        %v8885 = vld [vmem:[%s773 + $0x6a] sm:$0xff]
        %v8886 = vld [vmem:[%s773 + $0x7a] sm:$0xff]
        %v8887 = vld [vmem:[%s773 + $0x82] sm:$0xff]
        %v8888 = vld [vmem:[%s773 + $0x92] sm:$0xff]
        %v8889 = vld [vmem:[%s773 + $0x9a] sm:$0xff]
        %v8890 = vld [vmem:[%s773 + $0xaa] sm:$0xff]
        %v8891 = vld [vmem:[%s773 + $0xb2] sm:$0xff]
        %v8892 = vld [vmem:[%s773 + $0xc2] sm:$0xff]
        %v8893 = vld [vmem:[%s773 + $0xca] sm:$0xff]
        %v8894 = vld [vmem:[%s773 + $0xda] sm:$0xff]
        %v8895 = vld [vmem:[%s773 + $0xe2] sm:$0xff]
        %v8896 = vld [vmem:[%s773 + $0xf2] sm:$0xff]
        %v8897 = vld [vmem:[%s773 + $0xfa] sm:$0xff]
        %v8898 = vld [vmem:[%s773 + $0x10a] sm:$0xff]
        %v8899 = vld [vmem:[%s773 + $0x112] sm:$0xff]
        %v8900 = vld [vmem:[%s773 + $0x122] sm:$0xff]
        %v8901 = vld [vmem:[%s773 + $0x12a] sm:$0xff]
        %v8902 = vld [vmem:[%s773 + $0x13a] sm:$0xff]
        %v8903 = vld [vmem:[%s773 + $0x142] sm:$0xff]
        %v8904 = vld [vmem:[%s773 + $0x152] sm:$0xff]
        %v8905 = vld [vmem:[%s773 + $0x15a] sm:$0xff]
        %v8906 = vld [vmem:[%s773 + $0x16a] sm:$0xff]
        %v8907 = vld [vmem:[%s773 + $0x172] sm:$0xff]
        %8940 = vrot.lane.b32.xlu0 %v8652, 32
        %v8941 = vpop.permute.xlu0 %8940
        %8942 = vrot.lane.b32.xlu0 %v8653, 32
        %v8943 = vpop.permute.xlu0 %8942
        %8944 = vrot.lane.b32.xlu0 %v8654, 32
        %v8945 = vpop.permute.xlu0 %8944
        %8946 = vrot.lane.b32.xlu0 %v8655, 32
        %v8947 = vpop.permute.xlu0 %8946
        %8948 = vrot.lane.b32.xlu0 %v8656, 32
        %v8949 = vpop.permute.xlu0 %8948
        %8950 = vrot.lane.b32.xlu0 %v8657, 32
        %v8951 = vpop.permute.xlu0 %8950
        %8952 = vrot.lane.b32.xlu0 %v8658, 32
        %v8953 = vpop.permute.xlu0 %8952
        %8954 = vrot.lane.b32.xlu0 %v8659, 32
        %v8955 = vpop.permute.xlu0 %8954
        %8956 = vrot.lane.b32.xlu0 %v8660, 32
        %v8957 = vpop.permute.xlu0 %8956
        %8958 = vrot.lane.b32.xlu0 %v8661, 32
        %v8959 = vpop.permute.xlu0 %8958
        %8960 = vrot.lane.b32.xlu0 %v8662, 32
        %v8961 = vpop.permute.xlu0 %8960
        %8962 = vrot.lane.b32.xlu0 %v8663, 32
        %v8963 = vpop.permute.xlu0 %8962
        %8964 = vrot.lane.b32.xlu0 %v8664, 32
        %v8965 = vpop.permute.xlu0 %8964
        %8966 = vrot.lane.b32.xlu0 %v8665, 32
        %v8967 = vpop.permute.xlu0 %8966
        %8968 = vrot.lane.b32.xlu0 %v8666, 32
        %v8969 = vpop.permute.xlu0 %8968
        %8970 = vrot.lane.b32.xlu0 %v8667, 32
        %v8971 = vpop.permute.xlu0 %8970
        %8972 = vrot.lane.b32.xlu0 %v8668, 32
        %v8973 = vpop.permute.xlu0 %8972
        %8974 = vrot.lane.b32.xlu0 %v8669, 32
        %v8975 = vpop.permute.xlu0 %8974
        %8976 = vrot.lane.b32.xlu0 %v8670, 32
        %v8977 = vpop.permute.xlu0 %8976
        %8978 = vrot.lane.b32.xlu0 %v8671, 32
        %v8979 = vpop.permute.xlu0 %8978
        %8980 = vrot.lane.b32.xlu0 %v8672, 32
        %v8981 = vpop.permute.xlu0 %8980
        %8982 = vrot.lane.b32.xlu0 %v8673, 32
        %v8983 = vpop.permute.xlu0 %8982
        %8984 = vrot.lane.b32.xlu0 %v8674, 32
        %v8985 = vpop.permute.xlu0 %8984
        %8986 = vrot.lane.b32.xlu0 %v8675, 32
        %v8987 = vpop.permute.xlu0 %8986
        %8988 = vrot.lane.b32.xlu0 %v8676, 32
        %v8989 = vpop.permute.xlu0 %8988
        %8990 = vrot.lane.b32.xlu0 %v8677, 32
        %v8991 = vpop.permute.xlu0 %8990
        %8992 = vrot.lane.b32.xlu0 %v8678, 32
        %v8993 = vpop.permute.xlu0 %8992
        %8994 = vrot.lane.b32.xlu0 %v8679, 32
        %v8995 = vpop.permute.xlu0 %8994
        %8996 = vrot.lane.b32.xlu0 %v8680, 32
        %v8997 = vpop.permute.xlu0 %8996
        %8998 = vrot.lane.b32.xlu0 %v8681, 32
        %v8999 = vpop.permute.xlu0 %8998
        %9000 = vrot.lane.b32.xlu0 %v8682, 32
        %v9001 = vpop.permute.xlu0 %9000
        %9002 = vrot.lane.b32.xlu0 %v8683, 32
        %v9003 = vpop.permute.xlu0 %9002
        %9068 = vrot.lane.b32.xlu0 %v8684, 64
        %v9069 = vpop.permute.xlu0 %9068
        %9070 = vrot.lane.b32.xlu0 %v8685, 64
        %v9071 = vpop.permute.xlu0 %9070
        %9072 = vrot.lane.b32.xlu0 %v8686, 64
        %v9073 = vpop.permute.xlu0 %9072
        %9074 = vrot.lane.b32.xlu0 %v8687, 64
        %v9075 = vpop.permute.xlu0 %9074
        %9076 = vrot.lane.b32.xlu0 %v8688, 64
        %v9077 = vpop.permute.xlu0 %9076
        %9078 = vrot.lane.b32.xlu0 %v8689, 64
        %v9079 = vpop.permute.xlu0 %9078
        %9080 = vrot.lane.b32.xlu0 %v8690, 64
        %v9081 = vpop.permute.xlu0 %9080
        %9082 = vrot.lane.b32.xlu0 %v8691, 64
        %v9083 = vpop.permute.xlu0 %9082
        %9084 = vrot.lane.b32.xlu0 %v8692, 64
        %v9085 = vpop.permute.xlu0 %9084
        %9086 = vrot.lane.b32.xlu0 %v8693, 64
        %v9087 = vpop.permute.xlu0 %9086
        %9088 = vrot.lane.b32.xlu0 %v8694, 64
        %v9089 = vpop.permute.xlu0 %9088
        %9090 = vrot.lane.b32.xlu0 %v8695, 64
        %v9091 = vpop.permute.xlu0 %9090
        %9092 = vrot.lane.b32.xlu0 %v8696, 64
        %v9093 = vpop.permute.xlu0 %9092
        %9094 = vrot.lane.b32.xlu0 %v8697, 64
        %v9095 = vpop.permute.xlu0 %9094
        %9096 = vrot.lane.b32.xlu0 %v8698, 64
        %v9097 = vpop.permute.xlu0 %9096
        %9098 = vrot.lane.b32.xlu0 %v8699, 64
        %v9099 = vpop.permute.xlu0 %9098
        %9100 = vrot.lane.b32.xlu0 %v8700, 64
        %v9101 = vpop.permute.xlu0 %9100
        %9102 = vrot.lane.b32.xlu0 %v8701, 64
        %v9103 = vpop.permute.xlu0 %9102
        %9104 = vrot.lane.b32.xlu0 %v8702, 64
        %v9105 = vpop.permute.xlu0 %9104
        %9106 = vrot.lane.b32.xlu0 %v8703, 64
        %v9107 = vpop.permute.xlu0 %9106
        %9108 = vrot.lane.b32.xlu0 %v8704, 64
        %v9109 = vpop.permute.xlu0 %9108
        %9110 = vrot.lane.b32.xlu0 %v8705, 64
        %v9111 = vpop.permute.xlu0 %9110
        %9112 = vrot.lane.b32.xlu0 %v8706, 64
        %v9113 = vpop.permute.xlu0 %9112
        %9114 = vrot.lane.b32.xlu0 %v8707, 64
        %v9115 = vpop.permute.xlu0 %9114
        %9116 = vrot.lane.b32.xlu0 %v8708, 64
        %v9117 = vpop.permute.xlu0 %9116
        %9118 = vrot.lane.b32.xlu0 %v8709, 64
        %v9119 = vpop.permute.xlu0 %9118
        %9120 = vrot.lane.b32.xlu0 %v8710, 64
        %v9121 = vpop.permute.xlu0 %9120
        %9122 = vrot.lane.b32.xlu0 %v8711, 64
        %v9123 = vpop.permute.xlu0 %9122
        %9124 = vrot.lane.b32.xlu0 %v8712, 64
        %v9125 = vpop.permute.xlu0 %9124
        %9126 = vrot.lane.b32.xlu0 %v8713, 64
        %v9127 = vpop.permute.xlu0 %9126
        %9128 = vrot.lane.b32.xlu0 %v8714, 64
        %v9129 = vpop.permute.xlu0 %9128
        %9130 = vrot.lane.b32.xlu0 %v8715, 64
        %v9131 = vpop.permute.xlu0 %9130
        %9196 = vrot.lane.b32.xlu0 %v8716, 96
        %v9197 = vpop.permute.xlu0 %9196
        %9198 = vrot.lane.b32.xlu0 %v8717, 96
        %v9199 = vpop.permute.xlu0 %9198
        %9200 = vrot.lane.b32.xlu0 %v8718, 96
        %v9201 = vpop.permute.xlu0 %9200
        %9202 = vrot.lane.b32.xlu0 %v8719, 96
        %v9203 = vpop.permute.xlu0 %9202
        %9204 = vrot.lane.b32.xlu0 %v8720, 96
        %v9205 = vpop.permute.xlu0 %9204
        %9206 = vrot.lane.b32.xlu0 %v8721, 96
        %v9207 = vpop.permute.xlu0 %9206
        %9208 = vrot.lane.b32.xlu0 %v8722, 96
        %v9209 = vpop.permute.xlu0 %9208
        %9210 = vrot.lane.b32.xlu0 %v8723, 96
        %v9211 = vpop.permute.xlu0 %9210
        %9212 = vrot.lane.b32.xlu0 %v8724, 96
        %v9213 = vpop.permute.xlu0 %9212
        %9214 = vrot.lane.b32.xlu0 %v8725, 96
        %v9215 = vpop.permute.xlu0 %9214
        %9216 = vrot.lane.b32.xlu0 %v8726, 96
        %v9217 = vpop.permute.xlu0 %9216
        %9218 = vrot.lane.b32.xlu0 %v8727, 96
        %v9219 = vpop.permute.xlu0 %9218
        %9220 = vrot.lane.b32.xlu0 %v8728, 96
        %v9221 = vpop.permute.xlu0 %9220
        %9222 = vrot.lane.b32.xlu0 %v8729, 96
        %v9223 = vpop.permute.xlu0 %9222
        %9224 = vrot.lane.b32.xlu0 %v8730, 96
        %v9225 = vpop.permute.xlu0 %9224
        %9226 = vrot.lane.b32.xlu0 %v8731, 96
        %v9227 = vpop.permute.xlu0 %9226
        %9228 = vrot.lane.b32.xlu0 %v8732, 96
        %v9229 = vpop.permute.xlu0 %9228
        %9230 = vrot.lane.b32.xlu0 %v8733, 96
        %v9231 = vpop.permute.xlu0 %9230
        %9232 = vrot.lane.b32.xlu0 %v8734, 96
        %v9233 = vpop.permute.xlu0 %9232
        %9234 = vrot.lane.b32.xlu0 %v8735, 96
        %v9235 = vpop.permute.xlu0 %9234
        %9236 = vrot.lane.b32.xlu0 %v8736, 96
        %v9237 = vpop.permute.xlu0 %9236
        %9238 = vrot.lane.b32.xlu0 %v8737, 96
        %v9239 = vpop.permute.xlu0 %9238
        %9240 = vrot.lane.b32.xlu0 %v8738, 96
        %v9241 = vpop.permute.xlu0 %9240
        %9242 = vrot.lane.b32.xlu0 %v8739, 96
        %v9243 = vpop.permute.xlu0 %9242
        %9244 = vrot.lane.b32.xlu0 %v8740, 96
        %v9245 = vpop.permute.xlu0 %9244
        %9246 = vrot.lane.b32.xlu0 %v8741, 96
        %v9247 = vpop.permute.xlu0 %9246
        %9248 = vrot.lane.b32.xlu0 %v8742, 96
        %v9249 = vpop.permute.xlu0 %9248
        %9250 = vrot.lane.b32.xlu0 %v8743, 96
        %v9251 = vpop.permute.xlu0 %9250
        %9252 = vrot.lane.b32.xlu0 %v8744, 96
        %v9253 = vpop.permute.xlu0 %9252
        %9254 = vrot.lane.b32.xlu0 %v8745, 96
        %v9255 = vpop.permute.xlu0 %9254
        %9256 = vrot.lane.b32.xlu0 %v8746, 96
        %v9257 = vpop.permute.xlu0 %9256
        %9258 = vrot.lane.b32.xlu0 %v8747, 96
        %v9259 = vpop.permute.xlu0 %9258
        %9324 = vrot.lane.b32.xlu0 %v8780, 32
        %v9325 = vpop.permute.xlu0 %9324
        %9326 = vrot.lane.b32.xlu0 %v8781, 32
        %v9327 = vpop.permute.xlu0 %9326
        %9328 = vrot.lane.b32.xlu0 %v8782, 32
        %v9329 = vpop.permute.xlu0 %9328
        %9330 = vrot.lane.b32.xlu0 %v8783, 32
        %v9331 = vpop.permute.xlu0 %9330
        %9332 = vrot.lane.b32.xlu0 %v8784, 32
        %v9333 = vpop.permute.xlu0 %9332
        %9334 = vrot.lane.b32.xlu0 %v8785, 32
        %v9335 = vpop.permute.xlu0 %9334
        %9336 = vrot.lane.b32.xlu0 %v8786, 32
        %v9337 = vpop.permute.xlu0 %9336
        %9338 = vrot.lane.b32.xlu0 %v8787, 32
        %v9339 = vpop.permute.xlu0 %9338
        %9340 = vrot.lane.b32.xlu0 %v8788, 32
        %v9341 = vpop.permute.xlu0 %9340
        %9342 = vrot.lane.b32.xlu0 %v8789, 32
        %v9343 = vpop.permute.xlu0 %9342
        %9344 = vrot.lane.b32.xlu0 %v8790, 32
        %v9345 = vpop.permute.xlu0 %9344
        %9346 = vrot.lane.b32.xlu0 %v8791, 32
        %v9347 = vpop.permute.xlu0 %9346
        %9348 = vrot.lane.b32.xlu0 %v8792, 32
        %v9349 = vpop.permute.xlu0 %9348
        %9350 = vrot.lane.b32.xlu0 %v8793, 32
        %v9351 = vpop.permute.xlu0 %9350
        %9352 = vrot.lane.b32.xlu0 %v8794, 32
        %v9353 = vpop.permute.xlu0 %9352
        %9354 = vrot.lane.b32.xlu0 %v8795, 32
        %v9355 = vpop.permute.xlu0 %9354
        %9356 = vrot.lane.b32.xlu0 %v8796, 32
        %v9357 = vpop.permute.xlu0 %9356
        %9358 = vrot.lane.b32.xlu0 %v8797, 32
        %v9359 = vpop.permute.xlu0 %9358
        %9360 = vrot.lane.b32.xlu0 %v8798, 32
        %v9361 = vpop.permute.xlu0 %9360
        %9362 = vrot.lane.b32.xlu0 %v8799, 32
        %v9363 = vpop.permute.xlu0 %9362
        %9364 = vrot.lane.b32.xlu0 %v8800, 32
        %v9365 = vpop.permute.xlu0 %9364
        %9366 = vrot.lane.b32.xlu0 %v8801, 32
        %v9367 = vpop.permute.xlu0 %9366
        %9368 = vrot.lane.b32.xlu0 %v8802, 32
        %v9369 = vpop.permute.xlu0 %9368
        %9370 = vrot.lane.b32.xlu0 %v8803, 32
        %v9371 = vpop.permute.xlu0 %9370
        %9372 = vrot.lane.b32.xlu0 %v8804, 32
        %v9373 = vpop.permute.xlu0 %9372
        %9374 = vrot.lane.b32.xlu0 %v8805, 32
        %v9375 = vpop.permute.xlu0 %9374
        %9376 = vrot.lane.b32.xlu0 %v8806, 32
        %v9377 = vpop.permute.xlu0 %9376
        %9378 = vrot.lane.b32.xlu0 %v8807, 32
        %v9379 = vpop.permute.xlu0 %9378
        %9380 = vrot.lane.b32.xlu0 %v8808, 32
        %v9381 = vpop.permute.xlu0 %9380
        %9382 = vrot.lane.b32.xlu0 %v8809, 32
        %v9383 = vpop.permute.xlu0 %9382
        %9384 = vrot.lane.b32.xlu0 %v8810, 32
        %v9385 = vpop.permute.xlu0 %9384
        %9386 = vrot.lane.b32.xlu0 %v8811, 32
        %v9387 = vpop.permute.xlu0 %9386
        %9452 = vrot.lane.b32.xlu0 %v8812, 64
        %v9453 = vpop.permute.xlu0 %9452
        %9454 = vrot.lane.b32.xlu0 %v8813, 64
        %v9455 = vpop.permute.xlu0 %9454
        %9456 = vrot.lane.b32.xlu0 %v8814, 64
        %v9457 = vpop.permute.xlu0 %9456
        %9458 = vrot.lane.b32.xlu0 %v8815, 64
        %v9459 = vpop.permute.xlu0 %9458
        %9460 = vrot.lane.b32.xlu0 %v8816, 64
        %v9461 = vpop.permute.xlu0 %9460
        %9462 = vrot.lane.b32.xlu0 %v8817, 64
        %v9463 = vpop.permute.xlu0 %9462
        %9464 = vrot.lane.b32.xlu0 %v8818, 64
        %v9465 = vpop.permute.xlu0 %9464
        %9466 = vrot.lane.b32.xlu0 %v8819, 64
        %v9467 = vpop.permute.xlu0 %9466
        %9468 = vrot.lane.b32.xlu0 %v8820, 64
        %v9469 = vpop.permute.xlu0 %9468
        %9470 = vrot.lane.b32.xlu0 %v8821, 64
        %v9471 = vpop.permute.xlu0 %9470
        %9472 = vrot.lane.b32.xlu0 %v8822, 64
        %v9473 = vpop.permute.xlu0 %9472
        %9474 = vrot.lane.b32.xlu0 %v8823, 64
        %v9475 = vpop.permute.xlu0 %9474
        %9476 = vrot.lane.b32.xlu0 %v8824, 64
        %v9477 = vpop.permute.xlu0 %9476
        %9478 = vrot.lane.b32.xlu0 %v8825, 64
        %v9479 = vpop.permute.xlu0 %9478
        %9480 = vrot.lane.b32.xlu0 %v8826, 64
        %v9481 = vpop.permute.xlu0 %9480
        %9482 = vrot.lane.b32.xlu0 %v8827, 64
        %v9483 = vpop.permute.xlu0 %9482
        %9484 = vrot.lane.b32.xlu0 %v8828, 64
        %v9485 = vpop.permute.xlu0 %9484
        %9486 = vrot.lane.b32.xlu0 %v8829, 64
        %v9487 = vpop.permute.xlu0 %9486
        %9488 = vrot.lane.b32.xlu0 %v8830, 64
        %v9489 = vpop.permute.xlu0 %9488
        %9490 = vrot.lane.b32.xlu0 %v8831, 64
        %v9491 = vpop.permute.xlu0 %9490
        %9492 = vrot.lane.b32.xlu0 %v8832, 64
        %v9493 = vpop.permute.xlu0 %9492
        %9494 = vrot.lane.b32.xlu0 %v8833, 64
        %v9495 = vpop.permute.xlu0 %9494
        %9496 = vrot.lane.b32.xlu0 %v8834, 64
        %v9497 = vpop.permute.xlu0 %9496
        %9498 = vrot.lane.b32.xlu0 %v8835, 64
        %v9499 = vpop.permute.xlu0 %9498
        %9500 = vrot.lane.b32.xlu0 %v8836, 64
        %v9501 = vpop.permute.xlu0 %9500
        %9502 = vrot.lane.b32.xlu0 %v8837, 64
        %v9503 = vpop.permute.xlu0 %9502
        %9504 = vrot.lane.b32.xlu0 %v8838, 64
        %v9505 = vpop.permute.xlu0 %9504
        %9506 = vrot.lane.b32.xlu0 %v8839, 64
        %v9507 = vpop.permute.xlu0 %9506
        %9508 = vrot.lane.b32.xlu0 %v8840, 64
        %v9509 = vpop.permute.xlu0 %9508
        %9510 = vrot.lane.b32.xlu0 %v8841, 64
        %v9511 = vpop.permute.xlu0 %9510
        %9512 = vrot.lane.b32.xlu0 %v8842, 64
        %v9513 = vpop.permute.xlu0 %9512
        %9514 = vrot.lane.b32.xlu0 %v8843, 64
        %v9515 = vpop.permute.xlu0 %9514
        %9580 = vrot.lane.b32.xlu0 %v8844, 96
        %v9581 = vpop.permute.xlu0 %9580
        %9582 = vrot.lane.b32.xlu0 %v8845, 96
        %v9583 = vpop.permute.xlu0 %9582
        %9584 = vrot.lane.b32.xlu0 %v8846, 96
        %v9585 = vpop.permute.xlu0 %9584
        %9586 = vrot.lane.b32.xlu0 %v8847, 96
        %v9587 = vpop.permute.xlu0 %9586
        %9588 = vrot.lane.b32.xlu0 %v8848, 96
        %v9589 = vpop.permute.xlu0 %9588
        %9590 = vrot.lane.b32.xlu0 %v8849, 96
        %v9591 = vpop.permute.xlu0 %9590
        %9592 = vrot.lane.b32.xlu0 %v8850, 96
        %v9593 = vpop.permute.xlu0 %9592
        %9594 = vrot.lane.b32.xlu0 %v8851, 96
        %v9595 = vpop.permute.xlu0 %9594
        %9596 = vrot.lane.b32.xlu0 %v8852, 96
        %v9597 = vpop.permute.xlu0 %9596
        %9598 = vrot.lane.b32.xlu0 %v8853, 96
        %v9599 = vpop.permute.xlu0 %9598
        %9600 = vrot.lane.b32.xlu0 %v8854, 96
        %v9601 = vpop.permute.xlu0 %9600
        %9602 = vrot.lane.b32.xlu0 %v8855, 96
        %v9603 = vpop.permute.xlu0 %9602
        %9604 = vrot.lane.b32.xlu0 %v8856, 96
        %v9605 = vpop.permute.xlu0 %9604
        %9606 = vrot.lane.b32.xlu0 %v8857, 96
        %v9607 = vpop.permute.xlu0 %9606
        %9608 = vrot.lane.b32.xlu0 %v8858, 96
        %v9609 = vpop.permute.xlu0 %9608
        %9610 = vrot.lane.b32.xlu0 %v8859, 96
        %v9611 = vpop.permute.xlu0 %9610
        %9612 = vrot.lane.b32.xlu0 %v8860, 96
        %v9613 = vpop.permute.xlu0 %9612
        %9614 = vrot.lane.b32.xlu0 %v8861, 96
        %v9615 = vpop.permute.xlu0 %9614
        %9616 = vrot.lane.b32.xlu0 %v8862, 96
        %v9617 = vpop.permute.xlu0 %9616
        %9618 = vrot.lane.b32.xlu0 %v8863, 96
        %v9619 = vpop.permute.xlu0 %9618
        %9620 = vrot.lane.b32.xlu0 %v8864, 96
        %v9621 = vpop.permute.xlu0 %9620
        %9622 = vrot.lane.b32.xlu0 %v8865, 96
        %v9623 = vpop.permute.xlu0 %9622
        %9624 = vrot.lane.b32.xlu0 %v8866, 96
        %v9625 = vpop.permute.xlu0 %9624
        %9626 = vrot.lane.b32.xlu0 %v8867, 96
        %v9627 = vpop.permute.xlu0 %9626
        %9628 = vrot.lane.b32.xlu0 %v8868, 96
        %v9629 = vpop.permute.xlu0 %9628
        %9630 = vrot.lane.b32.xlu0 %v8869, 96
        %v9631 = vpop.permute.xlu0 %9630
        %9632 = vrot.lane.b32.xlu0 %v8870, 96
        %v9633 = vpop.permute.xlu0 %9632
        %9634 = vrot.lane.b32.xlu0 %v8871, 96
        %v9635 = vpop.permute.xlu0 %9634
        %9636 = vrot.lane.b32.xlu0 %v8872, 96
        %v9637 = vpop.permute.xlu0 %9636
        %9638 = vrot.lane.b32.xlu0 %v8873, 96
        %v9639 = vpop.permute.xlu0 %9638
        %9640 = vrot.lane.b32.xlu0 %v8874, 96
        %v9641 = vpop.permute.xlu0 %9640
        %9642 = vrot.lane.b32.xlu0 %v8875, 96
        %v9643 = vpop.permute.xlu0 %9642
        %v9676 = vsel %vm386, %v8620, %v8941
        %v9677 = vsel %vm386, %v8621, %v8943
        %v9678 = vsel %vm386, %v8622, %v8945
        %v9679 = vsel %vm386, %v8623, %v8947
        %v9680 = vsel %vm386, %v8624, %v8949
        %v9681 = vsel %vm386, %v8625, %v8951
        %v9682 = vsel %vm386, %v8626, %v8953
        %v9683 = vsel %vm386, %v8627, %v8955
        %v9684 = vsel %vm386, %v8628, %v8957
        %v9685 = vsel %vm386, %v8629, %v8959
        %v9686 = vsel %vm386, %v8630, %v8961
        %v9687 = vsel %vm386, %v8631, %v8963
        %v9688 = vsel %vm386, %v8632, %v8965
        %v9689 = vsel %vm386, %v8633, %v8967
        %v9690 = vsel %vm386, %v8634, %v8969
        %v9691 = vsel %vm386, %v8635, %v8971
        %v9692 = vsel %vm386, %v8636, %v8973
        %v9693 = vsel %vm386, %v8637, %v8975
        %v9694 = vsel %vm386, %v8638, %v8977
        %v9695 = vsel %vm386, %v8639, %v8979
        %v9696 = vsel %vm386, %v8640, %v8981
        %v9697 = vsel %vm386, %v8641, %v8983
        %v9698 = vsel %vm386, %v8642, %v8985
        %v9699 = vsel %vm386, %v8643, %v8987
        %v9700 = vsel %vm386, %v8644, %v8989
        %v9701 = vsel %vm386, %v8645, %v8991
        %v9702 = vsel %vm386, %v8646, %v8993
        %v9703 = vsel %vm386, %v8647, %v8995
        %v9704 = vsel %vm386, %v8648, %v8997
        %v9705 = vsel %vm386, %v8649, %v8999
        %v9706 = vsel %vm386, %v8650, %v9001
        %v9707 = vsel %vm386, %v8651, %v9003
        %v9708 = vsel %vm1670, %v9676, %v9069
        %v9709 = vsel %vm1670, %v9677, %v9071
        %v9710 = vsel %vm1670, %v9678, %v9073
        %v9711 = vsel %vm1670, %v9679, %v9075
        %v9712 = vsel %vm1670, %v9680, %v9077
        %v9713 = vsel %vm1670, %v9681, %v9079
        %v9714 = vsel %vm1670, %v9682, %v9081
        %v9715 = vsel %vm1670, %v9683, %v9083
        %v9716 = vsel %vm1670, %v9684, %v9085
        %v9717 = vsel %vm1670, %v9685, %v9087
        %v9718 = vsel %vm1670, %v9686, %v9089
        %v9719 = vsel %vm1670, %v9687, %v9091
        %v9720 = vsel %vm1670, %v9688, %v9093
        %v9721 = vsel %vm1670, %v9689, %v9095
        %v9722 = vsel %vm1670, %v9690, %v9097
        %v9723 = vsel %vm1670, %v9691, %v9099
        %v9724 = vsel %vm1670, %v9692, %v9101
        %v9725 = vsel %vm1670, %v9693, %v9103
        %v9726 = vsel %vm1670, %v9694, %v9105
        %v9727 = vsel %vm1670, %v9695, %v9107
        %v9728 = vsel %vm1670, %v9696, %v9109
        %v9729 = vsel %vm1670, %v9697, %v9111
        %v9730 = vsel %vm1670, %v9698, %v9113
        %v9731 = vsel %vm1670, %v9699, %v9115
        %v9732 = vsel %vm1670, %v9700, %v9117
        %v9733 = vsel %vm1670, %v9701, %v9119
        %v9734 = vsel %vm1670, %v9702, %v9121
        %v9735 = vsel %vm1670, %v9703, %v9123
        %v9736 = vsel %vm1670, %v9704, %v9125
        %v9737 = vsel %vm1670, %v9705, %v9127
        %v9738 = vsel %vm1670, %v9706, %v9129
        %v9739 = vsel %vm1670, %v9707, %v9131
        %v9740 = vsel %vm1703, %v9708, %v9197
        %v9741 = vsel %vm1703, %v9709, %v9199
        %v9742 = vsel %vm1703, %v9710, %v9201
        %v9743 = vsel %vm1703, %v9711, %v9203
        %v9744 = vsel %vm1703, %v9712, %v9205
        %v9745 = vsel %vm1703, %v9713, %v9207
        %v9746 = vsel %vm1703, %v9714, %v9209
        %v9747 = vsel %vm1703, %v9715, %v9211
        %v9748 = vsel %vm1703, %v9716, %v9213
        %v9749 = vsel %vm1703, %v9717, %v9215
        %v9750 = vsel %vm1703, %v9718, %v9217
        %v9751 = vsel %vm1703, %v9719, %v9219
        %v9752 = vsel %vm1703, %v9720, %v9221
        %v9753 = vsel %vm1703, %v9721, %v9223
        %v9754 = vsel %vm1703, %v9722, %v9225
        %v9755 = vsel %vm1703, %v9723, %v9227
        %v9756 = vsel %vm1703, %v9724, %v9229
        %v9757 = vsel %vm1703, %v9725, %v9231
        %v9758 = vsel %vm1703, %v9726, %v9233
        %v9759 = vsel %vm1703, %v9727, %v9235
        %v9760 = vsel %vm1703, %v9728, %v9237
        %v9761 = vsel %vm1703, %v9729, %v9239
        %v9762 = vsel %vm1703, %v9730, %v9241
        %v9763 = vsel %vm1703, %v9731, %v9243
        %v9764 = vsel %vm1703, %v9732, %v9245
        %v9765 = vsel %vm1703, %v9733, %v9247
        %v9766 = vsel %vm1703, %v9734, %v9249
        %v9767 = vsel %vm1703, %v9735, %v9251
        %v9768 = vsel %vm1703, %v9736, %v9253
        %v9769 = vsel %vm1703, %v9737, %v9255
        %v9770 = vsel %vm1703, %v9738, %v9257
        %v9771 = vsel %vm1703, %v9739, %v9259
        %v9772 = vsel %vm386, %v8748, %v9325
        %v9773 = vsel %vm386, %v8749, %v9327
        %v9774 = vsel %vm386, %v8750, %v9329
        %v9775 = vsel %vm386, %v8751, %v9331
        %v9776 = vsel %vm386, %v8752, %v9333
        %v9777 = vsel %vm386, %v8753, %v9335
        %v9778 = vsel %vm386, %v8754, %v9337
        %v9779 = vsel %vm386, %v8755, %v9339
        %v9780 = vsel %vm386, %v8756, %v9341
        %v9781 = vsel %vm386, %v8757, %v9343
        %v9782 = vsel %vm386, %v8758, %v9345
        %v9783 = vsel %vm386, %v8759, %v9347
        %v9784 = vsel %vm386, %v8760, %v9349
        %v9785 = vsel %vm386, %v8761, %v9351
        %v9786 = vsel %vm386, %v8762, %v9353
        %v9787 = vsel %vm386, %v8763, %v9355
        %v9788 = vsel %vm386, %v8764, %v9357
        %v9789 = vsel %vm386, %v8765, %v9359
        %v9790 = vsel %vm386, %v8766, %v9361
        %v9791 = vsel %vm386, %v8767, %v9363
        %v9792 = vsel %vm386, %v8768, %v9365
        %v9793 = vsel %vm386, %v8769, %v9367
        %v9794 = vsel %vm386, %v8770, %v9369
        %v9795 = vsel %vm386, %v8771, %v9371
        %v9796 = vsel %vm386, %v8772, %v9373
        %v9797 = vsel %vm386, %v8773, %v9375
        %v9798 = vsel %vm386, %v8774, %v9377
        %v9799 = vsel %vm386, %v8775, %v9379
        %v9800 = vsel %vm386, %v8776, %v9381
        %v9801 = vsel %vm386, %v8777, %v9383
        %v9802 = vsel %vm386, %v8778, %v9385
        %v9803 = vsel %vm386, %v8779, %v9387
        %v9804 = vsel %vm1670, %v9772, %v9453
        %v9805 = vsel %vm1670, %v9773, %v9455
        %v9806 = vsel %vm1670, %v9774, %v9457
        %v9807 = vsel %vm1670, %v9775, %v9459
        %v9808 = vsel %vm1670, %v9776, %v9461
        %v9809 = vsel %vm1670, %v9777, %v9463
        %v9810 = vsel %vm1670, %v9778, %v9465
        %v9811 = vsel %vm1670, %v9779, %v9467
        %v9812 = vsel %vm1670, %v9780, %v9469
        %v9813 = vsel %vm1670, %v9781, %v9471
        %v9814 = vsel %vm1670, %v9782, %v9473
        %v9815 = vsel %vm1670, %v9783, %v9475
        %v9816 = vsel %vm1670, %v9784, %v9477
        %v9817 = vsel %vm1670, %v9785, %v9479
        %v9818 = vsel %vm1670, %v9786, %v9481
        %v9819 = vsel %vm1670, %v9787, %v9483
        %v9820 = vsel %vm1670, %v9788, %v9485
        %v9821 = vsel %vm1670, %v9789, %v9487
        %v9822 = vsel %vm1670, %v9790, %v9489
        %v9823 = vsel %vm1670, %v9791, %v9491
        %v9824 = vsel %vm1670, %v9792, %v9493
        %v9825 = vsel %vm1670, %v9793, %v9495
        %v9826 = vsel %vm1670, %v9794, %v9497
        %v9827 = vsel %vm1670, %v9795, %v9499
        %v9828 = vsel %vm1670, %v9796, %v9501
        %v9829 = vsel %vm1670, %v9797, %v9503
        %v9830 = vsel %vm1670, %v9798, %v9505
        %v9831 = vsel %vm1670, %v9799, %v9507
        %v9832 = vsel %vm1670, %v9800, %v9509
        %v9833 = vsel %vm1670, %v9801, %v9511
        %v9834 = vsel %vm1670, %v9802, %v9513
        %v9835 = vsel %vm1670, %v9803, %v9515
        %v9836 = vsel %vm1703, %v9804, %v9581
        %v9837 = vsel %vm1703, %v9805, %v9583
        %v9838 = vsel %vm1703, %v9806, %v9585
        %v9839 = vsel %vm1703, %v9807, %v9587
        %v9840 = vsel %vm1703, %v9808, %v9589
        %v9841 = vsel %vm1703, %v9809, %v9591
        %v9842 = vsel %vm1703, %v9810, %v9593
        %v9843 = vsel %vm1703, %v9811, %v9595
        %v9844 = vsel %vm1703, %v9812, %v9597
        %v9845 = vsel %vm1703, %v9813, %v9599
        %v9846 = vsel %vm1703, %v9814, %v9601
        %v9847 = vsel %vm1703, %v9815, %v9603
        %v9848 = vsel %vm1703, %v9816, %v9605
        %v9849 = vsel %vm1703, %v9817, %v9607
        %v9850 = vsel %vm1703, %v9818, %v9609
        %v9851 = vsel %vm1703, %v9819, %v9611
        %v9852 = vsel %vm1703, %v9820, %v9613
        %v9853 = vsel %vm1703, %v9821, %v9615
        %v9854 = vsel %vm1703, %v9822, %v9617
        %v9855 = vsel %vm1703, %v9823, %v9619
        %v9856 = vsel %vm1703, %v9824, %v9621
        %v9857 = vsel %vm1703, %v9825, %v9623
        %v9858 = vsel %vm1703, %v9826, %v9625
        %v9859 = vsel %vm1703, %v9827, %v9627
        %v9860 = vsel %vm1703, %v9828, %v9629
        %v9861 = vsel %vm1703, %v9829, %v9631
        %v9862 = vsel %vm1703, %v9830, %v9633
        %v9863 = vsel %vm1703, %v9831, %v9635
        %v9864 = vsel %vm1703, %v9832, %v9637
        %v9865 = vsel %vm1703, %v9833, %v9639
        %v9866 = vsel %vm1703, %v9834, %v9641
        %v9867 = vsel %vm1703, %v9835, %v9643
        %v9868 = vpack.c.bf16 %v9741, %v9740
        %v9869 = vpack.c.bf16 %v9837, %v9836
        %v9870 = vpack.c.bf16 %v8877, %v8876
        %v9871 = vpack.c.bf16 %v9743, %v9742
        %v9872 = vpack.c.bf16 %v9839, %v9838
        %v9873 = vpack.c.bf16 %v8879, %v8878
        %v9874 = vpack.c.bf16 %v9745, %v9744
        %v9875 = vpack.c.bf16 %v9841, %v9840
        %v9876 = vpack.c.bf16 %v8881, %v8880
        %v9877 = vpack.c.bf16 %v9747, %v9746
        %v9878 = vpack.c.bf16 %v9843, %v9842
        %v9879 = vpack.c.bf16 %v8883, %v8882
        %v9880 = vpack.c.bf16 %v9749, %v9748
        %v9881 = vpack.c.bf16 %v9845, %v9844
        %v9882 = vpack.c.bf16 %v8885, %v8884
        %v9883 = vpack.c.bf16 %v9751, %v9750
        %v9884 = vpack.c.bf16 %v9847, %v9846
        %v9885 = vpack.c.bf16 %v8887, %v8886
        %v9886 = vpack.c.bf16 %v9753, %v9752
        %v9887 = vpack.c.bf16 %v9849, %v9848
        %v9888 = vpack.c.bf16 %v8889, %v8888
        %v9889 = vpack.c.bf16 %v9755, %v9754
        %v9890 = vpack.c.bf16 %v9851, %v9850
        %v9891 = vpack.c.bf16 %v8891, %v8890
        %v9892 = vpack.c.bf16 %v9757, %v9756
        %v9893 = vpack.c.bf16 %v9853, %v9852
        %v9894 = vpack.c.bf16 %v8893, %v8892
        %v9895 = vpack.c.bf16 %v9759, %v9758
        %v9896 = vpack.c.bf16 %v9855, %v9854
        %v9897 = vpack.c.bf16 %v8895, %v8894
        %v9898 = vpack.c.bf16 %v9761, %v9760
        %v9899 = vpack.c.bf16 %v9857, %v9856
        %v9900 = vpack.c.bf16 %v8897, %v8896
        %v9901 = vpack.c.bf16 %v9763, %v9762
        %v9902 = vpack.c.bf16 %v9859, %v9858
        %v9903 = vpack.c.bf16 %v8899, %v8898
        %v9904 = vpack.c.bf16 %v9765, %v9764
        %v9905 = vpack.c.bf16 %v9861, %v9860
        %v9906 = vpack.c.bf16 %v8901, %v8900
        %v9907 = vpack.c.bf16 %v9767, %v9766
        %v9908 = vpack.c.bf16 %v9863, %v9862
        %v9909 = vpack.c.bf16 %v8903, %v8902
        %v9910 = vpack.c.bf16 %v9769, %v9768
        %v9911 = vpack.c.bf16 %v9865, %v9864
        %v9912 = vpack.c.bf16 %v8905, %v8904
        %v9913 = vpack.c.bf16 %v9771, %v9770
        %v9914 = vpack.c.bf16 %v9867, %v9866
        %v9915 = vpack.c.bf16 %v8907, %v8906
        %v9917 = vlaneseq
        %v9918 = vshrl.u32 %v9917, 7
        %v9919 = vsub.s32 0, %v9918
        %v9920 = vrot.slane %v8619, %v9919
        %v9958 = vunpack.c.l.b16 %v8583
        %v9959 = vunpack.c.l.b16 %v8584
        %v9960 = vunpack.c.l.b16 %v8585
        %v9961 = vunpack.c.l.b16 %v8586
        %v9962 = vunpack.c.l.b16 %v8587
        %v9963 = vunpack.c.l.b16 %v8588
        %v9964 = vunpack.c.l.b16 %v8589
        %v9965 = vunpack.c.l.b16 %v8590
        %v9966 = vunpack.c.l.b16 %v8591
        %v9967 = vunpack.c.l.b16 %v8592
        %v9968 = vunpack.c.l.b16 %v8593
        %v9969 = vunpack.c.l.b16 %v8594
        %v9970 = vunpack.c.l.b16 %v8595
        %v9971 = vunpack.c.l.b16 %v8596
        %v9972 = vunpack.c.l.b16 %v8597
        %v9973 = vunpack.c.l.b16 %v8598
        %v9974 = vunpack.c.l.b16 %v8599
        %v9975 = vunpack.c.l.b16 %v8600
        %v9976 = vunpack.c.l.b16 %v8601
        %v9977 = vunpack.c.l.b16 %v8602
        %v9978 = vunpack.c.l.b16 %v8603
        %v9979 = vunpack.c.l.b16 %v8604
        %v9980 = vunpack.c.l.b16 %v8605
        %v9981 = vunpack.c.l.b16 %v8606
        %v9982 = vunpack.c.l.b16 %v8607
        %v9983 = vunpack.c.l.b16 %v8608
        %v9984 = vunpack.c.l.b16 %v8609
        %v9985 = vunpack.c.l.b16 %v8610
        %v9986 = vunpack.c.l.b16 %v8611
        %v9987 = vunpack.c.l.b16 %v8612
        %v9988 = vunpack.c.l.b16 %v8613
        %v9989 = vunpack.c.l.b16 %v8614
        %v9990 = vunpack.c.l.b16 %v8615
        %v9991 = vunpack.c.l.b16 %v8616
        %v9992 = vunpack.c.l.b16 %v8617
        %v9993 = vunpack.c.l.b16 %v8618
        %v9994 = vpack.c.b16 %v9959, %v9958
        %v9995 = vpack.c.b16 %v9961, %v9960
        %v9996 = vpack.c.b16 %v9963, %v9962
        %v9997 = vpack.c.b16 %v9965, %v9964
        %v9998 = vpack.c.b16 %v9967, %v9966
        %v9999 = vpack.c.b16 %v9969, %v9968
        %v10000 = vpack.c.b16 %v9971, %v9970
        %v10001 = vpack.c.b16 %v9973, %v9972
        %v10002 = vpack.c.b16 %v9975, %v9974
        %v10003 = vpack.c.b16 %v9977, %v9976
        %v10004 = vpack.c.b16 %v9979, %v9978
        %v10005 = vpack.c.b16 %v9981, %v9980
        %v10006 = vpack.c.b16 %v9983, %v9982
        %v10007 = vpack.c.b16 %v9985, %v9984
        %v10008 = vpack.c.b16 %v9987, %v9986
        %v10009 = vpack.c.b16 %v9989, %v9988
        %v10010 = vpack.c.b16 %v9991, %v9990
        %v10011 = vpack.c.b16 %v9993, %v9992
        %v10031 = vsel %vm386, %v9870, 0
        %v10034 = vsel %vm386, %v9873, 0
        %v10037 = vsel %vm386, %v9876, 0
        %v10040 = vsel %vm386, %v9879, 0
        %v10043 = vsel %vm386, %v9882, 0
        %v10046 = vsel %vm386, %v9885, 0
        %v10049 = vsel %vm386, %v9888, 0
        %v10052 = vsel %vm386, %v9891, 0
        %v10055 = vsel %vm386, %v9894, 0
        %v10058 = vsel %vm386, %v9897, 0
        %v10061 = vsel %vm386, %v9900, 0
        %v10064 = vsel %vm386, %v9903, 0
        %v10067 = vsel %vm386, %v9906, 0
        %v10070 = vsel %vm386, %v9909, 0
        %v10073 = vsel %vm386, %v9912, 0
        %v10076 = vsel %vm386, %v9915, 0
        %10078 = vmatprep.subr.bf16.mxu0 0
        %10079 = vmatpush1.bf16.msra.mxu0 %v9994
        %10080 = vmatprep.subr.bf16.mxu0 0
        %10081 = vmatpush1.bf16.msra.mxu0 %v9995
        %10082 = vmatprep.subr.bf16.mxu0 0
        %10083 = vmatpush1.bf16.msra.mxu0 %v9996
        %10084 = vmatprep.subr.bf16.mxu0 0
        %10085 = vmatpush1.bf16.msra.mxu0 %v9997
        %10086 = vmatprep.subr.bf16.mxu0 0
        %10087 = vmatpush1.bf16.msra.mxu0 %v9998
        %10088 = vmatprep.subr.bf16.mxu0 0
        %10089 = vmatpush1.bf16.msra.mxu0 %v9999
        %10090 = vmatprep.subr.bf16.mxu0 0
        %10091 = vmatpush1.bf16.msra.mxu0 %v10000
        %10092 = vmatprep.subr.bf16.mxu0 0
        %10093 = vmatpush1.bf16.msra.mxu0 %v10001
        %10094 = vmatprep.subr.bf16.mxu0 0
        %10095 = vmatpush1.bf16.msra.mxu0 %v10002
        %10096 = vmatprep.subr.bf16.mxu0 0
        %10097 = vmatpush1.bf16.msra.mxu0 %v10003
        %10098 = vmatprep.subr.bf16.mxu0 0
        %10099 = vmatpush1.bf16.msra.mxu0 %v10004
        %10100 = vmatprep.subr.bf16.mxu0 0
        %10101 = vmatpush1.bf16.msra.mxu0 %v10005
        %10102 = vmatprep.subr.bf16.mxu0 0
        %10103 = vmatpush1.bf16.msra.mxu0 %v10006
        %10104 = vmatprep.subr.bf16.mxu0 0
        %10105 = vmatpush1.bf16.msra.mxu0 %v10007
        %10106 = vmatprep.subr.bf16.mxu0 0
        %10107 = vmatpush1.bf16.msra.mxu0 %v10008
        %10108 = vmatprep.subr.bf16.mxu0 0
        %10109 = vmatpush1.bf16.msra.mxu0 %v10009
        %10110 = vmatprep.mubr.bf16.mxu0 %v9869
        %10111 = vmatmul.mubr.bf16.gmra.mrb[0].mxu0 %v9868
        %v10112 = vpop.f32.mrb[0].mxu0
        %v10113 = vadd.f32 %v9920, %v10112
        %v10114 = vpop.f32.mrb[0].mxu0
        %v10115 = vpop.f32.mrb[0].mxu0
        %v10116 = vadd.f32 %v9920, %v10115
        %v10117 = vpop.f32.mrb[0].mxu0
        %10118 = vmatprep.mubr.bf16.mxu0 %v9872
        %10119 = vmatmul.mubr.bf16.gmra.mrb[0].mxu0 %v9871
        %v10120 = vpop.f32.mrb[0].mxu0
        %v10121 = vadd.f32 %v9920, %v10120
        %v10122 = vpop.f32.mrb[0].mxu0
        %v10123 = vpop.f32.mrb[0].mxu0
        %v10124 = vadd.f32 %v9920, %v10123
        %v10125 = vpop.f32.mrb[0].mxu0
        %10126 = vmatprep.mubr.bf16.mxu0 %v9875
        %10127 = vmatmul.mubr.bf16.gmra.mrb[0].mxu0 %v9874
        %v10128 = vpop.f32.mrb[0].mxu0
        %v10129 = vadd.f32 %v9920, %v10128
        %v10130 = vpop.f32.mrb[0].mxu0
        %v10131 = vpop.f32.mrb[0].mxu0
        %v10132 = vadd.f32 %v9920, %v10131
        %v10133 = vpop.f32.mrb[0].mxu0
        %10134 = vmatprep.mubr.bf16.mxu0 %v9878
        %10135 = vmatmul.mubr.bf16.gmra.mrb[0].mxu0 %v9877
        %v10136 = vpop.f32.mrb[0].mxu0
        %v10137 = vadd.f32 %v9920, %v10136
        %v10138 = vpop.f32.mrb[0].mxu0
        %v10139 = vpop.f32.mrb[0].mxu0
        %v10140 = vadd.f32 %v9920, %v10139
        %v10141 = vpop.f32.mrb[0].mxu0
        %10142 = vmatprep.mubr.bf16.mxu0 %v9881
        %10143 = vmatmul.mubr.bf16.gmra.mrb[0].mxu0 %v9880
        %v10144 = vpop.f32.mrb[0].mxu0
        %v10145 = vadd.f32 %v9920, %v10144
        %v10146 = vpop.f32.mrb[0].mxu0
        %v10147 = vpop.f32.mrb[0].mxu0
        %v10148 = vadd.f32 %v9920, %v10147
        %v10149 = vpop.f32.mrb[0].mxu0
        %10150 = vmatprep.mubr.bf16.mxu0 %v9884
        %10151 = vmatmul.mubr.bf16.gmra.mrb[0].mxu0 %v9883
        %v10152 = vpop.f32.mrb[0].mxu0
        %v10153 = vadd.f32 %v9920, %v10152
        %v10154 = vpop.f32.mrb[0].mxu0
        %v10155 = vpop.f32.mrb[0].mxu0
        %v10156 = vadd.f32 %v9920, %v10155
        %v10157 = vpop.f32.mrb[0].mxu0
        %10158 = vmatprep.mubr.bf16.mxu0 %v9887
        %10159 = vmatmul.mubr.bf16.gmra.mrb[0].mxu0 %v9886
        %v10160 = vpop.f32.mrb[0].mxu0
        %v10161 = vadd.f32 %v9920, %v10160
        %v10162 = vpop.f32.mrb[0].mxu0
        %v10163 = vpop.f32.mrb[0].mxu0
        %v10164 = vadd.f32 %v9920, %v10163
        %v10165 = vpop.f32.mrb[0].mxu0
        %10166 = vmatprep.mubr.bf16.mxu0 %v9890
        %10167 = vmatmul.mubr.bf16.gmra.mrb[0].mxu0 %v9889
        %v10168 = vpop.f32.mrb[0].mxu0
        %v10169 = vadd.f32 %v9920, %v10168
        %v10170 = vpop.f32.mrb[0].mxu0
        %v10171 = vpop.f32.mrb[0].mxu0
        %v10172 = vadd.f32 %v9920, %v10171
        %v10173 = vpop.f32.mrb[0].mxu0
        %10174 = vmatprep.mubr.bf16.mxu0 %v9893
        %10175 = vmatmul.mubr.bf16.gmra.mrb[0].mxu0 %v9892
        %v10176 = vpop.f32.mrb[0].mxu0
        %v10177 = vadd.f32 %v9920, %v10176
        %v10178 = vpop.f32.mrb[0].mxu0
        %v10179 = vpop.f32.mrb[0].mxu0
        %v10180 = vadd.f32 %v9920, %v10179
        %v10181 = vpop.f32.mrb[0].mxu0
        %10182 = vmatprep.mubr.bf16.mxu0 %v9896
        %10183 = vmatmul.mubr.bf16.gmra.mrb[0].mxu0 %v9895
        %v10184 = vpop.f32.mrb[0].mxu0
        %v10185 = vadd.f32 %v9920, %v10184
        %v10186 = vpop.f32.mrb[0].mxu0
        %v10187 = vpop.f32.mrb[0].mxu0
        %v10188 = vadd.f32 %v9920, %v10187
        %v10189 = vpop.f32.mrb[0].mxu0
        %10190 = vmatprep.mubr.bf16.mxu0 %v9899
        %10191 = vmatmul.mubr.bf16.gmra.mrb[0].mxu0 %v9898
        %v10192 = vpop.f32.mrb[0].mxu0
        %v10193 = vadd.f32 %v9920, %v10192
        %v10194 = vpop.f32.mrb[0].mxu0
        %v10195 = vpop.f32.mrb[0].mxu0
        %v10196 = vadd.f32 %v9920, %v10195
        %v10197 = vpop.f32.mrb[0].mxu0
        %10198 = vmatprep.mubr.bf16.mxu0 %v9902
        %10199 = vmatmul.mubr.bf16.gmra.mrb[0].mxu0 %v9901
        %v10200 = vpop.f32.mrb[0].mxu0
        %v10201 = vadd.f32 %v9920, %v10200
        %v10202 = vpop.f32.mrb[0].mxu0
        %v10203 = vpop.f32.mrb[0].mxu0
        %v10204 = vadd.f32 %v9920, %v10203
        %v10205 = vpop.f32.mrb[0].mxu0
        %10206 = vmatprep.mubr.bf16.mxu0 %v9905
        %10207 = vmatmul.mubr.bf16.gmra.mrb[0].mxu0 %v9904
        %v10208 = vpop.f32.mrb[0].mxu0
        %v10209 = vadd.f32 %v9920, %v10208
        %v10210 = vpop.f32.mrb[0].mxu0
        %v10211 = vpop.f32.mrb[0].mxu0
        %v10212 = vadd.f32 %v9920, %v10211
        %v10213 = vpop.f32.mrb[0].mxu0
        %10214 = vmatprep.mubr.bf16.mxu0 %v9908
        %10215 = vmatmul.mubr.bf16.gmra.mrb[0].mxu0 %v9907
        %v10216 = vpop.f32.mrb[0].mxu0
        %v10217 = vadd.f32 %v9920, %v10216
        %v10218 = vpop.f32.mrb[0].mxu0
        %v10219 = vpop.f32.mrb[0].mxu0
        %v10220 = vadd.f32 %v9920, %v10219
        %v10221 = vpop.f32.mrb[0].mxu0
        %10222 = vmatprep.mubr.bf16.mxu0 %v9911
        %10223 = vmatmul.mubr.bf16.gmra.mrb[0].mxu0 %v9910
        %v10224 = vpop.f32.mrb[0].mxu0
        %v10225 = vadd.f32 %v9920, %v10224
        %v10226 = vpop.f32.mrb[0].mxu0
        %v10227 = vpop.f32.mrb[0].mxu0
        %v10228 = vadd.f32 %v9920, %v10227
        %v10229 = vpop.f32.mrb[0].mxu0
        %10230 = vmatprep.mubr.bf16.mxu0 %v9914
        %10231 = vmatmul.mubr.bf16.gmra.mrb[0].mxu0 %v9913
        %v10232 = vpop.f32.mrb[0].mxu0
        %v10233 = vadd.f32 %v9920, %v10232
        %v10234 = vpop.f32.mrb[0].mxu0
        %v10235 = vpop.f32.mrb[0].mxu0
        %v10236 = vadd.f32 %v9920, %v10235
        %v10237 = vpop.f32.mrb[0].mxu0
        %10238 = vdwg.mxu0
        %10239 = vmatprep.subr.bf16.mxu0 0
        %10240 = vmatpush1.bf16.msra.mxu0 %v10010
        %10241 = vmatprep.subr.bf16.mxu0 0
        %10242 = vmatpush1.bf16.msra.mxu0 %v10011
        %10243 = vmatprep.subr.bf16.mxu0 0
        %10244 = vmatpush1.bf16.msra.mxu0 0
        %10245 = vmatprep.subr.bf16.mxu0 0
        %10246 = vmatpush1.bf16.msra.mxu0 0
        %10247 = vmatprep.subr.bf16.mxu0 0
        %10248 = vmatpush1.bf16.msra.mxu0 0
        %10249 = vmatprep.subr.bf16.mxu0 0
        %10250 = vmatpush1.bf16.msra.mxu0 0
        %10251 = vmatprep.subr.bf16.mxu0 0
        %10252 = vmatpush1.bf16.msra.mxu0 0
        %10253 = vmatprep.subr.bf16.mxu0 0
        %10254 = vmatpush1.bf16.msra.mxu0 0
        %10255 = vmatprep.subr.bf16.mxu0 0
        %10256 = vmatpush1.bf16.msra.mxu0 0
        %10257 = vmatprep.subr.bf16.mxu0 0
        %10258 = vmatpush1.bf16.msra.mxu0 0
        %10259 = vmatprep.subr.bf16.mxu0 0
        %10260 = vmatpush1.bf16.msra.mxu0 0
        %10261 = vmatprep.subr.bf16.mxu0 0
        %10262 = vmatpush1.bf16.msra.mxu0 0
        %10263 = vmatprep.subr.bf16.mxu0 0
        %10264 = vmatpush1.bf16.msra.mxu0 0
        %10265 = vmatprep.subr.bf16.mxu0 0
        %10266 = vmatpush1.bf16.msra.mxu0 0
        %10267 = vmatprep.subr.bf16.mxu0 0
        %10268 = vmatpush1.bf16.msra.mxu0 0
        %10269 = vmatprep.subr.bf16.mxu0 0
        %10270 = vmatpush1.bf16.msra.mxu0 0
        %10271 = vmatprep.mubr.bf16.mxu0 0
        %10272 = vmatmul.mubr.bf16.gmra.mrb[0].mxu0 %v10031
        %v10273 = vpop.f32.mrb[0].mxu0
        %v10274 = vadd.f32 %v10113, %v10273
        %v10275 = vpop.f32.mrb[0].mxu0
        %v10276 = vpop.f32.mrb[0].mxu0
        %v10277 = vadd.f32 %v10116, %v10276
        %v10278 = vpop.f32.mrb[0].mxu0
        %10279 = vmatprep.mubr.bf16.mxu0 0
        %10280 = vmatmul.mubr.bf16.gmra.mrb[0].mxu0 %v10034
        %v10281 = vpop.f32.mrb[0].mxu0
        %v10282 = vadd.f32 %v10121, %v10281
        %v10283 = vpop.f32.mrb[0].mxu0
        %v10284 = vpop.f32.mrb[0].mxu0
        %v10285 = vadd.f32 %v10124, %v10284
        %v10286 = vpop.f32.mrb[0].mxu0
        %10287 = vmatprep.mubr.bf16.mxu0 0
        %10288 = vmatmul.mubr.bf16.gmra.mrb[0].mxu0 %v10037
        %v10289 = vpop.f32.mrb[0].mxu0
        %v10290 = vadd.f32 %v10129, %v10289
        %v10291 = vpop.f32.mrb[0].mxu0
        %v10292 = vpop.f32.mrb[0].mxu0
        %v10293 = vadd.f32 %v10132, %v10292
        %v10294 = vpop.f32.mrb[0].mxu0
        %10295 = vmatprep.mubr.bf16.mxu0 0
        %10296 = vmatmul.mubr.bf16.gmra.mrb[0].mxu0 %v10040
        %v10297 = vpop.f32.mrb[0].mxu0
        %v10298 = vadd.f32 %v10137, %v10297
        %v10299 = vpop.f32.mrb[0].mxu0
        %v10300 = vpop.f32.mrb[0].mxu0
        %v10301 = vadd.f32 %v10140, %v10300
        %v10302 = vpop.f32.mrb[0].mxu0
        %10303 = vmatprep.mubr.bf16.mxu0 0
        %10304 = vmatmul.mubr.bf16.gmra.mrb[0].mxu0 %v10043
        %v10305 = vpop.f32.mrb[0].mxu0
        %v10306 = vadd.f32 %v10145, %v10305
        %v10307 = vpop.f32.mrb[0].mxu0
        %v10308 = vpop.f32.mrb[0].mxu0
        %v10309 = vadd.f32 %v10148, %v10308
        %v10310 = vpop.f32.mrb[0].mxu0
        %10311 = vmatprep.mubr.bf16.mxu0 0
        %10312 = vmatmul.mubr.bf16.gmra.mrb[0].mxu0 %v10046
        %v10313 = vpop.f32.mrb[0].mxu0
        %v10314 = vadd.f32 %v10153, %v10313
        %v10315 = vpop.f32.mrb[0].mxu0
        %v10316 = vpop.f32.mrb[0].mxu0
        %v10317 = vadd.f32 %v10156, %v10316
        %v10318 = vpop.f32.mrb[0].mxu0
        %10319 = vmatprep.mubr.bf16.mxu0 0
        %10320 = vmatmul.mubr.bf16.gmra.mrb[0].mxu0 %v10049
        %v10321 = vpop.f32.mrb[0].mxu0
        %v10322 = vadd.f32 %v10161, %v10321
        %v10323 = vpop.f32.mrb[0].mxu0
        %v10324 = vpop.f32.mrb[0].mxu0
        %v10325 = vadd.f32 %v10164, %v10324
        %v10326 = vpop.f32.mrb[0].mxu0
        %10327 = vmatprep.mubr.bf16.mxu0 0
        %10328 = vmatmul.mubr.bf16.gmra.mrb[0].mxu0 %v10052
        %v10329 = vpop.f32.mrb[0].mxu0
        %v10330 = vadd.f32 %v10169, %v10329
        %v10331 = vpop.f32.mrb[0].mxu0
        %v10332 = vpop.f32.mrb[0].mxu0
        %v10333 = vadd.f32 %v10172, %v10332
        %v10334 = vpop.f32.mrb[0].mxu0
        %10335 = vmatprep.mubr.bf16.mxu0 0
        %10336 = vmatmul.mubr.bf16.gmra.mrb[0].mxu0 %v10055
        %v10337 = vpop.f32.mrb[0].mxu0
        %v10338 = vadd.f32 %v10177, %v10337
        %v10339 = vpop.f32.mrb[0].mxu0
        %v10340 = vpop.f32.mrb[0].mxu0
        %v10341 = vadd.f32 %v10180, %v10340
        %v10342 = vpop.f32.mrb[0].mxu0
        %10343 = vmatprep.mubr.bf16.mxu0 0
        %10344 = vmatmul.mubr.bf16.gmra.mrb[0].mxu0 %v10058
        %v10345 = vpop.f32.mrb[0].mxu0
        %v10346 = vadd.f32 %v10185, %v10345
        %v10347 = vpop.f32.mrb[0].mxu0
        %v10348 = vpop.f32.mrb[0].mxu0
        %v10349 = vadd.f32 %v10188, %v10348
        %v10350 = vpop.f32.mrb[0].mxu0
        %10351 = vmatprep.mubr.bf16.mxu0 0
        %10352 = vmatmul.mubr.bf16.gmra.mrb[0].mxu0 %v10061
        %v10353 = vpop.f32.mrb[0].mxu0
        %v10354 = vadd.f32 %v10193, %v10353
        %v10355 = vpop.f32.mrb[0].mxu0
        %v10356 = vpop.f32.mrb[0].mxu0
        %v10357 = vadd.f32 %v10196, %v10356
        %v10358 = vpop.f32.mrb[0].mxu0
        %10359 = vmatprep.mubr.bf16.mxu0 0
        %10360 = vmatmul.mubr.bf16.gmra.mrb[0].mxu0 %v10064
        %v10361 = vpop.f32.mrb[0].mxu0
        %v10362 = vadd.f32 %v10201, %v10361
        %v10363 = vpop.f32.mrb[0].mxu0
        %v10364 = vpop.f32.mrb[0].mxu0
        %v10365 = vadd.f32 %v10204, %v10364
        %v10366 = vpop.f32.mrb[0].mxu0
        %10367 = vmatprep.mubr.bf16.mxu0 0
        %10368 = vmatmul.mubr.bf16.gmra.mrb[0].mxu0 %v10067
        %v10369 = vpop.f32.mrb[0].mxu0
        %v10370 = vadd.f32 %v10209, %v10369
        %v10371 = vpop.f32.mrb[0].mxu0
        %v10372 = vpop.f32.mrb[0].mxu0
        %v10373 = vadd.f32 %v10212, %v10372
        %v10374 = vpop.f32.mrb[0].mxu0
        %10375 = vmatprep.mubr.bf16.mxu0 0
        %10376 = vmatmul.mubr.bf16.gmra.mrb[0].mxu0 %v10070
        %v10377 = vpop.f32.mrb[0].mxu0
        %v10378 = vadd.f32 %v10217, %v10377
        %v10379 = vpop.f32.mrb[0].mxu0
        %v10380 = vpop.f32.mrb[0].mxu0
        %v10381 = vadd.f32 %v10220, %v10380
        %v10382 = vpop.f32.mrb[0].mxu0
        %10383 = vmatprep.mubr.bf16.mxu0 0
        %10384 = vmatmul.mubr.bf16.gmra.mrb[0].mxu0 %v10073
        %v10385 = vpop.f32.mrb[0].mxu0
        %v10386 = vadd.f32 %v10225, %v10385
        %v10387 = vpop.f32.mrb[0].mxu0
        %v10388 = vpop.f32.mrb[0].mxu0
        %v10389 = vadd.f32 %v10228, %v10388
        %v10390 = vpop.f32.mrb[0].mxu0
        %10391 = vmatprep.mubr.bf16.mxu0 0
        %10392 = vmatmul.mubr.bf16.gmra.mrb[0].mxu0 %v10076
        %v10393 = vpop.f32.mrb[0].mxu0
        %v10394 = vadd.f32 %v10233, %v10393
        %v10395 = vpop.f32.mrb[0].mxu0
        %v10396 = vpop.f32.mrb[0].mxu0
        %v10397 = vadd.f32 %v10236, %v10396
        %v10398 = vpop.f32.mrb[0].mxu0
        %10399 = vdwg.mxu0
        %v10400 = vadd.f32 %v10274, %v442
        %v10401 = vadd.f32 %v10277, %v443
        %v10402 = vadd.f32 %v10282, %v444
        %v10403 = vadd.f32 %v10285, %v445
        %v10404 = vadd.f32 %v10290, %v446
        %v10405 = vadd.f32 %v10293, %v447
        %v10406 = vadd.f32 %v10298, %v448
        %v10407 = vadd.f32 %v10301, %v449
        %v10408 = vadd.f32 %v10306, %v450
        %v10409 = vadd.f32 %v10309, %v451
        %v10410 = vadd.f32 %v10314, %v452
        %v10411 = vadd.f32 %v10317, %v453
        %v10412 = vadd.f32 %v10322, %v454
        %v10413 = vadd.f32 %v10325, %v455
        %v10414 = vadd.f32 %v10330, %v456
        %v10415 = vadd.f32 %v10333, %v457
        %v10416 = vadd.f32 %v10338, %v458
        %v10417 = vadd.f32 %v10341, %v459
        %v10418 = vadd.f32 %v10346, %v460
        %v10419 = vadd.f32 %v10349, %v461
        %v10420 = vadd.f32 %v10354, %v462
        %v10421 = vadd.f32 %v10357, %v463
        %v10422 = vadd.f32 %v10362, %v464
        %v10423 = vadd.f32 %v10365, %v465
        %v10424 = vadd.f32 %v10370, %v466
        %v10425 = vadd.f32 %v10373, %v467
        %v10426 = vadd.f32 %v10378, %v468
        %v10427 = vadd.f32 %v10381, %v469
        %v10428 = vadd.f32 %v10386, %v470
        %v10429 = vadd.f32 %v10389, %v471
        %v10430 = vadd.f32 %v10394, %v472
        %v10431 = vadd.f32 %v10397, %v473
        %10432 = vst.msk [vmem:[%s379] sm:$0xff] %vm386, %v10400
        %10433 = vst.msk [vmem:[%s379 + $0x8] sm:$0xff] %vm386, %v10401
        %10434 = vst.msk [vmem:[%s379 + $0x10] sm:$0xff] %vm386, %v10402
        %10435 = vst.msk [vmem:[%s379 + $0x18] sm:$0xff] %vm386, %v10403
        %10436 = vst.msk [vmem:[%s379 + $0x20] sm:$0xff] %vm386, %v10404
        %10437 = vst.msk [vmem:[%s379 + $0x28] sm:$0xff] %vm386, %v10405
        %10438 = vst.msk [vmem:[%s379 + $0x30] sm:$0xff] %vm386, %v10406
        %10439 = vst.msk [vmem:[%s379 + $0x38] sm:$0xff] %vm386, %v10407
        %10440 = vst.msk [vmem:[%s379 + $0x40] sm:$0xff] %vm386, %v10408
        %10441 = vst.msk [vmem:[%s379 + $0x48] sm:$0xff] %vm386, %v10409
        %10442 = vst.msk [vmem:[%s379 + $0x50] sm:$0xff] %vm386, %v10410
        %10443 = vst.msk [vmem:[%s379 + $0x58] sm:$0xff] %vm386, %v10411
        %10444 = vst.msk [vmem:[%s379 + $0x60] sm:$0xff] %vm386, %v10412
        %10445 = vst.msk [vmem:[%s379 + $0x68] sm:$0xff] %vm386, %v10413
        %10446 = vst.msk [vmem:[%s379 + $0x70] sm:$0xff] %vm386, %v10414
        %10447 = vst.msk [vmem:[%s379 + $0x78] sm:$0xff] %vm386, %v10415
        %10448 = vst.msk [vmem:[%s379 + $0x80] sm:$0xff] %vm386, %v10416
        %10449 = vst.msk [vmem:[%s379 + $0x88] sm:$0xff] %vm386, %v10417
        %10450 = vst.msk [vmem:[%s379 + $0x90] sm:$0xff] %vm386, %v10418
        %10451 = vst.msk [vmem:[%s379 + $0x98] sm:$0xff] %vm386, %v10419
        %10452 = vst.msk [vmem:[%s379 + $0xa0] sm:$0xff] %vm386, %v10420
        %10453 = vst.msk [vmem:[%s379 + $0xa8] sm:$0xff] %vm386, %v10421
        %10454 = vst.msk [vmem:[%s379 + $0xb0] sm:$0xff] %vm386, %v10422
        %10455 = vst.msk [vmem:[%s379 + $0xb8] sm:$0xff] %vm386, %v10423
        %10456 = vst.msk [vmem:[%s379 + $0xc0] sm:$0xff] %vm386, %v10424
        %10457 = vst.msk [vmem:[%s379 + $0xc8] sm:$0xff] %vm386, %v10425
        %10458 = vst.msk [vmem:[%s379 + $0xd0] sm:$0xff] %vm386, %v10426
        %10459 = vst.msk [vmem:[%s379 + $0xd8] sm:$0xff] %vm386, %v10427
        %10460 = vst.msk [vmem:[%s379 + $0xe0] sm:$0xff] %vm386, %v10428
        %10461 = vst.msk [vmem:[%s379 + $0xe8] sm:$0xff] %vm386, %v10429
        %10462 = vst.msk [vmem:[%s379 + $0xf0] sm:$0xff] %vm386, %v10430
        %10463 = vst.msk [vmem:[%s379 + $0xf8] sm:$0xff] %vm386, %v10431
        %s10464 = sand.u32 %s269, 1
        %s10465 = scalar_lea.sflag [#allocation4], %s10464
        %s10466 = sand.u32 %s269, 1
        %s10467 = smul.addr %s10466, 256
        %s10468 = scalar_lea.vmem [#allocation3], %s10467
        // Predicated region
        $region65: #{res_group_forward.1} parent=63 // pred_check
          %p10469 = pneg %p279
        $region66: #{res_group_forward.1} parent=63 // pred_check_branch
          %10471 = sbr.rel (%p10469) target = $region68
        $region67: #{res_group_forward.1} parent=63 // pred_region
          %s10473 = ssub.s32 4096, 4096
          %10474 = vsyncadd %s10465, %s10473
          %s10475 = smul.addr %s25, 32
          %s10476 = smul.addr %s10475, 128
          %s10477 = scalar_lea.hbm %s11, %s10476
          %s10478 = sshll.u32 %s10468, 4
          %s10479 = int_to_ptr.vmem [resolvable:$true] %s10478
          %10484 = dma.vmem_to_hbm [thread:$0]  %s10479, 4096, %s10477, %s10465, 128, 128, 8
        $region68: #{res_group_forward.1} parent=63 // pred_fallthru
          _
      $region64: #{res_group_forward.1} parent=5 // pred_fallthru
        _
      %p10485 = scmp.le.s32.totalorder 2, %s20
      // Predicated region
      $region69: #{res_group_forward.1} parent=5 // pred_check
        %p10486 = pneg %p10485
      $region70: #{res_group_forward.1} parent=5 // pred_check_branch
        %10488 = sbr.rel (%p10486) target = $region72
      $region71: #{res_group_forward.1} parent=5 // pred_region
        %s10489 = ssub.s32 %s20, 2
        // Predicated region
        $region73: #{res_group_forward.1} parent=71 // pred_check
          %p10490 = pneg %p285
        $region74: #{res_group_forward.1} parent=71 // pred_check_branch
          %10492 = sbr.rel (%p10490) target = $region76
        $region75: #{res_group_forward.1} parent=71 // pred_region
          %s10493 = sand.u32 %s270, 1
          %s10494 = scalar_lea.sflag [#allocation4], %s10493
          %s10495 = sand.u32 %s270, 1
          %s10496 = smul.addr %s10495, 256
          %s10497 = scalar_lea.vmem [#allocation3], %s10496
          %10498 = dma.done %s10494, 4096
        $region76: #{res_group_forward.1} parent=71 // pred_fallthru
          _
      $region72: #{res_group_forward.1} parent=5 // pred_fallthru
        _
    $region6: #{res_group_forward.1} parent=1 // loop_footer
      %s24 = sadd.s32 1, %s20
    $region7: #{res_group_forward.1} parent=1 // loop_footer_branch
      %19 = sbr.rel target = $region3
    $region8: #{res_group_forward.1} parent=1 // loop_exit
      _
    %10499 = vsyncpa [#allocation4], 1
    %s10500 = scalar_lea.sflag [#allocation4], 1
    %10501 = vsyncpa %s10500, 1

</llo_original>
